<compile_context>
chip_gen: v5e
topology: v5e:2x2
jax: 0.10.0
libtpu: 0.0.40
codegen_flags: <defaults>
</compile_context>

<pallas_src>
import functools

import jax
import jax.numpy as jnp
from jax.experimental import pallas as pl
from jax.experimental.pallas import tpu as pltpu

C1 = 16       # conv1 out channels
C2 = 32       # conv2 out channels
K1 = 8        # conv1 kernel / stride
F_CNN = 80    # FeatureCNN output features
L_OUT = 49    # conv spatial length (392 / 8)


# ----------------------------------------------------------------------------
# Fused kernel: FeatureCNN + GATConv(aggr='max') + ReLU, single invocation.
# ----------------------------------------------------------------------------
def cnn_gnn_kernel(p1_ref, w1_ref, w2_ref, wfc_ref, wg_ref, vec_ref, adj_ref,
                   o_ref, a_scr, fc_scr, *, n_nodes, t_steps, l_out, neg_slope):
    B = n_nodes * t_steps            # samples, time-major: b = t*N + n
    R = l_out * B                    # conv rows, l-major:  row = l*B + b
    hidden = wg_ref.shape[1]
    f_fc = wfc_ref.shape[1]

    # packed tiny vectors: rows = [b1, b2, bfc, bg, a_src, a_dst], zero-padded to 128 lanes
    b1 = vec_ref[0:1, 0:C1]
    b2 = vec_ref[1:2, 0:C2]
    bfc = vec_ref[2:3, 0:f_fc]
    bg = vec_ref[3:4, 0:hidden]
    a_src = vec_ref[4:5, 0:hidden]
    a_dst = vec_ref[5:6, 0:hidden]

    # ---- conv1 + conv2 tap-partials: chunked rows, two wide MXU dots per chunk ----------
    # a_scr rows [B, B+R) hold A = relu(p1@w1+b1) @ [w2_k0 | w2_k1 | w2_k2]  (R, 96);
    # rows [0,B) / [B+R, 2B+R) are zero pads for the l = -1 / l = L taps.
    a_scr[0:B, :] = jnp.zeros((B, 3 * C2), jnp.float32)
    a_scr[B + R:B + R + B, :] = jnp.zeros((B, 3 * C2), jnp.float32)

    CH = 8 * B                                                   # 320 rows per chunk
    r0 = 0
    while r0 < R:                                                # static (unrolled) loop
        ch = min(CH, R - r0)
        p1c = p1_ref[r0:r0 + ch, :].astype(jnp.bfloat16)
        h1c = jnp.dot(p1c, w1_ref[...], preferred_element_type=jnp.float32)
        h1c = jnp.maximum(h1c + b1, 0.0).astype(jnp.bfloat16)    # (ch, 16)
        a_scr[B + r0:B + r0 + ch, :] = jnp.dot(h1c, w2_ref[...],
                                               preferred_element_type=jnp.float32)
        r0 += ch

    # ---- conv2 combine (+-B row shift) + bias + ReLU, written straight into FC layout ---
    for l in range(l_out):                                       # static, 49 independent iters
        s = l * B
        blk = (a_scr[s:s + B, 0:C2]
               + a_scr[s + B:s + 2 * B, C2:2 * C2]
               + a_scr[s + 2 * B:s + 3 * B, 2 * C2:3 * C2])      # (B, 32)
        fc_scr[:, l * C2:(l + 1) * C2] = jnp.maximum(blk + b2, 0.0)

    # ---- FC(49*32 -> 80): ONE (B,1568)@(1568,80) matmul + ReLU ---------------------------
    feat = jnp.dot(fc_scr[...].astype(jnp.bfloat16), wfc_ref[...],
                   preferred_element_type=jnp.float32)
    feat = jnp.maximum(feat + bfc, 0.0)                          # (B, 80)

    # ---- GATConv(80 -> hidden, heads=1, dropout=0, aggr='max') + ReLU, all T batched -----
    h_all = jnp.dot(feat.astype(jnp.bfloat16), wg_ref[...],
                    preferred_element_type=jnp.float32)          # (B, hidden) f32

    e_dst = jnp.sum(h_all * a_dst, axis=1, keepdims=True)        # (B, 1)  VPU lane-reduce
    # source logits: one tiny M=1 MXU dot -> (1, B) is already lane-major (no relayout needed)
    e_src = jax.lax.dot_general(a_src, h_all, (((1,), (1,)), ((), ())),
                                preferred_element_type=jnp.float32)          # (1, B)
    src_rows = jnp.concatenate(
        [jnp.broadcast_to(e_src[:, t * n_nodes:(t + 1) * n_nodes], (n_nodes, n_nodes))
         for t in range(t_steps)], axis=0)                       # (B, N) per-block row bcast

    adj = adj_ref[...]                                           # (N, N)
    neg = jnp.where(adj > 0, 0.0, -1e30)                         # additive mask (f32)
    neg_t = jnp.concatenate([neg] * t_steps, axis=0)             # (B, N)

    logits = e_dst + src_rows                                    # (B, N)
    logits = jnp.where(logits > 0, logits, neg_slope * logits)   # LeakyReLU
    masked = logits + neg_t
    m = jnp.max(masked, axis=1, keepdims=True)                   # (B, 1)
    p = jnp.exp(masked - m)                                      # disallowed edges -> 0
    denom = jnp.maximum(jnp.sum(p, axis=1, keepdims=True), 1e-20)
    alpha = p * pl.reciprocal(denom, approx=True)                # softmax over incoming edges

    # aggr='max': loop over source index j only (N iters), batched over all T blocks.
    h3 = h_all.reshape(t_steps, n_nodes, hidden)                 # layout-friendly split
    out = jnp.full((B, hidden), -1e30, jnp.float32)
    for j in range(n_nodes):                                     # static, N=8
        hj = jnp.broadcast_to(h3[:, j:j + 1, :], (t_steps, n_nodes, hidden))
        hj = hj.reshape(B, hidden)                               # row t*N+j replicated per block
        msg = alpha[:, j:j + 1] * hj + neg_t[:, j:j + 1]
        out = jnp.maximum(out, msg)

    o_ref[...] = jnp.maximum(out + bg, 0.0)                      # GAT bias + F.relu


# ----------------------------------------------------------------------------
# Wrapper
# ----------------------------------------------------------------------------
def _full_spec(shape):
    return pl.BlockSpec(shape, lambda *_: (0,) * len(shape))


def cnn_gnn_fused(p1, w1, w2w, wfc, wg, vec, adj, *, n_nodes, t_steps, l_out=L_OUT):
    B = n_nodes * t_steps
    R = l_out * B
    hidden = wg.shape[1]

    kern = functools.partial(cnn_gnn_kernel, n_nodes=n_nodes, t_steps=t_steps,
                             l_out=l_out, neg_slope=0.2)
    args = (p1, w1, w2w, wfc, wg, vec, adj)

    return pl.pallas_call(
        kern,
        out_shape=jax.ShapeDtypeStruct((B, hidden), jnp.float32),
        grid=(1,),
        in_specs=[_full_spec(a.shape) for a in args],
        out_specs=_full_spec((B, hidden)),
        scratch_shapes=[
            pltpu.VMEM((R + 2 * B, 3 * C2), jnp.float32),   # conv2 tap partials, +-B zero pad
            pltpu.VMEM((B, l_out * C2), jnp.float32),       # sample-major conv2 out for FC matmul
        ],
        compiler_params=pltpu.CompilerParams(dimension_semantics=("arbitrary",)),
    )(*args)


# ----------------------------------------------------------------------------
# Glue (input permute, adjacency, params)
# ----------------------------------------------------------------------------
def build_adjacency(edge_index, n_nodes):
    """adj[i, j] = 1 iff edge j -> i exists; always includes self-loops (PyG default)."""
    src, dst = edge_index[0], edge_index[1]
    adj = jnp.zeros((n_nodes, n_nodes), jnp.float32).at[dst, src].set(1.0)
    return jnp.maximum(adj, jnp.eye(n_nodes, dtype=jnp.float32))


def init_params(key, hidden_size=40):
    ks = jax.random.split(key, 10)
    s = 0.1
    return {
        # FeatureCNN (synthetic; see header)
        "w1": s * jax.random.normal(ks[0], (K1, C1), jnp.float32),        # Conv1d(1,16,k=8,s=8)
        "b1": s * jax.random.normal(ks[1], (1, C1), jnp.float32),
        "w2": s * jax.random.normal(ks[2], (3, C1, C2), jnp.float32),     # Conv1d(16,32,k=3,p=1)
        "b2": s * jax.random.normal(ks[3], (1, C2), jnp.float32),
        "wfc": s * jax.random.normal(ks[4], (L_OUT * C2, F_CNN), jnp.float32),  # rows (l, c) order
        "bfc": s * jax.random.normal(ks[5], (1, F_CNN), jnp.float32),
        # conv1 = GATConv(80, hidden, heads=1, dropout=0, aggr='max')
        "wg": s * jax.random.normal(ks[6], (F_CNN, hidden_size), jnp.float32),
        "a_src": s * jax.random.normal(ks[7], (1, hidden_size), jnp.float32),
        "a_dst": s * jax.random.normal(ks[8], (1, hidden_size), jnp.float32),
        "bg": s * jax.random.normal(ks[9], (1, hidden_size), jnp.float32),
    }


def cnn_gnn_forward(params, x, adj):
    """x: (N_nodes, T, 395) f32; adj: (N, N) dense mask built from edge_index."""
    n_nodes, t_steps, _ = x.shape
    hidden = params["wg"].shape[1]

    # conv1 im2col (k=8, s=8, cin=1) is a pure reshape; rows ordered l-major with
    # time-major samples so every in-kernel stage reads contiguous aligned blocks.
    p1 = (x[:, :, 3:]
          .reshape(n_nodes, t_steps, L_OUT, K1)
          .transpose(2, 1, 0, 3)
          .reshape(L_OUT * t_steps * n_nodes, K1))

    # one-time tiny layout / dtype prep for MXU operands (bf16 weights, f32 accumulation)
    w1 = params["w1"].astype(jnp.bfloat16)                                         # (8, 16)
    w2w = params["w2"].transpose(1, 0, 2).reshape(C1, 3 * C2).astype(jnp.bfloat16)  # (16, 96)
    wfc = params["wfc"].astype(jnp.bfloat16)                                       # (1568, 80)
    wg = params["wg"].astype(jnp.bfloat16)                                         # (80, hidden)

    vec = jnp.zeros((6, 128), jnp.float32)
    vec = vec.at[0, :C1].set(params["b1"][0])
    vec = vec.at[1, :C2].set(params["b2"][0])
    vec = vec.at[2, :F_CNN].set(params["bfc"][0])
    vec = vec.at[3, :hidden].set(params["bg"][0])
    vec = vec.at[4, :hidden].set(params["a_src"][0])
    vec = vec.at[5, :hidden].set(params["a_dst"][0])

    out = cnn_gnn_fused(p1, w1, w2w, wfc, wg, vec, adj,
                        n_nodes=n_nodes, t_steps=t_steps)                          # (T*N, hidden)
    # TODO(synk): extra GATConv layers (num_layers > 1) are not fused; default config has 1.
    return out.reshape(t_steps, n_nodes, hidden)                                   # (T, N, hidden)


# ----------------------------------------------------------------------------
if __name__ == "__main__":
    N_NODES, T_STEPS, F_RAW = 8, 5, 395
    HIDDEN = 40

    key = jax.random.PRNGKey(0)
    kx, kp = jax.random.split(key)
    x = jax.random.normal(kx, (N_NODES, T_STEPS, F_RAW), jnp.float32)

    # small deterministic bidirectional ring graph
    src = jnp.arange(N_NODES, dtype=jnp.int32)
    dst = (src + 1) % N_NODES
    edge_index = jnp.stack([jnp.concatenate([src, dst]), jnp.concatenate([dst, src])])
    adj = build_adjacency(edge_index, N_NODES)

    params = init_params(kp, hidden_size=HIDDEN)

    fwd = jax.jit(cnn_gnn_forward)
    out = fwd(params, x, adj)
    jax.block_until_ready(out)

    assert out.shape == (T_STEPS, N_NODES, HIDDEN), out.shape
    assert jnp.all(jnp.isfinite(out))
    print("KERNEL_OK")
</pallas_src>

<mosaic_0001>
module attributes {stable_mosaic.version = 11 : i64} {
  func.func @cnn_gnn_kernel(%arg0: i32, %arg1: memref<1960x8xf32, #tpu.memory_space<vmem>>, %arg2: memref<8x16xbf16, #tpu.memory_space<vmem>>, %arg3: memref<16x96xbf16, #tpu.memory_space<vmem>>, %arg4: memref<1568x80xbf16, #tpu.memory_space<vmem>>, %arg5: memref<80x40xbf16, #tpu.memory_space<vmem>>, %arg6: memref<6x128xf32, #tpu.memory_space<vmem>>, %arg7: memref<8x8xf32, #tpu.memory_space<vmem>>, %arg8: memref<40x40xf32, #tpu.memory_space<vmem>>, %arg9: memref<2040x96xf32, #tpu.memory_space<vmem>>, %arg10: memref<40x1568xf32, #tpu.memory_space<vmem>>) attributes {dimension_semantics = [#tpu.dimension_semantics<arbitrary>], iteration_bounds = array<i64: 1>, scalar_prefetch = 0 : i64, scratch_operands = 2 : i64, tpu.core_type = #tpu.core_type<tc>, window_params = [{pipeline_mode = #tpu.pipeline_mode<synchronous>, transform_indices = @transform_0, window_bounds = array<i64: 1960, 8>}, {pipeline_mode = #tpu.pipeline_mode<synchronous>, transform_indices = @transform_1, window_bounds = array<i64: 8, 16>}, {pipeline_mode = #tpu.pipeline_mode<synchronous>, transform_indices = @transform_2, window_bounds = array<i64: 16, 96>}, {pipeline_mode = #tpu.pipeline_mode<synchronous>, transform_indices = @transform_3, window_bounds = array<i64: 1568, 80>}, {pipeline_mode = #tpu.pipeline_mode<synchronous>, transform_indices = @transform_4, window_bounds = array<i64: 80, 40>}, {pipeline_mode = #tpu.pipeline_mode<synchronous>, transform_indices = @transform_5, window_bounds = array<i64: 6, 128>}, {pipeline_mode = #tpu.pipeline_mode<synchronous>, transform_indices = @transform_6, window_bounds = array<i64: 8, 8>}, {pipeline_mode = #tpu.pipeline_mode<synchronous>, transform_indices = @transform_7, window_bounds = array<i64: 40, 40>}]} {
    %c0 = arith.constant 0 : index
    %c0_0 = arith.constant 0 : index
    %0 = vector.load %arg6[%c0, %c0_0] : memref<6x128xf32, #tpu.memory_space<vmem>>, vector<1x16xf32>
    %c1 = arith.constant 1 : index
    %c0_1 = arith.constant 0 : index
    %1 = vector.load %arg6[%c1, %c0_1] : memref<6x128xf32, #tpu.memory_space<vmem>>, vector<1x32xf32>
    %c2 = arith.constant 2 : index
    %c0_2 = arith.constant 0 : index
    %2 = vector.load %arg6[%c2, %c0_2] : memref<6x128xf32, #tpu.memory_space<vmem>>, vector<1x80xf32>
    %c3 = arith.constant 3 : index
    %c0_3 = arith.constant 0 : index
    %3 = vector.load %arg6[%c3, %c0_3] : memref<6x128xf32, #tpu.memory_space<vmem>>, vector<1x40xf32>
    %c4 = arith.constant 4 : index
    %c0_4 = arith.constant 0 : index
    %4 = vector.load %arg6[%c4, %c0_4] : memref<6x128xf32, #tpu.memory_space<vmem>>, vector<1x40xf32>
    %c5 = arith.constant 5 : index
    %c0_5 = arith.constant 0 : index
    %5 = vector.load %arg6[%c5, %c0_5] : memref<6x128xf32, #tpu.memory_space<vmem>>, vector<1x40xf32>
    %cst = arith.constant 0.000000e+00 : f32
    %6 = vector.broadcast %cst : f32 to vector<40x96xf32>
    %c0_6 = arith.constant 0 : index
    %c0_7 = arith.constant 0 : index
    %7 = vector.load %arg9[%c0_6, %c0_7] : memref<2040x96xf32, #tpu.memory_space<vmem>>, vector<40x96xf32>
    tpu.vector_store %arg9[%c0_6, %c0_7], %6 {strides = array<i32>} : memref<2040x96xf32, #tpu.memory_space<vmem>>, vector<40x96xf32>,
    %cst_8 = arith.constant 0.000000e+00 : f32
    %8 = vector.broadcast %cst_8 : f32 to vector<40x96xf32>
    %c2000 = arith.constant 2000 : index
    %c0_9 = arith.constant 0 : index
    %9 = vector.load %arg9[%c2000, %c0_9] : memref<2040x96xf32, #tpu.memory_space<vmem>>, vector<40x96xf32>
    tpu.vector_store %arg9[%c2000, %c0_9], %8 {strides = array<i32>} : memref<2040x96xf32, #tpu.memory_space<vmem>>, vector<40x96xf32>,
    %c0_10 = arith.constant 0 : index
    %c0_11 = arith.constant 0 : index
    %10 = vector.load %arg1[%c0_10, %c0_11] : memref<1960x8xf32, #tpu.memory_space<vmem>>, vector<320x8xf32>
    %11 = arith.truncf %10 : vector<320x8xf32> to vector<320x8xbf16>
    %c0_12 = arith.constant 0 : index
    %c0_13 = arith.constant 0 : index
    %12 = vector.load %arg2[%c0_12, %c0_13] : memref<8x16xbf16, #tpu.memory_space<vmem>>, vector<8x16xbf16>
    %cst_14 = arith.constant dense<0.000000e+00> : vector<320x16xf32>
    %13 = tpu.matmul %11, %12, %cst_14 {dimension_numbers = #tpu.dot_dimension_numbers<[1], [0], [0], [1], [0, 0, 1, 1], [], []>} : vector<320x8xbf16>, vector<8x16xbf16>, vector<320x16xf32> -> vector<320x16xf32>
    %14 = vector.broadcast %0 : vector<1x16xf32> to vector<320x16xf32>
    %15 = arith.addf %13, %14 : vector<320x16xf32>
    %cst_15 = arith.constant 0.000000e+00 : f32
    %16 = vector.broadcast %cst_15 : f32 to vector<320x16xf32>
    %17 = arith.maximumf %15, %16 : vector<320x16xf32>
    %18 = arith.truncf %17 : vector<320x16xf32> to vector<320x16xbf16>
    %c0_16 = arith.constant 0 : index
    %c0_17 = arith.constant 0 : index
    %19 = vector.load %arg3[%c0_16, %c0_17] : memref<16x96xbf16, #tpu.memory_space<vmem>>, vector<16x96xbf16>
    %cst_18 = arith.constant dense<0.000000e+00> : vector<320x96xf32>
    %20 = tpu.matmul %18, %19, %cst_18 {dimension_numbers = #tpu.dot_dimension_numbers<[1], [0], [0], [1], [0, 0, 1, 1], [], []>} : vector<320x16xbf16>, vector<16x96xbf16>, vector<320x96xf32> -> vector<320x96xf32>
    %c40 = arith.constant 40 : index
    %c0_19 = arith.constant 0 : index
    %21 = vector.load %arg9[%c40, %c0_19] : memref<2040x96xf32, #tpu.memory_space<vmem>>, vector<320x96xf32>
    tpu.vector_store %arg9[%c40, %c0_19], %20 {strides = array<i32>} : memref<2040x96xf32, #tpu.memory_space<vmem>>, vector<320x96xf32>,
    %c320 = arith.constant 320 : index
    %c0_20 = arith.constant 0 : index
    %22 = vector.load %arg1[%c320, %c0_20] : memref<1960x8xf32, #tpu.memory_space<vmem>>, vector<320x8xf32>
    %23 = arith.truncf %22 : vector<320x8xf32> to vector<320x8xbf16>
    %c0_21 = arith.constant 0 : index
    %c0_22 = arith.constant 0 : index
    %24 = vector.load %arg2[%c0_21, %c0_22] : memref<8x16xbf16, #tpu.memory_space<vmem>>, vector<8x16xbf16>
    %cst_23 = arith.constant dense<0.000000e+00> : vector<320x16xf32>
    %25 = tpu.matmul %23, %24, %cst_23 {dimension_numbers = #tpu.dot_dimension_numbers<[1], [0], [0], [1], [0, 0, 1, 1], [], []>} : vector<320x8xbf16>, vector<8x16xbf16>, vector<320x16xf32> -> vector<320x16xf32>
    %26 = vector.broadcast %0 : vector<1x16xf32> to vector<320x16xf32>
    %27 = arith.addf %25, %26 : vector<320x16xf32>
    %cst_24 = arith.constant 0.000000e+00 : f32
    %28 = vector.broadcast %cst_24 : f32 to vector<320x16xf32>
    %29 = arith.maximumf %27, %28 : vector<320x16xf32>
    %30 = arith.truncf %29 : vector<320x16xf32> to vector<320x16xbf16>
    %c0_25 = arith.constant 0 : index
    %c0_26 = arith.constant 0 : index
    %31 = vector.load %arg3[%c0_25, %c0_26] : memref<16x96xbf16, #tpu.memory_space<vmem>>, vector<16x96xbf16>
    %cst_27 = arith.constant dense<0.000000e+00> : vector<320x96xf32>
    %32 = tpu.matmul %30, %31, %cst_27 {dimension_numbers = #tpu.dot_dimension_numbers<[1], [0], [0], [1], [0, 0, 1, 1], [], []>} : vector<320x16xbf16>, vector<16x96xbf16>, vector<320x96xf32> -> vector<320x96xf32>
    %c360 = arith.constant 360 : index
    %c0_28 = arith.constant 0 : index
    %33 = vector.load %arg9[%c360, %c0_28] : memref<2040x96xf32, #tpu.memory_space<vmem>>, vector<320x96xf32>
    tpu.vector_store %arg9[%c360, %c0_28], %32 {strides = array<i32>} : memref<2040x96xf32, #tpu.memory_space<vmem>>, vector<320x96xf32>,
    %c640 = arith.constant 640 : index
    %c0_29 = arith.constant 0 : index
    %34 = vector.load %arg1[%c640, %c0_29] : memref<1960x8xf32, #tpu.memory_space<vmem>>, vector<320x8xf32>
    %35 = arith.truncf %34 : vector<320x8xf32> to vector<320x8xbf16>
    %c0_30 = arith.constant 0 : index
    %c0_31 = arith.constant 0 : index
    %36 = vector.load %arg2[%c0_30, %c0_31] : memref<8x16xbf16, #tpu.memory_space<vmem>>, vector<8x16xbf16>
    %cst_32 = arith.constant dense<0.000000e+00> : vector<320x16xf32>
    %37 = tpu.matmul %35, %36, %cst_32 {dimension_numbers = #tpu.dot_dimension_numbers<[1], [0], [0], [1], [0, 0, 1, 1], [], []>} : vector<320x8xbf16>, vector<8x16xbf16>, vector<320x16xf32> -> vector<320x16xf32>
    %38 = vector.broadcast %0 : vector<1x16xf32> to vector<320x16xf32>
    %39 = arith.addf %37, %38 : vector<320x16xf32>
    %cst_33 = arith.constant 0.000000e+00 : f32
    %40 = vector.broadcast %cst_33 : f32 to vector<320x16xf32>
    %41 = arith.maximumf %39, %40 : vector<320x16xf32>
    %42 = arith.truncf %41 : vector<320x16xf32> to vector<320x16xbf16>
    %c0_34 = arith.constant 0 : index
    %c0_35 = arith.constant 0 : index
    %43 = vector.load %arg3[%c0_34, %c0_35] : memref<16x96xbf16, #tpu.memory_space<vmem>>, vector<16x96xbf16>
    %cst_36 = arith.constant dense<0.000000e+00> : vector<320x96xf32>
    %44 = tpu.matmul %42, %43, %cst_36 {dimension_numbers = #tpu.dot_dimension_numbers<[1], [0], [0], [1], [0, 0, 1, 1], [], []>} : vector<320x16xbf16>, vector<16x96xbf16>, vector<320x96xf32> -> vector<320x96xf32>
    %c680 = arith.constant 680 : index
    %c0_37 = arith.constant 0 : index
    %45 = vector.load %arg9[%c680, %c0_37] : memref<2040x96xf32, #tpu.memory_space<vmem>>, vector<320x96xf32>
    tpu.vector_store %arg9[%c680, %c0_37], %44 {strides = array<i32>} : memref<2040x96xf32, #tpu.memory_space<vmem>>, vector<320x96xf32>,
    %c960 = arith.constant 960 : index
    %c0_38 = arith.constant 0 : index
    %46 = vector.load %arg1[%c960, %c0_38] : memref<1960x8xf32, #tpu.memory_space<vmem>>, vector<320x8xf32>
    %47 = arith.truncf %46 : vector<320x8xf32> to vector<320x8xbf16>
    %c0_39 = arith.constant 0 : index
    %c0_40 = arith.constant 0 : index
    %48 = vector.load %arg2[%c0_39, %c0_40] : memref<8x16xbf16, #tpu.memory_space<vmem>>, vector<8x16xbf16>
    %cst_41 = arith.constant dense<0.000000e+00> : vector<320x16xf32>
    %49 = tpu.matmul %47, %48, %cst_41 {dimension_numbers = #tpu.dot_dimension_numbers<[1], [0], [0], [1], [0, 0, 1, 1], [], []>} : vector<320x8xbf16>, vector<8x16xbf16>, vector<320x16xf32> -> vector<320x16xf32>
    %50 = vector.broadcast %0 : vector<1x16xf32> to vector<320x16xf32>
    %51 = arith.addf %49, %50 : vector<320x16xf32>
    %cst_42 = arith.constant 0.000000e+00 : f32
    %52 = vector.broadcast %cst_42 : f32 to vector<320x16xf32>
    %53 = arith.maximumf %51, %52 : vector<320x16xf32>
    %54 = arith.truncf %53 : vector<320x16xf32> to vector<320x16xbf16>
    %c0_43 = arith.constant 0 : index
    %c0_44 = arith.constant 0 : index
    %55 = vector.load %arg3[%c0_43, %c0_44] : memref<16x96xbf16, #tpu.memory_space<vmem>>, vector<16x96xbf16>
    %cst_45 = arith.constant dense<0.000000e+00> : vector<320x96xf32>
    %56 = tpu.matmul %54, %55, %cst_45 {dimension_numbers = #tpu.dot_dimension_numbers<[1], [0], [0], [1], [0, 0, 1, 1], [], []>} : vector<320x16xbf16>, vector<16x96xbf16>, vector<320x96xf32> -> vector<320x96xf32>
    %c1000 = arith.constant 1000 : index
    %c0_46 = arith.constant 0 : index
    %57 = vector.load %arg9[%c1000, %c0_46] : memref<2040x96xf32, #tpu.memory_space<vmem>>, vector<320x96xf32>
    tpu.vector_store %arg9[%c1000, %c0_46], %56 {strides = array<i32>} : memref<2040x96xf32, #tpu.memory_space<vmem>>, vector<320x96xf32>,
    %c1280 = arith.constant 1280 : index
    %c0_47 = arith.constant 0 : index
    %58 = vector.load %arg1[%c1280, %c0_47] : memref<1960x8xf32, #tpu.memory_space<vmem>>, vector<320x8xf32>
    %59 = arith.truncf %58 : vector<320x8xf32> to vector<320x8xbf16>
    %c0_48 = arith.constant 0 : index
    %c0_49 = arith.constant 0 : index
    %60 = vector.load %arg2[%c0_48, %c0_49] : memref<8x16xbf16, #tpu.memory_space<vmem>>, vector<8x16xbf16>
    %cst_50 = arith.constant dense<0.000000e+00> : vector<320x16xf32>
    %61 = tpu.matmul %59, %60, %cst_50 {dimension_numbers = #tpu.dot_dimension_numbers<[1], [0], [0], [1], [0, 0, 1, 1], [], []>} : vector<320x8xbf16>, vector<8x16xbf16>, vector<320x16xf32> -> vector<320x16xf32>
    %62 = vector.broadcast %0 : vector<1x16xf32> to vector<320x16xf32>
    %63 = arith.addf %61, %62 : vector<320x16xf32>
    %cst_51 = arith.constant 0.000000e+00 : f32
    %64 = vector.broadcast %cst_51 : f32 to vector<320x16xf32>
    %65 = arith.maximumf %63, %64 : vector<320x16xf32>
    %66 = arith.truncf %65 : vector<320x16xf32> to vector<320x16xbf16>
    %c0_52 = arith.constant 0 : index
    %c0_53 = arith.constant 0 : index
    %67 = vector.load %arg3[%c0_52, %c0_53] : memref<16x96xbf16, #tpu.memory_space<vmem>>, vector<16x96xbf16>
    %cst_54 = arith.constant dense<0.000000e+00> : vector<320x96xf32>
    %68 = tpu.matmul %66, %67, %cst_54 {dimension_numbers = #tpu.dot_dimension_numbers<[1], [0], [0], [1], [0, 0, 1, 1], [], []>} : vector<320x16xbf16>, vector<16x96xbf16>, vector<320x96xf32> -> vector<320x96xf32>
    %c1320 = arith.constant 1320 : index
    %c0_55 = arith.constant 0 : index
    %69 = vector.load %arg9[%c1320, %c0_55] : memref<2040x96xf32, #tpu.memory_space<vmem>>, vector<320x96xf32>
    tpu.vector_store %arg9[%c1320, %c0_55], %68 {strides = array<i32>} : memref<2040x96xf32, #tpu.memory_space<vmem>>, vector<320x96xf32>,
    %c1600 = arith.constant 1600 : index
    %c0_56 = arith.constant 0 : index
    %70 = vector.load %arg1[%c1600, %c0_56] : memref<1960x8xf32, #tpu.memory_space<vmem>>, vector<320x8xf32>
    %71 = arith.truncf %70 : vector<320x8xf32> to vector<320x8xbf16>
    %c0_57 = arith.constant 0 : index
    %c0_58 = arith.constant 0 : index
    %72 = vector.load %arg2[%c0_57, %c0_58] : memref<8x16xbf16, #tpu.memory_space<vmem>>, vector<8x16xbf16>
    %cst_59 = arith.constant dense<0.000000e+00> : vector<320x16xf32>
    %73 = tpu.matmul %71, %72, %cst_59 {dimension_numbers = #tpu.dot_dimension_numbers<[1], [0], [0], [1], [0, 0, 1, 1], [], []>} : vector<320x8xbf16>, vector<8x16xbf16>, vector<320x16xf32> -> vector<320x16xf32>
    %74 = vector.broadcast %0 : vector<1x16xf32> to vector<320x16xf32>
    %75 = arith.addf %73, %74 : vector<320x16xf32>
    %cst_60 = arith.constant 0.000000e+00 : f32
    %76 = vector.broadcast %cst_60 : f32 to vector<320x16xf32>
    %77 = arith.maximumf %75, %76 : vector<320x16xf32>
    %78 = arith.truncf %77 : vector<320x16xf32> to vector<320x16xbf16>
    %c0_61 = arith.constant 0 : index
    %c0_62 = arith.constant 0 : index
    %79 = vector.load %arg3[%c0_61, %c0_62] : memref<16x96xbf16, #tpu.memory_space<vmem>>, vector<16x96xbf16>
    %cst_63 = arith.constant dense<0.000000e+00> : vector<320x96xf32>
    %80 = tpu.matmul %78, %79, %cst_63 {dimension_numbers = #tpu.dot_dimension_numbers<[1], [0], [0], [1], [0, 0, 1, 1], [], []>} : vector<320x16xbf16>, vector<16x96xbf16>, vector<320x96xf32> -> vector<320x96xf32>
    %c1640 = arith.constant 1640 : index
    %c0_64 = arith.constant 0 : index
    %81 = vector.load %arg9[%c1640, %c0_64] : memref<2040x96xf32, #tpu.memory_space<vmem>>, vector<320x96xf32>
    tpu.vector_store %arg9[%c1640, %c0_64], %80 {strides = array<i32>} : memref<2040x96xf32, #tpu.memory_space<vmem>>, vector<320x96xf32>,
    %c1920 = arith.constant 1920 : index
    %c0_65 = arith.constant 0 : index
    %82 = vector.load %arg1[%c1920, %c0_65] : memref<1960x8xf32, #tpu.memory_space<vmem>>, vector<40x8xf32>
    %83 = arith.truncf %82 : vector<40x8xf32> to vector<40x8xbf16>
    %c0_66 = arith.constant 0 : index
    %c0_67 = arith.constant 0 : index
    %84 = vector.load %arg2[%c0_66, %c0_67] : memref<8x16xbf16, #tpu.memory_space<vmem>>, vector<8x16xbf16>
    %cst_68 = arith.constant dense<0.000000e+00> : vector<40x16xf32>
    %85 = tpu.matmul %83, %84, %cst_68 {dimension_numbers = #tpu.dot_dimension_numbers<[1], [0], [0], [1], [0, 0, 1, 1], [], []>} : vector<40x8xbf16>, vector<8x16xbf16>, vector<40x16xf32> -> vector<40x16xf32>
    %86 = vector.broadcast %0 : vector<1x16xf32> to vector<40x16xf32>
    %87 = arith.addf %85, %86 : vector<40x16xf32>
    %cst_69 = arith.constant 0.000000e+00 : f32
    %88 = vector.broadcast %cst_69 : f32 to vector<40x16xf32>
    %89 = arith.maximumf %87, %88 : vector<40x16xf32>
    %90 = arith.truncf %89 : vector<40x16xf32> to vector<40x16xbf16>
    %c0_70 = arith.constant 0 : index
    %c0_71 = arith.constant 0 : index
    %91 = vector.load %arg3[%c0_70, %c0_71] : memref<16x96xbf16, #tpu.memory_space<vmem>>, vector<16x96xbf16>
    %cst_72 = arith.constant dense<0.000000e+00> : vector<40x96xf32>
    %92 = tpu.matmul %90, %91, %cst_72 {dimension_numbers = #tpu.dot_dimension_numbers<[1], [0], [0], [1], [0, 0, 1, 1], [], []>} : vector<40x16xbf16>, vector<16x96xbf16>, vector<40x96xf32> -> vector<40x96xf32>
    %c1960 = arith.constant 1960 : index
    %c0_73 = arith.constant 0 : index
    %93 = vector.load %arg9[%c1960, %c0_73] : memref<2040x96xf32, #tpu.memory_space<vmem>>, vector<40x96xf32>
    tpu.vector_store %arg9[%c1960, %c0_73], %92 {strides = array<i32>} : memref<2040x96xf32, #tpu.memory_space<vmem>>, vector<40x96xf32>,
    %c0_74 = arith.constant 0 : index
    %c0_75 = arith.constant 0 : index
    %94 = vector.load %arg9[%c0_74, %c0_75] : memref<2040x96xf32, #tpu.memory_space<vmem>>, vector<40x32xf32>
    %c40_76 = arith.constant 40 : index
    %c32 = arith.constant 32 : index
    %95 = vector.load %arg9[%c40_76, %c32] : memref<2040x96xf32, #tpu.memory_space<vmem>>, vector<40x32xf32>
    %96 = arith.addf %94, %95 : vector<40x32xf32>
    %c80 = arith.constant 80 : index
    %c64 = arith.constant 64 : index
    %97 = vector.load %arg9[%c80, %c64] : memref<2040x96xf32, #tpu.memory_space<vmem>>, vector<40x32xf32>
    %98 = arith.addf %96, %97 : vector<40x32xf32>
    %99 = vector.broadcast %1 : vector<1x32xf32> to vector<40x32xf32>
    %100 = arith.addf %98, %99 : vector<40x32xf32>
    %cst_77 = arith.constant 0.000000e+00 : f32
    %101 = vector.broadcast %cst_77 : f32 to vector<40x32xf32>
    %102 = arith.maximumf %100, %101 : vector<40x32xf32>
    %c0_78 = arith.constant 0 : index
    %c0_79 = arith.constant 0 : index
    %103 = vector.load %arg10[%c0_78, %c0_79] : memref<40x1568xf32, #tpu.memory_space<vmem>>, vector<40x32xf32>
    tpu.vector_store %arg10[%c0_78, %c0_79], %102 {strides = array<i32>} : memref<40x1568xf32, #tpu.memory_space<vmem>>, vector<40x32xf32>,
    %c40_80 = arith.constant 40 : index
    %c0_81 = arith.constant 0 : index
    %104 = vector.load %arg9[%c40_80, %c0_81] : memref<2040x96xf32, #tpu.memory_space<vmem>>, vector<40x32xf32>
    %c80_82 = arith.constant 80 : index
    %c32_83 = arith.constant 32 : index
    %105 = vector.load %arg9[%c80_82, %c32_83] : memref<2040x96xf32, #tpu.memory_space<vmem>>, vector<40x32xf32>
    %106 = arith.addf %104, %105 : vector<40x32xf32>
    %c120 = arith.constant 120 : index
    %c64_84 = arith.constant 64 : index
    %107 = vector.load %arg9[%c120, %c64_84] : memref<2040x96xf32, #tpu.memory_space<vmem>>, vector<40x32xf32>
    %108 = arith.addf %106, %107 : vector<40x32xf32>
    %109 = vector.broadcast %1 : vector<1x32xf32> to vector<40x32xf32>
    %110 = arith.addf %108, %109 : vector<40x32xf32>
    %cst_85 = arith.constant 0.000000e+00 : f32
    %111 = vector.broadcast %cst_85 : f32 to vector<40x32xf32>
    %112 = arith.maximumf %110, %111 : vector<40x32xf32>
    %c0_86 = arith.constant 0 : index
    %c32_87 = arith.constant 32 : index
    %113 = vector.load %arg10[%c0_86, %c32_87] : memref<40x1568xf32, #tpu.memory_space<vmem>>, vector<40x32xf32>
    tpu.vector_store %arg10[%c0_86, %c32_87], %112 {strides = array<i32>} : memref<40x1568xf32, #tpu.memory_space<vmem>>, vector<40x32xf32>,
    %c80_88 = arith.constant 80 : index
    %c0_89 = arith.constant 0 : index
    %114 = vector.load %arg9[%c80_88, %c0_89] : memref<2040x96xf32, #tpu.memory_space<vmem>>, vector<40x32xf32>
    %c120_90 = arith.constant 120 : index
    %c32_91 = arith.constant 32 : index
    %115 = vector.load %arg9[%c120_90, %c32_91] : memref<2040x96xf32, #tpu.memory_space<vmem>>, vector<40x32xf32>
    %116 = arith.addf %114, %115 : vector<40x32xf32>
    %c160 = arith.constant 160 : index
    %c64_92 = arith.constant 64 : index
    %117 = vector.load %arg9[%c160, %c64_92] : memref<2040x96xf32, #tpu.memory_space<vmem>>, vector<40x32xf32>
    %118 = arith.addf %116, %117 : vector<40x32xf32>
    %119 = vector.broadcast %1 : vector<1x32xf32> to vector<40x32xf32>
    %120 = arith.addf %118, %119 : vector<40x32xf32>
    %cst_93 = arith.constant 0.000000e+00 : f32
    %121 = vector.broadcast %cst_93 : f32 to vector<40x32xf32>
    %122 = arith.maximumf %120, %121 : vector<40x32xf32>
    %c0_94 = arith.constant 0 : index
    %c64_95 = arith.constant 64 : index
    %123 = vector.load %arg10[%c0_94, %c64_95] : memref<40x1568xf32, #tpu.memory_space<vmem>>, vector<40x32xf32>
    tpu.vector_store %arg10[%c0_94, %c64_95], %122 {strides = array<i32>} : memref<40x1568xf32, #tpu.memory_space<vmem>>, vector<40x32xf32>,
    %c120_96 = arith.constant 120 : index
    %c0_97 = arith.constant 0 : index
    %124 = vector.load %arg9[%c120_96, %c0_97] : memref<2040x96xf32, #tpu.memory_space<vmem>>, vector<40x32xf32>
    %c160_98 = arith.constant 160 : index
    %c32_99 = arith.constant 32 : index
    %125 = vector.load %arg9[%c160_98, %c32_99] : memref<2040x96xf32, #tpu.memory_space<vmem>>, vector<40x32xf32>
    %126 = arith.addf %124, %125 : vector<40x32xf32>
    %c200 = arith.constant 200 : index
    %c64_100 = arith.constant 64 : index
    %127 = vector.load %arg9[%c200, %c64_100] : memref<2040x96xf32, #tpu.memory_space<vmem>>, vector<40x32xf32>
    %128 = arith.addf %126, %127 : vector<40x32xf32>
    %129 = vector.broadcast %1 : vector<1x32xf32> to vector<40x32xf32>
    %130 = arith.addf %128, %129 : vector<40x32xf32>
    %cst_101 = arith.constant 0.000000e+00 : f32
    %131 = vector.broadcast %cst_101 : f32 to vector<40x32xf32>
    %132 = arith.maximumf %130, %131 : vector<40x32xf32>
    %c0_102 = arith.constant 0 : index
    %c96 = arith.constant 96 : index
    %133 = vector.load %arg10[%c0_102, %c96] : memref<40x1568xf32, #tpu.memory_space<vmem>>, vector<40x32xf32>
    tpu.vector_store %arg10[%c0_102, %c96], %132 {strides = array<i32>} : memref<40x1568xf32, #tpu.memory_space<vmem>>, vector<40x32xf32>,
    %c160_103 = arith.constant 160 : index
    %c0_104 = arith.constant 0 : index
    %134 = vector.load %arg9[%c160_103, %c0_104] : memref<2040x96xf32, #tpu.memory_space<vmem>>, vector<40x32xf32>
    %c200_105 = arith.constant 200 : index
    %c32_106 = arith.constant 32 : index
    %135 = vector.load %arg9[%c200_105, %c32_106] : memref<2040x96xf32, #tpu.memory_space<vmem>>, vector<40x32xf32>
    %136 = arith.addf %134, %135 : vector<40x32xf32>
    %c240 = arith.constant 240 : index
    %c64_107 = arith.constant 64 : index
    %137 = vector.load %arg9[%c240, %c64_107] : memref<2040x96xf32, #tpu.memory_space<vmem>>, vector<40x32xf32>
    %138 = arith.addf %136, %137 : vector<40x32xf32>
    %139 = vector.broadcast %1 : vector<1x32xf32> to vector<40x32xf32>
    %140 = arith.addf %138, %139 : vector<40x32xf32>
    %cst_108 = arith.constant 0.000000e+00 : f32
    %141 = vector.broadcast %cst_108 : f32 to vector<40x32xf32>
    %142 = arith.maximumf %140, %141 : vector<40x32xf32>
    %c0_109 = arith.constant 0 : index
    %c128 = arith.constant 128 : index
    %143 = vector.load %arg10[%c0_109, %c128] : memref<40x1568xf32, #tpu.memory_space<vmem>>, vector<40x32xf32>
    tpu.vector_store %arg10[%c0_109, %c128], %142 {strides = array<i32>} : memref<40x1568xf32, #tpu.memory_space<vmem>>, vector<40x32xf32>,
    %c200_110 = arith.constant 200 : index
    %c0_111 = arith.constant 0 : index
    %144 = vector.load %arg9[%c200_110, %c0_111] : memref<2040x96xf32, #tpu.memory_space<vmem>>, vector<40x32xf32>
    %c240_112 = arith.constant 240 : index
    %c32_113 = arith.constant 32 : index
    %145 = vector.load %arg9[%c240_112, %c32_113] : memref<2040x96xf32, #tpu.memory_space<vmem>>, vector<40x32xf32>
    %146 = arith.addf %144, %145 : vector<40x32xf32>
    %c280 = arith.constant 280 : index
    %c64_114 = arith.constant 64 : index
    %147 = vector.load %arg9[%c280, %c64_114] : memref<2040x96xf32, #tpu.memory_space<vmem>>, vector<40x32xf32>
    %148 = arith.addf %146, %147 : vector<40x32xf32>
    %149 = vector.broadcast %1 : vector<1x32xf32> to vector<40x32xf32>
    %150 = arith.addf %148, %149 : vector<40x32xf32>
    %cst_115 = arith.constant 0.000000e+00 : f32
    %151 = vector.broadcast %cst_115 : f32 to vector<40x32xf32>
    %152 = arith.maximumf %150, %151 : vector<40x32xf32>
    %c0_116 = arith.constant 0 : index
    %c160_117 = arith.constant 160 : index
    %153 = vector.load %arg10[%c0_116, %c160_117] : memref<40x1568xf32, #tpu.memory_space<vmem>>, vector<40x32xf32>
    tpu.vector_store %arg10[%c0_116, %c160_117], %152 {strides = array<i32>} : memref<40x1568xf32, #tpu.memory_space<vmem>>, vector<40x32xf32>,
    %c240_118 = arith.constant 240 : index
    %c0_119 = arith.constant 0 : index
    %154 = vector.load %arg9[%c240_118, %c0_119] : memref<2040x96xf32, #tpu.memory_space<vmem>>, vector<40x32xf32>
    %c280_120 = arith.constant 280 : index
    %c32_121 = arith.constant 32 : index
    %155 = vector.load %arg9[%c280_120, %c32_121] : memref<2040x96xf32, #tpu.memory_space<vmem>>, vector<40x32xf32>
    %156 = arith.addf %154, %155 : vector<40x32xf32>
    %c320_122 = arith.constant 320 : index
    %c64_123 = arith.constant 64 : index
    %157 = vector.load %arg9[%c320_122, %c64_123] : memref<2040x96xf32, #tpu.memory_space<vmem>>, vector<40x32xf32>
    %158 = arith.addf %156, %157 : vector<40x32xf32>
    %159 = vector.broadcast %1 : vector<1x32xf32> to vector<40x32xf32>
    %160 = arith.addf %158, %159 : vector<40x32xf32>
    %cst_124 = arith.constant 0.000000e+00 : f32
    %161 = vector.broadcast %cst_124 : f32 to vector<40x32xf32>
    %162 = arith.maximumf %160, %161 : vector<40x32xf32>
    %c0_125 = arith.constant 0 : index
    %c192 = arith.constant 192 : index
    %163 = vector.load %arg10[%c0_125, %c192] : memref<40x1568xf32, #tpu.memory_space<vmem>>, vector<40x32xf32>
    tpu.vector_store %arg10[%c0_125, %c192], %162 {strides = array<i32>} : memref<40x1568xf32, #tpu.memory_space<vmem>>, vector<40x32xf32>,
    %c280_126 = arith.constant 280 : index
    %c0_127 = arith.constant 0 : index
    %164 = vector.load %arg9[%c280_126, %c0_127] : memref<2040x96xf32, #tpu.memory_space<vmem>>, vector<40x32xf32>
    %c320_128 = arith.constant 320 : index
    %c32_129 = arith.constant 32 : index
    %165 = vector.load %arg9[%c320_128, %c32_129] : memref<2040x96xf32, #tpu.memory_space<vmem>>, vector<40x32xf32>
    %166 = arith.addf %164, %165 : vector<40x32xf32>
    %c360_130 = arith.constant 360 : index
    %c64_131 = arith.constant 64 : index
    %167 = vector.load %arg9[%c360_130, %c64_131] : memref<2040x96xf32, #tpu.memory_space<vmem>>, vector<40x32xf32>
    %168 = arith.addf %166, %167 : vector<40x32xf32>
    %169 = vector.broadcast %1 : vector<1x32xf32> to vector<40x32xf32>
    %170 = arith.addf %168, %169 : vector<40x32xf32>
    %cst_132 = arith.constant 0.000000e+00 : f32
    %171 = vector.broadcast %cst_132 : f32 to vector<40x32xf32>
    %172 = arith.maximumf %170, %171 : vector<40x32xf32>
    %c0_133 = arith.constant 0 : index
    %c224 = arith.constant 224 : index
    %173 = vector.load %arg10[%c0_133, %c224] : memref<40x1568xf32, #tpu.memory_space<vmem>>, vector<40x32xf32>
    tpu.vector_store %arg10[%c0_133, %c224], %172 {strides = array<i32>} : memref<40x1568xf32, #tpu.memory_space<vmem>>, vector<40x32xf32>,
    %c320_134 = arith.constant 320 : index
    %c0_135 = arith.constant 0 : index
    %174 = vector.load %arg9[%c320_134, %c0_135] : memref<2040x96xf32, #tpu.memory_space<vmem>>, vector<40x32xf32>
    %c360_136 = arith.constant 360 : index
    %c32_137 = arith.constant 32 : index
    %175 = vector.load %arg9[%c360_136, %c32_137] : memref<2040x96xf32, #tpu.memory_space<vmem>>, vector<40x32xf32>
    %176 = arith.addf %174, %175 : vector<40x32xf32>
    %c400 = arith.constant 400 : index
    %c64_138 = arith.constant 64 : index
    %177 = vector.load %arg9[%c400, %c64_138] : memref<2040x96xf32, #tpu.memory_space<vmem>>, vector<40x32xf32>
    %178 = arith.addf %176, %177 : vector<40x32xf32>
    %179 = vector.broadcast %1 : vector<1x32xf32> to vector<40x32xf32>
    %180 = arith.addf %178, %179 : vector<40x32xf32>
    %cst_139 = arith.constant 0.000000e+00 : f32
    %181 = vector.broadcast %cst_139 : f32 to vector<40x32xf32>
    %182 = arith.maximumf %180, %181 : vector<40x32xf32>
    %c0_140 = arith.constant 0 : index
    %c256 = arith.constant 256 : index
    %183 = vector.load %arg10[%c0_140, %c256] : memref<40x1568xf32, #tpu.memory_space<vmem>>, vector<40x32xf32>
    tpu.vector_store %arg10[%c0_140, %c256], %182 {strides = array<i32>} : memref<40x1568xf32, #tpu.memory_space<vmem>>, vector<40x32xf32>,
    %c360_141 = arith.constant 360 : index
    %c0_142 = arith.constant 0 : index
    %184 = vector.load %arg9[%c360_141, %c0_142] : memref<2040x96xf32, #tpu.memory_space<vmem>>, vector<40x32xf32>
    %c400_143 = arith.constant 400 : index
    %c32_144 = arith.constant 32 : index
    %185 = vector.load %arg9[%c400_143, %c32_144] : memref<2040x96xf32, #tpu.memory_space<vmem>>, vector<40x32xf32>
    %186 = arith.addf %184, %185 : vector<40x32xf32>
    %c440 = arith.constant 440 : index
    %c64_145 = arith.constant 64 : index
    %187 = vector.load %arg9[%c440, %c64_145] : memref<2040x96xf32, #tpu.memory_space<vmem>>, vector<40x32xf32>
    %188 = arith.addf %186, %187 : vector<40x32xf32>
    %189 = vector.broadcast %1 : vector<1x32xf32> to vector<40x32xf32>
    %190 = arith.addf %188, %189 : vector<40x32xf32>
    %cst_146 = arith.constant 0.000000e+00 : f32
    %191 = vector.broadcast %cst_146 : f32 to vector<40x32xf32>
    %192 = arith.maximumf %190, %191 : vector<40x32xf32>
    %c0_147 = arith.constant 0 : index
    %c288 = arith.constant 288 : index
    %193 = vector.load %arg10[%c0_147, %c288] : memref<40x1568xf32, #tpu.memory_space<vmem>>, vector<40x32xf32>
    tpu.vector_store %arg10[%c0_147, %c288], %192 {strides = array<i32>} : memref<40x1568xf32, #tpu.memory_space<vmem>>, vector<40x32xf32>,
    %c400_148 = arith.constant 400 : index
    %c0_149 = arith.constant 0 : index
    %194 = vector.load %arg9[%c400_148, %c0_149] : memref<2040x96xf32, #tpu.memory_space<vmem>>, vector<40x32xf32>
    %c440_150 = arith.constant 440 : index
    %c32_151 = arith.constant 32 : index
    %195 = vector.load %arg9[%c440_150, %c32_151] : memref<2040x96xf32, #tpu.memory_space<vmem>>, vector<40x32xf32>
    %196 = arith.addf %194, %195 : vector<40x32xf32>
    %c480 = arith.constant 480 : index
    %c64_152 = arith.constant 64 : index
    %197 = vector.load %arg9[%c480, %c64_152] : memref<2040x96xf32, #tpu.memory_space<vmem>>, vector<40x32xf32>
    %198 = arith.addf %196, %197 : vector<40x32xf32>
    %199 = vector.broadcast %1 : vector<1x32xf32> to vector<40x32xf32>
    %200 = arith.addf %198, %199 : vector<40x32xf32>
    %cst_153 = arith.constant 0.000000e+00 : f32
    %201 = vector.broadcast %cst_153 : f32 to vector<40x32xf32>
    %202 = arith.maximumf %200, %201 : vector<40x32xf32>
    %c0_154 = arith.constant 0 : index
    %c320_155 = arith.constant 320 : index
    %203 = vector.load %arg10[%c0_154, %c320_155] : memref<40x1568xf32, #tpu.memory_space<vmem>>, vector<40x32xf32>
    tpu.vector_store %arg10[%c0_154, %c320_155], %202 {strides = array<i32>} : memref<40x1568xf32, #tpu.memory_space<vmem>>, vector<40x32xf32>,
    %c440_156 = arith.constant 440 : index
    %c0_157 = arith.constant 0 : index
    %204 = vector.load %arg9[%c440_156, %c0_157] : memref<2040x96xf32, #tpu.memory_space<vmem>>, vector<40x32xf32>
    %c480_158 = arith.constant 480 : index
    %c32_159 = arith.constant 32 : index
    %205 = vector.load %arg9[%c480_158, %c32_159] : memref<2040x96xf32, #tpu.memory_space<vmem>>, vector<40x32xf32>
    %206 = arith.addf %204, %205 : vector<40x32xf32>
    %c520 = arith.constant 520 : index
    %c64_160 = arith.constant 64 : index
    %207 = vector.load %arg9[%c520, %c64_160] : memref<2040x96xf32, #tpu.memory_space<vmem>>, vector<40x32xf32>
    %208 = arith.addf %206, %207 : vector<40x32xf32>
    %209 = vector.broadcast %1 : vector<1x32xf32> to vector<40x32xf32>
    %210 = arith.addf %208, %209 : vector<40x32xf32>
    %cst_161 = arith.constant 0.000000e+00 : f32
    %211 = vector.broadcast %cst_161 : f32 to vector<40x32xf32>
    %212 = arith.maximumf %210, %211 : vector<40x32xf32>
    %c0_162 = arith.constant 0 : index
    %c352 = arith.constant 352 : index
    %213 = vector.load %arg10[%c0_162, %c352] : memref<40x1568xf32, #tpu.memory_space<vmem>>, vector<40x32xf32>
    tpu.vector_store %arg10[%c0_162, %c352], %212 {strides = array<i32>} : memref<40x1568xf32, #tpu.memory_space<vmem>>, vector<40x32xf32>,
    %c480_163 = arith.constant 480 : index
    %c0_164 = arith.constant 0 : index
    %214 = vector.load %arg9[%c480_163, %c0_164] : memref<2040x96xf32, #tpu.memory_space<vmem>>, vector<40x32xf32>
    %c520_165 = arith.constant 520 : index
    %c32_166 = arith.constant 32 : index
    %215 = vector.load %arg9[%c520_165, %c32_166] : memref<2040x96xf32, #tpu.memory_space<vmem>>, vector<40x32xf32>
    %216 = arith.addf %214, %215 : vector<40x32xf32>
    %c560 = arith.constant 560 : index
    %c64_167 = arith.constant 64 : index
    %217 = vector.load %arg9[%c560, %c64_167] : memref<2040x96xf32, #tpu.memory_space<vmem>>, vector<40x32xf32>
    %218 = arith.addf %216, %217 : vector<40x32xf32>
    %219 = vector.broadcast %1 : vector<1x32xf32> to vector<40x32xf32>
    %220 = arith.addf %218, %219 : vector<40x32xf32>
    %cst_168 = arith.constant 0.000000e+00 : f32
    %221 = vector.broadcast %cst_168 : f32 to vector<40x32xf32>
    %222 = arith.maximumf %220, %221 : vector<40x32xf32>
    %c0_169 = arith.constant 0 : index
    %c384 = arith.constant 384 : index
    %223 = vector.load %arg10[%c0_169, %c384] : memref<40x1568xf32, #tpu.memory_space<vmem>>, vector<40x32xf32>
    tpu.vector_store %arg10[%c0_169, %c384], %222 {strides = array<i32>} : memref<40x1568xf32, #tpu.memory_space<vmem>>, vector<40x32xf32>,
    %c520_170 = arith.constant 520 : index
    %c0_171 = arith.constant 0 : index
    %224 = vector.load %arg9[%c520_170, %c0_171] : memref<2040x96xf32, #tpu.memory_space<vmem>>, vector<40x32xf32>
    %c560_172 = arith.constant 560 : index
    %c32_173 = arith.constant 32 : index
    %225 = vector.load %arg9[%c560_172, %c32_173] : memref<2040x96xf32, #tpu.memory_space<vmem>>, vector<40x32xf32>
    %226 = arith.addf %224, %225 : vector<40x32xf32>
    %c600 = arith.constant 600 : index
    %c64_174 = arith.constant 64 : index
    %227 = vector.load %arg9[%c600, %c64_174] : memref<2040x96xf32, #tpu.memory_space<vmem>>, vector<40x32xf32>
    %228 = arith.addf %226, %227 : vector<40x32xf32>
    %229 = vector.broadcast %1 : vector<1x32xf32> to vector<40x32xf32>
    %230 = arith.addf %228, %229 : vector<40x32xf32>
    %cst_175 = arith.constant 0.000000e+00 : f32
    %231 = vector.broadcast %cst_175 : f32 to vector<40x32xf32>
    %232 = arith.maximumf %230, %231 : vector<40x32xf32>
    %c0_176 = arith.constant 0 : index
    %c416 = arith.constant 416 : index
    %233 = vector.load %arg10[%c0_176, %c416] : memref<40x1568xf32, #tpu.memory_space<vmem>>, vector<40x32xf32>
    tpu.vector_store %arg10[%c0_176, %c416], %232 {strides = array<i32>} : memref<40x1568xf32, #tpu.memory_space<vmem>>, vector<40x32xf32>,
    %c560_177 = arith.constant 560 : index
    %c0_178 = arith.constant 0 : index
    %234 = vector.load %arg9[%c560_177, %c0_178] : memref<2040x96xf32, #tpu.memory_space<vmem>>, vector<40x32xf32>
    %c600_179 = arith.constant 600 : index
    %c32_180 = arith.constant 32 : index
    %235 = vector.load %arg9[%c600_179, %c32_180] : memref<2040x96xf32, #tpu.memory_space<vmem>>, vector<40x32xf32>
    %236 = arith.addf %234, %235 : vector<40x32xf32>
    %c640_181 = arith.constant 640 : index
    %c64_182 = arith.constant 64 : index
    %237 = vector.load %arg9[%c640_181, %c64_182] : memref<2040x96xf32, #tpu.memory_space<vmem>>, vector<40x32xf32>
    %238 = arith.addf %236, %237 : vector<40x32xf32>
    %239 = vector.broadcast %1 : vector<1x32xf32> to vector<40x32xf32>
    %240 = arith.addf %238, %239 : vector<40x32xf32>
    %cst_183 = arith.constant 0.000000e+00 : f32
    %241 = vector.broadcast %cst_183 : f32 to vector<40x32xf32>
    %242 = arith.maximumf %240, %241 : vector<40x32xf32>
    %c0_184 = arith.constant 0 : index
    %c448 = arith.constant 448 : index
    %243 = vector.load %arg10[%c0_184, %c448] : memref<40x1568xf32, #tpu.memory_space<vmem>>, vector<40x32xf32>
    tpu.vector_store %arg10[%c0_184, %c448], %242 {strides = array<i32>} : memref<40x1568xf32, #tpu.memory_space<vmem>>, vector<40x32xf32>,
    %c600_185 = arith.constant 600 : index
    %c0_186 = arith.constant 0 : index
    %244 = vector.load %arg9[%c600_185, %c0_186] : memref<2040x96xf32, #tpu.memory_space<vmem>>, vector<40x32xf32>
    %c640_187 = arith.constant 640 : index
    %c32_188 = arith.constant 32 : index
    %245 = vector.load %arg9[%c640_187, %c32_188] : memref<2040x96xf32, #tpu.memory_space<vmem>>, vector<40x32xf32>
    %246 = arith.addf %244, %245 : vector<40x32xf32>
    %c680_189 = arith.constant 680 : index
    %c64_190 = arith.constant 64 : index
    %247 = vector.load %arg9[%c680_189, %c64_190] : memref<2040x96xf32, #tpu.memory_space<vmem>>, vector<40x32xf32>
    %248 = arith.addf %246, %247 : vector<40x32xf32>
    %249 = vector.broadcast %1 : vector<1x32xf32> to vector<40x32xf32>
    %250 = arith.addf %248, %249 : vector<40x32xf32>
    %cst_191 = arith.constant 0.000000e+00 : f32
    %251 = vector.broadcast %cst_191 : f32 to vector<40x32xf32>
    %252 = arith.maximumf %250, %251 : vector<40x32xf32>
    %c0_192 = arith.constant 0 : index
    %c480_193 = arith.constant 480 : index
    %253 = vector.load %arg10[%c0_192, %c480_193] : memref<40x1568xf32, #tpu.memory_space<vmem>>, vector<40x32xf32>
    tpu.vector_store %arg10[%c0_192, %c480_193], %252 {strides = array<i32>} : memref<40x1568xf32, #tpu.memory_space<vmem>>, vector<40x32xf32>,
    %c640_194 = arith.constant 640 : index
    %c0_195 = arith.constant 0 : index
    %254 = vector.load %arg9[%c640_194, %c0_195] : memref<2040x96xf32, #tpu.memory_space<vmem>>, vector<40x32xf32>
    %c680_196 = arith.constant 680 : index
    %c32_197 = arith.constant 32 : index
    %255 = vector.load %arg9[%c680_196, %c32_197] : memref<2040x96xf32, #tpu.memory_space<vmem>>, vector<40x32xf32>
    %256 = arith.addf %254, %255 : vector<40x32xf32>
    %c720 = arith.constant 720 : index
    %c64_198 = arith.constant 64 : index
    %257 = vector.load %arg9[%c720, %c64_198] : memref<2040x96xf32, #tpu.memory_space<vmem>>, vector<40x32xf32>
    %258 = arith.addf %256, %257 : vector<40x32xf32>
    %259 = vector.broadcast %1 : vector<1x32xf32> to vector<40x32xf32>
    %260 = arith.addf %258, %259 : vector<40x32xf32>
    %cst_199 = arith.constant 0.000000e+00 : f32
    %261 = vector.broadcast %cst_199 : f32 to vector<40x32xf32>
    %262 = arith.maximumf %260, %261 : vector<40x32xf32>
    %c0_200 = arith.constant 0 : index
    %c512 = arith.constant 512 : index
    %263 = vector.load %arg10[%c0_200, %c512] : memref<40x1568xf32, #tpu.memory_space<vmem>>, vector<40x32xf32>
    tpu.vector_store %arg10[%c0_200, %c512], %262 {strides = array<i32>} : memref<40x1568xf32, #tpu.memory_space<vmem>>, vector<40x32xf32>,
    %c680_201 = arith.constant 680 : index
    %c0_202 = arith.constant 0 : index
    %264 = vector.load %arg9[%c680_201, %c0_202] : memref<2040x96xf32, #tpu.memory_space<vmem>>, vector<40x32xf32>
    %c720_203 = arith.constant 720 : index
    %c32_204 = arith.constant 32 : index
    %265 = vector.load %arg9[%c720_203, %c32_204] : memref<2040x96xf32, #tpu.memory_space<vmem>>, vector<40x32xf32>
    %266 = arith.addf %264, %265 : vector<40x32xf32>
    %c760 = arith.constant 760 : index
    %c64_205 = arith.constant 64 : index
    %267 = vector.load %arg9[%c760, %c64_205] : memref<2040x96xf32, #tpu.memory_space<vmem>>, vector<40x32xf32>
    %268 = arith.addf %266, %267 : vector<40x32xf32>
    %269 = vector.broadcast %1 : vector<1x32xf32> to vector<40x32xf32>
    %270 = arith.addf %268, %269 : vector<40x32xf32>
    %cst_206 = arith.constant 0.000000e+00 : f32
    %271 = vector.broadcast %cst_206 : f32 to vector<40x32xf32>
    %272 = arith.maximumf %270, %271 : vector<40x32xf32>
    %c0_207 = arith.constant 0 : index
    %c544 = arith.constant 544 : index
    %273 = vector.load %arg10[%c0_207, %c544] : memref<40x1568xf32, #tpu.memory_space<vmem>>, vector<40x32xf32>
    tpu.vector_store %arg10[%c0_207, %c544], %272 {strides = array<i32>} : memref<40x1568xf32, #tpu.memory_space<vmem>>, vector<40x32xf32>,
    %c720_208 = arith.constant 720 : index
    %c0_209 = arith.constant 0 : index
    %274 = vector.load %arg9[%c720_208, %c0_209] : memref<2040x96xf32, #tpu.memory_space<vmem>>, vector<40x32xf32>
    %c760_210 = arith.constant 760 : index
    %c32_211 = arith.constant 32 : index
    %275 = vector.load %arg9[%c760_210, %c32_211] : memref<2040x96xf32, #tpu.memory_space<vmem>>, vector<40x32xf32>
    %276 = arith.addf %274, %275 : vector<40x32xf32>
    %c800 = arith.constant 800 : index
    %c64_212 = arith.constant 64 : index
    %277 = vector.load %arg9[%c800, %c64_212] : memref<2040x96xf32, #tpu.memory_space<vmem>>, vector<40x32xf32>
    %278 = arith.addf %276, %277 : vector<40x32xf32>
    %279 = vector.broadcast %1 : vector<1x32xf32> to vector<40x32xf32>
    %280 = arith.addf %278, %279 : vector<40x32xf32>
    %cst_213 = arith.constant 0.000000e+00 : f32
    %281 = vector.broadcast %cst_213 : f32 to vector<40x32xf32>
    %282 = arith.maximumf %280, %281 : vector<40x32xf32>
    %c0_214 = arith.constant 0 : index
    %c576 = arith.constant 576 : index
    %283 = vector.load %arg10[%c0_214, %c576] : memref<40x1568xf32, #tpu.memory_space<vmem>>, vector<40x32xf32>
    tpu.vector_store %arg10[%c0_214, %c576], %282 {strides = array<i32>} : memref<40x1568xf32, #tpu.memory_space<vmem>>, vector<40x32xf32>,
    %c760_215 = arith.constant 760 : index
    %c0_216 = arith.constant 0 : index
    %284 = vector.load %arg9[%c760_215, %c0_216] : memref<2040x96xf32, #tpu.memory_space<vmem>>, vector<40x32xf32>
    %c800_217 = arith.constant 800 : index
    %c32_218 = arith.constant 32 : index
    %285 = vector.load %arg9[%c800_217, %c32_218] : memref<2040x96xf32, #tpu.memory_space<vmem>>, vector<40x32xf32>
    %286 = arith.addf %284, %285 : vector<40x32xf32>
    %c840 = arith.constant 840 : index
    %c64_219 = arith.constant 64 : index
    %287 = vector.load %arg9[%c840, %c64_219] : memref<2040x96xf32, #tpu.memory_space<vmem>>, vector<40x32xf32>
    %288 = arith.addf %286, %287 : vector<40x32xf32>
    %289 = vector.broadcast %1 : vector<1x32xf32> to vector<40x32xf32>
    %290 = arith.addf %288, %289 : vector<40x32xf32>
    %cst_220 = arith.constant 0.000000e+00 : f32
    %291 = vector.broadcast %cst_220 : f32 to vector<40x32xf32>
    %292 = arith.maximumf %290, %291 : vector<40x32xf32>
    %c0_221 = arith.constant 0 : index
    %c608 = arith.constant 608 : index
    %293 = vector.load %arg10[%c0_221, %c608] : memref<40x1568xf32, #tpu.memory_space<vmem>>, vector<40x32xf32>
    tpu.vector_store %arg10[%c0_221, %c608], %292 {strides = array<i32>} : memref<40x1568xf32, #tpu.memory_space<vmem>>, vector<40x32xf32>,
    %c800_222 = arith.constant 800 : index
    %c0_223 = arith.constant 0 : index
    %294 = vector.load %arg9[%c800_222, %c0_223] : memref<2040x96xf32, #tpu.memory_space<vmem>>, vector<40x32xf32>
    %c840_224 = arith.constant 840 : index
    %c32_225 = arith.constant 32 : index
    %295 = vector.load %arg9[%c840_224, %c32_225] : memref<2040x96xf32, #tpu.memory_space<vmem>>, vector<40x32xf32>
    %296 = arith.addf %294, %295 : vector<40x32xf32>
    %c880 = arith.constant 880 : index
    %c64_226 = arith.constant 64 : index
    %297 = vector.load %arg9[%c880, %c64_226] : memref<2040x96xf32, #tpu.memory_space<vmem>>, vector<40x32xf32>
    %298 = arith.addf %296, %297 : vector<40x32xf32>
    %299 = vector.broadcast %1 : vector<1x32xf32> to vector<40x32xf32>
    %300 = arith.addf %298, %299 : vector<40x32xf32>
    %cst_227 = arith.constant 0.000000e+00 : f32
    %301 = vector.broadcast %cst_227 : f32 to vector<40x32xf32>
    %302 = arith.maximumf %300, %301 : vector<40x32xf32>
    %c0_228 = arith.constant 0 : index
    %c640_229 = arith.constant 640 : index
    %303 = vector.load %arg10[%c0_228, %c640_229] : memref<40x1568xf32, #tpu.memory_space<vmem>>, vector<40x32xf32>
    tpu.vector_store %arg10[%c0_228, %c640_229], %302 {strides = array<i32>} : memref<40x1568xf32, #tpu.memory_space<vmem>>, vector<40x32xf32>,
    %c840_230 = arith.constant 840 : index
    %c0_231 = arith.constant 0 : index
    %304 = vector.load %arg9[%c840_230, %c0_231] : memref<2040x96xf32, #tpu.memory_space<vmem>>, vector<40x32xf32>
    %c880_232 = arith.constant 880 : index
    %c32_233 = arith.constant 32 : index
    %305 = vector.load %arg9[%c880_232, %c32_233] : memref<2040x96xf32, #tpu.memory_space<vmem>>, vector<40x32xf32>
    %306 = arith.addf %304, %305 : vector<40x32xf32>
    %c920 = arith.constant 920 : index
    %c64_234 = arith.constant 64 : index
    %307 = vector.load %arg9[%c920, %c64_234] : memref<2040x96xf32, #tpu.memory_space<vmem>>, vector<40x32xf32>
    %308 = arith.addf %306, %307 : vector<40x32xf32>
    %309 = vector.broadcast %1 : vector<1x32xf32> to vector<40x32xf32>
    %310 = arith.addf %308, %309 : vector<40x32xf32>
    %cst_235 = arith.constant 0.000000e+00 : f32
    %311 = vector.broadcast %cst_235 : f32 to vector<40x32xf32>
    %312 = arith.maximumf %310, %311 : vector<40x32xf32>
    %c0_236 = arith.constant 0 : index
    %c672 = arith.constant 672 : index
    %313 = vector.load %arg10[%c0_236, %c672] : memref<40x1568xf32, #tpu.memory_space<vmem>>, vector<40x32xf32>
    tpu.vector_store %arg10[%c0_236, %c672], %312 {strides = array<i32>} : memref<40x1568xf32, #tpu.memory_space<vmem>>, vector<40x32xf32>,
    %c880_237 = arith.constant 880 : index
    %c0_238 = arith.constant 0 : index
    %314 = vector.load %arg9[%c880_237, %c0_238] : memref<2040x96xf32, #tpu.memory_space<vmem>>, vector<40x32xf32>
    %c920_239 = arith.constant 920 : index
    %c32_240 = arith.constant 32 : index
    %315 = vector.load %arg9[%c920_239, %c32_240] : memref<2040x96xf32, #tpu.memory_space<vmem>>, vector<40x32xf32>
    %316 = arith.addf %314, %315 : vector<40x32xf32>
    %c960_241 = arith.constant 960 : index
    %c64_242 = arith.constant 64 : index
    %317 = vector.load %arg9[%c960_241, %c64_242] : memref<2040x96xf32, #tpu.memory_space<vmem>>, vector<40x32xf32>
    %318 = arith.addf %316, %317 : vector<40x32xf32>
    %319 = vector.broadcast %1 : vector<1x32xf32> to vector<40x32xf32>
    %320 = arith.addf %318, %319 : vector<40x32xf32>
    %cst_243 = arith.constant 0.000000e+00 : f32
    %321 = vector.broadcast %cst_243 : f32 to vector<40x32xf32>
    %322 = arith.maximumf %320, %321 : vector<40x32xf32>
    %c0_244 = arith.constant 0 : index
    %c704 = arith.constant 704 : index
    %323 = vector.load %arg10[%c0_244, %c704] : memref<40x1568xf32, #tpu.memory_space<vmem>>, vector<40x32xf32>
    tpu.vector_store %arg10[%c0_244, %c704], %322 {strides = array<i32>} : memref<40x1568xf32, #tpu.memory_space<vmem>>, vector<40x32xf32>,
    %c920_245 = arith.constant 920 : index
    %c0_246 = arith.constant 0 : index
    %324 = vector.load %arg9[%c920_245, %c0_246] : memref<2040x96xf32, #tpu.memory_space<vmem>>, vector<40x32xf32>
    %c960_247 = arith.constant 960 : index
    %c32_248 = arith.constant 32 : index
    %325 = vector.load %arg9[%c960_247, %c32_248] : memref<2040x96xf32, #tpu.memory_space<vmem>>, vector<40x32xf32>
    %326 = arith.addf %324, %325 : vector<40x32xf32>
    %c1000_249 = arith.constant 1000 : index
    %c64_250 = arith.constant 64 : index
    %327 = vector.load %arg9[%c1000_249, %c64_250] : memref<2040x96xf32, #tpu.memory_space<vmem>>, vector<40x32xf32>
    %328 = arith.addf %326, %327 : vector<40x32xf32>
    %329 = vector.broadcast %1 : vector<1x32xf32> to vector<40x32xf32>
    %330 = arith.addf %328, %329 : vector<40x32xf32>
    %cst_251 = arith.constant 0.000000e+00 : f32
    %331 = vector.broadcast %cst_251 : f32 to vector<40x32xf32>
    %332 = arith.maximumf %330, %331 : vector<40x32xf32>
    %c0_252 = arith.constant 0 : index
    %c736 = arith.constant 736 : index
    %333 = vector.load %arg10[%c0_252, %c736] : memref<40x1568xf32, #tpu.memory_space<vmem>>, vector<40x32xf32>
    tpu.vector_store %arg10[%c0_252, %c736], %332 {strides = array<i32>} : memref<40x1568xf32, #tpu.memory_space<vmem>>, vector<40x32xf32>,
    %c960_253 = arith.constant 960 : index
    %c0_254 = arith.constant 0 : index
    %334 = vector.load %arg9[%c960_253, %c0_254] : memref<2040x96xf32, #tpu.memory_space<vmem>>, vector<40x32xf32>
    %c1000_255 = arith.constant 1000 : index
    %c32_256 = arith.constant 32 : index
    %335 = vector.load %arg9[%c1000_255, %c32_256] : memref<2040x96xf32, #tpu.memory_space<vmem>>, vector<40x32xf32>
    %336 = arith.addf %334, %335 : vector<40x32xf32>
    %c1040 = arith.constant 1040 : index
    %c64_257 = arith.constant 64 : index
    %337 = vector.load %arg9[%c1040, %c64_257] : memref<2040x96xf32, #tpu.memory_space<vmem>>, vector<40x32xf32>
    %338 = arith.addf %336, %337 : vector<40x32xf32>
    %339 = vector.broadcast %1 : vector<1x32xf32> to vector<40x32xf32>
    %340 = arith.addf %338, %339 : vector<40x32xf32>
    %cst_258 = arith.constant 0.000000e+00 : f32
    %341 = vector.broadcast %cst_258 : f32 to vector<40x32xf32>
    %342 = arith.maximumf %340, %341 : vector<40x32xf32>
    %c0_259 = arith.constant 0 : index
    %c768 = arith.constant 768 : index
    %343 = vector.load %arg10[%c0_259, %c768] : memref<40x1568xf32, #tpu.memory_space<vmem>>, vector<40x32xf32>
    tpu.vector_store %arg10[%c0_259, %c768], %342 {strides = array<i32>} : memref<40x1568xf32, #tpu.memory_space<vmem>>, vector<40x32xf32>,
    %c1000_260 = arith.constant 1000 : index
    %c0_261 = arith.constant 0 : index
    %344 = vector.load %arg9[%c1000_260, %c0_261] : memref<2040x96xf32, #tpu.memory_space<vmem>>, vector<40x32xf32>
    %c1040_262 = arith.constant 1040 : index
    %c32_263 = arith.constant 32 : index
    %345 = vector.load %arg9[%c1040_262, %c32_263] : memref<2040x96xf32, #tpu.memory_space<vmem>>, vector<40x32xf32>
    %346 = arith.addf %344, %345 : vector<40x32xf32>
    %c1080 = arith.constant 1080 : index
    %c64_264 = arith.constant 64 : index
    %347 = vector.load %arg9[%c1080, %c64_264] : memref<2040x96xf32, #tpu.memory_space<vmem>>, vector<40x32xf32>
    %348 = arith.addf %346, %347 : vector<40x32xf32>
    %349 = vector.broadcast %1 : vector<1x32xf32> to vector<40x32xf32>
    %350 = arith.addf %348, %349 : vector<40x32xf32>
    %cst_265 = arith.constant 0.000000e+00 : f32
    %351 = vector.broadcast %cst_265 : f32 to vector<40x32xf32>
    %352 = arith.maximumf %350, %351 : vector<40x32xf32>
    %c0_266 = arith.constant 0 : index
    %c800_267 = arith.constant 800 : index
    %353 = vector.load %arg10[%c0_266, %c800_267] : memref<40x1568xf32, #tpu.memory_space<vmem>>, vector<40x32xf32>
    tpu.vector_store %arg10[%c0_266, %c800_267], %352 {strides = array<i32>} : memref<40x1568xf32, #tpu.memory_space<vmem>>, vector<40x32xf32>,
    %c1040_268 = arith.constant 1040 : index
    %c0_269 = arith.constant 0 : index
    %354 = vector.load %arg9[%c1040_268, %c0_269] : memref<2040x96xf32, #tpu.memory_space<vmem>>, vector<40x32xf32>
    %c1080_270 = arith.constant 1080 : index
    %c32_271 = arith.constant 32 : index
    %355 = vector.load %arg9[%c1080_270, %c32_271] : memref<2040x96xf32, #tpu.memory_space<vmem>>, vector<40x32xf32>
    %356 = arith.addf %354, %355 : vector<40x32xf32>
    %c1120 = arith.constant 1120 : index
    %c64_272 = arith.constant 64 : index
    %357 = vector.load %arg9[%c1120, %c64_272] : memref<2040x96xf32, #tpu.memory_space<vmem>>, vector<40x32xf32>
    %358 = arith.addf %356, %357 : vector<40x32xf32>
    %359 = vector.broadcast %1 : vector<1x32xf32> to vector<40x32xf32>
    %360 = arith.addf %358, %359 : vector<40x32xf32>
    %cst_273 = arith.constant 0.000000e+00 : f32
    %361 = vector.broadcast %cst_273 : f32 to vector<40x32xf32>
    %362 = arith.maximumf %360, %361 : vector<40x32xf32>
    %c0_274 = arith.constant 0 : index
    %c832 = arith.constant 832 : index
    %363 = vector.load %arg10[%c0_274, %c832] : memref<40x1568xf32, #tpu.memory_space<vmem>>, vector<40x32xf32>
    tpu.vector_store %arg10[%c0_274, %c832], %362 {strides = array<i32>} : memref<40x1568xf32, #tpu.memory_space<vmem>>, vector<40x32xf32>,
    %c1080_275 = arith.constant 1080 : index
    %c0_276 = arith.constant 0 : index
    %364 = vector.load %arg9[%c1080_275, %c0_276] : memref<2040x96xf32, #tpu.memory_space<vmem>>, vector<40x32xf32>
    %c1120_277 = arith.constant 1120 : index
    %c32_278 = arith.constant 32 : index
    %365 = vector.load %arg9[%c1120_277, %c32_278] : memref<2040x96xf32, #tpu.memory_space<vmem>>, vector<40x32xf32>
    %366 = arith.addf %364, %365 : vector<40x32xf32>
    %c1160 = arith.constant 1160 : index
    %c64_279 = arith.constant 64 : index
    %367 = vector.load %arg9[%c1160, %c64_279] : memref<2040x96xf32, #tpu.memory_space<vmem>>, vector<40x32xf32>
    %368 = arith.addf %366, %367 : vector<40x32xf32>
    %369 = vector.broadcast %1 : vector<1x32xf32> to vector<40x32xf32>
    %370 = arith.addf %368, %369 : vector<40x32xf32>
    %cst_280 = arith.constant 0.000000e+00 : f32
    %371 = vector.broadcast %cst_280 : f32 to vector<40x32xf32>
    %372 = arith.maximumf %370, %371 : vector<40x32xf32>
    %c0_281 = arith.constant 0 : index
    %c864 = arith.constant 864 : index
    %373 = vector.load %arg10[%c0_281, %c864] : memref<40x1568xf32, #tpu.memory_space<vmem>>, vector<40x32xf32>
    tpu.vector_store %arg10[%c0_281, %c864], %372 {strides = array<i32>} : memref<40x1568xf32, #tpu.memory_space<vmem>>, vector<40x32xf32>,
    %c1120_282 = arith.constant 1120 : index
    %c0_283 = arith.constant 0 : index
    %374 = vector.load %arg9[%c1120_282, %c0_283] : memref<2040x96xf32, #tpu.memory_space<vmem>>, vector<40x32xf32>
    %c1160_284 = arith.constant 1160 : index
    %c32_285 = arith.constant 32 : index
    %375 = vector.load %arg9[%c1160_284, %c32_285] : memref<2040x96xf32, #tpu.memory_space<vmem>>, vector<40x32xf32>
    %376 = arith.addf %374, %375 : vector<40x32xf32>
    %c1200 = arith.constant 1200 : index
    %c64_286 = arith.constant 64 : index
    %377 = vector.load %arg9[%c1200, %c64_286] : memref<2040x96xf32, #tpu.memory_space<vmem>>, vector<40x32xf32>
    %378 = arith.addf %376, %377 : vector<40x32xf32>
    %379 = vector.broadcast %1 : vector<1x32xf32> to vector<40x32xf32>
    %380 = arith.addf %378, %379 : vector<40x32xf32>
    %cst_287 = arith.constant 0.000000e+00 : f32
    %381 = vector.broadcast %cst_287 : f32 to vector<40x32xf32>
    %382 = arith.maximumf %380, %381 : vector<40x32xf32>
    %c0_288 = arith.constant 0 : index
    %c896 = arith.constant 896 : index
    %383 = vector.load %arg10[%c0_288, %c896] : memref<40x1568xf32, #tpu.memory_space<vmem>>, vector<40x32xf32>
    tpu.vector_store %arg10[%c0_288, %c896], %382 {strides = array<i32>} : memref<40x1568xf32, #tpu.memory_space<vmem>>, vector<40x32xf32>,
    %c1160_289 = arith.constant 1160 : index
    %c0_290 = arith.constant 0 : index
    %384 = vector.load %arg9[%c1160_289, %c0_290] : memref<2040x96xf32, #tpu.memory_space<vmem>>, vector<40x32xf32>
    %c1200_291 = arith.constant 1200 : index
    %c32_292 = arith.constant 32 : index
    %385 = vector.load %arg9[%c1200_291, %c32_292] : memref<2040x96xf32, #tpu.memory_space<vmem>>, vector<40x32xf32>
    %386 = arith.addf %384, %385 : vector<40x32xf32>
    %c1240 = arith.constant 1240 : index
    %c64_293 = arith.constant 64 : index
    %387 = vector.load %arg9[%c1240, %c64_293] : memref<2040x96xf32, #tpu.memory_space<vmem>>, vector<40x32xf32>
    %388 = arith.addf %386, %387 : vector<40x32xf32>
    %389 = vector.broadcast %1 : vector<1x32xf32> to vector<40x32xf32>
    %390 = arith.addf %388, %389 : vector<40x32xf32>
    %cst_294 = arith.constant 0.000000e+00 : f32
    %391 = vector.broadcast %cst_294 : f32 to vector<40x32xf32>
    %392 = arith.maximumf %390, %391 : vector<40x32xf32>
    %c0_295 = arith.constant 0 : index
    %c928 = arith.constant 928 : index
    %393 = vector.load %arg10[%c0_295, %c928] : memref<40x1568xf32, #tpu.memory_space<vmem>>, vector<40x32xf32>
    tpu.vector_store %arg10[%c0_295, %c928], %392 {strides = array<i32>} : memref<40x1568xf32, #tpu.memory_space<vmem>>, vector<40x32xf32>,
    %c1200_296 = arith.constant 1200 : index
    %c0_297 = arith.constant 0 : index
    %394 = vector.load %arg9[%c1200_296, %c0_297] : memref<2040x96xf32, #tpu.memory_space<vmem>>, vector<40x32xf32>
    %c1240_298 = arith.constant 1240 : index
    %c32_299 = arith.constant 32 : index
    %395 = vector.load %arg9[%c1240_298, %c32_299] : memref<2040x96xf32, #tpu.memory_space<vmem>>, vector<40x32xf32>
    %396 = arith.addf %394, %395 : vector<40x32xf32>
    %c1280_300 = arith.constant 1280 : index
    %c64_301 = arith.constant 64 : index
    %397 = vector.load %arg9[%c1280_300, %c64_301] : memref<2040x96xf32, #tpu.memory_space<vmem>>, vector<40x32xf32>
    %398 = arith.addf %396, %397 : vector<40x32xf32>
    %399 = vector.broadcast %1 : vector<1x32xf32> to vector<40x32xf32>
    %400 = arith.addf %398, %399 : vector<40x32xf32>
    %cst_302 = arith.constant 0.000000e+00 : f32
    %401 = vector.broadcast %cst_302 : f32 to vector<40x32xf32>
    %402 = arith.maximumf %400, %401 : vector<40x32xf32>
    %c0_303 = arith.constant 0 : index
    %c960_304 = arith.constant 960 : index
    %403 = vector.load %arg10[%c0_303, %c960_304] : memref<40x1568xf32, #tpu.memory_space<vmem>>, vector<40x32xf32>
    tpu.vector_store %arg10[%c0_303, %c960_304], %402 {strides = array<i32>} : memref<40x1568xf32, #tpu.memory_space<vmem>>, vector<40x32xf32>,
    %c1240_305 = arith.constant 1240 : index
    %c0_306 = arith.constant 0 : index
    %404 = vector.load %arg9[%c1240_305, %c0_306] : memref<2040x96xf32, #tpu.memory_space<vmem>>, vector<40x32xf32>
    %c1280_307 = arith.constant 1280 : index
    %c32_308 = arith.constant 32 : index
    %405 = vector.load %arg9[%c1280_307, %c32_308] : memref<2040x96xf32, #tpu.memory_space<vmem>>, vector<40x32xf32>
    %406 = arith.addf %404, %405 : vector<40x32xf32>
    %c1320_309 = arith.constant 1320 : index
    %c64_310 = arith.constant 64 : index
    %407 = vector.load %arg9[%c1320_309, %c64_310] : memref<2040x96xf32, #tpu.memory_space<vmem>>, vector<40x32xf32>
    %408 = arith.addf %406, %407 : vector<40x32xf32>
    %409 = vector.broadcast %1 : vector<1x32xf32> to vector<40x32xf32>
    %410 = arith.addf %408, %409 : vector<40x32xf32>
    %cst_311 = arith.constant 0.000000e+00 : f32
    %411 = vector.broadcast %cst_311 : f32 to vector<40x32xf32>
    %412 = arith.maximumf %410, %411 : vector<40x32xf32>
    %c0_312 = arith.constant 0 : index
    %c992 = arith.constant 992 : index
    %413 = vector.load %arg10[%c0_312, %c992] : memref<40x1568xf32, #tpu.memory_space<vmem>>, vector<40x32xf32>
    tpu.vector_store %arg10[%c0_312, %c992], %412 {strides = array<i32>} : memref<40x1568xf32, #tpu.memory_space<vmem>>, vector<40x32xf32>,
    %c1280_313 = arith.constant 1280 : index
    %c0_314 = arith.constant 0 : index
    %414 = vector.load %arg9[%c1280_313, %c0_314] : memref<2040x96xf32, #tpu.memory_space<vmem>>, vector<40x32xf32>
    %c1320_315 = arith.constant 1320 : index
    %c32_316 = arith.constant 32 : index
    %415 = vector.load %arg9[%c1320_315, %c32_316] : memref<2040x96xf32, #tpu.memory_space<vmem>>, vector<40x32xf32>
    %416 = arith.addf %414, %415 : vector<40x32xf32>
    %c1360 = arith.constant 1360 : index
    %c64_317 = arith.constant 64 : index
    %417 = vector.load %arg9[%c1360, %c64_317] : memref<2040x96xf32, #tpu.memory_space<vmem>>, vector<40x32xf32>
    %418 = arith.addf %416, %417 : vector<40x32xf32>
    %419 = vector.broadcast %1 : vector<1x32xf32> to vector<40x32xf32>
    %420 = arith.addf %418, %419 : vector<40x32xf32>
    %cst_318 = arith.constant 0.000000e+00 : f32
    %421 = vector.broadcast %cst_318 : f32 to vector<40x32xf32>
    %422 = arith.maximumf %420, %421 : vector<40x32xf32>
    %c0_319 = arith.constant 0 : index
    %c1024 = arith.constant 1024 : index
    %423 = vector.load %arg10[%c0_319, %c1024] : memref<40x1568xf32, #tpu.memory_space<vmem>>, vector<40x32xf32>
    tpu.vector_store %arg10[%c0_319, %c1024], %422 {strides = array<i32>} : memref<40x1568xf32, #tpu.memory_space<vmem>>, vector<40x32xf32>,
    %c1320_320 = arith.constant 1320 : index
    %c0_321 = arith.constant 0 : index
    %424 = vector.load %arg9[%c1320_320, %c0_321] : memref<2040x96xf32, #tpu.memory_space<vmem>>, vector<40x32xf32>
    %c1360_322 = arith.constant 1360 : index
    %c32_323 = arith.constant 32 : index
    %425 = vector.load %arg9[%c1360_322, %c32_323] : memref<2040x96xf32, #tpu.memory_space<vmem>>, vector<40x32xf32>
    %426 = arith.addf %424, %425 : vector<40x32xf32>
    %c1400 = arith.constant 1400 : index
    %c64_324 = arith.constant 64 : index
    %427 = vector.load %arg9[%c1400, %c64_324] : memref<2040x96xf32, #tpu.memory_space<vmem>>, vector<40x32xf32>
    %428 = arith.addf %426, %427 : vector<40x32xf32>
    %429 = vector.broadcast %1 : vector<1x32xf32> to vector<40x32xf32>
    %430 = arith.addf %428, %429 : vector<40x32xf32>
    %cst_325 = arith.constant 0.000000e+00 : f32
    %431 = vector.broadcast %cst_325 : f32 to vector<40x32xf32>
    %432 = arith.maximumf %430, %431 : vector<40x32xf32>
    %c0_326 = arith.constant 0 : index
    %c1056 = arith.constant 1056 : index
    %433 = vector.load %arg10[%c0_326, %c1056] : memref<40x1568xf32, #tpu.memory_space<vmem>>, vector<40x32xf32>
    tpu.vector_store %arg10[%c0_326, %c1056], %432 {strides = array<i32>} : memref<40x1568xf32, #tpu.memory_space<vmem>>, vector<40x32xf32>,
    %c1360_327 = arith.constant 1360 : index
    %c0_328 = arith.constant 0 : index
    %434 = vector.load %arg9[%c1360_327, %c0_328] : memref<2040x96xf32, #tpu.memory_space<vmem>>, vector<40x32xf32>
    %c1400_329 = arith.constant 1400 : index
    %c32_330 = arith.constant 32 : index
    %435 = vector.load %arg9[%c1400_329, %c32_330] : memref<2040x96xf32, #tpu.memory_space<vmem>>, vector<40x32xf32>
    %436 = arith.addf %434, %435 : vector<40x32xf32>
    %c1440 = arith.constant 1440 : index
    %c64_331 = arith.constant 64 : index
    %437 = vector.load %arg9[%c1440, %c64_331] : memref<2040x96xf32, #tpu.memory_space<vmem>>, vector<40x32xf32>
    %438 = arith.addf %436, %437 : vector<40x32xf32>
    %439 = vector.broadcast %1 : vector<1x32xf32> to vector<40x32xf32>
    %440 = arith.addf %438, %439 : vector<40x32xf32>
    %cst_332 = arith.constant 0.000000e+00 : f32
    %441 = vector.broadcast %cst_332 : f32 to vector<40x32xf32>
    %442 = arith.maximumf %440, %441 : vector<40x32xf32>
    %c0_333 = arith.constant 0 : index
    %c1088 = arith.constant 1088 : index
    %443 = vector.load %arg10[%c0_333, %c1088] : memref<40x1568xf32, #tpu.memory_space<vmem>>, vector<40x32xf32>
    tpu.vector_store %arg10[%c0_333, %c1088], %442 {strides = array<i32>} : memref<40x1568xf32, #tpu.memory_space<vmem>>, vector<40x32xf32>,
    %c1400_334 = arith.constant 1400 : index
    %c0_335 = arith.constant 0 : index
    %444 = vector.load %arg9[%c1400_334, %c0_335] : memref<2040x96xf32, #tpu.memory_space<vmem>>, vector<40x32xf32>
    %c1440_336 = arith.constant 1440 : index
    %c32_337 = arith.constant 32 : index
    %445 = vector.load %arg9[%c1440_336, %c32_337] : memref<2040x96xf32, #tpu.memory_space<vmem>>, vector<40x32xf32>
    %446 = arith.addf %444, %445 : vector<40x32xf32>
    %c1480 = arith.constant 1480 : index
    %c64_338 = arith.constant 64 : index
    %447 = vector.load %arg9[%c1480, %c64_338] : memref<2040x96xf32, #tpu.memory_space<vmem>>, vector<40x32xf32>
    %448 = arith.addf %446, %447 : vector<40x32xf32>
    %449 = vector.broadcast %1 : vector<1x32xf32> to vector<40x32xf32>
    %450 = arith.addf %448, %449 : vector<40x32xf32>
    %cst_339 = arith.constant 0.000000e+00 : f32
    %451 = vector.broadcast %cst_339 : f32 to vector<40x32xf32>
    %452 = arith.maximumf %450, %451 : vector<40x32xf32>
    %c0_340 = arith.constant 0 : index
    %c1120_341 = arith.constant 1120 : index
    %453 = vector.load %arg10[%c0_340, %c1120_341] : memref<40x1568xf32, #tpu.memory_space<vmem>>, vector<40x32xf32>
    tpu.vector_store %arg10[%c0_340, %c1120_341], %452 {strides = array<i32>} : memref<40x1568xf32, #tpu.memory_space<vmem>>, vector<40x32xf32>,
    %c1440_342 = arith.constant 1440 : index
    %c0_343 = arith.constant 0 : index
    %454 = vector.load %arg9[%c1440_342, %c0_343] : memref<2040x96xf32, #tpu.memory_space<vmem>>, vector<40x32xf32>
    %c1480_344 = arith.constant 1480 : index
    %c32_345 = arith.constant 32 : index
    %455 = vector.load %arg9[%c1480_344, %c32_345] : memref<2040x96xf32, #tpu.memory_space<vmem>>, vector<40x32xf32>
    %456 = arith.addf %454, %455 : vector<40x32xf32>
    %c1520 = arith.constant 1520 : index
    %c64_346 = arith.constant 64 : index
    %457 = vector.load %arg9[%c1520, %c64_346] : memref<2040x96xf32, #tpu.memory_space<vmem>>, vector<40x32xf32>
    %458 = arith.addf %456, %457 : vector<40x32xf32>
    %459 = vector.broadcast %1 : vector<1x32xf32> to vector<40x32xf32>
    %460 = arith.addf %458, %459 : vector<40x32xf32>
    %cst_347 = arith.constant 0.000000e+00 : f32
    %461 = vector.broadcast %cst_347 : f32 to vector<40x32xf32>
    %462 = arith.maximumf %460, %461 : vector<40x32xf32>
    %c0_348 = arith.constant 0 : index
    %c1152 = arith.constant 1152 : index
    %463 = vector.load %arg10[%c0_348, %c1152] : memref<40x1568xf32, #tpu.memory_space<vmem>>, vector<40x32xf32>
    tpu.vector_store %arg10[%c0_348, %c1152], %462 {strides = array<i32>} : memref<40x1568xf32, #tpu.memory_space<vmem>>, vector<40x32xf32>,
    %c1480_349 = arith.constant 1480 : index
    %c0_350 = arith.constant 0 : index
    %464 = vector.load %arg9[%c1480_349, %c0_350] : memref<2040x96xf32, #tpu.memory_space<vmem>>, vector<40x32xf32>
    %c1520_351 = arith.constant 1520 : index
    %c32_352 = arith.constant 32 : index
    %465 = vector.load %arg9[%c1520_351, %c32_352] : memref<2040x96xf32, #tpu.memory_space<vmem>>, vector<40x32xf32>
    %466 = arith.addf %464, %465 : vector<40x32xf32>
    %c1560 = arith.constant 1560 : index
    %c64_353 = arith.constant 64 : index
    %467 = vector.load %arg9[%c1560, %c64_353] : memref<2040x96xf32, #tpu.memory_space<vmem>>, vector<40x32xf32>
    %468 = arith.addf %466, %467 : vector<40x32xf32>
    %469 = vector.broadcast %1 : vector<1x32xf32> to vector<40x32xf32>
    %470 = arith.addf %468, %469 : vector<40x32xf32>
    %cst_354 = arith.constant 0.000000e+00 : f32
    %471 = vector.broadcast %cst_354 : f32 to vector<40x32xf32>
    %472 = arith.maximumf %470, %471 : vector<40x32xf32>
    %c0_355 = arith.constant 0 : index
    %c1184 = arith.constant 1184 : index
    %473 = vector.load %arg10[%c0_355, %c1184] : memref<40x1568xf32, #tpu.memory_space<vmem>>, vector<40x32xf32>
    tpu.vector_store %arg10[%c0_355, %c1184], %472 {strides = array<i32>} : memref<40x1568xf32, #tpu.memory_space<vmem>>, vector<40x32xf32>,
    %c1520_356 = arith.constant 1520 : index
    %c0_357 = arith.constant 0 : index
    %474 = vector.load %arg9[%c1520_356, %c0_357] : memref<2040x96xf32, #tpu.memory_space<vmem>>, vector<40x32xf32>
    %c1560_358 = arith.constant 1560 : index
    %c32_359 = arith.constant 32 : index
    %475 = vector.load %arg9[%c1560_358, %c32_359] : memref<2040x96xf32, #tpu.memory_space<vmem>>, vector<40x32xf32>
    %476 = arith.addf %474, %475 : vector<40x32xf32>
    %c1600_360 = arith.constant 1600 : index
    %c64_361 = arith.constant 64 : index
    %477 = vector.load %arg9[%c1600_360, %c64_361] : memref<2040x96xf32, #tpu.memory_space<vmem>>, vector<40x32xf32>
    %478 = arith.addf %476, %477 : vector<40x32xf32>
    %479 = vector.broadcast %1 : vector<1x32xf32> to vector<40x32xf32>
    %480 = arith.addf %478, %479 : vector<40x32xf32>
    %cst_362 = arith.constant 0.000000e+00 : f32
    %481 = vector.broadcast %cst_362 : f32 to vector<40x32xf32>
    %482 = arith.maximumf %480, %481 : vector<40x32xf32>
    %c0_363 = arith.constant 0 : index
    %c1216 = arith.constant 1216 : index
    %483 = vector.load %arg10[%c0_363, %c1216] : memref<40x1568xf32, #tpu.memory_space<vmem>>, vector<40x32xf32>
    tpu.vector_store %arg10[%c0_363, %c1216], %482 {strides = array<i32>} : memref<40x1568xf32, #tpu.memory_space<vmem>>, vector<40x32xf32>,
    %c1560_364 = arith.constant 1560 : index
    %c0_365 = arith.constant 0 : index
    %484 = vector.load %arg9[%c1560_364, %c0_365] : memref<2040x96xf32, #tpu.memory_space<vmem>>, vector<40x32xf32>
    %c1600_366 = arith.constant 1600 : index
    %c32_367 = arith.constant 32 : index
    %485 = vector.load %arg9[%c1600_366, %c32_367] : memref<2040x96xf32, #tpu.memory_space<vmem>>, vector<40x32xf32>
    %486 = arith.addf %484, %485 : vector<40x32xf32>
    %c1640_368 = arith.constant 1640 : index
    %c64_369 = arith.constant 64 : index
    %487 = vector.load %arg9[%c1640_368, %c64_369] : memref<2040x96xf32, #tpu.memory_space<vmem>>, vector<40x32xf32>
    %488 = arith.addf %486, %487 : vector<40x32xf32>
    %489 = vector.broadcast %1 : vector<1x32xf32> to vector<40x32xf32>
    %490 = arith.addf %488, %489 : vector<40x32xf32>
    %cst_370 = arith.constant 0.000000e+00 : f32
    %491 = vector.broadcast %cst_370 : f32 to vector<40x32xf32>
    %492 = arith.maximumf %490, %491 : vector<40x32xf32>
    %c0_371 = arith.constant 0 : index
    %c1248 = arith.constant 1248 : index
    %493 = vector.load %arg10[%c0_371, %c1248] : memref<40x1568xf32, #tpu.memory_space<vmem>>, vector<40x32xf32>
    tpu.vector_store %arg10[%c0_371, %c1248], %492 {strides = array<i32>} : memref<40x1568xf32, #tpu.memory_space<vmem>>, vector<40x32xf32>,
    %c1600_372 = arith.constant 1600 : index
    %c0_373 = arith.constant 0 : index
    %494 = vector.load %arg9[%c1600_372, %c0_373] : memref<2040x96xf32, #tpu.memory_space<vmem>>, vector<40x32xf32>
    %c1640_374 = arith.constant 1640 : index
    %c32_375 = arith.constant 32 : index
    %495 = vector.load %arg9[%c1640_374, %c32_375] : memref<2040x96xf32, #tpu.memory_space<vmem>>, vector<40x32xf32>
    %496 = arith.addf %494, %495 : vector<40x32xf32>
    %c1680 = arith.constant 1680 : index
    %c64_376 = arith.constant 64 : index
    %497 = vector.load %arg9[%c1680, %c64_376] : memref<2040x96xf32, #tpu.memory_space<vmem>>, vector<40x32xf32>
    %498 = arith.addf %496, %497 : vector<40x32xf32>
    %499 = vector.broadcast %1 : vector<1x32xf32> to vector<40x32xf32>
    %500 = arith.addf %498, %499 : vector<40x32xf32>
    %cst_377 = arith.constant 0.000000e+00 : f32
    %501 = vector.broadcast %cst_377 : f32 to vector<40x32xf32>
    %502 = arith.maximumf %500, %501 : vector<40x32xf32>
    %c0_378 = arith.constant 0 : index
    %c1280_379 = arith.constant 1280 : index
    %503 = vector.load %arg10[%c0_378, %c1280_379] : memref<40x1568xf32, #tpu.memory_space<vmem>>, vector<40x32xf32>
    tpu.vector_store %arg10[%c0_378, %c1280_379], %502 {strides = array<i32>} : memref<40x1568xf32, #tpu.memory_space<vmem>>, vector<40x32xf32>,
    %c1640_380 = arith.constant 1640 : index
    %c0_381 = arith.constant 0 : index
    %504 = vector.load %arg9[%c1640_380, %c0_381] : memref<2040x96xf32, #tpu.memory_space<vmem>>, vector<40x32xf32>
    %c1680_382 = arith.constant 1680 : index
    %c32_383 = arith.constant 32 : index
    %505 = vector.load %arg9[%c1680_382, %c32_383] : memref<2040x96xf32, #tpu.memory_space<vmem>>, vector<40x32xf32>
    %506 = arith.addf %504, %505 : vector<40x32xf32>
    %c1720 = arith.constant 1720 : index
    %c64_384 = arith.constant 64 : index
    %507 = vector.load %arg9[%c1720, %c64_384] : memref<2040x96xf32, #tpu.memory_space<vmem>>, vector<40x32xf32>
    %508 = arith.addf %506, %507 : vector<40x32xf32>
    %509 = vector.broadcast %1 : vector<1x32xf32> to vector<40x32xf32>
    %510 = arith.addf %508, %509 : vector<40x32xf32>
    %cst_385 = arith.constant 0.000000e+00 : f32
    %511 = vector.broadcast %cst_385 : f32 to vector<40x32xf32>
    %512 = arith.maximumf %510, %511 : vector<40x32xf32>
    %c0_386 = arith.constant 0 : index
    %c1312 = arith.constant 1312 : index
    %513 = vector.load %arg10[%c0_386, %c1312] : memref<40x1568xf32, #tpu.memory_space<vmem>>, vector<40x32xf32>
    tpu.vector_store %arg10[%c0_386, %c1312], %512 {strides = array<i32>} : memref<40x1568xf32, #tpu.memory_space<vmem>>, vector<40x32xf32>,
    %c1680_387 = arith.constant 1680 : index
    %c0_388 = arith.constant 0 : index
    %514 = vector.load %arg9[%c1680_387, %c0_388] : memref<2040x96xf32, #tpu.memory_space<vmem>>, vector<40x32xf32>
    %c1720_389 = arith.constant 1720 : index
    %c32_390 = arith.constant 32 : index
    %515 = vector.load %arg9[%c1720_389, %c32_390] : memref<2040x96xf32, #tpu.memory_space<vmem>>, vector<40x32xf32>
    %516 = arith.addf %514, %515 : vector<40x32xf32>
    %c1760 = arith.constant 1760 : index
    %c64_391 = arith.constant 64 : index
    %517 = vector.load %arg9[%c1760, %c64_391] : memref<2040x96xf32, #tpu.memory_space<vmem>>, vector<40x32xf32>
    %518 = arith.addf %516, %517 : vector<40x32xf32>
    %519 = vector.broadcast %1 : vector<1x32xf32> to vector<40x32xf32>
    %520 = arith.addf %518, %519 : vector<40x32xf32>
    %cst_392 = arith.constant 0.000000e+00 : f32
    %521 = vector.broadcast %cst_392 : f32 to vector<40x32xf32>
    %522 = arith.maximumf %520, %521 : vector<40x32xf32>
    %c0_393 = arith.constant 0 : index
    %c1344 = arith.constant 1344 : index
    %523 = vector.load %arg10[%c0_393, %c1344] : memref<40x1568xf32, #tpu.memory_space<vmem>>, vector<40x32xf32>
    tpu.vector_store %arg10[%c0_393, %c1344], %522 {strides = array<i32>} : memref<40x1568xf32, #tpu.memory_space<vmem>>, vector<40x32xf32>,
    %c1720_394 = arith.constant 1720 : index
    %c0_395 = arith.constant 0 : index
    %524 = vector.load %arg9[%c1720_394, %c0_395] : memref<2040x96xf32, #tpu.memory_space<vmem>>, vector<40x32xf32>
    %c1760_396 = arith.constant 1760 : index
    %c32_397 = arith.constant 32 : index
    %525 = vector.load %arg9[%c1760_396, %c32_397] : memref<2040x96xf32, #tpu.memory_space<vmem>>, vector<40x32xf32>
    %526 = arith.addf %524, %525 : vector<40x32xf32>
    %c1800 = arith.constant 1800 : index
    %c64_398 = arith.constant 64 : index
    %527 = vector.load %arg9[%c1800, %c64_398] : memref<2040x96xf32, #tpu.memory_space<vmem>>, vector<40x32xf32>
    %528 = arith.addf %526, %527 : vector<40x32xf32>
    %529 = vector.broadcast %1 : vector<1x32xf32> to vector<40x32xf32>
    %530 = arith.addf %528, %529 : vector<40x32xf32>
    %cst_399 = arith.constant 0.000000e+00 : f32
    %531 = vector.broadcast %cst_399 : f32 to vector<40x32xf32>
    %532 = arith.maximumf %530, %531 : vector<40x32xf32>
    %c0_400 = arith.constant 0 : index
    %c1376 = arith.constant 1376 : index
    %533 = vector.load %arg10[%c0_400, %c1376] : memref<40x1568xf32, #tpu.memory_space<vmem>>, vector<40x32xf32>
    tpu.vector_store %arg10[%c0_400, %c1376], %532 {strides = array<i32>} : memref<40x1568xf32, #tpu.memory_space<vmem>>, vector<40x32xf32>,
    %c1760_401 = arith.constant 1760 : index
    %c0_402 = arith.constant 0 : index
    %534 = vector.load %arg9[%c1760_401, %c0_402] : memref<2040x96xf32, #tpu.memory_space<vmem>>, vector<40x32xf32>
    %c1800_403 = arith.constant 1800 : index
    %c32_404 = arith.constant 32 : index
    %535 = vector.load %arg9[%c1800_403, %c32_404] : memref<2040x96xf32, #tpu.memory_space<vmem>>, vector<40x32xf32>
    %536 = arith.addf %534, %535 : vector<40x32xf32>
    %c1840 = arith.constant 1840 : index
    %c64_405 = arith.constant 64 : index
    %537 = vector.load %arg9[%c1840, %c64_405] : memref<2040x96xf32, #tpu.memory_space<vmem>>, vector<40x32xf32>
    %538 = arith.addf %536, %537 : vector<40x32xf32>
    %539 = vector.broadcast %1 : vector<1x32xf32> to vector<40x32xf32>
    %540 = arith.addf %538, %539 : vector<40x32xf32>
    %cst_406 = arith.constant 0.000000e+00 : f32
    %541 = vector.broadcast %cst_406 : f32 to vector<40x32xf32>
    %542 = arith.maximumf %540, %541 : vector<40x32xf32>
    %c0_407 = arith.constant 0 : index
    %c1408 = arith.constant 1408 : index
    %543 = vector.load %arg10[%c0_407, %c1408] : memref<40x1568xf32, #tpu.memory_space<vmem>>, vector<40x32xf32>
    tpu.vector_store %arg10[%c0_407, %c1408], %542 {strides = array<i32>} : memref<40x1568xf32, #tpu.memory_space<vmem>>, vector<40x32xf32>,
    %c1800_408 = arith.constant 1800 : index
    %c0_409 = arith.constant 0 : index
    %544 = vector.load %arg9[%c1800_408, %c0_409] : memref<2040x96xf32, #tpu.memory_space<vmem>>, vector<40x32xf32>
    %c1840_410 = arith.constant 1840 : index
    %c32_411 = arith.constant 32 : index
    %545 = vector.load %arg9[%c1840_410, %c32_411] : memref<2040x96xf32, #tpu.memory_space<vmem>>, vector<40x32xf32>
    %546 = arith.addf %544, %545 : vector<40x32xf32>
    %c1880 = arith.constant 1880 : index
    %c64_412 = arith.constant 64 : index
    %547 = vector.load %arg9[%c1880, %c64_412] : memref<2040x96xf32, #tpu.memory_space<vmem>>, vector<40x32xf32>
    %548 = arith.addf %546, %547 : vector<40x32xf32>
    %549 = vector.broadcast %1 : vector<1x32xf32> to vector<40x32xf32>
    %550 = arith.addf %548, %549 : vector<40x32xf32>
    %cst_413 = arith.constant 0.000000e+00 : f32
    %551 = vector.broadcast %cst_413 : f32 to vector<40x32xf32>
    %552 = arith.maximumf %550, %551 : vector<40x32xf32>
    %c0_414 = arith.constant 0 : index
    %c1440_415 = arith.constant 1440 : index
    %553 = vector.load %arg10[%c0_414, %c1440_415] : memref<40x1568xf32, #tpu.memory_space<vmem>>, vector<40x32xf32>
    tpu.vector_store %arg10[%c0_414, %c1440_415], %552 {strides = array<i32>} : memref<40x1568xf32, #tpu.memory_space<vmem>>, vector<40x32xf32>,
    %c1840_416 = arith.constant 1840 : index
    %c0_417 = arith.constant 0 : index
    %554 = vector.load %arg9[%c1840_416, %c0_417] : memref<2040x96xf32, #tpu.memory_space<vmem>>, vector<40x32xf32>
    %c1880_418 = arith.constant 1880 : index
    %c32_419 = arith.constant 32 : index
    %555 = vector.load %arg9[%c1880_418, %c32_419] : memref<2040x96xf32, #tpu.memory_space<vmem>>, vector<40x32xf32>
    %556 = arith.addf %554, %555 : vector<40x32xf32>
    %c1920_420 = arith.constant 1920 : index
    %c64_421 = arith.constant 64 : index
    %557 = vector.load %arg9[%c1920_420, %c64_421] : memref<2040x96xf32, #tpu.memory_space<vmem>>, vector<40x32xf32>
    %558 = arith.addf %556, %557 : vector<40x32xf32>
    %559 = vector.broadcast %1 : vector<1x32xf32> to vector<40x32xf32>
    %560 = arith.addf %558, %559 : vector<40x32xf32>
    %cst_422 = arith.constant 0.000000e+00 : f32
    %561 = vector.broadcast %cst_422 : f32 to vector<40x32xf32>
    %562 = arith.maximumf %560, %561 : vector<40x32xf32>
    %c0_423 = arith.constant 0 : index
    %c1472 = arith.constant 1472 : index
    %563 = vector.load %arg10[%c0_423, %c1472] : memref<40x1568xf32, #tpu.memory_space<vmem>>, vector<40x32xf32>
    tpu.vector_store %arg10[%c0_423, %c1472], %562 {strides = array<i32>} : memref<40x1568xf32, #tpu.memory_space<vmem>>, vector<40x32xf32>,
    %c1880_424 = arith.constant 1880 : index
    %c0_425 = arith.constant 0 : index
    %564 = vector.load %arg9[%c1880_424, %c0_425] : memref<2040x96xf32, #tpu.memory_space<vmem>>, vector<40x32xf32>
    %c1920_426 = arith.constant 1920 : index
    %c32_427 = arith.constant 32 : index
    %565 = vector.load %arg9[%c1920_426, %c32_427] : memref<2040x96xf32, #tpu.memory_space<vmem>>, vector<40x32xf32>
    %566 = arith.addf %564, %565 : vector<40x32xf32>
    %c1960_428 = arith.constant 1960 : index
    %c64_429 = arith.constant 64 : index
    %567 = vector.load %arg9[%c1960_428, %c64_429] : memref<2040x96xf32, #tpu.memory_space<vmem>>, vector<40x32xf32>
    %568 = arith.addf %566, %567 : vector<40x32xf32>
    %569 = vector.broadcast %1 : vector<1x32xf32> to vector<40x32xf32>
    %570 = arith.addf %568, %569 : vector<40x32xf32>
    %cst_430 = arith.constant 0.000000e+00 : f32
    %571 = vector.broadcast %cst_430 : f32 to vector<40x32xf32>
    %572 = arith.maximumf %570, %571 : vector<40x32xf32>
    %c0_431 = arith.constant 0 : index
    %c1504 = arith.constant 1504 : index
    %573 = vector.load %arg10[%c0_431, %c1504] : memref<40x1568xf32, #tpu.memory_space<vmem>>, vector<40x32xf32>
    tpu.vector_store %arg10[%c0_431, %c1504], %572 {strides = array<i32>} : memref<40x1568xf32, #tpu.memory_space<vmem>>, vector<40x32xf32>,
    %c1920_432 = arith.constant 1920 : index
    %c0_433 = arith.constant 0 : index
    %574 = vector.load %arg9[%c1920_432, %c0_433] : memref<2040x96xf32, #tpu.memory_space<vmem>>, vector<40x32xf32>
    %c1960_434 = arith.constant 1960 : index
    %c32_435 = arith.constant 32 : index
    %575 = vector.load %arg9[%c1960_434, %c32_435] : memref<2040x96xf32, #tpu.memory_space<vmem>>, vector<40x32xf32>
    %576 = arith.addf %574, %575 : vector<40x32xf32>
    %c2000_436 = arith.constant 2000 : index
    %c64_437 = arith.constant 64 : index
    %577 = vector.load %arg9[%c2000_436, %c64_437] : memref<2040x96xf32, #tpu.memory_space<vmem>>, vector<40x32xf32>
    %578 = arith.addf %576, %577 : vector<40x32xf32>
    %579 = vector.broadcast %1 : vector<1x32xf32> to vector<40x32xf32>
    %580 = arith.addf %578, %579 : vector<40x32xf32>
    %cst_438 = arith.constant 0.000000e+00 : f32
    %581 = vector.broadcast %cst_438 : f32 to vector<40x32xf32>
    %582 = arith.maximumf %580, %581 : vector<40x32xf32>
    %c0_439 = arith.constant 0 : index
    %c1536 = arith.constant 1536 : index
    %583 = vector.load %arg10[%c0_439, %c1536] : memref<40x1568xf32, #tpu.memory_space<vmem>>, vector<40x32xf32>
    tpu.vector_store %arg10[%c0_439, %c1536], %582 {strides = array<i32>} : memref<40x1568xf32, #tpu.memory_space<vmem>>, vector<40x32xf32>,
    %c0_440 = arith.constant 0 : index
    %c0_441 = arith.constant 0 : index
    %584 = vector.load %arg10[%c0_440, %c0_441] : memref<40x1568xf32, #tpu.memory_space<vmem>>, vector<40x1568xf32>
    %585 = arith.truncf %584 : vector<40x1568xf32> to vector<40x1568xbf16>
    %c0_442 = arith.constant 0 : index
    %c0_443 = arith.constant 0 : index
    %586 = vector.load %arg4[%c0_442, %c0_443] : memref<1568x80xbf16, #tpu.memory_space<vmem>>, vector<1568x80xbf16>
    %cst_444 = arith.constant dense<0.000000e+00> : vector<40x80xf32>
    %587 = tpu.matmul %585, %586, %cst_444 {dimension_numbers = #tpu.dot_dimension_numbers<[1], [0], [0], [1], [0, 0, 1, 1], [], []>} : vector<40x1568xbf16>, vector<1568x80xbf16>, vector<40x80xf32> -> vector<40x80xf32>
    %588 = vector.broadcast %2 : vector<1x80xf32> to vector<40x80xf32>
    %589 = arith.addf %587, %588 : vector<40x80xf32>
    %cst_445 = arith.constant 0.000000e+00 : f32
    %590 = vector.broadcast %cst_445 : f32 to vector<40x80xf32>
    %591 = arith.maximumf %589, %590 : vector<40x80xf32>
    %592 = arith.truncf %591 : vector<40x80xf32> to vector<40x80xbf16>
    %c0_446 = arith.constant 0 : index
    %c0_447 = arith.constant 0 : index
    %593 = vector.load %arg5[%c0_446, %c0_447] : memref<80x40xbf16, #tpu.memory_space<vmem>>, vector<80x40xbf16>
    %cst_448 = arith.constant dense<0.000000e+00> : vector<40x40xf32>
    %594 = tpu.matmul %592, %593, %cst_448 {dimension_numbers = #tpu.dot_dimension_numbers<[1], [0], [0], [1], [0, 0, 1, 1], [], []>} : vector<40x80xbf16>, vector<80x40xbf16>, vector<40x40xf32> -> vector<40x40xf32>
    %595 = vector.broadcast %5 : vector<1x40xf32> to vector<40x40xf32>
    %596 = arith.mulf %594, %595 : vector<40x40xf32>
    %cst_449 = arith.constant dense<0.000000e+00> : vector<40xf32>
    %597 = vector.multi_reduction <add>, %596, %cst_449 [1] : vector<40x40xf32> to vector<40xf32>
    %598 = vector.shape_cast %597 : vector<40xf32> to vector<40x1xf32>
    %cst_450 = arith.constant dense<0.000000e+00> : vector<1x40xf32>
    %599 = tpu.matmul %4, %594, %cst_450 {dimension_numbers = #tpu.dot_dimension_numbers<[1], [1], [0], [0], [0, 0, 1, 0], [], []>} : vector<1x40xf32>, vector<40x40xf32>, vector<1x40xf32> -> vector<1x40xf32>
    %600 = vector.extract_strided_slice %599 {offsets = [0, 0], sizes = [1, 8], strides = [1, 1]} : vector<1x40xf32> to vector<1x8xf32>
    %601 = vector.shape_cast %600 : vector<1x8xf32> to vector<1x8xf32>
    %602 = vector.broadcast %601 : vector<1x8xf32> to vector<8x8xf32>
    %603 = vector.extract_strided_slice %599 {offsets = [0, 8], sizes = [1, 8], strides = [1, 1]} : vector<1x40xf32> to vector<1x8xf32>
    %604 = vector.shape_cast %603 : vector<1x8xf32> to vector<1x8xf32>
    %605 = vector.broadcast %604 : vector<1x8xf32> to vector<8x8xf32>
    %606 = vector.extract_strided_slice %599 {offsets = [0, 16], sizes = [1, 8], strides = [1, 1]} : vector<1x40xf32> to vector<1x8xf32>
    %607 = vector.shape_cast %606 : vector<1x8xf32> to vector<1x8xf32>
    %608 = vector.broadcast %607 : vector<1x8xf32> to vector<8x8xf32>
    %609 = vector.extract_strided_slice %599 {offsets = [0, 24], sizes = [1, 8], strides = [1, 1]} : vector<1x40xf32> to vector<1x8xf32>
    %610 = vector.shape_cast %609 : vector<1x8xf32> to vector<1x8xf32>
    %611 = vector.broadcast %610 : vector<1x8xf32> to vector<8x8xf32>
    %612 = vector.extract_strided_slice %599 {offsets = [0, 32], sizes = [1, 8], strides = [1, 1]} : vector<1x40xf32> to vector<1x8xf32>
    %613 = vector.shape_cast %612 : vector<1x8xf32> to vector<1x8xf32>
    %614 = vector.broadcast %613 : vector<1x8xf32> to vector<8x8xf32>
    %615 = tpu.concatenate %602, %605, %608, %611, %614 in 0 : vector<8x8xf32>, vector<8x8xf32>, vector<8x8xf32>, vector<8x8xf32>, vector<8x8xf32> -> vector<40x8xf32>
    %c0_451 = arith.constant 0 : index
    %c0_452 = arith.constant 0 : index
    %616 = vector.load %arg7[%c0_451, %c0_452] : memref<8x8xf32, #tpu.memory_space<vmem>>, vector<8x8xf32>
    %cst_453 = arith.constant 0.000000e+00 : f32
    %617 = vector.broadcast %cst_453 : f32 to vector<8x8xf32>
    %618 = arith.cmpf ogt, %616, %617 : vector<8x8xf32>
    %cst_454 = arith.constant 0.000000e+00 : f32
    %cst_455 = arith.constant -1.000000e+30 : f32
    %619 = vector.broadcast %cst_454 : f32 to vector<8x8xf32>
    %620 = vector.broadcast %cst_455 : f32 to vector<8x8xf32>
    %621 = arith.select %618, %619, %620 : vector<8x8xi1>, vector<8x8xf32>
    %622 = tpu.concatenate %621, %621, %621, %621, %621 in 0 : vector<8x8xf32>, vector<8x8xf32>, vector<8x8xf32>, vector<8x8xf32>, vector<8x8xf32> -> vector<40x8xf32>
    %623 = vector.broadcast %598 : vector<40x1xf32> to vector<40x8xf32>
    %624 = arith.addf %623, %615 : vector<40x8xf32>
    %cst_456 = arith.constant 0.000000e+00 : f32
    %625 = vector.broadcast %cst_456 : f32 to vector<40x8xf32>
    %626 = arith.cmpf ogt, %624, %625 : vector<40x8xf32>
    %cst_457 = arith.constant 2.000000e-01 : f32
    %627 = vector.broadcast %cst_457 : f32 to vector<40x8xf32>
    %628 = arith.mulf %627, %624 : vector<40x8xf32>
    %629 = arith.select %626, %624, %628 : vector<40x8xi1>, vector<40x8xf32>
    %630 = arith.addf %629, %622 : vector<40x8xf32>
    %cst_458 = arith.constant dense<0xFF800000> : vector<40xf32>
    %631 = vector.multi_reduction <maximumf>, %630, %cst_458 [1] : vector<40x8xf32> to vector<40xf32>
    %632 = vector.shape_cast %631 : vector<40xf32> to vector<40x1xf32>
    %633 = vector.broadcast %632 : vector<40x1xf32> to vector<40x8xf32>
    %634 = arith.subf %630, %633 : vector<40x8xf32>
    %635 = math.exp %634 : vector<40x8xf32>
    %cst_459 = arith.constant dense<0.000000e+00> : vector<40xf32>
    %636 = vector.multi_reduction <add>, %635, %cst_459 [1] : vector<40x8xf32> to vector<40xf32>
    %637 = vector.shape_cast %636 : vector<40xf32> to vector<40x1xf32>
    %cst_460 = arith.constant 9.99999968E-21 : f32
    %638 = vector.broadcast %cst_460 : f32 to vector<40x1xf32>
    %639 = arith.maximumf %637, %638 : vector<40x1xf32>
    %640 = tpu.reciprocal %639 {approx = true} : vector<40x1xf32> -> vector<40x1xf32>
    %641 = vector.broadcast %640 : vector<40x1xf32> to vector<40x8xf32>
    %642 = arith.mulf %635, %641 : vector<40x8xf32>
    %643 = vector.shape_cast %594 : vector<40x40xf32> to vector<5x8x40xf32>
    %cst_461 = arith.constant -1.000000e+30 : f32
    %644 = vector.broadcast %cst_461 : f32 to vector<40x40xf32>
    %645 = vector.extract_strided_slice %643 {offsets = [0, 0, 0], sizes = [5, 1, 40], strides = [1, 1, 1]} : vector<5x8x40xf32> to vector<5x1x40xf32>
    %646 = vector.shape_cast %645 : vector<5x1x40xf32> to vector<5x1x40xf32>
    %647 = vector.broadcast %646 : vector<5x1x40xf32> to vector<5x8x40xf32>
    %648 = vector.shape_cast %647 : vector<5x8x40xf32> to vector<40x40xf32>
    %649 = vector.extract_strided_slice %642 {offsets = [0, 0], sizes = [40, 1], strides = [1, 1]} : vector<40x8xf32> to vector<40x1xf32>
    %650 = vector.broadcast %649 : vector<40x1xf32> to vector<40x40xf32>
    %651 = arith.mulf %650, %648 : vector<40x40xf32>
    %652 = vector.extract_strided_slice %622 {offsets = [0, 0], sizes = [40, 1], strides = [1, 1]} : vector<40x8xf32> to vector<40x1xf32>
    %653 = vector.broadcast %652 : vector<40x1xf32> to vector<40x40xf32>
    %654 = arith.addf %651, %653 : vector<40x40xf32>
    %655 = arith.maximumf %644, %654 : vector<40x40xf32>
    %656 = vector.extract_strided_slice %643 {offsets = [0, 1, 0], sizes = [5, 1, 40], strides = [1, 1, 1]} : vector<5x8x40xf32> to vector<5x1x40xf32>
    %657 = vector.shape_cast %656 : vector<5x1x40xf32> to vector<5x1x40xf32>
    %658 = vector.broadcast %657 : vector<5x1x40xf32> to vector<5x8x40xf32>
    %659 = vector.shape_cast %658 : vector<5x8x40xf32> to vector<40x40xf32>
    %660 = vector.extract_strided_slice %642 {offsets = [0, 1], sizes = [40, 1], strides = [1, 1]} : vector<40x8xf32> to vector<40x1xf32>
    %661 = vector.broadcast %660 : vector<40x1xf32> to vector<40x40xf32>
    %662 = arith.mulf %661, %659 : vector<40x40xf32>
    %663 = vector.extract_strided_slice %622 {offsets = [0, 1], sizes = [40, 1], strides = [1, 1]} : vector<40x8xf32> to vector<40x1xf32>
    %664 = vector.broadcast %663 : vector<40x1xf32> to vector<40x40xf32>
    %665 = arith.addf %662, %664 : vector<40x40xf32>
    %666 = arith.maximumf %655, %665 : vector<40x40xf32>
    %667 = vector.extract_strided_slice %643 {offsets = [0, 2, 0], sizes = [5, 1, 40], strides = [1, 1, 1]} : vector<5x8x40xf32> to vector<5x1x40xf32>
    %668 = vector.shape_cast %667 : vector<5x1x40xf32> to vector<5x1x40xf32>
    %669 = vector.broadcast %668 : vector<5x1x40xf32> to vector<5x8x40xf32>
    %670 = vector.shape_cast %669 : vector<5x8x40xf32> to vector<40x40xf32>
    %671 = vector.extract_strided_slice %642 {offsets = [0, 2], sizes = [40, 1], strides = [1, 1]} : vector<40x8xf32> to vector<40x1xf32>
    %672 = vector.broadcast %671 : vector<40x1xf32> to vector<40x40xf32>
    %673 = arith.mulf %672, %670 : vector<40x40xf32>
    %674 = vector.extract_strided_slice %622 {offsets = [0, 2], sizes = [40, 1], strides = [1, 1]} : vector<40x8xf32> to vector<40x1xf32>
    %675 = vector.broadcast %674 : vector<40x1xf32> to vector<40x40xf32>
    %676 = arith.addf %673, %675 : vector<40x40xf32>
    %677 = arith.maximumf %666, %676 : vector<40x40xf32>
    %678 = vector.extract_strided_slice %643 {offsets = [0, 3, 0], sizes = [5, 1, 40], strides = [1, 1, 1]} : vector<5x8x40xf32> to vector<5x1x40xf32>
    %679 = vector.shape_cast %678 : vector<5x1x40xf32> to vector<5x1x40xf32>
    %680 = vector.broadcast %679 : vector<5x1x40xf32> to vector<5x8x40xf32>
    %681 = vector.shape_cast %680 : vector<5x8x40xf32> to vector<40x40xf32>
    %682 = vector.extract_strided_slice %642 {offsets = [0, 3], sizes = [40, 1], strides = [1, 1]} : vector<40x8xf32> to vector<40x1xf32>
    %683 = vector.broadcast %682 : vector<40x1xf32> to vector<40x40xf32>
    %684 = arith.mulf %683, %681 : vector<40x40xf32>
    %685 = vector.extract_strided_slice %622 {offsets = [0, 3], sizes = [40, 1], strides = [1, 1]} : vector<40x8xf32> to vector<40x1xf32>
    %686 = vector.broadcast %685 : vector<40x1xf32> to vector<40x40xf32>
    %687 = arith.addf %684, %686 : vector<40x40xf32>
    %688 = arith.maximumf %677, %687 : vector<40x40xf32>
    %689 = vector.extract_strided_slice %643 {offsets = [0, 4, 0], sizes = [5, 1, 40], strides = [1, 1, 1]} : vector<5x8x40xf32> to vector<5x1x40xf32>
    %690 = vector.shape_cast %689 : vector<5x1x40xf32> to vector<5x1x40xf32>
    %691 = vector.broadcast %690 : vector<5x1x40xf32> to vector<5x8x40xf32>
    %692 = vector.shape_cast %691 : vector<5x8x40xf32> to vector<40x40xf32>
    %693 = vector.extract_strided_slice %642 {offsets = [0, 4], sizes = [40, 1], strides = [1, 1]} : vector<40x8xf32> to vector<40x1xf32>
    %694 = vector.broadcast %693 : vector<40x1xf32> to vector<40x40xf32>
    %695 = arith.mulf %694, %692 : vector<40x40xf32>
    %696 = vector.extract_strided_slice %622 {offsets = [0, 4], sizes = [40, 1], strides = [1, 1]} : vector<40x8xf32> to vector<40x1xf32>
    %697 = vector.broadcast %696 : vector<40x1xf32> to vector<40x40xf32>
    %698 = arith.addf %695, %697 : vector<40x40xf32>
    %699 = arith.maximumf %688, %698 : vector<40x40xf32>
    %700 = vector.extract_strided_slice %643 {offsets = [0, 5, 0], sizes = [5, 1, 40], strides = [1, 1, 1]} : vector<5x8x40xf32> to vector<5x1x40xf32>
    %701 = vector.shape_cast %700 : vector<5x1x40xf32> to vector<5x1x40xf32>
    %702 = vector.broadcast %701 : vector<5x1x40xf32> to vector<5x8x40xf32>
    %703 = vector.shape_cast %702 : vector<5x8x40xf32> to vector<40x40xf32>
    %704 = vector.extract_strided_slice %642 {offsets = [0, 5], sizes = [40, 1], strides = [1, 1]} : vector<40x8xf32> to vector<40x1xf32>
    %705 = vector.broadcast %704 : vector<40x1xf32> to vector<40x40xf32>
    %706 = arith.mulf %705, %703 : vector<40x40xf32>
    %707 = vector.extract_strided_slice %622 {offsets = [0, 5], sizes = [40, 1], strides = [1, 1]} : vector<40x8xf32> to vector<40x1xf32>
    %708 = vector.broadcast %707 : vector<40x1xf32> to vector<40x40xf32>
    %709 = arith.addf %706, %708 : vector<40x40xf32>
    %710 = arith.maximumf %699, %709 : vector<40x40xf32>
    %711 = vector.extract_strided_slice %643 {offsets = [0, 6, 0], sizes = [5, 1, 40], strides = [1, 1, 1]} : vector<5x8x40xf32> to vector<5x1x40xf32>
    %712 = vector.shape_cast %711 : vector<5x1x40xf32> to vector<5x1x40xf32>
    %713 = vector.broadcast %712 : vector<5x1x40xf32> to vector<5x8x40xf32>
    %714 = vector.shape_cast %713 : vector<5x8x40xf32> to vector<40x40xf32>
    %715 = vector.extract_strided_slice %642 {offsets = [0, 6], sizes = [40, 1], strides = [1, 1]} : vector<40x8xf32> to vector<40x1xf32>
    %716 = vector.broadcast %715 : vector<40x1xf32> to vector<40x40xf32>
    %717 = arith.mulf %716, %714 : vector<40x40xf32>
    %718 = vector.extract_strided_slice %622 {offsets = [0, 6], sizes = [40, 1], strides = [1, 1]} : vector<40x8xf32> to vector<40x1xf32>
    %719 = vector.broadcast %718 : vector<40x1xf32> to vector<40x40xf32>
    %720 = arith.addf %717, %719 : vector<40x40xf32>
    %721 = arith.maximumf %710, %720 : vector<40x40xf32>
    %722 = vector.extract_strided_slice %643 {offsets = [0, 7, 0], sizes = [5, 1, 40], strides = [1, 1, 1]} : vector<5x8x40xf32> to vector<5x1x40xf32>
    %723 = vector.shape_cast %722 : vector<5x1x40xf32> to vector<5x1x40xf32>
    %724 = vector.broadcast %723 : vector<5x1x40xf32> to vector<5x8x40xf32>
    %725 = vector.shape_cast %724 : vector<5x8x40xf32> to vector<40x40xf32>
    %726 = vector.extract_strided_slice %642 {offsets = [0, 7], sizes = [40, 1], strides = [1, 1]} : vector<40x8xf32> to vector<40x1xf32>
    %727 = vector.broadcast %726 : vector<40x1xf32> to vector<40x40xf32>
    %728 = arith.mulf %727, %725 : vector<40x40xf32>
    %729 = vector.extract_strided_slice %622 {offsets = [0, 7], sizes = [40, 1], strides = [1, 1]} : vector<40x8xf32> to vector<40x1xf32>
    %730 = vector.broadcast %729 : vector<40x1xf32> to vector<40x40xf32>
    %731 = arith.addf %728, %730 : vector<40x40xf32>
    %732 = arith.maximumf %721, %731 : vector<40x40xf32>
    %733 = vector.broadcast %3 : vector<1x40xf32> to vector<40x40xf32>
    %734 = arith.addf %732, %733 : vector<40x40xf32>
    %cst_462 = arith.constant 0.000000e+00 : f32
    %735 = vector.broadcast %cst_462 : f32 to vector<40x40xf32>
    %736 = arith.maximumf %734, %735 : vector<40x40xf32>
    %c0_463 = arith.constant 0 : index
    %c0_464 = arith.constant 0 : index
    %737 = vector.load %arg8[%c0_463, %c0_464] : memref<40x40xf32, #tpu.memory_space<vmem>>, vector<40x40xf32>
    tpu.vector_store %arg8[%c0_463, %c0_464], %736 {strides = array<i32>} : memref<40x40xf32, #tpu.memory_space<vmem>>, vector<40x40xf32>,
    return
  }
  func.func @transform_0(%arg0: i32) -> (i32, i32) {
    %c0_i32 = arith.constant 0 : i32
    %c0_i32_0 = arith.constant 0 : i32
    %c0_i32_1 = arith.constant 0 : i32
    return %c0_i32, %c0_i32_0 : i32, i32
  }
  func.func @transform_1(%arg0: i32) -> (i32, i32) {
    %c0_i32 = arith.constant 0 : i32
    %c0_i32_0 = arith.constant 0 : i32
    %c0_i32_1 = arith.constant 0 : i32
    return %c0_i32, %c0_i32_0 : i32, i32
  }
  func.func @transform_2(%arg0: i32) -> (i32, i32) {
    %c0_i32 = arith.constant 0 : i32
    %c0_i32_0 = arith.constant 0 : i32
    %c0_i32_1 = arith.constant 0 : i32
    return %c0_i32, %c0_i32_0 : i32, i32
  }
  func.func @transform_3(%arg0: i32) -> (i32, i32) {
    %c0_i32 = arith.constant 0 : i32
    %c0_i32_0 = arith.constant 0 : i32
    %c0_i32_1 = arith.constant 0 : i32
    return %c0_i32, %c0_i32_0 : i32, i32
  }
  func.func @transform_4(%arg0: i32) -> (i32, i32) {
    %c0_i32 = arith.constant 0 : i32
    %c0_i32_0 = arith.constant 0 : i32
    %c0_i32_1 = arith.constant 0 : i32
    return %c0_i32, %c0_i32_0 : i32, i32
  }
  func.func @transform_5(%arg0: i32) -> (i32, i32) {
    %c0_i32 = arith.constant 0 : i32
    %c0_i32_0 = arith.constant 0 : i32
    %c0_i32_1 = arith.constant 0 : i32
    return %c0_i32, %c0_i32_0 : i32, i32
  }
  func.func @transform_6(%arg0: i32) -> (i32, i32) {
    %c0_i32 = arith.constant 0 : i32
    %c0_i32_0 = arith.constant 0 : i32
    %c0_i32_1 = arith.constant 0 : i32
    return %c0_i32, %c0_i32_0 : i32, i32
  }
  func.func @transform_7(%arg0: i32) -> (i32, i32) {
    %c0_i32 = arith.constant 0 : i32
    %c0_i32_0 = arith.constant 0 : i32
    %c0_i32_1 = arith.constant 0 : i32
    return %c0_i32, %c0_i32_0 : i32, i32
  }
}

</mosaic_0001>

<llo_original>
// kernel: cnn_gnn_forward.1
$region0: #{cnn_gnn_forward.1}
  #allocation0 [shape = 'u32[]', space=smem, size = 0x4, offset = 0x4, fixed_abs, tag = 'smem constant byte address 0x4 - core index']
  #allocation1 [shape = 'u32[72,128]{1,0:T(1,128)}', space=vmem, size = 0x9000, scoped, tag = 'internal scratch']
  #allocation2 [shape = 'f32[2040,96]{1,0:T(8,128)}', space=vmem, size = 0xff000, scoped, tag = 'scratch operand']
  #allocation3 [shape = 'f32[40,1568]{1,0:T(8,128)}', space=vmem, size = 0x41000, scoped, tag = 'scratch operand']
  %s0 = inlined_call_operand.vmem [shape: f32[1960,8], index: 0, kind: input, shape index: {}]
  %s1 = inlined_call_operand.vmem [shape: bf16[8,16], index: 1, kind: input, shape index: {}]
  %s2 = inlined_call_operand.vmem [shape: bf16[16,96], index: 2, kind: input, shape index: {}]
  %s3 = inlined_call_operand.vmem [shape: bf16[1568,80], index: 3, kind: input, shape index: {}]
  %s4 = inlined_call_operand.vmem [shape: bf16[80,40], index: 4, kind: input, shape index: {}]
  %s5 = inlined_call_operand.vmem [shape: f32[6,128], index: 5, kind: input, shape index: {}]
  %s6 = inlined_call_operand.vmem [shape: f32[8,8], index: 6, kind: input, shape index: {}]
  %s7 = inlined_call_operand.hbm [shape: f32[40,40], index: 7, kind: output, shape index: {}]
  %s8 = sld [smem:[#allocation0]]
  $region38: #{cnn_gnn_forward.1} parent=0
    _
  %s10 = ssub.s32 1, %s8
  %s11 = scalar_select 0, %s10, %s8
  $region1: #{cnn_gnn_forward.1} parent=0
    #allocation4 [shape = 'u8[20480]{0}', space=vmem, size = 0x5000, scoped, tag = 'output window, operand 0, single buffered']
    #allocation5 [shape = 's32[1]{0}', space=sflag, size = 0x4, scoped, tag = 'scoped memory for cnn_gnn_forward.1']
    %12 = vsyncpa [#allocation5], 0
    // Predicated region
    $region2: #{cnn_gnn_forward.1} parent=1 // pred_check
      _
    $region3: #{cnn_gnn_forward.1} parent=1 // pred_check_branch
      %14 = sbr.rel (0) target = $region5
    $region4: #{cnn_gnn_forward.1} parent=1 // pred_region
      _
    $region5: #{cnn_gnn_forward.1} parent=1 // pred_fallthru
      _
    // Predicated region
    $region6: #{cnn_gnn_forward.1} parent=1 // pred_check
      _
    $region7: #{cnn_gnn_forward.1} parent=1 // pred_check_branch
      %16 = sbr.rel (0) target = $region9
    $region8: #{cnn_gnn_forward.1} parent=1 // pred_region
      _
    $region9: #{cnn_gnn_forward.1} parent=1 // pred_fallthru
      _
    // Predicated region
    $region10: #{cnn_gnn_forward.1} parent=1 // pred_check
      _
    $region11: #{cnn_gnn_forward.1} parent=1 // pred_check_branch
      %18 = sbr.rel (0) target = $region13
    $region12: #{cnn_gnn_forward.1} parent=1 // pred_region
      _
    $region13: #{cnn_gnn_forward.1} parent=1 // pred_fallthru
      _
    // Predicated region
    $region14: #{cnn_gnn_forward.1} parent=1 // pred_check
      _
    $region15: #{cnn_gnn_forward.1} parent=1 // pred_check_branch
      %20 = sbr.rel (0) target = $region17
    $region16: #{cnn_gnn_forward.1} parent=1 // pred_region
      _
    $region17: #{cnn_gnn_forward.1} parent=1 // pred_fallthru
      _
    // Predicated region
    $region18: #{cnn_gnn_forward.1} parent=1 // pred_check
      _
    $region19: #{cnn_gnn_forward.1} parent=1 // pred_check_branch
      %22 = sbr.rel (0) target = $region21
    $region20: #{cnn_gnn_forward.1} parent=1 // pred_region
      _
    $region21: #{cnn_gnn_forward.1} parent=1 // pred_fallthru
      _
    // Predicated region
    $region22: #{cnn_gnn_forward.1} parent=1 // pred_check
      _
    $region23: #{cnn_gnn_forward.1} parent=1 // pred_check_branch
      %24 = sbr.rel (0) target = $region25
    $region24: #{cnn_gnn_forward.1} parent=1 // pred_region
      _
    $region25: #{cnn_gnn_forward.1} parent=1 // pred_fallthru
      _
    // Predicated region
    $region26: #{cnn_gnn_forward.1} parent=1 // pred_check
      _
    $region27: #{cnn_gnn_forward.1} parent=1 // pred_check_branch
      %26 = sbr.rel (0) target = $region29
    $region28: #{cnn_gnn_forward.1} parent=1 // pred_region
      _
    $region29: #{cnn_gnn_forward.1} parent=1 // pred_fallthru
      _
    %v28 = vld [vmem:[%s5] sm:$0x1]
    %v29 = vld [vmem:[%s5 + $0x1] sm:$0x1]
    %v30 = vld [vmem:[%s5 + $0x2] sm:$0x1]
    %v31 = vld [vmem:[%s5 + $0x3] sm:$0x1]
    %v32 = vld [vmem:[%s5 + $0x4] sm:$0x1]
    %v33 = vld [vmem:[%s5 + $0x5] sm:$0x1]
    %vm34 = vcmask 785408
    %35 = vst.msk [vmem:[#allocation2] sm:$0xff] %vm34, 0.0
    %36 = vst.msk [vmem:[#allocation2 + $0x8] sm:$0xff] %vm34, 0.0
    %37 = vst.msk [vmem:[#allocation2 + $0x10] sm:$0xff] %vm34, 0.0
    %38 = vst.msk [vmem:[#allocation2 + $0x18] sm:$0xff] %vm34, 0.0
    %39 = vst.msk [vmem:[#allocation2 + $0x20] sm:$0xff] %vm34, 0.0
    %40 = vst.msk [vmem:[#allocation2 + $0x7d0] sm:$0xff] %vm34, 0.0
    %41 = vst.msk [vmem:[#allocation2 + $0x7d8] sm:$0xff] %vm34, 0.0
    %42 = vst.msk [vmem:[#allocation2 + $0x7e0] sm:$0xff] %vm34, 0.0
    %43 = vst.msk [vmem:[#allocation2 + $0x7e8] sm:$0xff] %vm34, 0.0
    %44 = vst.msk [vmem:[#allocation2 + $0x7f0] sm:$0xff] %vm34, 0.0
    %v45 = vld [vmem:[%s0] sm:$0xff]
    %v46 = vld [vmem:[%s0 + $0x8] sm:$0xff]
    %v47 = vld [vmem:[%s0 + $0x10] sm:$0xff]
    %v48 = vld [vmem:[%s0 + $0x18] sm:$0xff]
    %v49 = vld [vmem:[%s0 + $0x20] sm:$0xff]
    %v50 = vld [vmem:[%s0 + $0x28] sm:$0xff]
    %v51 = vld [vmem:[%s0 + $0x30] sm:$0xff]
    %v52 = vld [vmem:[%s0 + $0x38] sm:$0xff]
    %v53 = vld [vmem:[%s0 + $0x40] sm:$0xff]
    %v54 = vld [vmem:[%s0 + $0x48] sm:$0xff]
    %v55 = vld [vmem:[%s0 + $0x50] sm:$0xff]
    %v56 = vld [vmem:[%s0 + $0x58] sm:$0xff]
    %v57 = vld [vmem:[%s0 + $0x60] sm:$0xff]
    %v58 = vld [vmem:[%s0 + $0x68] sm:$0xff]
    %v59 = vld [vmem:[%s0 + $0x70] sm:$0xff]
    %v60 = vld [vmem:[%s0 + $0x78] sm:$0xff]
    %v61 = vld [vmem:[%s0 + $0x80] sm:$0xff]
    %v62 = vld [vmem:[%s0 + $0x88] sm:$0xff]
    %v63 = vld [vmem:[%s0 + $0x90] sm:$0xff]
    %v64 = vld [vmem:[%s0 + $0x98] sm:$0xff]
    %v65 = vld [vmem:[%s0 + $0xa0] sm:$0xff]
    %v66 = vld [vmem:[%s0 + $0xa8] sm:$0xff]
    %v67 = vld [vmem:[%s0 + $0xb0] sm:$0xff]
    %v68 = vld [vmem:[%s0 + $0xb8] sm:$0xff]
    %v69 = vld [vmem:[%s0 + $0xc0] sm:$0xff]
    %v70 = vld [vmem:[%s0 + $0xc8] sm:$0xff]
    %v71 = vld [vmem:[%s0 + $0xd0] sm:$0xff]
    %v72 = vld [vmem:[%s0 + $0xd8] sm:$0xff]
    %v73 = vld [vmem:[%s0 + $0xe0] sm:$0xff]
    %v74 = vld [vmem:[%s0 + $0xe8] sm:$0xff]
    %v75 = vld [vmem:[%s0 + $0xf0] sm:$0xff]
    %v76 = vld [vmem:[%s0 + $0xf8] sm:$0xff]
    %v77 = vld [vmem:[%s0 + $0x100] sm:$0xff]
    %v78 = vld [vmem:[%s0 + $0x108] sm:$0xff]
    %v79 = vld [vmem:[%s0 + $0x110] sm:$0xff]
    %v80 = vld [vmem:[%s0 + $0x118] sm:$0xff]
    %v81 = vld [vmem:[%s0 + $0x120] sm:$0xff]
    %v82 = vld [vmem:[%s0 + $0x128] sm:$0xff]
    %v83 = vld [vmem:[%s0 + $0x130] sm:$0xff]
    %v84 = vld [vmem:[%s0 + $0x138] sm:$0xff]
    %v85 = vpack.c.bf16 %v46, %v45
    %v86 = vpack.c.bf16 %v48, %v47
    %v87 = vpack.c.bf16 %v50, %v49
    %v88 = vpack.c.bf16 %v52, %v51
    %v89 = vpack.c.bf16 %v54, %v53
    %v90 = vpack.c.bf16 %v56, %v55
    %v91 = vpack.c.bf16 %v58, %v57
    %v92 = vpack.c.bf16 %v60, %v59
    %v93 = vpack.c.bf16 %v62, %v61
    %v94 = vpack.c.bf16 %v64, %v63
    %v95 = vpack.c.bf16 %v66, %v65
    %v96 = vpack.c.bf16 %v68, %v67
    %v97 = vpack.c.bf16 %v70, %v69
    %v98 = vpack.c.bf16 %v72, %v71
    %v99 = vpack.c.bf16 %v74, %v73
    %v100 = vpack.c.bf16 %v76, %v75
    %v101 = vpack.c.bf16 %v78, %v77
    %v102 = vpack.c.bf16 %v80, %v79
    %v103 = vpack.c.bf16 %v82, %v81
    %v104 = vpack.c.bf16 %v84, %v83
    %v105 = vld [vmem:[%s1] sm:$0xf]
    %v106 = vperm.slane %v28, 0
    %vm107 = vcmask 64512
    %v109 = vsel %vm107, %v85, 0
    %v112 = vsel %vm107, %v86, 0
    %v115 = vsel %vm107, %v87, 0
    %v118 = vsel %vm107, %v88, 0
    %v121 = vsel %vm107, %v89, 0
    %v124 = vsel %vm107, %v90, 0
    %v127 = vsel %vm107, %v91, 0
    %v130 = vsel %vm107, %v92, 0
    %v133 = vsel %vm107, %v93, 0
    %v136 = vsel %vm107, %v94, 0
    %v139 = vsel %vm107, %v95, 0
    %v142 = vsel %vm107, %v96, 0
    %v145 = vsel %vm107, %v97, 0
    %v148 = vsel %vm107, %v98, 0
    %v151 = vsel %vm107, %v99, 0
    %v154 = vsel %vm107, %v100, 0
    %v157 = vsel %vm107, %v101, 0
    %v160 = vsel %vm107, %v102, 0
    %v163 = vsel %vm107, %v103, 0
    %v166 = vsel %vm107, %v104, 0
    %vm168 = vcmask 1043456
    %v170 = vsel %vm168, %v105, 0
    %172 = vmatpush.bf16.msra.mxu0 0
    %173 = vmatpush.bf16.msra.mxu0 0
    %174 = vmatpush.bf16.msra.mxu0 0
    %175 = vmatpush.bf16.msra.mxu0 0
    %176 = vmatpush.bf16.msra.mxu0 0
    %177 = vmatpush.bf16.msra.mxu0 0
    %178 = vmatpush.bf16.msra.mxu0 0
    %179 = vmatpush.bf16.msra.mxu0 %v170
    %180 = vmatmul.bf16.gmra.mxu0 %v109
    %v181 = vpop.f32.mrf.mxu0
    %v182 = vadd.f32 %v106, %v181
    %v183 = vpop.f32.mrf.mxu0
    %v184 = vadd.f32 %v106, %v183
    %185 = vmatmul.bf16.gmra.mxu0 %v112
    %v186 = vpop.f32.mrf.mxu0
    %v187 = vadd.f32 %v106, %v186
    %v188 = vpop.f32.mrf.mxu0
    %v189 = vadd.f32 %v106, %v188
    %190 = vmatmul.bf16.gmra.mxu0 %v115
    %v191 = vpop.f32.mrf.mxu0
    %v192 = vadd.f32 %v106, %v191
    %v193 = vpop.f32.mrf.mxu0
    %v194 = vadd.f32 %v106, %v193
    %195 = vmatmul.bf16.gmra.mxu0 %v118
    %v196 = vpop.f32.mrf.mxu0
    %v197 = vadd.f32 %v106, %v196
    %v198 = vpop.f32.mrf.mxu0
    %v199 = vadd.f32 %v106, %v198
    %200 = vmatmul.bf16.gmra.mxu0 %v121
    %v201 = vpop.f32.mrf.mxu0
    %v202 = vadd.f32 %v106, %v201
    %v203 = vpop.f32.mrf.mxu0
    %v204 = vadd.f32 %v106, %v203
    %205 = vmatmul.bf16.gmra.mxu0 %v124
    %v206 = vpop.f32.mrf.mxu0
    %v207 = vadd.f32 %v106, %v206
    %v208 = vpop.f32.mrf.mxu0
    %v209 = vadd.f32 %v106, %v208
    %210 = vmatmul.bf16.gmra.mxu0 %v127
    %v211 = vpop.f32.mrf.mxu0
    %v212 = vadd.f32 %v106, %v211
    %v213 = vpop.f32.mrf.mxu0
    %v214 = vadd.f32 %v106, %v213
    %215 = vmatmul.bf16.gmra.mxu0 %v130
    %v216 = vpop.f32.mrf.mxu0
    %v217 = vadd.f32 %v106, %v216
    %v218 = vpop.f32.mrf.mxu0
    %v219 = vadd.f32 %v106, %v218
    %220 = vmatmul.bf16.gmra.mxu0 %v133
    %v221 = vpop.f32.mrf.mxu0
    %v222 = vadd.f32 %v106, %v221
    %v223 = vpop.f32.mrf.mxu0
    %v224 = vadd.f32 %v106, %v223
    %225 = vmatmul.bf16.gmra.mxu0 %v136
    %v226 = vpop.f32.mrf.mxu0
    %v227 = vadd.f32 %v106, %v226
    %v228 = vpop.f32.mrf.mxu0
    %v229 = vadd.f32 %v106, %v228
    %230 = vmatmul.bf16.gmra.mxu0 %v139
    %v231 = vpop.f32.mrf.mxu0
    %v232 = vadd.f32 %v106, %v231
    %v233 = vpop.f32.mrf.mxu0
    %v234 = vadd.f32 %v106, %v233
    %235 = vmatmul.bf16.gmra.mxu0 %v142
    %v236 = vpop.f32.mrf.mxu0
    %v237 = vadd.f32 %v106, %v236
    %v238 = vpop.f32.mrf.mxu0
    %v239 = vadd.f32 %v106, %v238
    %240 = vmatmul.bf16.gmra.mxu0 %v145
    %v241 = vpop.f32.mrf.mxu0
    %v242 = vadd.f32 %v106, %v241
    %v243 = vpop.f32.mrf.mxu0
    %v244 = vadd.f32 %v106, %v243
    %245 = vmatmul.bf16.gmra.mxu0 %v148
    %v246 = vpop.f32.mrf.mxu0
    %v247 = vadd.f32 %v106, %v246
    %v248 = vpop.f32.mrf.mxu0
    %v249 = vadd.f32 %v106, %v248
    %250 = vmatmul.bf16.gmra.mxu0 %v151
    %v251 = vpop.f32.mrf.mxu0
    %v252 = vadd.f32 %v106, %v251
    %v253 = vpop.f32.mrf.mxu0
    %v254 = vadd.f32 %v106, %v253
    %255 = vmatmul.bf16.gmra.mxu0 %v154
    %v256 = vpop.f32.mrf.mxu0
    %v257 = vadd.f32 %v106, %v256
    %v258 = vpop.f32.mrf.mxu0
    %v259 = vadd.f32 %v106, %v258
    %260 = vmatmul.bf16.gmra.mxu0 %v157
    %v261 = vpop.f32.mrf.mxu0
    %v262 = vadd.f32 %v106, %v261
    %v263 = vpop.f32.mrf.mxu0
    %v264 = vadd.f32 %v106, %v263
    %265 = vmatmul.bf16.gmra.mxu0 %v160
    %v266 = vpop.f32.mrf.mxu0
    %v267 = vadd.f32 %v106, %v266
    %v268 = vpop.f32.mrf.mxu0
    %v269 = vadd.f32 %v106, %v268
    %270 = vmatmul.bf16.gmra.mxu0 %v163
    %v271 = vpop.f32.mrf.mxu0
    %v272 = vadd.f32 %v106, %v271
    %v273 = vpop.f32.mrf.mxu0
    %v274 = vadd.f32 %v106, %v273
    %275 = vmatmul.bf16.gmra.mxu0 %v166
    %v276 = vpop.f32.mrf.mxu0
    %v277 = vadd.f32 %v106, %v276
    %v278 = vpop.f32.mrf.mxu0
    %v279 = vadd.f32 %v106, %v278
    %280 = vdwg.mxu0
    %v281 = vmax.f32 %v182, 0.0
    %v282 = vmax.f32 %v184, 0.0
    %v283 = vmax.f32 %v187, 0.0
    %v284 = vmax.f32 %v189, 0.0
    %v285 = vmax.f32 %v192, 0.0
    %v286 = vmax.f32 %v194, 0.0
    %v287 = vmax.f32 %v197, 0.0
    %v288 = vmax.f32 %v199, 0.0
    %v289 = vmax.f32 %v202, 0.0
    %v290 = vmax.f32 %v204, 0.0
    %v291 = vmax.f32 %v207, 0.0
    %v292 = vmax.f32 %v209, 0.0
    %v293 = vmax.f32 %v212, 0.0
    %v294 = vmax.f32 %v214, 0.0
    %v295 = vmax.f32 %v217, 0.0
    %v296 = vmax.f32 %v219, 0.0
    %v297 = vmax.f32 %v222, 0.0
    %v298 = vmax.f32 %v224, 0.0
    %v299 = vmax.f32 %v227, 0.0
    %v300 = vmax.f32 %v229, 0.0
    %v301 = vmax.f32 %v232, 0.0
    %v302 = vmax.f32 %v234, 0.0
    %v303 = vmax.f32 %v237, 0.0
    %v304 = vmax.f32 %v239, 0.0
    %v305 = vmax.f32 %v242, 0.0
    %v306 = vmax.f32 %v244, 0.0
    %v307 = vmax.f32 %v247, 0.0
    %v308 = vmax.f32 %v249, 0.0
    %v309 = vmax.f32 %v252, 0.0
    %v310 = vmax.f32 %v254, 0.0
    %v311 = vmax.f32 %v257, 0.0
    %v312 = vmax.f32 %v259, 0.0
    %v313 = vmax.f32 %v262, 0.0
    %v314 = vmax.f32 %v264, 0.0
    %v315 = vmax.f32 %v267, 0.0
    %v316 = vmax.f32 %v269, 0.0
    %v317 = vmax.f32 %v272, 0.0
    %v318 = vmax.f32 %v274, 0.0
    %v319 = vmax.f32 %v277, 0.0
    %v320 = vmax.f32 %v279, 0.0
    %v321 = vpack.c.bf16 %v282, %v281
    %v322 = vpack.c.bf16 %v284, %v283
    %v323 = vpack.c.bf16 %v286, %v285
    %v324 = vpack.c.bf16 %v288, %v287
    %v325 = vpack.c.bf16 %v290, %v289
    %v326 = vpack.c.bf16 %v292, %v291
    %v327 = vpack.c.bf16 %v294, %v293
    %v328 = vpack.c.bf16 %v296, %v295
    %v329 = vpack.c.bf16 %v298, %v297
    %v330 = vpack.c.bf16 %v300, %v299
    %v331 = vpack.c.bf16 %v302, %v301
    %v332 = vpack.c.bf16 %v304, %v303
    %v333 = vpack.c.bf16 %v306, %v305
    %v334 = vpack.c.bf16 %v308, %v307
    %v335 = vpack.c.bf16 %v310, %v309
    %v336 = vpack.c.bf16 %v312, %v311
    %v337 = vpack.c.bf16 %v314, %v313
    %v338 = vpack.c.bf16 %v316, %v315
    %v339 = vpack.c.bf16 %v318, %v317
    %v340 = vpack.c.bf16 %v320, %v319
    %v341 = vld [vmem:[%s2] sm:$0xf]
    %v342 = vld [vmem:[%s2 + $0x4] sm:$0xf]
    %v345 = vunpack.c.l.b16 %v341
    %v346 = vunpack.c.l.b16 %v342
    %v347 = vpack.c.b16 %v346, %v345
    %vm349 = vcmask 130048
    %v351 = vsel %vm349, %v321, 0
    %v354 = vsel %vm349, %v322, 0
    %v357 = vsel %vm349, %v323, 0
    %v360 = vsel %vm349, %v324, 0
    %v363 = vsel %vm349, %v325, 0
    %v366 = vsel %vm349, %v326, 0
    %v369 = vsel %vm349, %v327, 0
    %v372 = vsel %vm349, %v328, 0
    %v375 = vsel %vm349, %v329, 0
    %v378 = vsel %vm349, %v330, 0
    %v381 = vsel %vm349, %v331, 0
    %v384 = vsel %vm349, %v332, 0
    %v387 = vsel %vm349, %v333, 0
    %v390 = vsel %vm349, %v334, 0
    %v393 = vsel %vm349, %v335, 0
    %v396 = vsel %vm349, %v336, 0
    %v399 = vsel %vm349, %v337, 0
    %v402 = vsel %vm349, %v338, 0
    %v405 = vsel %vm349, %v339, 0
    %v408 = vsel %vm349, %v340, 0
    %410 = vmatpush.bf16.msra.mxu0 0
    %411 = vmatpush.bf16.msra.mxu0 0
    %412 = vmatpush.bf16.msra.mxu0 0
    %413 = vmatpush.bf16.msra.mxu0 0
    %414 = vmatpush.bf16.msra.mxu0 0
    %415 = vmatpush.bf16.msra.mxu0 0
    %416 = vmatpush.bf16.msra.mxu0 0
    %417 = vmatpush.bf16.msra.mxu0 %v347
    %418 = vmatmul.bf16.gmra.mxu0 %v351
    %v419 = vpop.f32.mrf.mxu0
    %v420 = vadd.f32 0.0, %v419
    %v421 = vpop.f32.mrf.mxu0
    %v422 = vadd.f32 0.0, %v421
    %423 = vmatmul.bf16.gmra.mxu0 %v354
    %v424 = vpop.f32.mrf.mxu0
    %v425 = vadd.f32 0.0, %v424
    %v426 = vpop.f32.mrf.mxu0
    %v427 = vadd.f32 0.0, %v426
    %428 = vmatmul.bf16.gmra.mxu0 %v357
    %v429 = vpop.f32.mrf.mxu0
    %v430 = vadd.f32 0.0, %v429
    %v431 = vpop.f32.mrf.mxu0
    %v432 = vadd.f32 0.0, %v431
    %433 = vmatmul.bf16.gmra.mxu0 %v360
    %v434 = vpop.f32.mrf.mxu0
    %v435 = vadd.f32 0.0, %v434
    %v436 = vpop.f32.mrf.mxu0
    %v437 = vadd.f32 0.0, %v436
    %438 = vmatmul.bf16.gmra.mxu0 %v363
    %v439 = vpop.f32.mrf.mxu0
    %v440 = vadd.f32 0.0, %v439
    %v441 = vpop.f32.mrf.mxu0
    %v442 = vadd.f32 0.0, %v441
    %443 = vmatmul.bf16.gmra.mxu0 %v366
    %v444 = vpop.f32.mrf.mxu0
    %v445 = vadd.f32 0.0, %v444
    %v446 = vpop.f32.mrf.mxu0
    %v447 = vadd.f32 0.0, %v446
    %448 = vmatmul.bf16.gmra.mxu0 %v369
    %v449 = vpop.f32.mrf.mxu0
    %v450 = vadd.f32 0.0, %v449
    %v451 = vpop.f32.mrf.mxu0
    %v452 = vadd.f32 0.0, %v451
    %453 = vmatmul.bf16.gmra.mxu0 %v372
    %v454 = vpop.f32.mrf.mxu0
    %v455 = vadd.f32 0.0, %v454
    %v456 = vpop.f32.mrf.mxu0
    %v457 = vadd.f32 0.0, %v456
    %458 = vmatmul.bf16.gmra.mxu0 %v375
    %v459 = vpop.f32.mrf.mxu0
    %v460 = vadd.f32 0.0, %v459
    %v461 = vpop.f32.mrf.mxu0
    %v462 = vadd.f32 0.0, %v461
    %463 = vmatmul.bf16.gmra.mxu0 %v378
    %v464 = vpop.f32.mrf.mxu0
    %v465 = vadd.f32 0.0, %v464
    %v466 = vpop.f32.mrf.mxu0
    %v467 = vadd.f32 0.0, %v466
    %468 = vmatmul.bf16.gmra.mxu0 %v381
    %v469 = vpop.f32.mrf.mxu0
    %v470 = vadd.f32 0.0, %v469
    %v471 = vpop.f32.mrf.mxu0
    %v472 = vadd.f32 0.0, %v471
    %473 = vmatmul.bf16.gmra.mxu0 %v384
    %v474 = vpop.f32.mrf.mxu0
    %v475 = vadd.f32 0.0, %v474
    %v476 = vpop.f32.mrf.mxu0
    %v477 = vadd.f32 0.0, %v476
    %478 = vmatmul.bf16.gmra.mxu0 %v387
    %v479 = vpop.f32.mrf.mxu0
    %v480 = vadd.f32 0.0, %v479
    %v481 = vpop.f32.mrf.mxu0
    %v482 = vadd.f32 0.0, %v481
    %483 = vmatmul.bf16.gmra.mxu0 %v390
    %v484 = vpop.f32.mrf.mxu0
    %v485 = vadd.f32 0.0, %v484
    %v486 = vpop.f32.mrf.mxu0
    %v487 = vadd.f32 0.0, %v486
    %488 = vmatmul.bf16.gmra.mxu0 %v393
    %v489 = vpop.f32.mrf.mxu0
    %v490 = vadd.f32 0.0, %v489
    %v491 = vpop.f32.mrf.mxu0
    %v492 = vadd.f32 0.0, %v491
    %493 = vmatmul.bf16.gmra.mxu0 %v396
    %v494 = vpop.f32.mrf.mxu0
    %v495 = vadd.f32 0.0, %v494
    %v496 = vpop.f32.mrf.mxu0
    %v497 = vadd.f32 0.0, %v496
    %498 = vmatmul.bf16.gmra.mxu0 %v399
    %v499 = vpop.f32.mrf.mxu0
    %v500 = vadd.f32 0.0, %v499
    %v501 = vpop.f32.mrf.mxu0
    %v502 = vadd.f32 0.0, %v501
    %503 = vmatmul.bf16.gmra.mxu0 %v402
    %v504 = vpop.f32.mrf.mxu0
    %v505 = vadd.f32 0.0, %v504
    %v506 = vpop.f32.mrf.mxu0
    %v507 = vadd.f32 0.0, %v506
    %508 = vmatmul.bf16.gmra.mxu0 %v405
    %v509 = vpop.f32.mrf.mxu0
    %v510 = vadd.f32 0.0, %v509
    %v511 = vpop.f32.mrf.mxu0
    %v512 = vadd.f32 0.0, %v511
    %513 = vmatmul.bf16.gmra.mxu0 %v408
    %v514 = vpop.f32.mrf.mxu0
    %v515 = vadd.f32 0.0, %v514
    %v516 = vpop.f32.mrf.mxu0
    %v517 = vadd.f32 0.0, %v516
    %518 = vdwg.mxu0
    %519 = vst.msk [vmem:[#allocation2 + $0x28] sm:$0xff] %vm34, %v420
    %520 = vst.msk [vmem:[#allocation2 + $0x30] sm:$0xff] %vm34, %v422
    %521 = vst.msk [vmem:[#allocation2 + $0x38] sm:$0xff] %vm34, %v425
    %522 = vst.msk [vmem:[#allocation2 + $0x40] sm:$0xff] %vm34, %v427
    %523 = vst.msk [vmem:[#allocation2 + $0x48] sm:$0xff] %vm34, %v430
    %524 = vst.msk [vmem:[#allocation2 + $0x50] sm:$0xff] %vm34, %v432
    %525 = vst.msk [vmem:[#allocation2 + $0x58] sm:$0xff] %vm34, %v435
    %526 = vst.msk [vmem:[#allocation2 + $0x60] sm:$0xff] %vm34, %v437
    %527 = vst.msk [vmem:[#allocation2 + $0x68] sm:$0xff] %vm34, %v440
    %528 = vst.msk [vmem:[#allocation2 + $0x70] sm:$0xff] %vm34, %v442
    %529 = vst.msk [vmem:[#allocation2 + $0x78] sm:$0xff] %vm34, %v445
    %530 = vst.msk [vmem:[#allocation2 + $0x80] sm:$0xff] %vm34, %v447
    %531 = vst.msk [vmem:[#allocation2 + $0x88] sm:$0xff] %vm34, %v450
    %532 = vst.msk [vmem:[#allocation2 + $0x90] sm:$0xff] %vm34, %v452
    %533 = vst.msk [vmem:[#allocation2 + $0x98] sm:$0xff] %vm34, %v455
    %534 = vst.msk [vmem:[#allocation2 + $0xa0] sm:$0xff] %vm34, %v457
    %535 = vst.msk [vmem:[#allocation2 + $0xa8] sm:$0xff] %vm34, %v460
    %536 = vst.msk [vmem:[#allocation2 + $0xb0] sm:$0xff] %vm34, %v462
    %537 = vst.msk [vmem:[#allocation2 + $0xb8] sm:$0xff] %vm34, %v465
    %538 = vst.msk [vmem:[#allocation2 + $0xc0] sm:$0xff] %vm34, %v467
    %539 = vst.msk [vmem:[#allocation2 + $0xc8] sm:$0xff] %vm34, %v470
    %540 = vst.msk [vmem:[#allocation2 + $0xd0] sm:$0xff] %vm34, %v472
    %541 = vst.msk [vmem:[#allocation2 + $0xd8] sm:$0xff] %vm34, %v475
    %542 = vst.msk [vmem:[#allocation2 + $0xe0] sm:$0xff] %vm34, %v477
    %543 = vst.msk [vmem:[#allocation2 + $0xe8] sm:$0xff] %vm34, %v480
    %544 = vst.msk [vmem:[#allocation2 + $0xf0] sm:$0xff] %vm34, %v482
    %545 = vst.msk [vmem:[#allocation2 + $0xf8] sm:$0xff] %vm34, %v485
    %546 = vst.msk [vmem:[#allocation2 + $0x100] sm:$0xff] %vm34, %v487
    %547 = vst.msk [vmem:[#allocation2 + $0x108] sm:$0xff] %vm34, %v490
    %548 = vst.msk [vmem:[#allocation2 + $0x110] sm:$0xff] %vm34, %v492
    %549 = vst.msk [vmem:[#allocation2 + $0x118] sm:$0xff] %vm34, %v495
    %550 = vst.msk [vmem:[#allocation2 + $0x120] sm:$0xff] %vm34, %v497
    %551 = vst.msk [vmem:[#allocation2 + $0x128] sm:$0xff] %vm34, %v500
    %552 = vst.msk [vmem:[#allocation2 + $0x130] sm:$0xff] %vm34, %v502
    %553 = vst.msk [vmem:[#allocation2 + $0x138] sm:$0xff] %vm34, %v505
    %554 = vst.msk [vmem:[#allocation2 + $0x140] sm:$0xff] %vm34, %v507
    %555 = vst.msk [vmem:[#allocation2 + $0x148] sm:$0xff] %vm34, %v510
    %556 = vst.msk [vmem:[#allocation2 + $0x150] sm:$0xff] %vm34, %v512
    %557 = vst.msk [vmem:[#allocation2 + $0x158] sm:$0xff] %vm34, %v515
    %558 = vst.msk [vmem:[#allocation2 + $0x160] sm:$0xff] %vm34, %v517
    %v559 = vld [vmem:[%s0 + $0x140] sm:$0xff]
    %v560 = vld [vmem:[%s0 + $0x148] sm:$0xff]
    %v561 = vld [vmem:[%s0 + $0x150] sm:$0xff]
    %v562 = vld [vmem:[%s0 + $0x158] sm:$0xff]
    %v563 = vld [vmem:[%s0 + $0x160] sm:$0xff]
    %v564 = vld [vmem:[%s0 + $0x168] sm:$0xff]
    %v565 = vld [vmem:[%s0 + $0x170] sm:$0xff]
    %v566 = vld [vmem:[%s0 + $0x178] sm:$0xff]
    %v567 = vld [vmem:[%s0 + $0x180] sm:$0xff]
    %v568 = vld [vmem:[%s0 + $0x188] sm:$0xff]
    %v569 = vld [vmem:[%s0 + $0x190] sm:$0xff]
    %v570 = vld [vmem:[%s0 + $0x198] sm:$0xff]
    %v571 = vld [vmem:[%s0 + $0x1a0] sm:$0xff]
    %v572 = vld [vmem:[%s0 + $0x1a8] sm:$0xff]
    %v573 = vld [vmem:[%s0 + $0x1b0] sm:$0xff]
    %v574 = vld [vmem:[%s0 + $0x1b8] sm:$0xff]
    %v575 = vld [vmem:[%s0 + $0x1c0] sm:$0xff]
    %v576 = vld [vmem:[%s0 + $0x1c8] sm:$0xff]
    %v577 = vld [vmem:[%s0 + $0x1d0] sm:$0xff]
    %v578 = vld [vmem:[%s0 + $0x1d8] sm:$0xff]
    %v579 = vld [vmem:[%s0 + $0x1e0] sm:$0xff]
    %v580 = vld [vmem:[%s0 + $0x1e8] sm:$0xff]
    %v581 = vld [vmem:[%s0 + $0x1f0] sm:$0xff]
    %v582 = vld [vmem:[%s0 + $0x1f8] sm:$0xff]
    %v583 = vld [vmem:[%s0 + $0x200] sm:$0xff]
    %v584 = vld [vmem:[%s0 + $0x208] sm:$0xff]
    %v585 = vld [vmem:[%s0 + $0x210] sm:$0xff]
    %v586 = vld [vmem:[%s0 + $0x218] sm:$0xff]
    %v587 = vld [vmem:[%s0 + $0x220] sm:$0xff]
    %v588 = vld [vmem:[%s0 + $0x228] sm:$0xff]
    %v589 = vld [vmem:[%s0 + $0x230] sm:$0xff]
    %v590 = vld [vmem:[%s0 + $0x238] sm:$0xff]
    %v591 = vld [vmem:[%s0 + $0x240] sm:$0xff]
    %v592 = vld [vmem:[%s0 + $0x248] sm:$0xff]
    %v593 = vld [vmem:[%s0 + $0x250] sm:$0xff]
    %v594 = vld [vmem:[%s0 + $0x258] sm:$0xff]
    %v595 = vld [vmem:[%s0 + $0x260] sm:$0xff]
    %v596 = vld [vmem:[%s0 + $0x268] sm:$0xff]
    %v597 = vld [vmem:[%s0 + $0x270] sm:$0xff]
    %v598 = vld [vmem:[%s0 + $0x278] sm:$0xff]
    %v599 = vpack.c.bf16 %v560, %v559
    %v600 = vpack.c.bf16 %v562, %v561
    %v601 = vpack.c.bf16 %v564, %v563
    %v602 = vpack.c.bf16 %v566, %v565
    %v603 = vpack.c.bf16 %v568, %v567
    %v604 = vpack.c.bf16 %v570, %v569
    %v605 = vpack.c.bf16 %v572, %v571
    %v606 = vpack.c.bf16 %v574, %v573
    %v607 = vpack.c.bf16 %v576, %v575
    %v608 = vpack.c.bf16 %v578, %v577
    %v609 = vpack.c.bf16 %v580, %v579
    %v610 = vpack.c.bf16 %v582, %v581
    %v611 = vpack.c.bf16 %v584, %v583
    %v612 = vpack.c.bf16 %v586, %v585
    %v613 = vpack.c.bf16 %v588, %v587
    %v614 = vpack.c.bf16 %v590, %v589
    %v615 = vpack.c.bf16 %v592, %v591
    %v616 = vpack.c.bf16 %v594, %v593
    %v617 = vpack.c.bf16 %v596, %v595
    %v618 = vpack.c.bf16 %v598, %v597
    %v619 = vld [vmem:[%s1] sm:$0xf]
    %v621 = vsel %vm107, %v599, 0
    %v624 = vsel %vm107, %v600, 0
    %v627 = vsel %vm107, %v601, 0
    %v630 = vsel %vm107, %v602, 0
    %v633 = vsel %vm107, %v603, 0
    %v636 = vsel %vm107, %v604, 0
    %v639 = vsel %vm107, %v605, 0
    %v642 = vsel %vm107, %v606, 0
    %v645 = vsel %vm107, %v607, 0
    %v648 = vsel %vm107, %v608, 0
    %v651 = vsel %vm107, %v609, 0
    %v654 = vsel %vm107, %v610, 0
    %v657 = vsel %vm107, %v611, 0
    %v660 = vsel %vm107, %v612, 0
    %v663 = vsel %vm107, %v613, 0
    %v666 = vsel %vm107, %v614, 0
    %v669 = vsel %vm107, %v615, 0
    %v672 = vsel %vm107, %v616, 0
    %v675 = vsel %vm107, %v617, 0
    %v678 = vsel %vm107, %v618, 0
    %v681 = vsel %vm168, %v619, 0
    %683 = vmatpush.bf16.msra.mxu0 0
    %684 = vmatpush.bf16.msra.mxu0 0
    %685 = vmatpush.bf16.msra.mxu0 0
    %686 = vmatpush.bf16.msra.mxu0 0
    %687 = vmatpush.bf16.msra.mxu0 0
    %688 = vmatpush.bf16.msra.mxu0 0
    %689 = vmatpush.bf16.msra.mxu0 0
    %690 = vmatpush.bf16.msra.mxu0 %v681
    %691 = vmatmul.bf16.gmra.mxu0 %v621
    %v692 = vpop.f32.mrf.mxu0
    %v693 = vadd.f32 %v106, %v692
    %v694 = vpop.f32.mrf.mxu0
    %v695 = vadd.f32 %v106, %v694
    %696 = vmatmul.bf16.gmra.mxu0 %v624
    %v697 = vpop.f32.mrf.mxu0
    %v698 = vadd.f32 %v106, %v697
    %v699 = vpop.f32.mrf.mxu0
    %v700 = vadd.f32 %v106, %v699
    %701 = vmatmul.bf16.gmra.mxu0 %v627
    %v702 = vpop.f32.mrf.mxu0
    %v703 = vadd.f32 %v106, %v702
    %v704 = vpop.f32.mrf.mxu0
    %v705 = vadd.f32 %v106, %v704
    %706 = vmatmul.bf16.gmra.mxu0 %v630
    %v707 = vpop.f32.mrf.mxu0
    %v708 = vadd.f32 %v106, %v707
    %v709 = vpop.f32.mrf.mxu0
    %v710 = vadd.f32 %v106, %v709
    %711 = vmatmul.bf16.gmra.mxu0 %v633
    %v712 = vpop.f32.mrf.mxu0
    %v713 = vadd.f32 %v106, %v712
    %v714 = vpop.f32.mrf.mxu0
    %v715 = vadd.f32 %v106, %v714
    %716 = vmatmul.bf16.gmra.mxu0 %v636
    %v717 = vpop.f32.mrf.mxu0
    %v718 = vadd.f32 %v106, %v717
    %v719 = vpop.f32.mrf.mxu0
    %v720 = vadd.f32 %v106, %v719
    %721 = vmatmul.bf16.gmra.mxu0 %v639
    %v722 = vpop.f32.mrf.mxu0
    %v723 = vadd.f32 %v106, %v722
    %v724 = vpop.f32.mrf.mxu0
    %v725 = vadd.f32 %v106, %v724
    %726 = vmatmul.bf16.gmra.mxu0 %v642
    %v727 = vpop.f32.mrf.mxu0
    %v728 = vadd.f32 %v106, %v727
    %v729 = vpop.f32.mrf.mxu0
    %v730 = vadd.f32 %v106, %v729
    %731 = vmatmul.bf16.gmra.mxu0 %v645
    %v732 = vpop.f32.mrf.mxu0
    %v733 = vadd.f32 %v106, %v732
    %v734 = vpop.f32.mrf.mxu0
    %v735 = vadd.f32 %v106, %v734
    %736 = vmatmul.bf16.gmra.mxu0 %v648
    %v737 = vpop.f32.mrf.mxu0
    %v738 = vadd.f32 %v106, %v737
    %v739 = vpop.f32.mrf.mxu0
    %v740 = vadd.f32 %v106, %v739
    %741 = vmatmul.bf16.gmra.mxu0 %v651
    %v742 = vpop.f32.mrf.mxu0
    %v743 = vadd.f32 %v106, %v742
    %v744 = vpop.f32.mrf.mxu0
    %v745 = vadd.f32 %v106, %v744
    %746 = vmatmul.bf16.gmra.mxu0 %v654
    %v747 = vpop.f32.mrf.mxu0
    %v748 = vadd.f32 %v106, %v747
    %v749 = vpop.f32.mrf.mxu0
    %v750 = vadd.f32 %v106, %v749
    %751 = vmatmul.bf16.gmra.mxu0 %v657
    %v752 = vpop.f32.mrf.mxu0
    %v753 = vadd.f32 %v106, %v752
    %v754 = vpop.f32.mrf.mxu0
    %v755 = vadd.f32 %v106, %v754
    %756 = vmatmul.bf16.gmra.mxu0 %v660
    %v757 = vpop.f32.mrf.mxu0
    %v758 = vadd.f32 %v106, %v757
    %v759 = vpop.f32.mrf.mxu0
    %v760 = vadd.f32 %v106, %v759
    %761 = vmatmul.bf16.gmra.mxu0 %v663
    %v762 = vpop.f32.mrf.mxu0
    %v763 = vadd.f32 %v106, %v762
    %v764 = vpop.f32.mrf.mxu0
    %v765 = vadd.f32 %v106, %v764
    %766 = vmatmul.bf16.gmra.mxu0 %v666
    %v767 = vpop.f32.mrf.mxu0
    %v768 = vadd.f32 %v106, %v767
    %v769 = vpop.f32.mrf.mxu0
    %v770 = vadd.f32 %v106, %v769
    %771 = vmatmul.bf16.gmra.mxu0 %v669
    %v772 = vpop.f32.mrf.mxu0
    %v773 = vadd.f32 %v106, %v772
    %v774 = vpop.f32.mrf.mxu0
    %v775 = vadd.f32 %v106, %v774
    %776 = vmatmul.bf16.gmra.mxu0 %v672
    %v777 = vpop.f32.mrf.mxu0
    %v778 = vadd.f32 %v106, %v777
    %v779 = vpop.f32.mrf.mxu0
    %v780 = vadd.f32 %v106, %v779
    %781 = vmatmul.bf16.gmra.mxu0 %v675
    %v782 = vpop.f32.mrf.mxu0
    %v783 = vadd.f32 %v106, %v782
    %v784 = vpop.f32.mrf.mxu0
    %v785 = vadd.f32 %v106, %v784
    %786 = vmatmul.bf16.gmra.mxu0 %v678
    %v787 = vpop.f32.mrf.mxu0
    %v788 = vadd.f32 %v106, %v787
    %v789 = vpop.f32.mrf.mxu0
    %v790 = vadd.f32 %v106, %v789
    %791 = vdwg.mxu0
    %v792 = vmax.f32 %v693, 0.0
    %v793 = vmax.f32 %v695, 0.0
    %v794 = vmax.f32 %v698, 0.0
    %v795 = vmax.f32 %v700, 0.0
    %v796 = vmax.f32 %v703, 0.0
    %v797 = vmax.f32 %v705, 0.0
    %v798 = vmax.f32 %v708, 0.0
    %v799 = vmax.f32 %v710, 0.0
    %v800 = vmax.f32 %v713, 0.0
    %v801 = vmax.f32 %v715, 0.0
    %v802 = vmax.f32 %v718, 0.0
    %v803 = vmax.f32 %v720, 0.0
    %v804 = vmax.f32 %v723, 0.0
    %v805 = vmax.f32 %v725, 0.0
    %v806 = vmax.f32 %v728, 0.0
    %v807 = vmax.f32 %v730, 0.0
    %v808 = vmax.f32 %v733, 0.0
    %v809 = vmax.f32 %v735, 0.0
    %v810 = vmax.f32 %v738, 0.0
    %v811 = vmax.f32 %v740, 0.0
    %v812 = vmax.f32 %v743, 0.0
    %v813 = vmax.f32 %v745, 0.0
    %v814 = vmax.f32 %v748, 0.0
    %v815 = vmax.f32 %v750, 0.0
    %v816 = vmax.f32 %v753, 0.0
    %v817 = vmax.f32 %v755, 0.0
    %v818 = vmax.f32 %v758, 0.0
    %v819 = vmax.f32 %v760, 0.0
    %v820 = vmax.f32 %v763, 0.0
    %v821 = vmax.f32 %v765, 0.0
    %v822 = vmax.f32 %v768, 0.0
    %v823 = vmax.f32 %v770, 0.0
    %v824 = vmax.f32 %v773, 0.0
    %v825 = vmax.f32 %v775, 0.0
    %v826 = vmax.f32 %v778, 0.0
    %v827 = vmax.f32 %v780, 0.0
    %v828 = vmax.f32 %v783, 0.0
    %v829 = vmax.f32 %v785, 0.0
    %v830 = vmax.f32 %v788, 0.0
    %v831 = vmax.f32 %v790, 0.0
    %v832 = vpack.c.bf16 %v793, %v792
    %v833 = vpack.c.bf16 %v795, %v794
    %v834 = vpack.c.bf16 %v797, %v796
    %v835 = vpack.c.bf16 %v799, %v798
    %v836 = vpack.c.bf16 %v801, %v800
    %v837 = vpack.c.bf16 %v803, %v802
    %v838 = vpack.c.bf16 %v805, %v804
    %v839 = vpack.c.bf16 %v807, %v806
    %v840 = vpack.c.bf16 %v809, %v808
    %v841 = vpack.c.bf16 %v811, %v810
    %v842 = vpack.c.bf16 %v813, %v812
    %v843 = vpack.c.bf16 %v815, %v814
    %v844 = vpack.c.bf16 %v817, %v816
    %v845 = vpack.c.bf16 %v819, %v818
    %v846 = vpack.c.bf16 %v821, %v820
    %v847 = vpack.c.bf16 %v823, %v822
    %v848 = vpack.c.bf16 %v825, %v824
    %v849 = vpack.c.bf16 %v827, %v826
    %v850 = vpack.c.bf16 %v829, %v828
    %v851 = vpack.c.bf16 %v831, %v830
    %v852 = vld [vmem:[%s2] sm:$0xf]
    %v853 = vld [vmem:[%s2 + $0x4] sm:$0xf]
    %v856 = vunpack.c.l.b16 %v852
    %v857 = vunpack.c.l.b16 %v853
    %v858 = vpack.c.b16 %v857, %v856
    %v861 = vsel %vm349, %v832, 0
    %v864 = vsel %vm349, %v833, 0
    %v867 = vsel %vm349, %v834, 0
    %v870 = vsel %vm349, %v835, 0
    %v873 = vsel %vm349, %v836, 0
    %v876 = vsel %vm349, %v837, 0
    %v879 = vsel %vm349, %v838, 0
    %v882 = vsel %vm349, %v839, 0
    %v885 = vsel %vm349, %v840, 0
    %v888 = vsel %vm349, %v841, 0
    %v891 = vsel %vm349, %v842, 0
    %v894 = vsel %vm349, %v843, 0
    %v897 = vsel %vm349, %v844, 0
    %v900 = vsel %vm349, %v845, 0
    %v903 = vsel %vm349, %v846, 0
    %v906 = vsel %vm349, %v847, 0
    %v909 = vsel %vm349, %v848, 0
    %v912 = vsel %vm349, %v849, 0
    %v915 = vsel %vm349, %v850, 0
    %v918 = vsel %vm349, %v851, 0
    %920 = vmatpush.bf16.msra.mxu0 0
    %921 = vmatpush.bf16.msra.mxu0 0
    %922 = vmatpush.bf16.msra.mxu0 0
    %923 = vmatpush.bf16.msra.mxu0 0
    %924 = vmatpush.bf16.msra.mxu0 0
    %925 = vmatpush.bf16.msra.mxu0 0
    %926 = vmatpush.bf16.msra.mxu0 0
    %927 = vmatpush.bf16.msra.mxu0 %v858
    %928 = vmatmul.bf16.gmra.mxu0 %v861
    %v929 = vpop.f32.mrf.mxu0
    %v930 = vadd.f32 0.0, %v929
    %v931 = vpop.f32.mrf.mxu0
    %v932 = vadd.f32 0.0, %v931
    %933 = vmatmul.bf16.gmra.mxu0 %v864
    %v934 = vpop.f32.mrf.mxu0
    %v935 = vadd.f32 0.0, %v934
    %v936 = vpop.f32.mrf.mxu0
    %v937 = vadd.f32 0.0, %v936
    %938 = vmatmul.bf16.gmra.mxu0 %v867
    %v939 = vpop.f32.mrf.mxu0
    %v940 = vadd.f32 0.0, %v939
    %v941 = vpop.f32.mrf.mxu0
    %v942 = vadd.f32 0.0, %v941
    %943 = vmatmul.bf16.gmra.mxu0 %v870
    %v944 = vpop.f32.mrf.mxu0
    %v945 = vadd.f32 0.0, %v944
    %v946 = vpop.f32.mrf.mxu0
    %v947 = vadd.f32 0.0, %v946
    %948 = vmatmul.bf16.gmra.mxu0 %v873
    %v949 = vpop.f32.mrf.mxu0
    %v950 = vadd.f32 0.0, %v949
    %v951 = vpop.f32.mrf.mxu0
    %v952 = vadd.f32 0.0, %v951
    %953 = vmatmul.bf16.gmra.mxu0 %v876
    %v954 = vpop.f32.mrf.mxu0
    %v955 = vadd.f32 0.0, %v954
    %v956 = vpop.f32.mrf.mxu0
    %v957 = vadd.f32 0.0, %v956
    %958 = vmatmul.bf16.gmra.mxu0 %v879
    %v959 = vpop.f32.mrf.mxu0
    %v960 = vadd.f32 0.0, %v959
    %v961 = vpop.f32.mrf.mxu0
    %v962 = vadd.f32 0.0, %v961
    %963 = vmatmul.bf16.gmra.mxu0 %v882
    %v964 = vpop.f32.mrf.mxu0
    %v965 = vadd.f32 0.0, %v964
    %v966 = vpop.f32.mrf.mxu0
    %v967 = vadd.f32 0.0, %v966
    %968 = vmatmul.bf16.gmra.mxu0 %v885
    %v969 = vpop.f32.mrf.mxu0
    %v970 = vadd.f32 0.0, %v969
    %v971 = vpop.f32.mrf.mxu0
    %v972 = vadd.f32 0.0, %v971
    %973 = vmatmul.bf16.gmra.mxu0 %v888
    %v974 = vpop.f32.mrf.mxu0
    %v975 = vadd.f32 0.0, %v974
    %v976 = vpop.f32.mrf.mxu0
    %v977 = vadd.f32 0.0, %v976
    %978 = vmatmul.bf16.gmra.mxu0 %v891
    %v979 = vpop.f32.mrf.mxu0
    %v980 = vadd.f32 0.0, %v979
    %v981 = vpop.f32.mrf.mxu0
    %v982 = vadd.f32 0.0, %v981
    %983 = vmatmul.bf16.gmra.mxu0 %v894
    %v984 = vpop.f32.mrf.mxu0
    %v985 = vadd.f32 0.0, %v984
    %v986 = vpop.f32.mrf.mxu0
    %v987 = vadd.f32 0.0, %v986
    %988 = vmatmul.bf16.gmra.mxu0 %v897
    %v989 = vpop.f32.mrf.mxu0
    %v990 = vadd.f32 0.0, %v989
    %v991 = vpop.f32.mrf.mxu0
    %v992 = vadd.f32 0.0, %v991
    %993 = vmatmul.bf16.gmra.mxu0 %v900
    %v994 = vpop.f32.mrf.mxu0
    %v995 = vadd.f32 0.0, %v994
    %v996 = vpop.f32.mrf.mxu0
    %v997 = vadd.f32 0.0, %v996
    %998 = vmatmul.bf16.gmra.mxu0 %v903
    %v999 = vpop.f32.mrf.mxu0
    %v1000 = vadd.f32 0.0, %v999
    %v1001 = vpop.f32.mrf.mxu0
    %v1002 = vadd.f32 0.0, %v1001
    %1003 = vmatmul.bf16.gmra.mxu0 %v906
    %v1004 = vpop.f32.mrf.mxu0
    %v1005 = vadd.f32 0.0, %v1004
    %v1006 = vpop.f32.mrf.mxu0
    %v1007 = vadd.f32 0.0, %v1006
    %1008 = vmatmul.bf16.gmra.mxu0 %v909
    %v1009 = vpop.f32.mrf.mxu0
    %v1010 = vadd.f32 0.0, %v1009
    %v1011 = vpop.f32.mrf.mxu0
    %v1012 = vadd.f32 0.0, %v1011
    %1013 = vmatmul.bf16.gmra.mxu0 %v912
    %v1014 = vpop.f32.mrf.mxu0
    %v1015 = vadd.f32 0.0, %v1014
    %v1016 = vpop.f32.mrf.mxu0
    %v1017 = vadd.f32 0.0, %v1016
    %1018 = vmatmul.bf16.gmra.mxu0 %v915
    %v1019 = vpop.f32.mrf.mxu0
    %v1020 = vadd.f32 0.0, %v1019
    %v1021 = vpop.f32.mrf.mxu0
    %v1022 = vadd.f32 0.0, %v1021
    %1023 = vmatmul.bf16.gmra.mxu0 %v918
    %v1024 = vpop.f32.mrf.mxu0
    %v1025 = vadd.f32 0.0, %v1024
    %v1026 = vpop.f32.mrf.mxu0
    %v1027 = vadd.f32 0.0, %v1026
    %1028 = vdwg.mxu0
    %1029 = vst.msk [vmem:[#allocation2 + $0x168] sm:$0xff] %vm34, %v930
    %1030 = vst.msk [vmem:[#allocation2 + $0x170] sm:$0xff] %vm34, %v932
    %1031 = vst.msk [vmem:[#allocation2 + $0x178] sm:$0xff] %vm34, %v935
    %1032 = vst.msk [vmem:[#allocation2 + $0x180] sm:$0xff] %vm34, %v937
    %1033 = vst.msk [vmem:[#allocation2 + $0x188] sm:$0xff] %vm34, %v940
    %1034 = vst.msk [vmem:[#allocation2 + $0x190] sm:$0xff] %vm34, %v942
    %1035 = vst.msk [vmem:[#allocation2 + $0x198] sm:$0xff] %vm34, %v945
    %1036 = vst.msk [vmem:[#allocation2 + $0x1a0] sm:$0xff] %vm34, %v947
    %1037 = vst.msk [vmem:[#allocation2 + $0x1a8] sm:$0xff] %vm34, %v950
    %1038 = vst.msk [vmem:[#allocation2 + $0x1b0] sm:$0xff] %vm34, %v952
    %1039 = vst.msk [vmem:[#allocation2 + $0x1b8] sm:$0xff] %vm34, %v955
    %1040 = vst.msk [vmem:[#allocation2 + $0x1c0] sm:$0xff] %vm34, %v957
    %1041 = vst.msk [vmem:[#allocation2 + $0x1c8] sm:$0xff] %vm34, %v960
    %1042 = vst.msk [vmem:[#allocation2 + $0x1d0] sm:$0xff] %vm34, %v962
    %1043 = vst.msk [vmem:[#allocation2 + $0x1d8] sm:$0xff] %vm34, %v965
    %1044 = vst.msk [vmem:[#allocation2 + $0x1e0] sm:$0xff] %vm34, %v967
    %1045 = vst.msk [vmem:[#allocation2 + $0x1e8] sm:$0xff] %vm34, %v970
    %1046 = vst.msk [vmem:[#allocation2 + $0x1f0] sm:$0xff] %vm34, %v972
    %1047 = vst.msk [vmem:[#allocation2 + $0x1f8] sm:$0xff] %vm34, %v975
    %1048 = vst.msk [vmem:[#allocation2 + $0x200] sm:$0xff] %vm34, %v977
    %1049 = vst.msk [vmem:[#allocation2 + $0x208] sm:$0xff] %vm34, %v980
    %1050 = vst.msk [vmem:[#allocation2 + $0x210] sm:$0xff] %vm34, %v982
    %1051 = vst.msk [vmem:[#allocation2 + $0x218] sm:$0xff] %vm34, %v985
    %1052 = vst.msk [vmem:[#allocation2 + $0x220] sm:$0xff] %vm34, %v987
    %1053 = vst.msk [vmem:[#allocation2 + $0x228] sm:$0xff] %vm34, %v990
    %1054 = vst.msk [vmem:[#allocation2 + $0x230] sm:$0xff] %vm34, %v992
    %1055 = vst.msk [vmem:[#allocation2 + $0x238] sm:$0xff] %vm34, %v995
    %1056 = vst.msk [vmem:[#allocation2 + $0x240] sm:$0xff] %vm34, %v997
    %1057 = vst.msk [vmem:[#allocation2 + $0x248] sm:$0xff] %vm34, %v1000
    %1058 = vst.msk [vmem:[#allocation2 + $0x250] sm:$0xff] %vm34, %v1002
    %1059 = vst.msk [vmem:[#allocation2 + $0x258] sm:$0xff] %vm34, %v1005
    %1060 = vst.msk [vmem:[#allocation2 + $0x260] sm:$0xff] %vm34, %v1007
    %1061 = vst.msk [vmem:[#allocation2 + $0x268] sm:$0xff] %vm34, %v1010
    %1062 = vst.msk [vmem:[#allocation2 + $0x270] sm:$0xff] %vm34, %v1012
    %1063 = vst.msk [vmem:[#allocation2 + $0x278] sm:$0xff] %vm34, %v1015
    %1064 = vst.msk [vmem:[#allocation2 + $0x280] sm:$0xff] %vm34, %v1017
    %1065 = vst.msk [vmem:[#allocation2 + $0x288] sm:$0xff] %vm34, %v1020
    %1066 = vst.msk [vmem:[#allocation2 + $0x290] sm:$0xff] %vm34, %v1022
    %1067 = vst.msk [vmem:[#allocation2 + $0x298] sm:$0xff] %vm34, %v1025
    %1068 = vst.msk [vmem:[#allocation2 + $0x2a0] sm:$0xff] %vm34, %v1027
    %v1069 = vld [vmem:[%s0 + $0x280] sm:$0xff]
    %v1070 = vld [vmem:[%s0 + $0x288] sm:$0xff]
    %v1071 = vld [vmem:[%s0 + $0x290] sm:$0xff]
    %v1072 = vld [vmem:[%s0 + $0x298] sm:$0xff]
    %v1073 = vld [vmem:[%s0 + $0x2a0] sm:$0xff]
    %v1074 = vld [vmem:[%s0 + $0x2a8] sm:$0xff]
    %v1075 = vld [vmem:[%s0 + $0x2b0] sm:$0xff]
    %v1076 = vld [vmem:[%s0 + $0x2b8] sm:$0xff]
    %v1077 = vld [vmem:[%s0 + $0x2c0] sm:$0xff]
    %v1078 = vld [vmem:[%s0 + $0x2c8] sm:$0xff]
    %v1079 = vld [vmem:[%s0 + $0x2d0] sm:$0xff]
    %v1080 = vld [vmem:[%s0 + $0x2d8] sm:$0xff]
    %v1081 = vld [vmem:[%s0 + $0x2e0] sm:$0xff]
    %v1082 = vld [vmem:[%s0 + $0x2e8] sm:$0xff]
    %v1083 = vld [vmem:[%s0 + $0x2f0] sm:$0xff]
    %v1084 = vld [vmem:[%s0 + $0x2f8] sm:$0xff]
    %v1085 = vld [vmem:[%s0 + $0x300] sm:$0xff]
    %v1086 = vld [vmem:[%s0 + $0x308] sm:$0xff]
    %v1087 = vld [vmem:[%s0 + $0x310] sm:$0xff]
    %v1088 = vld [vmem:[%s0 + $0x318] sm:$0xff]
    %v1089 = vld [vmem:[%s0 + $0x320] sm:$0xff]
    %v1090 = vld [vmem:[%s0 + $0x328] sm:$0xff]
    %v1091 = vld [vmem:[%s0 + $0x330] sm:$0xff]
    %v1092 = vld [vmem:[%s0 + $0x338] sm:$0xff]
    %v1093 = vld [vmem:[%s0 + $0x340] sm:$0xff]
    %v1094 = vld [vmem:[%s0 + $0x348] sm:$0xff]
    %v1095 = vld [vmem:[%s0 + $0x350] sm:$0xff]
    %v1096 = vld [vmem:[%s0 + $0x358] sm:$0xff]
    %v1097 = vld [vmem:[%s0 + $0x360] sm:$0xff]
    %v1098 = vld [vmem:[%s0 + $0x368] sm:$0xff]
    %v1099 = vld [vmem:[%s0 + $0x370] sm:$0xff]
    %v1100 = vld [vmem:[%s0 + $0x378] sm:$0xff]
    %v1101 = vld [vmem:[%s0 + $0x380] sm:$0xff]
    %v1102 = vld [vmem:[%s0 + $0x388] sm:$0xff]
    %v1103 = vld [vmem:[%s0 + $0x390] sm:$0xff]
    %v1104 = vld [vmem:[%s0 + $0x398] sm:$0xff]
    %v1105 = vld [vmem:[%s0 + $0x3a0] sm:$0xff]
    %v1106 = vld [vmem:[%s0 + $0x3a8] sm:$0xff]
    %v1107 = vld [vmem:[%s0 + $0x3b0] sm:$0xff]
    %v1108 = vld [vmem:[%s0 + $0x3b8] sm:$0xff]
    %v1109 = vpack.c.bf16 %v1070, %v1069
    %v1110 = vpack.c.bf16 %v1072, %v1071
    %v1111 = vpack.c.bf16 %v1074, %v1073
    %v1112 = vpack.c.bf16 %v1076, %v1075
    %v1113 = vpack.c.bf16 %v1078, %v1077
    %v1114 = vpack.c.bf16 %v1080, %v1079
    %v1115 = vpack.c.bf16 %v1082, %v1081
    %v1116 = vpack.c.bf16 %v1084, %v1083
    %v1117 = vpack.c.bf16 %v1086, %v1085
    %v1118 = vpack.c.bf16 %v1088, %v1087
    %v1119 = vpack.c.bf16 %v1090, %v1089
    %v1120 = vpack.c.bf16 %v1092, %v1091
    %v1121 = vpack.c.bf16 %v1094, %v1093
    %v1122 = vpack.c.bf16 %v1096, %v1095
    %v1123 = vpack.c.bf16 %v1098, %v1097
    %v1124 = vpack.c.bf16 %v1100, %v1099
    %v1125 = vpack.c.bf16 %v1102, %v1101
    %v1126 = vpack.c.bf16 %v1104, %v1103
    %v1127 = vpack.c.bf16 %v1106, %v1105
    %v1128 = vpack.c.bf16 %v1108, %v1107
    %v1129 = vld [vmem:[%s1] sm:$0xf]
    %v1131 = vsel %vm107, %v1109, 0
    %v1134 = vsel %vm107, %v1110, 0
    %v1137 = vsel %vm107, %v1111, 0
    %v1140 = vsel %vm107, %v1112, 0
    %v1143 = vsel %vm107, %v1113, 0
    %v1146 = vsel %vm107, %v1114, 0
    %v1149 = vsel %vm107, %v1115, 0
    %v1152 = vsel %vm107, %v1116, 0
    %v1155 = vsel %vm107, %v1117, 0
    %v1158 = vsel %vm107, %v1118, 0
    %v1161 = vsel %vm107, %v1119, 0
    %v1164 = vsel %vm107, %v1120, 0
    %v1167 = vsel %vm107, %v1121, 0
    %v1170 = vsel %vm107, %v1122, 0
    %v1173 = vsel %vm107, %v1123, 0
    %v1176 = vsel %vm107, %v1124, 0
    %v1179 = vsel %vm107, %v1125, 0
    %v1182 = vsel %vm107, %v1126, 0
    %v1185 = vsel %vm107, %v1127, 0
    %v1188 = vsel %vm107, %v1128, 0
    %v1191 = vsel %vm168, %v1129, 0
    %1193 = vmatpush.bf16.msra.mxu0 0
    %1194 = vmatpush.bf16.msra.mxu0 0
    %1195 = vmatpush.bf16.msra.mxu0 0
    %1196 = vmatpush.bf16.msra.mxu0 0
    %1197 = vmatpush.bf16.msra.mxu0 0
    %1198 = vmatpush.bf16.msra.mxu0 0
    %1199 = vmatpush.bf16.msra.mxu0 0
    %1200 = vmatpush.bf16.msra.mxu0 %v1191
    %1201 = vmatmul.bf16.gmra.mxu0 %v1131
    %v1202 = vpop.f32.mrf.mxu0
    %v1203 = vadd.f32 %v106, %v1202
    %v1204 = vpop.f32.mrf.mxu0
    %v1205 = vadd.f32 %v106, %v1204
    %1206 = vmatmul.bf16.gmra.mxu0 %v1134
    %v1207 = vpop.f32.mrf.mxu0
    %v1208 = vadd.f32 %v106, %v1207
    %v1209 = vpop.f32.mrf.mxu0
    %v1210 = vadd.f32 %v106, %v1209
    %1211 = vmatmul.bf16.gmra.mxu0 %v1137
    %v1212 = vpop.f32.mrf.mxu0
    %v1213 = vadd.f32 %v106, %v1212
    %v1214 = vpop.f32.mrf.mxu0
    %v1215 = vadd.f32 %v106, %v1214
    %1216 = vmatmul.bf16.gmra.mxu0 %v1140
    %v1217 = vpop.f32.mrf.mxu0
    %v1218 = vadd.f32 %v106, %v1217
    %v1219 = vpop.f32.mrf.mxu0
    %v1220 = vadd.f32 %v106, %v1219
    %1221 = vmatmul.bf16.gmra.mxu0 %v1143
    %v1222 = vpop.f32.mrf.mxu0
    %v1223 = vadd.f32 %v106, %v1222
    %v1224 = vpop.f32.mrf.mxu0
    %v1225 = vadd.f32 %v106, %v1224
    %1226 = vmatmul.bf16.gmra.mxu0 %v1146
    %v1227 = vpop.f32.mrf.mxu0
    %v1228 = vadd.f32 %v106, %v1227
    %v1229 = vpop.f32.mrf.mxu0
    %v1230 = vadd.f32 %v106, %v1229
    %1231 = vmatmul.bf16.gmra.mxu0 %v1149
    %v1232 = vpop.f32.mrf.mxu0
    %v1233 = vadd.f32 %v106, %v1232
    %v1234 = vpop.f32.mrf.mxu0
    %v1235 = vadd.f32 %v106, %v1234
    %1236 = vmatmul.bf16.gmra.mxu0 %v1152
    %v1237 = vpop.f32.mrf.mxu0
    %v1238 = vadd.f32 %v106, %v1237
    %v1239 = vpop.f32.mrf.mxu0
    %v1240 = vadd.f32 %v106, %v1239
    %1241 = vmatmul.bf16.gmra.mxu0 %v1155
    %v1242 = vpop.f32.mrf.mxu0
    %v1243 = vadd.f32 %v106, %v1242
    %v1244 = vpop.f32.mrf.mxu0
    %v1245 = vadd.f32 %v106, %v1244
    %1246 = vmatmul.bf16.gmra.mxu0 %v1158
    %v1247 = vpop.f32.mrf.mxu0
    %v1248 = vadd.f32 %v106, %v1247
    %v1249 = vpop.f32.mrf.mxu0
    %v1250 = vadd.f32 %v106, %v1249
    %1251 = vmatmul.bf16.gmra.mxu0 %v1161
    %v1252 = vpop.f32.mrf.mxu0
    %v1253 = vadd.f32 %v106, %v1252
    %v1254 = vpop.f32.mrf.mxu0
    %v1255 = vadd.f32 %v106, %v1254
    %1256 = vmatmul.bf16.gmra.mxu0 %v1164
    %v1257 = vpop.f32.mrf.mxu0
    %v1258 = vadd.f32 %v106, %v1257
    %v1259 = vpop.f32.mrf.mxu0
    %v1260 = vadd.f32 %v106, %v1259
    %1261 = vmatmul.bf16.gmra.mxu0 %v1167
    %v1262 = vpop.f32.mrf.mxu0
    %v1263 = vadd.f32 %v106, %v1262
    %v1264 = vpop.f32.mrf.mxu0
    %v1265 = vadd.f32 %v106, %v1264
    %1266 = vmatmul.bf16.gmra.mxu0 %v1170
    %v1267 = vpop.f32.mrf.mxu0
    %v1268 = vadd.f32 %v106, %v1267
    %v1269 = vpop.f32.mrf.mxu0
    %v1270 = vadd.f32 %v106, %v1269
    %1271 = vmatmul.bf16.gmra.mxu0 %v1173
    %v1272 = vpop.f32.mrf.mxu0
    %v1273 = vadd.f32 %v106, %v1272
    %v1274 = vpop.f32.mrf.mxu0
    %v1275 = vadd.f32 %v106, %v1274
    %1276 = vmatmul.bf16.gmra.mxu0 %v1176
    %v1277 = vpop.f32.mrf.mxu0
    %v1278 = vadd.f32 %v106, %v1277
    %v1279 = vpop.f32.mrf.mxu0
    %v1280 = vadd.f32 %v106, %v1279
    %1281 = vmatmul.bf16.gmra.mxu0 %v1179
    %v1282 = vpop.f32.mrf.mxu0
    %v1283 = vadd.f32 %v106, %v1282
    %v1284 = vpop.f32.mrf.mxu0
    %v1285 = vadd.f32 %v106, %v1284
    %1286 = vmatmul.bf16.gmra.mxu0 %v1182
    %v1287 = vpop.f32.mrf.mxu0
    %v1288 = vadd.f32 %v106, %v1287
    %v1289 = vpop.f32.mrf.mxu0
    %v1290 = vadd.f32 %v106, %v1289
    %1291 = vmatmul.bf16.gmra.mxu0 %v1185
    %v1292 = vpop.f32.mrf.mxu0
    %v1293 = vadd.f32 %v106, %v1292
    %v1294 = vpop.f32.mrf.mxu0
    %v1295 = vadd.f32 %v106, %v1294
    %1296 = vmatmul.bf16.gmra.mxu0 %v1188
    %v1297 = vpop.f32.mrf.mxu0
    %v1298 = vadd.f32 %v106, %v1297
    %v1299 = vpop.f32.mrf.mxu0
    %v1300 = vadd.f32 %v106, %v1299
    %1301 = vdwg.mxu0
    %v1302 = vmax.f32 %v1203, 0.0
    %v1303 = vmax.f32 %v1205, 0.0
    %v1304 = vmax.f32 %v1208, 0.0
    %v1305 = vmax.f32 %v1210, 0.0
    %v1306 = vmax.f32 %v1213, 0.0
    %v1307 = vmax.f32 %v1215, 0.0
    %v1308 = vmax.f32 %v1218, 0.0
    %v1309 = vmax.f32 %v1220, 0.0
    %v1310 = vmax.f32 %v1223, 0.0
    %v1311 = vmax.f32 %v1225, 0.0
    %v1312 = vmax.f32 %v1228, 0.0
    %v1313 = vmax.f32 %v1230, 0.0
    %v1314 = vmax.f32 %v1233, 0.0
    %v1315 = vmax.f32 %v1235, 0.0
    %v1316 = vmax.f32 %v1238, 0.0
    %v1317 = vmax.f32 %v1240, 0.0
    %v1318 = vmax.f32 %v1243, 0.0
    %v1319 = vmax.f32 %v1245, 0.0
    %v1320 = vmax.f32 %v1248, 0.0
    %v1321 = vmax.f32 %v1250, 0.0
    %v1322 = vmax.f32 %v1253, 0.0
    %v1323 = vmax.f32 %v1255, 0.0
    %v1324 = vmax.f32 %v1258, 0.0
    %v1325 = vmax.f32 %v1260, 0.0
    %v1326 = vmax.f32 %v1263, 0.0
    %v1327 = vmax.f32 %v1265, 0.0
    %v1328 = vmax.f32 %v1268, 0.0
    %v1329 = vmax.f32 %v1270, 0.0
    %v1330 = vmax.f32 %v1273, 0.0
    %v1331 = vmax.f32 %v1275, 0.0
    %v1332 = vmax.f32 %v1278, 0.0
    %v1333 = vmax.f32 %v1280, 0.0
    %v1334 = vmax.f32 %v1283, 0.0
    %v1335 = vmax.f32 %v1285, 0.0
    %v1336 = vmax.f32 %v1288, 0.0
    %v1337 = vmax.f32 %v1290, 0.0
    %v1338 = vmax.f32 %v1293, 0.0
    %v1339 = vmax.f32 %v1295, 0.0
    %v1340 = vmax.f32 %v1298, 0.0
    %v1341 = vmax.f32 %v1300, 0.0
    %v1342 = vpack.c.bf16 %v1303, %v1302
    %v1343 = vpack.c.bf16 %v1305, %v1304
    %v1344 = vpack.c.bf16 %v1307, %v1306
    %v1345 = vpack.c.bf16 %v1309, %v1308
    %v1346 = vpack.c.bf16 %v1311, %v1310
    %v1347 = vpack.c.bf16 %v1313, %v1312
    %v1348 = vpack.c.bf16 %v1315, %v1314
    %v1349 = vpack.c.bf16 %v1317, %v1316
    %v1350 = vpack.c.bf16 %v1319, %v1318
    %v1351 = vpack.c.bf16 %v1321, %v1320
    %v1352 = vpack.c.bf16 %v1323, %v1322
    %v1353 = vpack.c.bf16 %v1325, %v1324
    %v1354 = vpack.c.bf16 %v1327, %v1326
    %v1355 = vpack.c.bf16 %v1329, %v1328
    %v1356 = vpack.c.bf16 %v1331, %v1330
    %v1357 = vpack.c.bf16 %v1333, %v1332
    %v1358 = vpack.c.bf16 %v1335, %v1334
    %v1359 = vpack.c.bf16 %v1337, %v1336
    %v1360 = vpack.c.bf16 %v1339, %v1338
    %v1361 = vpack.c.bf16 %v1341, %v1340
    %v1362 = vld [vmem:[%s2] sm:$0xf]
    %v1363 = vld [vmem:[%s2 + $0x4] sm:$0xf]
    %v1366 = vunpack.c.l.b16 %v1362
    %v1367 = vunpack.c.l.b16 %v1363
    %v1368 = vpack.c.b16 %v1367, %v1366
    %v1371 = vsel %vm349, %v1342, 0
    %v1374 = vsel %vm349, %v1343, 0
    %v1377 = vsel %vm349, %v1344, 0
    %v1380 = vsel %vm349, %v1345, 0
    %v1383 = vsel %vm349, %v1346, 0
    %v1386 = vsel %vm349, %v1347, 0
    %v1389 = vsel %vm349, %v1348, 0
    %v1392 = vsel %vm349, %v1349, 0
    %v1395 = vsel %vm349, %v1350, 0
    %v1398 = vsel %vm349, %v1351, 0
    %v1401 = vsel %vm349, %v1352, 0
    %v1404 = vsel %vm349, %v1353, 0
    %v1407 = vsel %vm349, %v1354, 0
    %v1410 = vsel %vm349, %v1355, 0
    %v1413 = vsel %vm349, %v1356, 0
    %v1416 = vsel %vm349, %v1357, 0
    %v1419 = vsel %vm349, %v1358, 0
    %v1422 = vsel %vm349, %v1359, 0
    %v1425 = vsel %vm349, %v1360, 0
    %v1428 = vsel %vm349, %v1361, 0
    %1430 = vmatpush.bf16.msra.mxu0 0
    %1431 = vmatpush.bf16.msra.mxu0 0
    %1432 = vmatpush.bf16.msra.mxu0 0
    %1433 = vmatpush.bf16.msra.mxu0 0
    %1434 = vmatpush.bf16.msra.mxu0 0
    %1435 = vmatpush.bf16.msra.mxu0 0
    %1436 = vmatpush.bf16.msra.mxu0 0
    %1437 = vmatpush.bf16.msra.mxu0 %v1368
    %1438 = vmatmul.bf16.gmra.mxu0 %v1371
    %v1439 = vpop.f32.mrf.mxu0
    %v1440 = vadd.f32 0.0, %v1439
    %v1441 = vpop.f32.mrf.mxu0
    %v1442 = vadd.f32 0.0, %v1441
    %1443 = vmatmul.bf16.gmra.mxu0 %v1374
    %v1444 = vpop.f32.mrf.mxu0
    %v1445 = vadd.f32 0.0, %v1444
    %v1446 = vpop.f32.mrf.mxu0
    %v1447 = vadd.f32 0.0, %v1446
    %1448 = vmatmul.bf16.gmra.mxu0 %v1377
    %v1449 = vpop.f32.mrf.mxu0
    %v1450 = vadd.f32 0.0, %v1449
    %v1451 = vpop.f32.mrf.mxu0
    %v1452 = vadd.f32 0.0, %v1451
    %1453 = vmatmul.bf16.gmra.mxu0 %v1380
    %v1454 = vpop.f32.mrf.mxu0
    %v1455 = vadd.f32 0.0, %v1454
    %v1456 = vpop.f32.mrf.mxu0
    %v1457 = vadd.f32 0.0, %v1456
    %1458 = vmatmul.bf16.gmra.mxu0 %v1383
    %v1459 = vpop.f32.mrf.mxu0
    %v1460 = vadd.f32 0.0, %v1459
    %v1461 = vpop.f32.mrf.mxu0
    %v1462 = vadd.f32 0.0, %v1461
    %1463 = vmatmul.bf16.gmra.mxu0 %v1386
    %v1464 = vpop.f32.mrf.mxu0
    %v1465 = vadd.f32 0.0, %v1464
    %v1466 = vpop.f32.mrf.mxu0
    %v1467 = vadd.f32 0.0, %v1466
    %1468 = vmatmul.bf16.gmra.mxu0 %v1389
    %v1469 = vpop.f32.mrf.mxu0
    %v1470 = vadd.f32 0.0, %v1469
    %v1471 = vpop.f32.mrf.mxu0
    %v1472 = vadd.f32 0.0, %v1471
    %1473 = vmatmul.bf16.gmra.mxu0 %v1392
    %v1474 = vpop.f32.mrf.mxu0
    %v1475 = vadd.f32 0.0, %v1474
    %v1476 = vpop.f32.mrf.mxu0
    %v1477 = vadd.f32 0.0, %v1476
    %1478 = vmatmul.bf16.gmra.mxu0 %v1395
    %v1479 = vpop.f32.mrf.mxu0
    %v1480 = vadd.f32 0.0, %v1479
    %v1481 = vpop.f32.mrf.mxu0
    %v1482 = vadd.f32 0.0, %v1481
    %1483 = vmatmul.bf16.gmra.mxu0 %v1398
    %v1484 = vpop.f32.mrf.mxu0
    %v1485 = vadd.f32 0.0, %v1484
    %v1486 = vpop.f32.mrf.mxu0
    %v1487 = vadd.f32 0.0, %v1486
    %1488 = vmatmul.bf16.gmra.mxu0 %v1401
    %v1489 = vpop.f32.mrf.mxu0
    %v1490 = vadd.f32 0.0, %v1489
    %v1491 = vpop.f32.mrf.mxu0
    %v1492 = vadd.f32 0.0, %v1491
    %1493 = vmatmul.bf16.gmra.mxu0 %v1404
    %v1494 = vpop.f32.mrf.mxu0
    %v1495 = vadd.f32 0.0, %v1494
    %v1496 = vpop.f32.mrf.mxu0
    %v1497 = vadd.f32 0.0, %v1496
    %1498 = vmatmul.bf16.gmra.mxu0 %v1407
    %v1499 = vpop.f32.mrf.mxu0
    %v1500 = vadd.f32 0.0, %v1499
    %v1501 = vpop.f32.mrf.mxu0
    %v1502 = vadd.f32 0.0, %v1501
    %1503 = vmatmul.bf16.gmra.mxu0 %v1410
    %v1504 = vpop.f32.mrf.mxu0
    %v1505 = vadd.f32 0.0, %v1504
    %v1506 = vpop.f32.mrf.mxu0
    %v1507 = vadd.f32 0.0, %v1506
    %1508 = vmatmul.bf16.gmra.mxu0 %v1413
    %v1509 = vpop.f32.mrf.mxu0
    %v1510 = vadd.f32 0.0, %v1509
    %v1511 = vpop.f32.mrf.mxu0
    %v1512 = vadd.f32 0.0, %v1511
    %1513 = vmatmul.bf16.gmra.mxu0 %v1416
    %v1514 = vpop.f32.mrf.mxu0
    %v1515 = vadd.f32 0.0, %v1514
    %v1516 = vpop.f32.mrf.mxu0
    %v1517 = vadd.f32 0.0, %v1516
    %1518 = vmatmul.bf16.gmra.mxu0 %v1419
    %v1519 = vpop.f32.mrf.mxu0
    %v1520 = vadd.f32 0.0, %v1519
    %v1521 = vpop.f32.mrf.mxu0
    %v1522 = vadd.f32 0.0, %v1521
    %1523 = vmatmul.bf16.gmra.mxu0 %v1422
    %v1524 = vpop.f32.mrf.mxu0
    %v1525 = vadd.f32 0.0, %v1524
    %v1526 = vpop.f32.mrf.mxu0
    %v1527 = vadd.f32 0.0, %v1526
    %1528 = vmatmul.bf16.gmra.mxu0 %v1425
    %v1529 = vpop.f32.mrf.mxu0
    %v1530 = vadd.f32 0.0, %v1529
    %v1531 = vpop.f32.mrf.mxu0
    %v1532 = vadd.f32 0.0, %v1531
    %1533 = vmatmul.bf16.gmra.mxu0 %v1428
    %v1534 = vpop.f32.mrf.mxu0
    %v1535 = vadd.f32 0.0, %v1534
    %v1536 = vpop.f32.mrf.mxu0
    %v1537 = vadd.f32 0.0, %v1536
    %1538 = vdwg.mxu0
    %1539 = vst.msk [vmem:[#allocation2 + $0x2a8] sm:$0xff] %vm34, %v1440
    %1540 = vst.msk [vmem:[#allocation2 + $0x2b0] sm:$0xff] %vm34, %v1442
    %1541 = vst.msk [vmem:[#allocation2 + $0x2b8] sm:$0xff] %vm34, %v1445
    %1542 = vst.msk [vmem:[#allocation2 + $0x2c0] sm:$0xff] %vm34, %v1447
    %1543 = vst.msk [vmem:[#allocation2 + $0x2c8] sm:$0xff] %vm34, %v1450
    %1544 = vst.msk [vmem:[#allocation2 + $0x2d0] sm:$0xff] %vm34, %v1452
    %1545 = vst.msk [vmem:[#allocation2 + $0x2d8] sm:$0xff] %vm34, %v1455
    %1546 = vst.msk [vmem:[#allocation2 + $0x2e0] sm:$0xff] %vm34, %v1457
    %1547 = vst.msk [vmem:[#allocation2 + $0x2e8] sm:$0xff] %vm34, %v1460
    %1548 = vst.msk [vmem:[#allocation2 + $0x2f0] sm:$0xff] %vm34, %v1462
    %1549 = vst.msk [vmem:[#allocation2 + $0x2f8] sm:$0xff] %vm34, %v1465
    %1550 = vst.msk [vmem:[#allocation2 + $0x300] sm:$0xff] %vm34, %v1467
    %1551 = vst.msk [vmem:[#allocation2 + $0x308] sm:$0xff] %vm34, %v1470
    %1552 = vst.msk [vmem:[#allocation2 + $0x310] sm:$0xff] %vm34, %v1472
    %1553 = vst.msk [vmem:[#allocation2 + $0x318] sm:$0xff] %vm34, %v1475
    %1554 = vst.msk [vmem:[#allocation2 + $0x320] sm:$0xff] %vm34, %v1477
    %1555 = vst.msk [vmem:[#allocation2 + $0x328] sm:$0xff] %vm34, %v1480
    %1556 = vst.msk [vmem:[#allocation2 + $0x330] sm:$0xff] %vm34, %v1482
    %1557 = vst.msk [vmem:[#allocation2 + $0x338] sm:$0xff] %vm34, %v1485
    %1558 = vst.msk [vmem:[#allocation2 + $0x340] sm:$0xff] %vm34, %v1487
    %1559 = vst.msk [vmem:[#allocation2 + $0x348] sm:$0xff] %vm34, %v1490
    %1560 = vst.msk [vmem:[#allocation2 + $0x350] sm:$0xff] %vm34, %v1492
    %1561 = vst.msk [vmem:[#allocation2 + $0x358] sm:$0xff] %vm34, %v1495
    %1562 = vst.msk [vmem:[#allocation2 + $0x360] sm:$0xff] %vm34, %v1497
    %1563 = vst.msk [vmem:[#allocation2 + $0x368] sm:$0xff] %vm34, %v1500
    %1564 = vst.msk [vmem:[#allocation2 + $0x370] sm:$0xff] %vm34, %v1502
    %1565 = vst.msk [vmem:[#allocation2 + $0x378] sm:$0xff] %vm34, %v1505
    %1566 = vst.msk [vmem:[#allocation2 + $0x380] sm:$0xff] %vm34, %v1507
    %1567 = vst.msk [vmem:[#allocation2 + $0x388] sm:$0xff] %vm34, %v1510
    %1568 = vst.msk [vmem:[#allocation2 + $0x390] sm:$0xff] %vm34, %v1512
    %1569 = vst.msk [vmem:[#allocation2 + $0x398] sm:$0xff] %vm34, %v1515
    %1570 = vst.msk [vmem:[#allocation2 + $0x3a0] sm:$0xff] %vm34, %v1517
    %1571 = vst.msk [vmem:[#allocation2 + $0x3a8] sm:$0xff] %vm34, %v1520
    %1572 = vst.msk [vmem:[#allocation2 + $0x3b0] sm:$0xff] %vm34, %v1522
    %1573 = vst.msk [vmem:[#allocation2 + $0x3b8] sm:$0xff] %vm34, %v1525
    %1574 = vst.msk [vmem:[#allocation2 + $0x3c0] sm:$0xff] %vm34, %v1527
    %1575 = vst.msk [vmem:[#allocation2 + $0x3c8] sm:$0xff] %vm34, %v1530
    %1576 = vst.msk [vmem:[#allocation2 + $0x3d0] sm:$0xff] %vm34, %v1532
    %1577 = vst.msk [vmem:[#allocation2 + $0x3d8] sm:$0xff] %vm34, %v1535
    %1578 = vst.msk [vmem:[#allocation2 + $0x3e0] sm:$0xff] %vm34, %v1537
    %v1579 = vld [vmem:[%s0 + $0x3c0] sm:$0xff]
    %v1580 = vld [vmem:[%s0 + $0x3c8] sm:$0xff]
    %v1581 = vld [vmem:[%s0 + $0x3d0] sm:$0xff]
    %v1582 = vld [vmem:[%s0 + $0x3d8] sm:$0xff]
    %v1583 = vld [vmem:[%s0 + $0x3e0] sm:$0xff]
    %v1584 = vld [vmem:[%s0 + $0x3e8] sm:$0xff]
    %v1585 = vld [vmem:[%s0 + $0x3f0] sm:$0xff]
    %v1586 = vld [vmem:[%s0 + $0x3f8] sm:$0xff]
    %v1587 = vld [vmem:[%s0 + $0x400] sm:$0xff]
    %v1588 = vld [vmem:[%s0 + $0x408] sm:$0xff]
    %v1589 = vld [vmem:[%s0 + $0x410] sm:$0xff]
    %v1590 = vld [vmem:[%s0 + $0x418] sm:$0xff]
    %v1591 = vld [vmem:[%s0 + $0x420] sm:$0xff]
    %v1592 = vld [vmem:[%s0 + $0x428] sm:$0xff]
    %v1593 = vld [vmem:[%s0 + $0x430] sm:$0xff]
    %v1594 = vld [vmem:[%s0 + $0x438] sm:$0xff]
    %v1595 = vld [vmem:[%s0 + $0x440] sm:$0xff]
    %v1596 = vld [vmem:[%s0 + $0x448] sm:$0xff]
    %v1597 = vld [vmem:[%s0 + $0x450] sm:$0xff]
    %v1598 = vld [vmem:[%s0 + $0x458] sm:$0xff]
    %v1599 = vld [vmem:[%s0 + $0x460] sm:$0xff]
    %v1600 = vld [vmem:[%s0 + $0x468] sm:$0xff]
    %v1601 = vld [vmem:[%s0 + $0x470] sm:$0xff]
    %v1602 = vld [vmem:[%s0 + $0x478] sm:$0xff]
    %v1603 = vld [vmem:[%s0 + $0x480] sm:$0xff]
    %v1604 = vld [vmem:[%s0 + $0x488] sm:$0xff]
    %v1605 = vld [vmem:[%s0 + $0x490] sm:$0xff]
    %v1606 = vld [vmem:[%s0 + $0x498] sm:$0xff]
    %v1607 = vld [vmem:[%s0 + $0x4a0] sm:$0xff]
    %v1608 = vld [vmem:[%s0 + $0x4a8] sm:$0xff]
    %v1609 = vld [vmem:[%s0 + $0x4b0] sm:$0xff]
    %v1610 = vld [vmem:[%s0 + $0x4b8] sm:$0xff]
    %v1611 = vld [vmem:[%s0 + $0x4c0] sm:$0xff]
    %v1612 = vld [vmem:[%s0 + $0x4c8] sm:$0xff]
    %v1613 = vld [vmem:[%s0 + $0x4d0] sm:$0xff]
    %v1614 = vld [vmem:[%s0 + $0x4d8] sm:$0xff]
    %v1615 = vld [vmem:[%s0 + $0x4e0] sm:$0xff]
    %v1616 = vld [vmem:[%s0 + $0x4e8] sm:$0xff]
    %v1617 = vld [vmem:[%s0 + $0x4f0] sm:$0xff]
    %v1618 = vld [vmem:[%s0 + $0x4f8] sm:$0xff]
    %v1619 = vpack.c.bf16 %v1580, %v1579
    %v1620 = vpack.c.bf16 %v1582, %v1581
    %v1621 = vpack.c.bf16 %v1584, %v1583
    %v1622 = vpack.c.bf16 %v1586, %v1585
    %v1623 = vpack.c.bf16 %v1588, %v1587
    %v1624 = vpack.c.bf16 %v1590, %v1589
    %v1625 = vpack.c.bf16 %v1592, %v1591
    %v1626 = vpack.c.bf16 %v1594, %v1593
    %v1627 = vpack.c.bf16 %v1596, %v1595
    %v1628 = vpack.c.bf16 %v1598, %v1597
    %v1629 = vpack.c.bf16 %v1600, %v1599
    %v1630 = vpack.c.bf16 %v1602, %v1601
    %v1631 = vpack.c.bf16 %v1604, %v1603
    %v1632 = vpack.c.bf16 %v1606, %v1605
    %v1633 = vpack.c.bf16 %v1608, %v1607
    %v1634 = vpack.c.bf16 %v1610, %v1609
    %v1635 = vpack.c.bf16 %v1612, %v1611
    %v1636 = vpack.c.bf16 %v1614, %v1613
    %v1637 = vpack.c.bf16 %v1616, %v1615
    %v1638 = vpack.c.bf16 %v1618, %v1617
    %v1639 = vld [vmem:[%s1] sm:$0xf]
    %v1641 = vsel %vm107, %v1619, 0
    %v1644 = vsel %vm107, %v1620, 0
    %v1647 = vsel %vm107, %v1621, 0
    %v1650 = vsel %vm107, %v1622, 0
    %v1653 = vsel %vm107, %v1623, 0
    %v1656 = vsel %vm107, %v1624, 0
    %v1659 = vsel %vm107, %v1625, 0
    %v1662 = vsel %vm107, %v1626, 0
    %v1665 = vsel %vm107, %v1627, 0
    %v1668 = vsel %vm107, %v1628, 0
    %v1671 = vsel %vm107, %v1629, 0
    %v1674 = vsel %vm107, %v1630, 0
    %v1677 = vsel %vm107, %v1631, 0
    %v1680 = vsel %vm107, %v1632, 0
    %v1683 = vsel %vm107, %v1633, 0
    %v1686 = vsel %vm107, %v1634, 0
    %v1689 = vsel %vm107, %v1635, 0
    %v1692 = vsel %vm107, %v1636, 0
    %v1695 = vsel %vm107, %v1637, 0
    %v1698 = vsel %vm107, %v1638, 0
    %v1701 = vsel %vm168, %v1639, 0
    %1703 = vmatpush.bf16.msra.mxu0 0
    %1704 = vmatpush.bf16.msra.mxu0 0
    %1705 = vmatpush.bf16.msra.mxu0 0
    %1706 = vmatpush.bf16.msra.mxu0 0
    %1707 = vmatpush.bf16.msra.mxu0 0
    %1708 = vmatpush.bf16.msra.mxu0 0
    %1709 = vmatpush.bf16.msra.mxu0 0
    %1710 = vmatpush.bf16.msra.mxu0 %v1701
    %1711 = vmatmul.bf16.gmra.mxu0 %v1641
    %v1712 = vpop.f32.mrf.mxu0
    %v1713 = vadd.f32 %v106, %v1712
    %v1714 = vpop.f32.mrf.mxu0
    %v1715 = vadd.f32 %v106, %v1714
    %1716 = vmatmul.bf16.gmra.mxu0 %v1644
    %v1717 = vpop.f32.mrf.mxu0
    %v1718 = vadd.f32 %v106, %v1717
    %v1719 = vpop.f32.mrf.mxu0
    %v1720 = vadd.f32 %v106, %v1719
    %1721 = vmatmul.bf16.gmra.mxu0 %v1647
    %v1722 = vpop.f32.mrf.mxu0
    %v1723 = vadd.f32 %v106, %v1722
    %v1724 = vpop.f32.mrf.mxu0
    %v1725 = vadd.f32 %v106, %v1724
    %1726 = vmatmul.bf16.gmra.mxu0 %v1650
    %v1727 = vpop.f32.mrf.mxu0
    %v1728 = vadd.f32 %v106, %v1727
    %v1729 = vpop.f32.mrf.mxu0
    %v1730 = vadd.f32 %v106, %v1729
    %1731 = vmatmul.bf16.gmra.mxu0 %v1653
    %v1732 = vpop.f32.mrf.mxu0
    %v1733 = vadd.f32 %v106, %v1732
    %v1734 = vpop.f32.mrf.mxu0
    %v1735 = vadd.f32 %v106, %v1734
    %1736 = vmatmul.bf16.gmra.mxu0 %v1656
    %v1737 = vpop.f32.mrf.mxu0
    %v1738 = vadd.f32 %v106, %v1737
    %v1739 = vpop.f32.mrf.mxu0
    %v1740 = vadd.f32 %v106, %v1739
    %1741 = vmatmul.bf16.gmra.mxu0 %v1659
    %v1742 = vpop.f32.mrf.mxu0
    %v1743 = vadd.f32 %v106, %v1742
    %v1744 = vpop.f32.mrf.mxu0
    %v1745 = vadd.f32 %v106, %v1744
    %1746 = vmatmul.bf16.gmra.mxu0 %v1662
    %v1747 = vpop.f32.mrf.mxu0
    %v1748 = vadd.f32 %v106, %v1747
    %v1749 = vpop.f32.mrf.mxu0
    %v1750 = vadd.f32 %v106, %v1749
    %1751 = vmatmul.bf16.gmra.mxu0 %v1665
    %v1752 = vpop.f32.mrf.mxu0
    %v1753 = vadd.f32 %v106, %v1752
    %v1754 = vpop.f32.mrf.mxu0
    %v1755 = vadd.f32 %v106, %v1754
    %1756 = vmatmul.bf16.gmra.mxu0 %v1668
    %v1757 = vpop.f32.mrf.mxu0
    %v1758 = vadd.f32 %v106, %v1757
    %v1759 = vpop.f32.mrf.mxu0
    %v1760 = vadd.f32 %v106, %v1759
    %1761 = vmatmul.bf16.gmra.mxu0 %v1671
    %v1762 = vpop.f32.mrf.mxu0
    %v1763 = vadd.f32 %v106, %v1762
    %v1764 = vpop.f32.mrf.mxu0
    %v1765 = vadd.f32 %v106, %v1764
    %1766 = vmatmul.bf16.gmra.mxu0 %v1674
    %v1767 = vpop.f32.mrf.mxu0
    %v1768 = vadd.f32 %v106, %v1767
    %v1769 = vpop.f32.mrf.mxu0
    %v1770 = vadd.f32 %v106, %v1769
    %1771 = vmatmul.bf16.gmra.mxu0 %v1677
    %v1772 = vpop.f32.mrf.mxu0
    %v1773 = vadd.f32 %v106, %v1772
    %v1774 = vpop.f32.mrf.mxu0
    %v1775 = vadd.f32 %v106, %v1774
    %1776 = vmatmul.bf16.gmra.mxu0 %v1680
    %v1777 = vpop.f32.mrf.mxu0
    %v1778 = vadd.f32 %v106, %v1777
    %v1779 = vpop.f32.mrf.mxu0
    %v1780 = vadd.f32 %v106, %v1779
    %1781 = vmatmul.bf16.gmra.mxu0 %v1683
    %v1782 = vpop.f32.mrf.mxu0
    %v1783 = vadd.f32 %v106, %v1782
    %v1784 = vpop.f32.mrf.mxu0
    %v1785 = vadd.f32 %v106, %v1784
    %1786 = vmatmul.bf16.gmra.mxu0 %v1686
    %v1787 = vpop.f32.mrf.mxu0
    %v1788 = vadd.f32 %v106, %v1787
    %v1789 = vpop.f32.mrf.mxu0
    %v1790 = vadd.f32 %v106, %v1789
    %1791 = vmatmul.bf16.gmra.mxu0 %v1689
    %v1792 = vpop.f32.mrf.mxu0
    %v1793 = vadd.f32 %v106, %v1792
    %v1794 = vpop.f32.mrf.mxu0
    %v1795 = vadd.f32 %v106, %v1794
    %1796 = vmatmul.bf16.gmra.mxu0 %v1692
    %v1797 = vpop.f32.mrf.mxu0
    %v1798 = vadd.f32 %v106, %v1797
    %v1799 = vpop.f32.mrf.mxu0
    %v1800 = vadd.f32 %v106, %v1799
    %1801 = vmatmul.bf16.gmra.mxu0 %v1695
    %v1802 = vpop.f32.mrf.mxu0
    %v1803 = vadd.f32 %v106, %v1802
    %v1804 = vpop.f32.mrf.mxu0
    %v1805 = vadd.f32 %v106, %v1804
    %1806 = vmatmul.bf16.gmra.mxu0 %v1698
    %v1807 = vpop.f32.mrf.mxu0
    %v1808 = vadd.f32 %v106, %v1807
    %v1809 = vpop.f32.mrf.mxu0
    %v1810 = vadd.f32 %v106, %v1809
    %1811 = vdwg.mxu0
    %v1812 = vmax.f32 %v1713, 0.0
    %v1813 = vmax.f32 %v1715, 0.0
    %v1814 = vmax.f32 %v1718, 0.0
    %v1815 = vmax.f32 %v1720, 0.0
    %v1816 = vmax.f32 %v1723, 0.0
    %v1817 = vmax.f32 %v1725, 0.0
    %v1818 = vmax.f32 %v1728, 0.0
    %v1819 = vmax.f32 %v1730, 0.0
    %v1820 = vmax.f32 %v1733, 0.0
    %v1821 = vmax.f32 %v1735, 0.0
    %v1822 = vmax.f32 %v1738, 0.0
    %v1823 = vmax.f32 %v1740, 0.0
    %v1824 = vmax.f32 %v1743, 0.0
    %v1825 = vmax.f32 %v1745, 0.0
    %v1826 = vmax.f32 %v1748, 0.0
    %v1827 = vmax.f32 %v1750, 0.0
    %v1828 = vmax.f32 %v1753, 0.0
    %v1829 = vmax.f32 %v1755, 0.0
    %v1830 = vmax.f32 %v1758, 0.0
    %v1831 = vmax.f32 %v1760, 0.0
    %v1832 = vmax.f32 %v1763, 0.0
    %v1833 = vmax.f32 %v1765, 0.0
    %v1834 = vmax.f32 %v1768, 0.0
    %v1835 = vmax.f32 %v1770, 0.0
    %v1836 = vmax.f32 %v1773, 0.0
    %v1837 = vmax.f32 %v1775, 0.0
    %v1838 = vmax.f32 %v1778, 0.0
    %v1839 = vmax.f32 %v1780, 0.0
    %v1840 = vmax.f32 %v1783, 0.0
    %v1841 = vmax.f32 %v1785, 0.0
    %v1842 = vmax.f32 %v1788, 0.0
    %v1843 = vmax.f32 %v1790, 0.0
    %v1844 = vmax.f32 %v1793, 0.0
    %v1845 = vmax.f32 %v1795, 0.0
    %v1846 = vmax.f32 %v1798, 0.0
    %v1847 = vmax.f32 %v1800, 0.0
    %v1848 = vmax.f32 %v1803, 0.0
    %v1849 = vmax.f32 %v1805, 0.0
    %v1850 = vmax.f32 %v1808, 0.0
    %v1851 = vmax.f32 %v1810, 0.0
    %v1852 = vpack.c.bf16 %v1813, %v1812
    %v1853 = vpack.c.bf16 %v1815, %v1814
    %v1854 = vpack.c.bf16 %v1817, %v1816
    %v1855 = vpack.c.bf16 %v1819, %v1818
    %v1856 = vpack.c.bf16 %v1821, %v1820
    %v1857 = vpack.c.bf16 %v1823, %v1822
    %v1858 = vpack.c.bf16 %v1825, %v1824
    %v1859 = vpack.c.bf16 %v1827, %v1826
    %v1860 = vpack.c.bf16 %v1829, %v1828
    %v1861 = vpack.c.bf16 %v1831, %v1830
    %v1862 = vpack.c.bf16 %v1833, %v1832
    %v1863 = vpack.c.bf16 %v1835, %v1834
    %v1864 = vpack.c.bf16 %v1837, %v1836
    %v1865 = vpack.c.bf16 %v1839, %v1838
    %v1866 = vpack.c.bf16 %v1841, %v1840
    %v1867 = vpack.c.bf16 %v1843, %v1842
    %v1868 = vpack.c.bf16 %v1845, %v1844
    %v1869 = vpack.c.bf16 %v1847, %v1846
    %v1870 = vpack.c.bf16 %v1849, %v1848
    %v1871 = vpack.c.bf16 %v1851, %v1850
    %v1872 = vld [vmem:[%s2] sm:$0xf]
    %v1873 = vld [vmem:[%s2 + $0x4] sm:$0xf]
    %v1876 = vunpack.c.l.b16 %v1872
    %v1877 = vunpack.c.l.b16 %v1873
    %v1878 = vpack.c.b16 %v1877, %v1876
    %v1881 = vsel %vm349, %v1852, 0
    %v1884 = vsel %vm349, %v1853, 0
    %v1887 = vsel %vm349, %v1854, 0
    %v1890 = vsel %vm349, %v1855, 0
    %v1893 = vsel %vm349, %v1856, 0
    %v1896 = vsel %vm349, %v1857, 0
    %v1899 = vsel %vm349, %v1858, 0
    %v1902 = vsel %vm349, %v1859, 0
    %v1905 = vsel %vm349, %v1860, 0
    %v1908 = vsel %vm349, %v1861, 0
    %v1911 = vsel %vm349, %v1862, 0
    %v1914 = vsel %vm349, %v1863, 0
    %v1917 = vsel %vm349, %v1864, 0
    %v1920 = vsel %vm349, %v1865, 0
    %v1923 = vsel %vm349, %v1866, 0
    %v1926 = vsel %vm349, %v1867, 0
    %v1929 = vsel %vm349, %v1868, 0
    %v1932 = vsel %vm349, %v1869, 0
    %v1935 = vsel %vm349, %v1870, 0
    %v1938 = vsel %vm349, %v1871, 0
    %1940 = vmatpush.bf16.msra.mxu0 0
    %1941 = vmatpush.bf16.msra.mxu0 0
    %1942 = vmatpush.bf16.msra.mxu0 0
    %1943 = vmatpush.bf16.msra.mxu0 0
    %1944 = vmatpush.bf16.msra.mxu0 0
    %1945 = vmatpush.bf16.msra.mxu0 0
    %1946 = vmatpush.bf16.msra.mxu0 0
    %1947 = vmatpush.bf16.msra.mxu0 %v1878
    %1948 = vmatmul.bf16.gmra.mxu0 %v1881
    %v1949 = vpop.f32.mrf.mxu0
    %v1950 = vadd.f32 0.0, %v1949
    %v1951 = vpop.f32.mrf.mxu0
    %v1952 = vadd.f32 0.0, %v1951
    %1953 = vmatmul.bf16.gmra.mxu0 %v1884
    %v1954 = vpop.f32.mrf.mxu0
    %v1955 = vadd.f32 0.0, %v1954
    %v1956 = vpop.f32.mrf.mxu0
    %v1957 = vadd.f32 0.0, %v1956
    %1958 = vmatmul.bf16.gmra.mxu0 %v1887
    %v1959 = vpop.f32.mrf.mxu0
    %v1960 = vadd.f32 0.0, %v1959
    %v1961 = vpop.f32.mrf.mxu0
    %v1962 = vadd.f32 0.0, %v1961
    %1963 = vmatmul.bf16.gmra.mxu0 %v1890
    %v1964 = vpop.f32.mrf.mxu0
    %v1965 = vadd.f32 0.0, %v1964
    %v1966 = vpop.f32.mrf.mxu0
    %v1967 = vadd.f32 0.0, %v1966
    %1968 = vmatmul.bf16.gmra.mxu0 %v1893
    %v1969 = vpop.f32.mrf.mxu0
    %v1970 = vadd.f32 0.0, %v1969
    %v1971 = vpop.f32.mrf.mxu0
    %v1972 = vadd.f32 0.0, %v1971
    %1973 = vmatmul.bf16.gmra.mxu0 %v1896
    %v1974 = vpop.f32.mrf.mxu0
    %v1975 = vadd.f32 0.0, %v1974
    %v1976 = vpop.f32.mrf.mxu0
    %v1977 = vadd.f32 0.0, %v1976
    %1978 = vmatmul.bf16.gmra.mxu0 %v1899
    %v1979 = vpop.f32.mrf.mxu0
    %v1980 = vadd.f32 0.0, %v1979
    %v1981 = vpop.f32.mrf.mxu0
    %v1982 = vadd.f32 0.0, %v1981
    %1983 = vmatmul.bf16.gmra.mxu0 %v1902
    %v1984 = vpop.f32.mrf.mxu0
    %v1985 = vadd.f32 0.0, %v1984
    %v1986 = vpop.f32.mrf.mxu0
    %v1987 = vadd.f32 0.0, %v1986
    %1988 = vmatmul.bf16.gmra.mxu0 %v1905
    %v1989 = vpop.f32.mrf.mxu0
    %v1990 = vadd.f32 0.0, %v1989
    %v1991 = vpop.f32.mrf.mxu0
    %v1992 = vadd.f32 0.0, %v1991
    %1993 = vmatmul.bf16.gmra.mxu0 %v1908
    %v1994 = vpop.f32.mrf.mxu0
    %v1995 = vadd.f32 0.0, %v1994
    %v1996 = vpop.f32.mrf.mxu0
    %v1997 = vadd.f32 0.0, %v1996
    %1998 = vmatmul.bf16.gmra.mxu0 %v1911
    %v1999 = vpop.f32.mrf.mxu0
    %v2000 = vadd.f32 0.0, %v1999
    %v2001 = vpop.f32.mrf.mxu0
    %v2002 = vadd.f32 0.0, %v2001
    %2003 = vmatmul.bf16.gmra.mxu0 %v1914
    %v2004 = vpop.f32.mrf.mxu0
    %v2005 = vadd.f32 0.0, %v2004
    %v2006 = vpop.f32.mrf.mxu0
    %v2007 = vadd.f32 0.0, %v2006
    %2008 = vmatmul.bf16.gmra.mxu0 %v1917
    %v2009 = vpop.f32.mrf.mxu0
    %v2010 = vadd.f32 0.0, %v2009
    %v2011 = vpop.f32.mrf.mxu0
    %v2012 = vadd.f32 0.0, %v2011
    %2013 = vmatmul.bf16.gmra.mxu0 %v1920
    %v2014 = vpop.f32.mrf.mxu0
    %v2015 = vadd.f32 0.0, %v2014
    %v2016 = vpop.f32.mrf.mxu0
    %v2017 = vadd.f32 0.0, %v2016
    %2018 = vmatmul.bf16.gmra.mxu0 %v1923
    %v2019 = vpop.f32.mrf.mxu0
    %v2020 = vadd.f32 0.0, %v2019
    %v2021 = vpop.f32.mrf.mxu0
    %v2022 = vadd.f32 0.0, %v2021
    %2023 = vmatmul.bf16.gmra.mxu0 %v1926
    %v2024 = vpop.f32.mrf.mxu0
    %v2025 = vadd.f32 0.0, %v2024
    %v2026 = vpop.f32.mrf.mxu0
    %v2027 = vadd.f32 0.0, %v2026
    %2028 = vmatmul.bf16.gmra.mxu0 %v1929
    %v2029 = vpop.f32.mrf.mxu0
    %v2030 = vadd.f32 0.0, %v2029
    %v2031 = vpop.f32.mrf.mxu0
    %v2032 = vadd.f32 0.0, %v2031
    %2033 = vmatmul.bf16.gmra.mxu0 %v1932
    %v2034 = vpop.f32.mrf.mxu0
    %v2035 = vadd.f32 0.0, %v2034
    %v2036 = vpop.f32.mrf.mxu0
    %v2037 = vadd.f32 0.0, %v2036
    %2038 = vmatmul.bf16.gmra.mxu0 %v1935
    %v2039 = vpop.f32.mrf.mxu0
    %v2040 = vadd.f32 0.0, %v2039
    %v2041 = vpop.f32.mrf.mxu0
    %v2042 = vadd.f32 0.0, %v2041
    %2043 = vmatmul.bf16.gmra.mxu0 %v1938
    %v2044 = vpop.f32.mrf.mxu0
    %v2045 = vadd.f32 0.0, %v2044
    %v2046 = vpop.f32.mrf.mxu0
    %v2047 = vadd.f32 0.0, %v2046
    %2048 = vdwg.mxu0
    %2049 = vst.msk [vmem:[#allocation2 + $0x3e8] sm:$0xff] %vm34, %v1950
    %2050 = vst.msk [vmem:[#allocation2 + $0x3f0] sm:$0xff] %vm34, %v1952
    %2051 = vst.msk [vmem:[#allocation2 + $0x3f8] sm:$0xff] %vm34, %v1955
    %2052 = vst.msk [vmem:[#allocation2 + $0x400] sm:$0xff] %vm34, %v1957
    %2053 = vst.msk [vmem:[#allocation2 + $0x408] sm:$0xff] %vm34, %v1960
    %2054 = vst.msk [vmem:[#allocation2 + $0x410] sm:$0xff] %vm34, %v1962
    %2055 = vst.msk [vmem:[#allocation2 + $0x418] sm:$0xff] %vm34, %v1965
    %2056 = vst.msk [vmem:[#allocation2 + $0x420] sm:$0xff] %vm34, %v1967
    %2057 = vst.msk [vmem:[#allocation2 + $0x428] sm:$0xff] %vm34, %v1970
    %2058 = vst.msk [vmem:[#allocation2 + $0x430] sm:$0xff] %vm34, %v1972
    %2059 = vst.msk [vmem:[#allocation2 + $0x438] sm:$0xff] %vm34, %v1975
    %2060 = vst.msk [vmem:[#allocation2 + $0x440] sm:$0xff] %vm34, %v1977
    %2061 = vst.msk [vmem:[#allocation2 + $0x448] sm:$0xff] %vm34, %v1980
    %2062 = vst.msk [vmem:[#allocation2 + $0x450] sm:$0xff] %vm34, %v1982
    %2063 = vst.msk [vmem:[#allocation2 + $0x458] sm:$0xff] %vm34, %v1985
    %2064 = vst.msk [vmem:[#allocation2 + $0x460] sm:$0xff] %vm34, %v1987
    %2065 = vst.msk [vmem:[#allocation2 + $0x468] sm:$0xff] %vm34, %v1990
    %2066 = vst.msk [vmem:[#allocation2 + $0x470] sm:$0xff] %vm34, %v1992
    %2067 = vst.msk [vmem:[#allocation2 + $0x478] sm:$0xff] %vm34, %v1995
    %2068 = vst.msk [vmem:[#allocation2 + $0x480] sm:$0xff] %vm34, %v1997
    %2069 = vst.msk [vmem:[#allocation2 + $0x488] sm:$0xff] %vm34, %v2000
    %2070 = vst.msk [vmem:[#allocation2 + $0x490] sm:$0xff] %vm34, %v2002
    %2071 = vst.msk [vmem:[#allocation2 + $0x498] sm:$0xff] %vm34, %v2005
    %2072 = vst.msk [vmem:[#allocation2 + $0x4a0] sm:$0xff] %vm34, %v2007
    %2073 = vst.msk [vmem:[#allocation2 + $0x4a8] sm:$0xff] %vm34, %v2010
    %2074 = vst.msk [vmem:[#allocation2 + $0x4b0] sm:$0xff] %vm34, %v2012
    %2075 = vst.msk [vmem:[#allocation2 + $0x4b8] sm:$0xff] %vm34, %v2015
    %2076 = vst.msk [vmem:[#allocation2 + $0x4c0] sm:$0xff] %vm34, %v2017
    %2077 = vst.msk [vmem:[#allocation2 + $0x4c8] sm:$0xff] %vm34, %v2020
    %2078 = vst.msk [vmem:[#allocation2 + $0x4d0] sm:$0xff] %vm34, %v2022
    %2079 = vst.msk [vmem:[#allocation2 + $0x4d8] sm:$0xff] %vm34, %v2025
    %2080 = vst.msk [vmem:[#allocation2 + $0x4e0] sm:$0xff] %vm34, %v2027
    %2081 = vst.msk [vmem:[#allocation2 + $0x4e8] sm:$0xff] %vm34, %v2030
    %2082 = vst.msk [vmem:[#allocation2 + $0x4f0] sm:$0xff] %vm34, %v2032
    %2083 = vst.msk [vmem:[#allocation2 + $0x4f8] sm:$0xff] %vm34, %v2035
    %2084 = vst.msk [vmem:[#allocation2 + $0x500] sm:$0xff] %vm34, %v2037
    %2085 = vst.msk [vmem:[#allocation2 + $0x508] sm:$0xff] %vm34, %v2040
    %2086 = vst.msk [vmem:[#allocation2 + $0x510] sm:$0xff] %vm34, %v2042
    %2087 = vst.msk [vmem:[#allocation2 + $0x518] sm:$0xff] %vm34, %v2045
    %2088 = vst.msk [vmem:[#allocation2 + $0x520] sm:$0xff] %vm34, %v2047
    %v2089 = vld [vmem:[%s0 + $0x500] sm:$0xff]
    %v2090 = vld [vmem:[%s0 + $0x508] sm:$0xff]
    %v2091 = vld [vmem:[%s0 + $0x510] sm:$0xff]
    %v2092 = vld [vmem:[%s0 + $0x518] sm:$0xff]
    %v2093 = vld [vmem:[%s0 + $0x520] sm:$0xff]
    %v2094 = vld [vmem:[%s0 + $0x528] sm:$0xff]
    %v2095 = vld [vmem:[%s0 + $0x530] sm:$0xff]
    %v2096 = vld [vmem:[%s0 + $0x538] sm:$0xff]
    %v2097 = vld [vmem:[%s0 + $0x540] sm:$0xff]
    %v2098 = vld [vmem:[%s0 + $0x548] sm:$0xff]
    %v2099 = vld [vmem:[%s0 + $0x550] sm:$0xff]
    %v2100 = vld [vmem:[%s0 + $0x558] sm:$0xff]
    %v2101 = vld [vmem:[%s0 + $0x560] sm:$0xff]
    %v2102 = vld [vmem:[%s0 + $0x568] sm:$0xff]
    %v2103 = vld [vmem:[%s0 + $0x570] sm:$0xff]
    %v2104 = vld [vmem:[%s0 + $0x578] sm:$0xff]
    %v2105 = vld [vmem:[%s0 + $0x580] sm:$0xff]
    %v2106 = vld [vmem:[%s0 + $0x588] sm:$0xff]
    %v2107 = vld [vmem:[%s0 + $0x590] sm:$0xff]
    %v2108 = vld [vmem:[%s0 + $0x598] sm:$0xff]
    %v2109 = vld [vmem:[%s0 + $0x5a0] sm:$0xff]
    %v2110 = vld [vmem:[%s0 + $0x5a8] sm:$0xff]
    %v2111 = vld [vmem:[%s0 + $0x5b0] sm:$0xff]
    %v2112 = vld [vmem:[%s0 + $0x5b8] sm:$0xff]
    %v2113 = vld [vmem:[%s0 + $0x5c0] sm:$0xff]
    %v2114 = vld [vmem:[%s0 + $0x5c8] sm:$0xff]
    %v2115 = vld [vmem:[%s0 + $0x5d0] sm:$0xff]
    %v2116 = vld [vmem:[%s0 + $0x5d8] sm:$0xff]
    %v2117 = vld [vmem:[%s0 + $0x5e0] sm:$0xff]
    %v2118 = vld [vmem:[%s0 + $0x5e8] sm:$0xff]
    %v2119 = vld [vmem:[%s0 + $0x5f0] sm:$0xff]
    %v2120 = vld [vmem:[%s0 + $0x5f8] sm:$0xff]
    %v2121 = vld [vmem:[%s0 + $0x600] sm:$0xff]
    %v2122 = vld [vmem:[%s0 + $0x608] sm:$0xff]
    %v2123 = vld [vmem:[%s0 + $0x610] sm:$0xff]
    %v2124 = vld [vmem:[%s0 + $0x618] sm:$0xff]
    %v2125 = vld [vmem:[%s0 + $0x620] sm:$0xff]
    %v2126 = vld [vmem:[%s0 + $0x628] sm:$0xff]
    %v2127 = vld [vmem:[%s0 + $0x630] sm:$0xff]
    %v2128 = vld [vmem:[%s0 + $0x638] sm:$0xff]
    %v2129 = vpack.c.bf16 %v2090, %v2089
    %v2130 = vpack.c.bf16 %v2092, %v2091
    %v2131 = vpack.c.bf16 %v2094, %v2093
    %v2132 = vpack.c.bf16 %v2096, %v2095
    %v2133 = vpack.c.bf16 %v2098, %v2097
    %v2134 = vpack.c.bf16 %v2100, %v2099
    %v2135 = vpack.c.bf16 %v2102, %v2101
    %v2136 = vpack.c.bf16 %v2104, %v2103
    %v2137 = vpack.c.bf16 %v2106, %v2105
    %v2138 = vpack.c.bf16 %v2108, %v2107
    %v2139 = vpack.c.bf16 %v2110, %v2109
    %v2140 = vpack.c.bf16 %v2112, %v2111
    %v2141 = vpack.c.bf16 %v2114, %v2113
    %v2142 = vpack.c.bf16 %v2116, %v2115
    %v2143 = vpack.c.bf16 %v2118, %v2117
    %v2144 = vpack.c.bf16 %v2120, %v2119
    %v2145 = vpack.c.bf16 %v2122, %v2121
    %v2146 = vpack.c.bf16 %v2124, %v2123
    %v2147 = vpack.c.bf16 %v2126, %v2125
    %v2148 = vpack.c.bf16 %v2128, %v2127
    %v2149 = vld [vmem:[%s1] sm:$0xf]
    %v2151 = vsel %vm107, %v2129, 0
    %v2154 = vsel %vm107, %v2130, 0
    %v2157 = vsel %vm107, %v2131, 0
    %v2160 = vsel %vm107, %v2132, 0
    %v2163 = vsel %vm107, %v2133, 0
    %v2166 = vsel %vm107, %v2134, 0
    %v2169 = vsel %vm107, %v2135, 0
    %v2172 = vsel %vm107, %v2136, 0
    %v2175 = vsel %vm107, %v2137, 0
    %v2178 = vsel %vm107, %v2138, 0
    %v2181 = vsel %vm107, %v2139, 0
    %v2184 = vsel %vm107, %v2140, 0
    %v2187 = vsel %vm107, %v2141, 0
    %v2190 = vsel %vm107, %v2142, 0
    %v2193 = vsel %vm107, %v2143, 0
    %v2196 = vsel %vm107, %v2144, 0
    %v2199 = vsel %vm107, %v2145, 0
    %v2202 = vsel %vm107, %v2146, 0
    %v2205 = vsel %vm107, %v2147, 0
    %v2208 = vsel %vm107, %v2148, 0
    %v2211 = vsel %vm168, %v2149, 0
    %2213 = vmatpush.bf16.msra.mxu0 0
    %2214 = vmatpush.bf16.msra.mxu0 0
    %2215 = vmatpush.bf16.msra.mxu0 0
    %2216 = vmatpush.bf16.msra.mxu0 0
    %2217 = vmatpush.bf16.msra.mxu0 0
    %2218 = vmatpush.bf16.msra.mxu0 0
    %2219 = vmatpush.bf16.msra.mxu0 0
    %2220 = vmatpush.bf16.msra.mxu0 %v2211
    %2221 = vmatmul.bf16.gmra.mxu0 %v2151
    %v2222 = vpop.f32.mrf.mxu0
    %v2223 = vadd.f32 %v106, %v2222
    %v2224 = vpop.f32.mrf.mxu0
    %v2225 = vadd.f32 %v106, %v2224
    %2226 = vmatmul.bf16.gmra.mxu0 %v2154
    %v2227 = vpop.f32.mrf.mxu0
    %v2228 = vadd.f32 %v106, %v2227
    %v2229 = vpop.f32.mrf.mxu0
    %v2230 = vadd.f32 %v106, %v2229
    %2231 = vmatmul.bf16.gmra.mxu0 %v2157
    %v2232 = vpop.f32.mrf.mxu0
    %v2233 = vadd.f32 %v106, %v2232
    %v2234 = vpop.f32.mrf.mxu0
    %v2235 = vadd.f32 %v106, %v2234
    %2236 = vmatmul.bf16.gmra.mxu0 %v2160
    %v2237 = vpop.f32.mrf.mxu0
    %v2238 = vadd.f32 %v106, %v2237
    %v2239 = vpop.f32.mrf.mxu0
    %v2240 = vadd.f32 %v106, %v2239
    %2241 = vmatmul.bf16.gmra.mxu0 %v2163
    %v2242 = vpop.f32.mrf.mxu0
    %v2243 = vadd.f32 %v106, %v2242
    %v2244 = vpop.f32.mrf.mxu0
    %v2245 = vadd.f32 %v106, %v2244
    %2246 = vmatmul.bf16.gmra.mxu0 %v2166
    %v2247 = vpop.f32.mrf.mxu0
    %v2248 = vadd.f32 %v106, %v2247
    %v2249 = vpop.f32.mrf.mxu0
    %v2250 = vadd.f32 %v106, %v2249
    %2251 = vmatmul.bf16.gmra.mxu0 %v2169
    %v2252 = vpop.f32.mrf.mxu0
    %v2253 = vadd.f32 %v106, %v2252
    %v2254 = vpop.f32.mrf.mxu0
    %v2255 = vadd.f32 %v106, %v2254
    %2256 = vmatmul.bf16.gmra.mxu0 %v2172
    %v2257 = vpop.f32.mrf.mxu0
    %v2258 = vadd.f32 %v106, %v2257
    %v2259 = vpop.f32.mrf.mxu0
    %v2260 = vadd.f32 %v106, %v2259
    %2261 = vmatmul.bf16.gmra.mxu0 %v2175
    %v2262 = vpop.f32.mrf.mxu0
    %v2263 = vadd.f32 %v106, %v2262
    %v2264 = vpop.f32.mrf.mxu0
    %v2265 = vadd.f32 %v106, %v2264
    %2266 = vmatmul.bf16.gmra.mxu0 %v2178
    %v2267 = vpop.f32.mrf.mxu0
    %v2268 = vadd.f32 %v106, %v2267
    %v2269 = vpop.f32.mrf.mxu0
    %v2270 = vadd.f32 %v106, %v2269
    %2271 = vmatmul.bf16.gmra.mxu0 %v2181
    %v2272 = vpop.f32.mrf.mxu0
    %v2273 = vadd.f32 %v106, %v2272
    %v2274 = vpop.f32.mrf.mxu0
    %v2275 = vadd.f32 %v106, %v2274
    %2276 = vmatmul.bf16.gmra.mxu0 %v2184
    %v2277 = vpop.f32.mrf.mxu0
    %v2278 = vadd.f32 %v106, %v2277
    %v2279 = vpop.f32.mrf.mxu0
    %v2280 = vadd.f32 %v106, %v2279
    %2281 = vmatmul.bf16.gmra.mxu0 %v2187
    %v2282 = vpop.f32.mrf.mxu0
    %v2283 = vadd.f32 %v106, %v2282
    %v2284 = vpop.f32.mrf.mxu0
    %v2285 = vadd.f32 %v106, %v2284
    %2286 = vmatmul.bf16.gmra.mxu0 %v2190
    %v2287 = vpop.f32.mrf.mxu0
    %v2288 = vadd.f32 %v106, %v2287
    %v2289 = vpop.f32.mrf.mxu0
    %v2290 = vadd.f32 %v106, %v2289
    %2291 = vmatmul.bf16.gmra.mxu0 %v2193
    %v2292 = vpop.f32.mrf.mxu0
    %v2293 = vadd.f32 %v106, %v2292
    %v2294 = vpop.f32.mrf.mxu0
    %v2295 = vadd.f32 %v106, %v2294
    %2296 = vmatmul.bf16.gmra.mxu0 %v2196
    %v2297 = vpop.f32.mrf.mxu0
    %v2298 = vadd.f32 %v106, %v2297
    %v2299 = vpop.f32.mrf.mxu0
    %v2300 = vadd.f32 %v106, %v2299
    %2301 = vmatmul.bf16.gmra.mxu0 %v2199
    %v2302 = vpop.f32.mrf.mxu0
    %v2303 = vadd.f32 %v106, %v2302
    %v2304 = vpop.f32.mrf.mxu0
    %v2305 = vadd.f32 %v106, %v2304
    %2306 = vmatmul.bf16.gmra.mxu0 %v2202
    %v2307 = vpop.f32.mrf.mxu0
    %v2308 = vadd.f32 %v106, %v2307
    %v2309 = vpop.f32.mrf.mxu0
    %v2310 = vadd.f32 %v106, %v2309
    %2311 = vmatmul.bf16.gmra.mxu0 %v2205
    %v2312 = vpop.f32.mrf.mxu0
    %v2313 = vadd.f32 %v106, %v2312
    %v2314 = vpop.f32.mrf.mxu0
    %v2315 = vadd.f32 %v106, %v2314
    %2316 = vmatmul.bf16.gmra.mxu0 %v2208
    %v2317 = vpop.f32.mrf.mxu0
    %v2318 = vadd.f32 %v106, %v2317
    %v2319 = vpop.f32.mrf.mxu0
    %v2320 = vadd.f32 %v106, %v2319
    %2321 = vdwg.mxu0
    %v2322 = vmax.f32 %v2223, 0.0
    %v2323 = vmax.f32 %v2225, 0.0
    %v2324 = vmax.f32 %v2228, 0.0
    %v2325 = vmax.f32 %v2230, 0.0
    %v2326 = vmax.f32 %v2233, 0.0
    %v2327 = vmax.f32 %v2235, 0.0
    %v2328 = vmax.f32 %v2238, 0.0
    %v2329 = vmax.f32 %v2240, 0.0
    %v2330 = vmax.f32 %v2243, 0.0
    %v2331 = vmax.f32 %v2245, 0.0
    %v2332 = vmax.f32 %v2248, 0.0
    %v2333 = vmax.f32 %v2250, 0.0
    %v2334 = vmax.f32 %v2253, 0.0
    %v2335 = vmax.f32 %v2255, 0.0
    %v2336 = vmax.f32 %v2258, 0.0
    %v2337 = vmax.f32 %v2260, 0.0
    %v2338 = vmax.f32 %v2263, 0.0
    %v2339 = vmax.f32 %v2265, 0.0
    %v2340 = vmax.f32 %v2268, 0.0
    %v2341 = vmax.f32 %v2270, 0.0
    %v2342 = vmax.f32 %v2273, 0.0
    %v2343 = vmax.f32 %v2275, 0.0
    %v2344 = vmax.f32 %v2278, 0.0
    %v2345 = vmax.f32 %v2280, 0.0
    %v2346 = vmax.f32 %v2283, 0.0
    %v2347 = vmax.f32 %v2285, 0.0
    %v2348 = vmax.f32 %v2288, 0.0
    %v2349 = vmax.f32 %v2290, 0.0
    %v2350 = vmax.f32 %v2293, 0.0
    %v2351 = vmax.f32 %v2295, 0.0
    %v2352 = vmax.f32 %v2298, 0.0
    %v2353 = vmax.f32 %v2300, 0.0
    %v2354 = vmax.f32 %v2303, 0.0
    %v2355 = vmax.f32 %v2305, 0.0
    %v2356 = vmax.f32 %v2308, 0.0
    %v2357 = vmax.f32 %v2310, 0.0
    %v2358 = vmax.f32 %v2313, 0.0
    %v2359 = vmax.f32 %v2315, 0.0
    %v2360 = vmax.f32 %v2318, 0.0
    %v2361 = vmax.f32 %v2320, 0.0
    %v2362 = vpack.c.bf16 %v2323, %v2322
    %v2363 = vpack.c.bf16 %v2325, %v2324
    %v2364 = vpack.c.bf16 %v2327, %v2326
    %v2365 = vpack.c.bf16 %v2329, %v2328
    %v2366 = vpack.c.bf16 %v2331, %v2330
    %v2367 = vpack.c.bf16 %v2333, %v2332
    %v2368 = vpack.c.bf16 %v2335, %v2334
    %v2369 = vpack.c.bf16 %v2337, %v2336
    %v2370 = vpack.c.bf16 %v2339, %v2338
    %v2371 = vpack.c.bf16 %v2341, %v2340
    %v2372 = vpack.c.bf16 %v2343, %v2342
    %v2373 = vpack.c.bf16 %v2345, %v2344
    %v2374 = vpack.c.bf16 %v2347, %v2346
    %v2375 = vpack.c.bf16 %v2349, %v2348
    %v2376 = vpack.c.bf16 %v2351, %v2350
    %v2377 = vpack.c.bf16 %v2353, %v2352
    %v2378 = vpack.c.bf16 %v2355, %v2354
    %v2379 = vpack.c.bf16 %v2357, %v2356
    %v2380 = vpack.c.bf16 %v2359, %v2358
    %v2381 = vpack.c.bf16 %v2361, %v2360
    %v2382 = vld [vmem:[%s2] sm:$0xf]
    %v2383 = vld [vmem:[%s2 + $0x4] sm:$0xf]
    %v2386 = vunpack.c.l.b16 %v2382
    %v2387 = vunpack.c.l.b16 %v2383
    %v2388 = vpack.c.b16 %v2387, %v2386
    %v2391 = vsel %vm349, %v2362, 0
    %v2394 = vsel %vm349, %v2363, 0
    %v2397 = vsel %vm349, %v2364, 0
    %v2400 = vsel %vm349, %v2365, 0
    %v2403 = vsel %vm349, %v2366, 0
    %v2406 = vsel %vm349, %v2367, 0
    %v2409 = vsel %vm349, %v2368, 0
    %v2412 = vsel %vm349, %v2369, 0
    %v2415 = vsel %vm349, %v2370, 0
    %v2418 = vsel %vm349, %v2371, 0
    %v2421 = vsel %vm349, %v2372, 0
    %v2424 = vsel %vm349, %v2373, 0
    %v2427 = vsel %vm349, %v2374, 0
    %v2430 = vsel %vm349, %v2375, 0
    %v2433 = vsel %vm349, %v2376, 0
    %v2436 = vsel %vm349, %v2377, 0
    %v2439 = vsel %vm349, %v2378, 0
    %v2442 = vsel %vm349, %v2379, 0
    %v2445 = vsel %vm349, %v2380, 0
    %v2448 = vsel %vm349, %v2381, 0
    %2450 = vmatpush.bf16.msra.mxu0 0
    %2451 = vmatpush.bf16.msra.mxu0 0
    %2452 = vmatpush.bf16.msra.mxu0 0
    %2453 = vmatpush.bf16.msra.mxu0 0
    %2454 = vmatpush.bf16.msra.mxu0 0
    %2455 = vmatpush.bf16.msra.mxu0 0
    %2456 = vmatpush.bf16.msra.mxu0 0
    %2457 = vmatpush.bf16.msra.mxu0 %v2388
    %2458 = vmatmul.bf16.gmra.mxu0 %v2391
    %v2459 = vpop.f32.mrf.mxu0
    %v2460 = vadd.f32 0.0, %v2459
    %v2461 = vpop.f32.mrf.mxu0
    %v2462 = vadd.f32 0.0, %v2461
    %2463 = vmatmul.bf16.gmra.mxu0 %v2394
    %v2464 = vpop.f32.mrf.mxu0
    %v2465 = vadd.f32 0.0, %v2464
    %v2466 = vpop.f32.mrf.mxu0
    %v2467 = vadd.f32 0.0, %v2466
    %2468 = vmatmul.bf16.gmra.mxu0 %v2397
    %v2469 = vpop.f32.mrf.mxu0
    %v2470 = vadd.f32 0.0, %v2469
    %v2471 = vpop.f32.mrf.mxu0
    %v2472 = vadd.f32 0.0, %v2471
    %2473 = vmatmul.bf16.gmra.mxu0 %v2400
    %v2474 = vpop.f32.mrf.mxu0
    %v2475 = vadd.f32 0.0, %v2474
    %v2476 = vpop.f32.mrf.mxu0
    %v2477 = vadd.f32 0.0, %v2476
    %2478 = vmatmul.bf16.gmra.mxu0 %v2403
    %v2479 = vpop.f32.mrf.mxu0
    %v2480 = vadd.f32 0.0, %v2479
    %v2481 = vpop.f32.mrf.mxu0
    %v2482 = vadd.f32 0.0, %v2481
    %2483 = vmatmul.bf16.gmra.mxu0 %v2406
    %v2484 = vpop.f32.mrf.mxu0
    %v2485 = vadd.f32 0.0, %v2484
    %v2486 = vpop.f32.mrf.mxu0
    %v2487 = vadd.f32 0.0, %v2486
    %2488 = vmatmul.bf16.gmra.mxu0 %v2409
    %v2489 = vpop.f32.mrf.mxu0
    %v2490 = vadd.f32 0.0, %v2489
    %v2491 = vpop.f32.mrf.mxu0
    %v2492 = vadd.f32 0.0, %v2491
    %2493 = vmatmul.bf16.gmra.mxu0 %v2412
    %v2494 = vpop.f32.mrf.mxu0
    %v2495 = vadd.f32 0.0, %v2494
    %v2496 = vpop.f32.mrf.mxu0
    %v2497 = vadd.f32 0.0, %v2496
    %2498 = vmatmul.bf16.gmra.mxu0 %v2415
    %v2499 = vpop.f32.mrf.mxu0
    %v2500 = vadd.f32 0.0, %v2499
    %v2501 = vpop.f32.mrf.mxu0
    %v2502 = vadd.f32 0.0, %v2501
    %2503 = vmatmul.bf16.gmra.mxu0 %v2418
    %v2504 = vpop.f32.mrf.mxu0
    %v2505 = vadd.f32 0.0, %v2504
    %v2506 = vpop.f32.mrf.mxu0
    %v2507 = vadd.f32 0.0, %v2506
    %2508 = vmatmul.bf16.gmra.mxu0 %v2421
    %v2509 = vpop.f32.mrf.mxu0
    %v2510 = vadd.f32 0.0, %v2509
    %v2511 = vpop.f32.mrf.mxu0
    %v2512 = vadd.f32 0.0, %v2511
    %2513 = vmatmul.bf16.gmra.mxu0 %v2424
    %v2514 = vpop.f32.mrf.mxu0
    %v2515 = vadd.f32 0.0, %v2514
    %v2516 = vpop.f32.mrf.mxu0
    %v2517 = vadd.f32 0.0, %v2516
    %2518 = vmatmul.bf16.gmra.mxu0 %v2427
    %v2519 = vpop.f32.mrf.mxu0
    %v2520 = vadd.f32 0.0, %v2519
    %v2521 = vpop.f32.mrf.mxu0
    %v2522 = vadd.f32 0.0, %v2521
    %2523 = vmatmul.bf16.gmra.mxu0 %v2430
    %v2524 = vpop.f32.mrf.mxu0
    %v2525 = vadd.f32 0.0, %v2524
    %v2526 = vpop.f32.mrf.mxu0
    %v2527 = vadd.f32 0.0, %v2526
    %2528 = vmatmul.bf16.gmra.mxu0 %v2433
    %v2529 = vpop.f32.mrf.mxu0
    %v2530 = vadd.f32 0.0, %v2529
    %v2531 = vpop.f32.mrf.mxu0
    %v2532 = vadd.f32 0.0, %v2531
    %2533 = vmatmul.bf16.gmra.mxu0 %v2436
    %v2534 = vpop.f32.mrf.mxu0
    %v2535 = vadd.f32 0.0, %v2534
    %v2536 = vpop.f32.mrf.mxu0
    %v2537 = vadd.f32 0.0, %v2536
    %2538 = vmatmul.bf16.gmra.mxu0 %v2439
    %v2539 = vpop.f32.mrf.mxu0
    %v2540 = vadd.f32 0.0, %v2539
    %v2541 = vpop.f32.mrf.mxu0
    %v2542 = vadd.f32 0.0, %v2541
    %2543 = vmatmul.bf16.gmra.mxu0 %v2442
    %v2544 = vpop.f32.mrf.mxu0
    %v2545 = vadd.f32 0.0, %v2544
    %v2546 = vpop.f32.mrf.mxu0
    %v2547 = vadd.f32 0.0, %v2546
    %2548 = vmatmul.bf16.gmra.mxu0 %v2445
    %v2549 = vpop.f32.mrf.mxu0
    %v2550 = vadd.f32 0.0, %v2549
    %v2551 = vpop.f32.mrf.mxu0
    %v2552 = vadd.f32 0.0, %v2551
    %2553 = vmatmul.bf16.gmra.mxu0 %v2448
    %v2554 = vpop.f32.mrf.mxu0
    %v2555 = vadd.f32 0.0, %v2554
    %v2556 = vpop.f32.mrf.mxu0
    %v2557 = vadd.f32 0.0, %v2556
    %2558 = vdwg.mxu0
    %2559 = vst.msk [vmem:[#allocation2 + $0x528] sm:$0xff] %vm34, %v2460
    %2560 = vst.msk [vmem:[#allocation2 + $0x530] sm:$0xff] %vm34, %v2462
    %2561 = vst.msk [vmem:[#allocation2 + $0x538] sm:$0xff] %vm34, %v2465
    %2562 = vst.msk [vmem:[#allocation2 + $0x540] sm:$0xff] %vm34, %v2467
    %2563 = vst.msk [vmem:[#allocation2 + $0x548] sm:$0xff] %vm34, %v2470
    %2564 = vst.msk [vmem:[#allocation2 + $0x550] sm:$0xff] %vm34, %v2472
    %2565 = vst.msk [vmem:[#allocation2 + $0x558] sm:$0xff] %vm34, %v2475
    %2566 = vst.msk [vmem:[#allocation2 + $0x560] sm:$0xff] %vm34, %v2477
    %2567 = vst.msk [vmem:[#allocation2 + $0x568] sm:$0xff] %vm34, %v2480
    %2568 = vst.msk [vmem:[#allocation2 + $0x570] sm:$0xff] %vm34, %v2482
    %2569 = vst.msk [vmem:[#allocation2 + $0x578] sm:$0xff] %vm34, %v2485
    %2570 = vst.msk [vmem:[#allocation2 + $0x580] sm:$0xff] %vm34, %v2487
    %2571 = vst.msk [vmem:[#allocation2 + $0x588] sm:$0xff] %vm34, %v2490
    %2572 = vst.msk [vmem:[#allocation2 + $0x590] sm:$0xff] %vm34, %v2492
    %2573 = vst.msk [vmem:[#allocation2 + $0x598] sm:$0xff] %vm34, %v2495
    %2574 = vst.msk [vmem:[#allocation2 + $0x5a0] sm:$0xff] %vm34, %v2497
    %2575 = vst.msk [vmem:[#allocation2 + $0x5a8] sm:$0xff] %vm34, %v2500
    %2576 = vst.msk [vmem:[#allocation2 + $0x5b0] sm:$0xff] %vm34, %v2502
    %2577 = vst.msk [vmem:[#allocation2 + $0x5b8] sm:$0xff] %vm34, %v2505
    %2578 = vst.msk [vmem:[#allocation2 + $0x5c0] sm:$0xff] %vm34, %v2507
    %2579 = vst.msk [vmem:[#allocation2 + $0x5c8] sm:$0xff] %vm34, %v2510
    %2580 = vst.msk [vmem:[#allocation2 + $0x5d0] sm:$0xff] %vm34, %v2512
    %2581 = vst.msk [vmem:[#allocation2 + $0x5d8] sm:$0xff] %vm34, %v2515
    %2582 = vst.msk [vmem:[#allocation2 + $0x5e0] sm:$0xff] %vm34, %v2517
    %2583 = vst.msk [vmem:[#allocation2 + $0x5e8] sm:$0xff] %vm34, %v2520
    %2584 = vst.msk [vmem:[#allocation2 + $0x5f0] sm:$0xff] %vm34, %v2522
    %2585 = vst.msk [vmem:[#allocation2 + $0x5f8] sm:$0xff] %vm34, %v2525
    %2586 = vst.msk [vmem:[#allocation2 + $0x600] sm:$0xff] %vm34, %v2527
    %2587 = vst.msk [vmem:[#allocation2 + $0x608] sm:$0xff] %vm34, %v2530
    %2588 = vst.msk [vmem:[#allocation2 + $0x610] sm:$0xff] %vm34, %v2532
    %2589 = vst.msk [vmem:[#allocation2 + $0x618] sm:$0xff] %vm34, %v2535
    %2590 = vst.msk [vmem:[#allocation2 + $0x620] sm:$0xff] %vm34, %v2537
    %2591 = vst.msk [vmem:[#allocation2 + $0x628] sm:$0xff] %vm34, %v2540
    %2592 = vst.msk [vmem:[#allocation2 + $0x630] sm:$0xff] %vm34, %v2542
    %2593 = vst.msk [vmem:[#allocation2 + $0x638] sm:$0xff] %vm34, %v2545
    %2594 = vst.msk [vmem:[#allocation2 + $0x640] sm:$0xff] %vm34, %v2547
    %2595 = vst.msk [vmem:[#allocation2 + $0x648] sm:$0xff] %vm34, %v2550
    %2596 = vst.msk [vmem:[#allocation2 + $0x650] sm:$0xff] %vm34, %v2552
    %2597 = vst.msk [vmem:[#allocation2 + $0x658] sm:$0xff] %vm34, %v2555
    %2598 = vst.msk [vmem:[#allocation2 + $0x660] sm:$0xff] %vm34, %v2557
    %v2599 = vld [vmem:[%s0 + $0x640] sm:$0xff]
    %v2600 = vld [vmem:[%s0 + $0x648] sm:$0xff]
    %v2601 = vld [vmem:[%s0 + $0x650] sm:$0xff]
    %v2602 = vld [vmem:[%s0 + $0x658] sm:$0xff]
    %v2603 = vld [vmem:[%s0 + $0x660] sm:$0xff]
    %v2604 = vld [vmem:[%s0 + $0x668] sm:$0xff]
    %v2605 = vld [vmem:[%s0 + $0x670] sm:$0xff]
    %v2606 = vld [vmem:[%s0 + $0x678] sm:$0xff]
    %v2607 = vld [vmem:[%s0 + $0x680] sm:$0xff]
    %v2608 = vld [vmem:[%s0 + $0x688] sm:$0xff]
    %v2609 = vld [vmem:[%s0 + $0x690] sm:$0xff]
    %v2610 = vld [vmem:[%s0 + $0x698] sm:$0xff]
    %v2611 = vld [vmem:[%s0 + $0x6a0] sm:$0xff]
    %v2612 = vld [vmem:[%s0 + $0x6a8] sm:$0xff]
    %v2613 = vld [vmem:[%s0 + $0x6b0] sm:$0xff]
    %v2614 = vld [vmem:[%s0 + $0x6b8] sm:$0xff]
    %v2615 = vld [vmem:[%s0 + $0x6c0] sm:$0xff]
    %v2616 = vld [vmem:[%s0 + $0x6c8] sm:$0xff]
    %v2617 = vld [vmem:[%s0 + $0x6d0] sm:$0xff]
    %v2618 = vld [vmem:[%s0 + $0x6d8] sm:$0xff]
    %v2619 = vld [vmem:[%s0 + $0x6e0] sm:$0xff]
    %v2620 = vld [vmem:[%s0 + $0x6e8] sm:$0xff]
    %v2621 = vld [vmem:[%s0 + $0x6f0] sm:$0xff]
    %v2622 = vld [vmem:[%s0 + $0x6f8] sm:$0xff]
    %v2623 = vld [vmem:[%s0 + $0x700] sm:$0xff]
    %v2624 = vld [vmem:[%s0 + $0x708] sm:$0xff]
    %v2625 = vld [vmem:[%s0 + $0x710] sm:$0xff]
    %v2626 = vld [vmem:[%s0 + $0x718] sm:$0xff]
    %v2627 = vld [vmem:[%s0 + $0x720] sm:$0xff]
    %v2628 = vld [vmem:[%s0 + $0x728] sm:$0xff]
    %v2629 = vld [vmem:[%s0 + $0x730] sm:$0xff]
    %v2630 = vld [vmem:[%s0 + $0x738] sm:$0xff]
    %v2631 = vld [vmem:[%s0 + $0x740] sm:$0xff]
    %v2632 = vld [vmem:[%s0 + $0x748] sm:$0xff]
    %v2633 = vld [vmem:[%s0 + $0x750] sm:$0xff]
    %v2634 = vld [vmem:[%s0 + $0x758] sm:$0xff]
    %v2635 = vld [vmem:[%s0 + $0x760] sm:$0xff]
    %v2636 = vld [vmem:[%s0 + $0x768] sm:$0xff]
    %v2637 = vld [vmem:[%s0 + $0x770] sm:$0xff]
    %v2638 = vld [vmem:[%s0 + $0x778] sm:$0xff]
    %v2639 = vpack.c.bf16 %v2600, %v2599
    %v2640 = vpack.c.bf16 %v2602, %v2601
    %v2641 = vpack.c.bf16 %v2604, %v2603
    %v2642 = vpack.c.bf16 %v2606, %v2605
    %v2643 = vpack.c.bf16 %v2608, %v2607
    %v2644 = vpack.c.bf16 %v2610, %v2609
    %v2645 = vpack.c.bf16 %v2612, %v2611
    %v2646 = vpack.c.bf16 %v2614, %v2613
    %v2647 = vpack.c.bf16 %v2616, %v2615
    %v2648 = vpack.c.bf16 %v2618, %v2617
    %v2649 = vpack.c.bf16 %v2620, %v2619
    %v2650 = vpack.c.bf16 %v2622, %v2621
    %v2651 = vpack.c.bf16 %v2624, %v2623
    %v2652 = vpack.c.bf16 %v2626, %v2625
    %v2653 = vpack.c.bf16 %v2628, %v2627
    %v2654 = vpack.c.bf16 %v2630, %v2629
    %v2655 = vpack.c.bf16 %v2632, %v2631
    %v2656 = vpack.c.bf16 %v2634, %v2633
    %v2657 = vpack.c.bf16 %v2636, %v2635
    %v2658 = vpack.c.bf16 %v2638, %v2637
    %v2659 = vld [vmem:[%s1] sm:$0xf]
    %v2661 = vsel %vm107, %v2639, 0
    %v2664 = vsel %vm107, %v2640, 0
    %v2667 = vsel %vm107, %v2641, 0
    %v2670 = vsel %vm107, %v2642, 0
    %v2673 = vsel %vm107, %v2643, 0
    %v2676 = vsel %vm107, %v2644, 0
    %v2679 = vsel %vm107, %v2645, 0
    %v2682 = vsel %vm107, %v2646, 0
    %v2685 = vsel %vm107, %v2647, 0
    %v2688 = vsel %vm107, %v2648, 0
    %v2691 = vsel %vm107, %v2649, 0
    %v2694 = vsel %vm107, %v2650, 0
    %v2697 = vsel %vm107, %v2651, 0
    %v2700 = vsel %vm107, %v2652, 0
    %v2703 = vsel %vm107, %v2653, 0
    %v2706 = vsel %vm107, %v2654, 0
    %v2709 = vsel %vm107, %v2655, 0
    %v2712 = vsel %vm107, %v2656, 0
    %v2715 = vsel %vm107, %v2657, 0
    %v2718 = vsel %vm107, %v2658, 0
    %v2721 = vsel %vm168, %v2659, 0
    %2723 = vmatpush.bf16.msra.mxu0 0
    %2724 = vmatpush.bf16.msra.mxu0 0
    %2725 = vmatpush.bf16.msra.mxu0 0
    %2726 = vmatpush.bf16.msra.mxu0 0
    %2727 = vmatpush.bf16.msra.mxu0 0
    %2728 = vmatpush.bf16.msra.mxu0 0
    %2729 = vmatpush.bf16.msra.mxu0 0
    %2730 = vmatpush.bf16.msra.mxu0 %v2721
    %2731 = vmatmul.bf16.gmra.mxu0 %v2661
    %v2732 = vpop.f32.mrf.mxu0
    %v2733 = vadd.f32 %v106, %v2732
    %v2734 = vpop.f32.mrf.mxu0
    %v2735 = vadd.f32 %v106, %v2734
    %2736 = vmatmul.bf16.gmra.mxu0 %v2664
    %v2737 = vpop.f32.mrf.mxu0
    %v2738 = vadd.f32 %v106, %v2737
    %v2739 = vpop.f32.mrf.mxu0
    %v2740 = vadd.f32 %v106, %v2739
    %2741 = vmatmul.bf16.gmra.mxu0 %v2667
    %v2742 = vpop.f32.mrf.mxu0
    %v2743 = vadd.f32 %v106, %v2742
    %v2744 = vpop.f32.mrf.mxu0
    %v2745 = vadd.f32 %v106, %v2744
    %2746 = vmatmul.bf16.gmra.mxu0 %v2670
    %v2747 = vpop.f32.mrf.mxu0
    %v2748 = vadd.f32 %v106, %v2747
    %v2749 = vpop.f32.mrf.mxu0
    %v2750 = vadd.f32 %v106, %v2749
    %2751 = vmatmul.bf16.gmra.mxu0 %v2673
    %v2752 = vpop.f32.mrf.mxu0
    %v2753 = vadd.f32 %v106, %v2752
    %v2754 = vpop.f32.mrf.mxu0
    %v2755 = vadd.f32 %v106, %v2754
    %2756 = vmatmul.bf16.gmra.mxu0 %v2676
    %v2757 = vpop.f32.mrf.mxu0
    %v2758 = vadd.f32 %v106, %v2757
    %v2759 = vpop.f32.mrf.mxu0
    %v2760 = vadd.f32 %v106, %v2759
    %2761 = vmatmul.bf16.gmra.mxu0 %v2679
    %v2762 = vpop.f32.mrf.mxu0
    %v2763 = vadd.f32 %v106, %v2762
    %v2764 = vpop.f32.mrf.mxu0
    %v2765 = vadd.f32 %v106, %v2764
    %2766 = vmatmul.bf16.gmra.mxu0 %v2682
    %v2767 = vpop.f32.mrf.mxu0
    %v2768 = vadd.f32 %v106, %v2767
    %v2769 = vpop.f32.mrf.mxu0
    %v2770 = vadd.f32 %v106, %v2769
    %2771 = vmatmul.bf16.gmra.mxu0 %v2685
    %v2772 = vpop.f32.mrf.mxu0
    %v2773 = vadd.f32 %v106, %v2772
    %v2774 = vpop.f32.mrf.mxu0
    %v2775 = vadd.f32 %v106, %v2774
    %2776 = vmatmul.bf16.gmra.mxu0 %v2688
    %v2777 = vpop.f32.mrf.mxu0
    %v2778 = vadd.f32 %v106, %v2777
    %v2779 = vpop.f32.mrf.mxu0
    %v2780 = vadd.f32 %v106, %v2779
    %2781 = vmatmul.bf16.gmra.mxu0 %v2691
    %v2782 = vpop.f32.mrf.mxu0
    %v2783 = vadd.f32 %v106, %v2782
    %v2784 = vpop.f32.mrf.mxu0
    %v2785 = vadd.f32 %v106, %v2784
    %2786 = vmatmul.bf16.gmra.mxu0 %v2694
    %v2787 = vpop.f32.mrf.mxu0
    %v2788 = vadd.f32 %v106, %v2787
    %v2789 = vpop.f32.mrf.mxu0
    %v2790 = vadd.f32 %v106, %v2789
    %2791 = vmatmul.bf16.gmra.mxu0 %v2697
    %v2792 = vpop.f32.mrf.mxu0
    %v2793 = vadd.f32 %v106, %v2792
    %v2794 = vpop.f32.mrf.mxu0
    %v2795 = vadd.f32 %v106, %v2794
    %2796 = vmatmul.bf16.gmra.mxu0 %v2700
    %v2797 = vpop.f32.mrf.mxu0
    %v2798 = vadd.f32 %v106, %v2797
    %v2799 = vpop.f32.mrf.mxu0
    %v2800 = vadd.f32 %v106, %v2799
    %2801 = vmatmul.bf16.gmra.mxu0 %v2703
    %v2802 = vpop.f32.mrf.mxu0
    %v2803 = vadd.f32 %v106, %v2802
    %v2804 = vpop.f32.mrf.mxu0
    %v2805 = vadd.f32 %v106, %v2804
    %2806 = vmatmul.bf16.gmra.mxu0 %v2706
    %v2807 = vpop.f32.mrf.mxu0
    %v2808 = vadd.f32 %v106, %v2807
    %v2809 = vpop.f32.mrf.mxu0
    %v2810 = vadd.f32 %v106, %v2809
    %2811 = vmatmul.bf16.gmra.mxu0 %v2709
    %v2812 = vpop.f32.mrf.mxu0
    %v2813 = vadd.f32 %v106, %v2812
    %v2814 = vpop.f32.mrf.mxu0
    %v2815 = vadd.f32 %v106, %v2814
    %2816 = vmatmul.bf16.gmra.mxu0 %v2712
    %v2817 = vpop.f32.mrf.mxu0
    %v2818 = vadd.f32 %v106, %v2817
    %v2819 = vpop.f32.mrf.mxu0
    %v2820 = vadd.f32 %v106, %v2819
    %2821 = vmatmul.bf16.gmra.mxu0 %v2715
    %v2822 = vpop.f32.mrf.mxu0
    %v2823 = vadd.f32 %v106, %v2822
    %v2824 = vpop.f32.mrf.mxu0
    %v2825 = vadd.f32 %v106, %v2824
    %2826 = vmatmul.bf16.gmra.mxu0 %v2718
    %v2827 = vpop.f32.mrf.mxu0
    %v2828 = vadd.f32 %v106, %v2827
    %v2829 = vpop.f32.mrf.mxu0
    %v2830 = vadd.f32 %v106, %v2829
    %2831 = vdwg.mxu0
    %v2832 = vmax.f32 %v2733, 0.0
    %v2833 = vmax.f32 %v2735, 0.0
    %v2834 = vmax.f32 %v2738, 0.0
    %v2835 = vmax.f32 %v2740, 0.0
    %v2836 = vmax.f32 %v2743, 0.0
    %v2837 = vmax.f32 %v2745, 0.0
    %v2838 = vmax.f32 %v2748, 0.0
    %v2839 = vmax.f32 %v2750, 0.0
    %v2840 = vmax.f32 %v2753, 0.0
    %v2841 = vmax.f32 %v2755, 0.0
    %v2842 = vmax.f32 %v2758, 0.0
    %v2843 = vmax.f32 %v2760, 0.0
    %v2844 = vmax.f32 %v2763, 0.0
    %v2845 = vmax.f32 %v2765, 0.0
    %v2846 = vmax.f32 %v2768, 0.0
    %v2847 = vmax.f32 %v2770, 0.0
    %v2848 = vmax.f32 %v2773, 0.0
    %v2849 = vmax.f32 %v2775, 0.0
    %v2850 = vmax.f32 %v2778, 0.0
    %v2851 = vmax.f32 %v2780, 0.0
    %v2852 = vmax.f32 %v2783, 0.0
    %v2853 = vmax.f32 %v2785, 0.0
    %v2854 = vmax.f32 %v2788, 0.0
    %v2855 = vmax.f32 %v2790, 0.0
    %v2856 = vmax.f32 %v2793, 0.0
    %v2857 = vmax.f32 %v2795, 0.0
    %v2858 = vmax.f32 %v2798, 0.0
    %v2859 = vmax.f32 %v2800, 0.0
    %v2860 = vmax.f32 %v2803, 0.0
    %v2861 = vmax.f32 %v2805, 0.0
    %v2862 = vmax.f32 %v2808, 0.0
    %v2863 = vmax.f32 %v2810, 0.0
    %v2864 = vmax.f32 %v2813, 0.0
    %v2865 = vmax.f32 %v2815, 0.0
    %v2866 = vmax.f32 %v2818, 0.0
    %v2867 = vmax.f32 %v2820, 0.0
    %v2868 = vmax.f32 %v2823, 0.0
    %v2869 = vmax.f32 %v2825, 0.0
    %v2870 = vmax.f32 %v2828, 0.0
    %v2871 = vmax.f32 %v2830, 0.0
    %v2872 = vpack.c.bf16 %v2833, %v2832
    %v2873 = vpack.c.bf16 %v2835, %v2834
    %v2874 = vpack.c.bf16 %v2837, %v2836
    %v2875 = vpack.c.bf16 %v2839, %v2838
    %v2876 = vpack.c.bf16 %v2841, %v2840
    %v2877 = vpack.c.bf16 %v2843, %v2842
    %v2878 = vpack.c.bf16 %v2845, %v2844
    %v2879 = vpack.c.bf16 %v2847, %v2846
    %v2880 = vpack.c.bf16 %v2849, %v2848
    %v2881 = vpack.c.bf16 %v2851, %v2850
    %v2882 = vpack.c.bf16 %v2853, %v2852
    %v2883 = vpack.c.bf16 %v2855, %v2854
    %v2884 = vpack.c.bf16 %v2857, %v2856
    %v2885 = vpack.c.bf16 %v2859, %v2858
    %v2886 = vpack.c.bf16 %v2861, %v2860
    %v2887 = vpack.c.bf16 %v2863, %v2862
    %v2888 = vpack.c.bf16 %v2865, %v2864
    %v2889 = vpack.c.bf16 %v2867, %v2866
    %v2890 = vpack.c.bf16 %v2869, %v2868
    %v2891 = vpack.c.bf16 %v2871, %v2870
    %v2892 = vld [vmem:[%s2] sm:$0xf]
    %v2893 = vld [vmem:[%s2 + $0x4] sm:$0xf]
    %v2896 = vunpack.c.l.b16 %v2892
    %v2897 = vunpack.c.l.b16 %v2893
    %v2898 = vpack.c.b16 %v2897, %v2896
    %v2901 = vsel %vm349, %v2872, 0
    %v2904 = vsel %vm349, %v2873, 0
    %v2907 = vsel %vm349, %v2874, 0
    %v2910 = vsel %vm349, %v2875, 0
    %v2913 = vsel %vm349, %v2876, 0
    %v2916 = vsel %vm349, %v2877, 0
    %v2919 = vsel %vm349, %v2878, 0
    %v2922 = vsel %vm349, %v2879, 0
    %v2925 = vsel %vm349, %v2880, 0
    %v2928 = vsel %vm349, %v2881, 0
    %v2931 = vsel %vm349, %v2882, 0
    %v2934 = vsel %vm349, %v2883, 0
    %v2937 = vsel %vm349, %v2884, 0
    %v2940 = vsel %vm349, %v2885, 0
    %v2943 = vsel %vm349, %v2886, 0
    %v2946 = vsel %vm349, %v2887, 0
    %v2949 = vsel %vm349, %v2888, 0
    %v2952 = vsel %vm349, %v2889, 0
    %v2955 = vsel %vm349, %v2890, 0
    %v2958 = vsel %vm349, %v2891, 0
    %2960 = vmatpush.bf16.msra.mxu0 0
    %2961 = vmatpush.bf16.msra.mxu0 0
    %2962 = vmatpush.bf16.msra.mxu0 0
    %2963 = vmatpush.bf16.msra.mxu0 0
    %2964 = vmatpush.bf16.msra.mxu0 0
    %2965 = vmatpush.bf16.msra.mxu0 0
    %2966 = vmatpush.bf16.msra.mxu0 0
    %2967 = vmatpush.bf16.msra.mxu0 %v2898
    %2968 = vmatmul.bf16.gmra.mxu0 %v2901
    %v2969 = vpop.f32.mrf.mxu0
    %v2970 = vadd.f32 0.0, %v2969
    %v2971 = vpop.f32.mrf.mxu0
    %v2972 = vadd.f32 0.0, %v2971
    %2973 = vmatmul.bf16.gmra.mxu0 %v2904
    %v2974 = vpop.f32.mrf.mxu0
    %v2975 = vadd.f32 0.0, %v2974
    %v2976 = vpop.f32.mrf.mxu0
    %v2977 = vadd.f32 0.0, %v2976
    %2978 = vmatmul.bf16.gmra.mxu0 %v2907
    %v2979 = vpop.f32.mrf.mxu0
    %v2980 = vadd.f32 0.0, %v2979
    %v2981 = vpop.f32.mrf.mxu0
    %v2982 = vadd.f32 0.0, %v2981
    %2983 = vmatmul.bf16.gmra.mxu0 %v2910
    %v2984 = vpop.f32.mrf.mxu0
    %v2985 = vadd.f32 0.0, %v2984
    %v2986 = vpop.f32.mrf.mxu0
    %v2987 = vadd.f32 0.0, %v2986
    %2988 = vmatmul.bf16.gmra.mxu0 %v2913
    %v2989 = vpop.f32.mrf.mxu0
    %v2990 = vadd.f32 0.0, %v2989
    %v2991 = vpop.f32.mrf.mxu0
    %v2992 = vadd.f32 0.0, %v2991
    %2993 = vmatmul.bf16.gmra.mxu0 %v2916
    %v2994 = vpop.f32.mrf.mxu0
    %v2995 = vadd.f32 0.0, %v2994
    %v2996 = vpop.f32.mrf.mxu0
    %v2997 = vadd.f32 0.0, %v2996
    %2998 = vmatmul.bf16.gmra.mxu0 %v2919
    %v2999 = vpop.f32.mrf.mxu0
    %v3000 = vadd.f32 0.0, %v2999
    %v3001 = vpop.f32.mrf.mxu0
    %v3002 = vadd.f32 0.0, %v3001
    %3003 = vmatmul.bf16.gmra.mxu0 %v2922
    %v3004 = vpop.f32.mrf.mxu0
    %v3005 = vadd.f32 0.0, %v3004
    %v3006 = vpop.f32.mrf.mxu0
    %v3007 = vadd.f32 0.0, %v3006
    %3008 = vmatmul.bf16.gmra.mxu0 %v2925
    %v3009 = vpop.f32.mrf.mxu0
    %v3010 = vadd.f32 0.0, %v3009
    %v3011 = vpop.f32.mrf.mxu0
    %v3012 = vadd.f32 0.0, %v3011
    %3013 = vmatmul.bf16.gmra.mxu0 %v2928
    %v3014 = vpop.f32.mrf.mxu0
    %v3015 = vadd.f32 0.0, %v3014
    %v3016 = vpop.f32.mrf.mxu0
    %v3017 = vadd.f32 0.0, %v3016
    %3018 = vmatmul.bf16.gmra.mxu0 %v2931
    %v3019 = vpop.f32.mrf.mxu0
    %v3020 = vadd.f32 0.0, %v3019
    %v3021 = vpop.f32.mrf.mxu0
    %v3022 = vadd.f32 0.0, %v3021
    %3023 = vmatmul.bf16.gmra.mxu0 %v2934
    %v3024 = vpop.f32.mrf.mxu0
    %v3025 = vadd.f32 0.0, %v3024
    %v3026 = vpop.f32.mrf.mxu0
    %v3027 = vadd.f32 0.0, %v3026
    %3028 = vmatmul.bf16.gmra.mxu0 %v2937
    %v3029 = vpop.f32.mrf.mxu0
    %v3030 = vadd.f32 0.0, %v3029
    %v3031 = vpop.f32.mrf.mxu0
    %v3032 = vadd.f32 0.0, %v3031
    %3033 = vmatmul.bf16.gmra.mxu0 %v2940
    %v3034 = vpop.f32.mrf.mxu0
    %v3035 = vadd.f32 0.0, %v3034
    %v3036 = vpop.f32.mrf.mxu0
    %v3037 = vadd.f32 0.0, %v3036
    %3038 = vmatmul.bf16.gmra.mxu0 %v2943
    %v3039 = vpop.f32.mrf.mxu0
    %v3040 = vadd.f32 0.0, %v3039
    %v3041 = vpop.f32.mrf.mxu0
    %v3042 = vadd.f32 0.0, %v3041
    %3043 = vmatmul.bf16.gmra.mxu0 %v2946
    %v3044 = vpop.f32.mrf.mxu0
    %v3045 = vadd.f32 0.0, %v3044
    %v3046 = vpop.f32.mrf.mxu0
    %v3047 = vadd.f32 0.0, %v3046
    %3048 = vmatmul.bf16.gmra.mxu0 %v2949
    %v3049 = vpop.f32.mrf.mxu0
    %v3050 = vadd.f32 0.0, %v3049
    %v3051 = vpop.f32.mrf.mxu0
    %v3052 = vadd.f32 0.0, %v3051
    %3053 = vmatmul.bf16.gmra.mxu0 %v2952
    %v3054 = vpop.f32.mrf.mxu0
    %v3055 = vadd.f32 0.0, %v3054
    %v3056 = vpop.f32.mrf.mxu0
    %v3057 = vadd.f32 0.0, %v3056
    %3058 = vmatmul.bf16.gmra.mxu0 %v2955
    %v3059 = vpop.f32.mrf.mxu0
    %v3060 = vadd.f32 0.0, %v3059
    %v3061 = vpop.f32.mrf.mxu0
    %v3062 = vadd.f32 0.0, %v3061
    %3063 = vmatmul.bf16.gmra.mxu0 %v2958
    %v3064 = vpop.f32.mrf.mxu0
    %v3065 = vadd.f32 0.0, %v3064
    %v3066 = vpop.f32.mrf.mxu0
    %v3067 = vadd.f32 0.0, %v3066
    %3068 = vdwg.mxu0
    %3069 = vst.msk [vmem:[#allocation2 + $0x668] sm:$0xff] %vm34, %v2970
    %3070 = vst.msk [vmem:[#allocation2 + $0x670] sm:$0xff] %vm34, %v2972
    %3071 = vst.msk [vmem:[#allocation2 + $0x678] sm:$0xff] %vm34, %v2975
    %3072 = vst.msk [vmem:[#allocation2 + $0x680] sm:$0xff] %vm34, %v2977
    %3073 = vst.msk [vmem:[#allocation2 + $0x688] sm:$0xff] %vm34, %v2980
    %3074 = vst.msk [vmem:[#allocation2 + $0x690] sm:$0xff] %vm34, %v2982
    %3075 = vst.msk [vmem:[#allocation2 + $0x698] sm:$0xff] %vm34, %v2985
    %3076 = vst.msk [vmem:[#allocation2 + $0x6a0] sm:$0xff] %vm34, %v2987
    %3077 = vst.msk [vmem:[#allocation2 + $0x6a8] sm:$0xff] %vm34, %v2990
    %3078 = vst.msk [vmem:[#allocation2 + $0x6b0] sm:$0xff] %vm34, %v2992
    %3079 = vst.msk [vmem:[#allocation2 + $0x6b8] sm:$0xff] %vm34, %v2995
    %3080 = vst.msk [vmem:[#allocation2 + $0x6c0] sm:$0xff] %vm34, %v2997
    %3081 = vst.msk [vmem:[#allocation2 + $0x6c8] sm:$0xff] %vm34, %v3000
    %3082 = vst.msk [vmem:[#allocation2 + $0x6d0] sm:$0xff] %vm34, %v3002
    %3083 = vst.msk [vmem:[#allocation2 + $0x6d8] sm:$0xff] %vm34, %v3005
    %3084 = vst.msk [vmem:[#allocation2 + $0x6e0] sm:$0xff] %vm34, %v3007
    %3085 = vst.msk [vmem:[#allocation2 + $0x6e8] sm:$0xff] %vm34, %v3010
    %3086 = vst.msk [vmem:[#allocation2 + $0x6f0] sm:$0xff] %vm34, %v3012
    %3087 = vst.msk [vmem:[#allocation2 + $0x6f8] sm:$0xff] %vm34, %v3015
    %3088 = vst.msk [vmem:[#allocation2 + $0x700] sm:$0xff] %vm34, %v3017
    %3089 = vst.msk [vmem:[#allocation2 + $0x708] sm:$0xff] %vm34, %v3020
    %3090 = vst.msk [vmem:[#allocation2 + $0x710] sm:$0xff] %vm34, %v3022
    %3091 = vst.msk [vmem:[#allocation2 + $0x718] sm:$0xff] %vm34, %v3025
    %3092 = vst.msk [vmem:[#allocation2 + $0x720] sm:$0xff] %vm34, %v3027
    %3093 = vst.msk [vmem:[#allocation2 + $0x728] sm:$0xff] %vm34, %v3030
    %3094 = vst.msk [vmem:[#allocation2 + $0x730] sm:$0xff] %vm34, %v3032
    %3095 = vst.msk [vmem:[#allocation2 + $0x738] sm:$0xff] %vm34, %v3035
    %3096 = vst.msk [vmem:[#allocation2 + $0x740] sm:$0xff] %vm34, %v3037
    %3097 = vst.msk [vmem:[#allocation2 + $0x748] sm:$0xff] %vm34, %v3040
    %3098 = vst.msk [vmem:[#allocation2 + $0x750] sm:$0xff] %vm34, %v3042
    %3099 = vst.msk [vmem:[#allocation2 + $0x758] sm:$0xff] %vm34, %v3045
    %3100 = vst.msk [vmem:[#allocation2 + $0x760] sm:$0xff] %vm34, %v3047
    %3101 = vst.msk [vmem:[#allocation2 + $0x768] sm:$0xff] %vm34, %v3050
    %3102 = vst.msk [vmem:[#allocation2 + $0x770] sm:$0xff] %vm34, %v3052
    %3103 = vst.msk [vmem:[#allocation2 + $0x778] sm:$0xff] %vm34, %v3055
    %3104 = vst.msk [vmem:[#allocation2 + $0x780] sm:$0xff] %vm34, %v3057
    %3105 = vst.msk [vmem:[#allocation2 + $0x788] sm:$0xff] %vm34, %v3060
    %3106 = vst.msk [vmem:[#allocation2 + $0x790] sm:$0xff] %vm34, %v3062
    %3107 = vst.msk [vmem:[#allocation2 + $0x798] sm:$0xff] %vm34, %v3065
    %3108 = vst.msk [vmem:[#allocation2 + $0x7a0] sm:$0xff] %vm34, %v3067
    %v3109 = vld [vmem:[%s0 + $0x780] sm:$0xff]
    %v3110 = vld [vmem:[%s0 + $0x788] sm:$0xff]
    %v3111 = vld [vmem:[%s0 + $0x790] sm:$0xff]
    %v3112 = vld [vmem:[%s0 + $0x798] sm:$0xff]
    %v3113 = vld [vmem:[%s0 + $0x7a0] sm:$0xff]
    %v3114 = vpack.c.bf16 %v3110, %v3109
    %v3115 = vpack.c.bf16 %v3112, %v3111
    %v3116 = vpack.c.bf16 %v3113, %v3113
    %v3117 = vld [vmem:[%s1] sm:$0xf]
    %v3119 = vsel %vm107, %v3114, 0
    %v3122 = vsel %vm107, %v3115, 0
    %v3125 = vsel %vm107, %v3116, 0
    %v3128 = vsel %vm168, %v3117, 0
    %3130 = vmatpush.bf16.msra.mxu0 0
    %3131 = vmatpush.bf16.msra.mxu0 0
    %3132 = vmatpush.bf16.msra.mxu0 0
    %3133 = vmatpush.bf16.msra.mxu0 0
    %3134 = vmatpush.bf16.msra.mxu0 0
    %3135 = vmatpush.bf16.msra.mxu0 0
    %3136 = vmatpush.bf16.msra.mxu0 0
    %3137 = vmatpush.bf16.msra.mxu0 %v3128
    %3138 = vmatmul.bf16.gmra.mxu0 %v3119
    %v3139 = vpop.f32.mrf.mxu0
    %v3140 = vadd.f32 %v106, %v3139
    %v3141 = vpop.f32.mrf.mxu0
    %v3142 = vadd.f32 %v106, %v3141
    %3143 = vmatmul.bf16.gmra.mxu0 %v3122
    %v3144 = vpop.f32.mrf.mxu0
    %v3145 = vadd.f32 %v106, %v3144
    %v3146 = vpop.f32.mrf.mxu0
    %v3147 = vadd.f32 %v106, %v3146
    %3148 = vmatmul.bf16.gmra.mxu0 %v3125
    %v3149 = vpop.f32.mrf.mxu0
    %v3150 = vadd.f32 %v106, %v3149
    %v3151 = vpop.f32.mrf.mxu0
    %3152 = vdwg.mxu0
    %v3153 = vmax.f32 %v3140, 0.0
    %v3154 = vmax.f32 %v3142, 0.0
    %v3155 = vmax.f32 %v3145, 0.0
    %v3156 = vmax.f32 %v3147, 0.0
    %v3157 = vmax.f32 %v3150, 0.0
    %v3158 = vpack.c.bf16 %v3154, %v3153
    %v3159 = vpack.c.bf16 %v3156, %v3155
    %v3160 = vpack.c.bf16 %v3157, %v3157
    %v3161 = vld [vmem:[%s2] sm:$0xf]
    %v3162 = vld [vmem:[%s2 + $0x4] sm:$0xf]
    %v3165 = vunpack.c.l.b16 %v3161
    %v3166 = vunpack.c.l.b16 %v3162
    %v3167 = vpack.c.b16 %v3166, %v3165
    %v3170 = vsel %vm349, %v3158, 0
    %v3173 = vsel %vm349, %v3159, 0
    %v3176 = vsel %vm349, %v3160, 0
    %3178 = vmatpush.bf16.msra.mxu0 0
    %3179 = vmatpush.bf16.msra.mxu0 0
    %3180 = vmatpush.bf16.msra.mxu0 0
    %3181 = vmatpush.bf16.msra.mxu0 0
    %3182 = vmatpush.bf16.msra.mxu0 0
    %3183 = vmatpush.bf16.msra.mxu0 0
    %3184 = vmatpush.bf16.msra.mxu0 0
    %3185 = vmatpush.bf16.msra.mxu0 %v3167
    %3186 = vmatmul.bf16.gmra.mxu0 %v3170
    %v3187 = vpop.f32.mrf.mxu0
    %v3188 = vadd.f32 0.0, %v3187
    %v3189 = vpop.f32.mrf.mxu0
    %v3190 = vadd.f32 0.0, %v3189
    %3191 = vmatmul.bf16.gmra.mxu0 %v3173
    %v3192 = vpop.f32.mrf.mxu0
    %v3193 = vadd.f32 0.0, %v3192
    %v3194 = vpop.f32.mrf.mxu0
    %v3195 = vadd.f32 0.0, %v3194
    %3196 = vmatmul.bf16.gmra.mxu0 %v3176
    %v3197 = vpop.f32.mrf.mxu0
    %v3198 = vadd.f32 0.0, %v3197
    %v3199 = vpop.f32.mrf.mxu0
    %3200 = vdwg.mxu0
    %3201 = vst.msk [vmem:[#allocation2 + $0x7a8] sm:$0xff] %vm34, %v3188
    %3202 = vst.msk [vmem:[#allocation2 + $0x7b0] sm:$0xff] %vm34, %v3190
    %3203 = vst.msk [vmem:[#allocation2 + $0x7b8] sm:$0xff] %vm34, %v3193
    %3204 = vst.msk [vmem:[#allocation2 + $0x7c0] sm:$0xff] %vm34, %v3195
    %3205 = vst.msk [vmem:[#allocation2 + $0x7c8] sm:$0xff] %vm34, %v3198
    %v3206 = vld [vmem:[#allocation2] sm:$0xff]
    %v3207 = vld [vmem:[#allocation2 + $0x8] sm:$0xff]
    %v3208 = vld [vmem:[#allocation2 + $0x10] sm:$0xff]
    %v3209 = vld [vmem:[#allocation2 + $0x18] sm:$0xff]
    %v3210 = vld [vmem:[#allocation2 + $0x20] sm:$0xff]
    %v3211 = vld [vmem:[#allocation2 + $0x28] sm:$0xff]
    %v3212 = vld [vmem:[#allocation2 + $0x30] sm:$0xff]
    %v3213 = vld [vmem:[#allocation2 + $0x38] sm:$0xff]
    %v3214 = vld [vmem:[#allocation2 + $0x40] sm:$0xff]
    %v3215 = vld [vmem:[#allocation2 + $0x48] sm:$0xff]
    %3221 = vrot.lane.b32.xlu0 %v3211, 96
    %v3222 = vpop.permute.xlu0 %3221
    %3223 = vrot.lane.b32.xlu0 %v3212, 96
    %v3224 = vpop.permute.xlu0 %3223
    %3225 = vrot.lane.b32.xlu0 %v3213, 96
    %v3226 = vpop.permute.xlu0 %3225
    %3227 = vrot.lane.b32.xlu0 %v3214, 96
    %v3228 = vpop.permute.xlu0 %3227
    %3229 = vrot.lane.b32.xlu0 %v3215, 96
    %v3230 = vpop.permute.xlu0 %3229
    %v3236 = vadd.f32 %v3206, %v3222
    %v3237 = vadd.f32 %v3207, %v3224
    %v3238 = vadd.f32 %v3208, %v3226
    %v3239 = vadd.f32 %v3209, %v3228
    %v3240 = vadd.f32 %v3210, %v3230
    %v3241 = vld [vmem:[#allocation2 + $0x50] sm:$0xff]
    %v3242 = vld [vmem:[#allocation2 + $0x58] sm:$0xff]
    %v3243 = vld [vmem:[#allocation2 + $0x60] sm:$0xff]
    %v3244 = vld [vmem:[#allocation2 + $0x68] sm:$0xff]
    %v3245 = vld [vmem:[#allocation2 + $0x70] sm:$0xff]
    %3251 = vrot.lane.b32.xlu0 %v3241, 64
    %v3252 = vpop.permute.xlu0 %3251
    %3253 = vrot.lane.b32.xlu0 %v3242, 64
    %v3254 = vpop.permute.xlu0 %3253
    %3255 = vrot.lane.b32.xlu0 %v3243, 64
    %v3256 = vpop.permute.xlu0 %3255
    %3257 = vrot.lane.b32.xlu0 %v3244, 64
    %v3258 = vpop.permute.xlu0 %3257
    %3259 = vrot.lane.b32.xlu0 %v3245, 64
    %v3260 = vpop.permute.xlu0 %3259
    %v3266 = vadd.f32 %v3236, %v3252
    %v3267 = vadd.f32 %v3237, %v3254
    %v3268 = vadd.f32 %v3238, %v3256
    %v3269 = vadd.f32 %v3239, %v3258
    %v3270 = vadd.f32 %v3240, %v3260
    %v3271 = vperm.slane %v29, 0
    %v3272 = vadd.f32 %v3266, %v3271
    %v3273 = vadd.f32 %v3267, %v3271
    %v3274 = vadd.f32 %v3268, %v3271
    %v3275 = vadd.f32 %v3269, %v3271
    %v3276 = vadd.f32 %v3270, %v3271
    %v3277 = vmax.f32 %v3272, 0.0
    %v3278 = vmax.f32 %v3273, 0.0
    %v3279 = vmax.f32 %v3274, 0.0
    %v3280 = vmax.f32 %v3275, 0.0
    %v3281 = vmax.f32 %v3276, 0.0
    %vm3282 = vcmask 261120
    %3283 = vst.msk [vmem:[#allocation3] sm:$0xff] %vm3282, %v3277
    %3284 = vst.msk [vmem:[#allocation3 + $0x68] sm:$0xff] %vm3282, %v3278
    %3285 = vst.msk [vmem:[#allocation3 + $0xd0] sm:$0xff] %vm3282, %v3279
    %3286 = vst.msk [vmem:[#allocation3 + $0x138] sm:$0xff] %vm3282, %v3280
    %3287 = vst.msk [vmem:[#allocation3 + $0x1a0] sm:$0xff] %vm3282, %v3281
    %v3288 = vld [vmem:[#allocation2 + $0x28] sm:$0xff]
    %v3289 = vld [vmem:[#allocation2 + $0x30] sm:$0xff]
    %v3290 = vld [vmem:[#allocation2 + $0x38] sm:$0xff]
    %v3291 = vld [vmem:[#allocation2 + $0x40] sm:$0xff]
    %v3292 = vld [vmem:[#allocation2 + $0x48] sm:$0xff]
    %v3293 = vld [vmem:[#allocation2 + $0x50] sm:$0xff]
    %v3294 = vld [vmem:[#allocation2 + $0x58] sm:$0xff]
    %v3295 = vld [vmem:[#allocation2 + $0x60] sm:$0xff]
    %v3296 = vld [vmem:[#allocation2 + $0x68] sm:$0xff]
    %v3297 = vld [vmem:[#allocation2 + $0x70] sm:$0xff]
    %3303 = vrot.lane.b32.xlu0 %v3293, 96
    %v3304 = vpop.permute.xlu0 %3303
    %3305 = vrot.lane.b32.xlu0 %v3294, 96
    %v3306 = vpop.permute.xlu0 %3305
    %3307 = vrot.lane.b32.xlu0 %v3295, 96
    %v3308 = vpop.permute.xlu0 %3307
    %3309 = vrot.lane.b32.xlu0 %v3296, 96
    %v3310 = vpop.permute.xlu0 %3309
    %3311 = vrot.lane.b32.xlu0 %v3297, 96
    %v3312 = vpop.permute.xlu0 %3311
    %v3318 = vadd.f32 %v3288, %v3304
    %v3319 = vadd.f32 %v3289, %v3306
    %v3320 = vadd.f32 %v3290, %v3308
    %v3321 = vadd.f32 %v3291, %v3310
    %v3322 = vadd.f32 %v3292, %v3312
    %v3323 = vld [vmem:[#allocation2 + $0x78] sm:$0xff]
    %v3324 = vld [vmem:[#allocation2 + $0x80] sm:$0xff]
    %v3325 = vld [vmem:[#allocation2 + $0x88] sm:$0xff]
    %v3326 = vld [vmem:[#allocation2 + $0x90] sm:$0xff]
    %v3327 = vld [vmem:[#allocation2 + $0x98] sm:$0xff]
    %3333 = vrot.lane.b32.xlu0 %v3323, 64
    %v3334 = vpop.permute.xlu0 %3333
    %3335 = vrot.lane.b32.xlu0 %v3324, 64
    %v3336 = vpop.permute.xlu0 %3335
    %3337 = vrot.lane.b32.xlu0 %v3325, 64
    %v3338 = vpop.permute.xlu0 %3337
    %3339 = vrot.lane.b32.xlu0 %v3326, 64
    %v3340 = vpop.permute.xlu0 %3339
    %3341 = vrot.lane.b32.xlu0 %v3327, 64
    %v3342 = vpop.permute.xlu0 %3341
    %v3348 = vadd.f32 %v3318, %v3334
    %v3349 = vadd.f32 %v3319, %v3336
    %v3350 = vadd.f32 %v3320, %v3338
    %v3351 = vadd.f32 %v3321, %v3340
    %v3352 = vadd.f32 %v3322, %v3342
    %v3353 = vadd.f32 %v3348, %v3271
    %v3354 = vadd.f32 %v3349, %v3271
    %v3355 = vadd.f32 %v3350, %v3271
    %v3356 = vadd.f32 %v3351, %v3271
    %v3357 = vadd.f32 %v3352, %v3271
    %v3358 = vmax.f32 %v3353, 0.0
    %v3359 = vmax.f32 %v3354, 0.0
    %v3360 = vmax.f32 %v3355, 0.0
    %v3361 = vmax.f32 %v3356, 0.0
    %v3362 = vmax.f32 %v3357, 0.0
    %3368 = vrot.lane.b32.xlu0 %v3358, 32
    %v3369 = vpop.permute.xlu0 %3368
    %3370 = vrot.lane.b32.xlu0 %v3359, 32
    %v3371 = vpop.permute.xlu0 %3370
    %3372 = vrot.lane.b32.xlu0 %v3360, 32
    %v3373 = vpop.permute.xlu0 %3372
    %3374 = vrot.lane.b32.xlu0 %v3361, 32
    %v3375 = vpop.permute.xlu0 %3374
    %3376 = vrot.lane.b32.xlu0 %v3362, 32
    %v3377 = vpop.permute.xlu0 %3376
    %vm3383 = vcmask 523520
    %3384 = vst.msk [vmem:[#allocation3] sm:$0xff] %vm3383, %v3369
    %3385 = vst.msk [vmem:[#allocation3 + $0x68] sm:$0xff] %vm3383, %v3371
    %3386 = vst.msk [vmem:[#allocation3 + $0xd0] sm:$0xff] %vm3383, %v3373
    %3387 = vst.msk [vmem:[#allocation3 + $0x138] sm:$0xff] %vm3383, %v3375
    %3388 = vst.msk [vmem:[#allocation3 + $0x1a0] sm:$0xff] %vm3383, %v3377
    %v3389 = vld [vmem:[#allocation2 + $0x50] sm:$0xff]
    %v3390 = vld [vmem:[#allocation2 + $0x58] sm:$0xff]
    %v3391 = vld [vmem:[#allocation2 + $0x60] sm:$0xff]
    %v3392 = vld [vmem:[#allocation2 + $0x68] sm:$0xff]
    %v3393 = vld [vmem:[#allocation2 + $0x70] sm:$0xff]
    %v3394 = vld [vmem:[#allocation2 + $0x78] sm:$0xff]
    %v3395 = vld [vmem:[#allocation2 + $0x80] sm:$0xff]
    %v3396 = vld [vmem:[#allocation2 + $0x88] sm:$0xff]
    %v3397 = vld [vmem:[#allocation2 + $0x90] sm:$0xff]
    %v3398 = vld [vmem:[#allocation2 + $0x98] sm:$0xff]
    %3404 = vrot.lane.b32.xlu0 %v3394, 96
    %v3405 = vpop.permute.xlu0 %3404
    %3406 = vrot.lane.b32.xlu0 %v3395, 96
    %v3407 = vpop.permute.xlu0 %3406
    %3408 = vrot.lane.b32.xlu0 %v3396, 96
    %v3409 = vpop.permute.xlu0 %3408
    %3410 = vrot.lane.b32.xlu0 %v3397, 96
    %v3411 = vpop.permute.xlu0 %3410
    %3412 = vrot.lane.b32.xlu0 %v3398, 96
    %v3413 = vpop.permute.xlu0 %3412
    %v3419 = vadd.f32 %v3389, %v3405
    %v3420 = vadd.f32 %v3390, %v3407
    %v3421 = vadd.f32 %v3391, %v3409
    %v3422 = vadd.f32 %v3392, %v3411
    %v3423 = vadd.f32 %v3393, %v3413
    %v3424 = vld [vmem:[#allocation2 + $0xa0] sm:$0xff]
    %v3425 = vld [vmem:[#allocation2 + $0xa8] sm:$0xff]
    %v3426 = vld [vmem:[#allocation2 + $0xb0] sm:$0xff]
    %v3427 = vld [vmem:[#allocation2 + $0xb8] sm:$0xff]
    %v3428 = vld [vmem:[#allocation2 + $0xc0] sm:$0xff]
    %3434 = vrot.lane.b32.xlu0 %v3424, 64
    %v3435 = vpop.permute.xlu0 %3434
    %3436 = vrot.lane.b32.xlu0 %v3425, 64
    %v3437 = vpop.permute.xlu0 %3436
    %3438 = vrot.lane.b32.xlu0 %v3426, 64
    %v3439 = vpop.permute.xlu0 %3438
    %3440 = vrot.lane.b32.xlu0 %v3427, 64
    %v3441 = vpop.permute.xlu0 %3440
    %3442 = vrot.lane.b32.xlu0 %v3428, 64
    %v3443 = vpop.permute.xlu0 %3442
    %v3449 = vadd.f32 %v3419, %v3435
    %v3450 = vadd.f32 %v3420, %v3437
    %v3451 = vadd.f32 %v3421, %v3439
    %v3452 = vadd.f32 %v3422, %v3441
    %v3453 = vadd.f32 %v3423, %v3443
    %v3454 = vadd.f32 %v3449, %v3271
    %v3455 = vadd.f32 %v3450, %v3271
    %v3456 = vadd.f32 %v3451, %v3271
    %v3457 = vadd.f32 %v3452, %v3271
    %v3458 = vadd.f32 %v3453, %v3271
    %v3459 = vmax.f32 %v3454, 0.0
    %v3460 = vmax.f32 %v3455, 0.0
    %v3461 = vmax.f32 %v3456, 0.0
    %v3462 = vmax.f32 %v3457, 0.0
    %v3463 = vmax.f32 %v3458, 0.0
    %3469 = vrot.lane.b32.xlu0 %v3459, 64
    %v3470 = vpop.permute.xlu0 %3469
    %3471 = vrot.lane.b32.xlu0 %v3460, 64
    %v3472 = vpop.permute.xlu0 %3471
    %3473 = vrot.lane.b32.xlu0 %v3461, 64
    %v3474 = vpop.permute.xlu0 %3473
    %3475 = vrot.lane.b32.xlu0 %v3462, 64
    %v3476 = vpop.permute.xlu0 %3475
    %3477 = vrot.lane.b32.xlu0 %v3463, 64
    %v3478 = vpop.permute.xlu0 %3477
    %vm3484 = vcmask 785920
    %3485 = vst.msk [vmem:[#allocation3] sm:$0xff] %vm3484, %v3470
    %3486 = vst.msk [vmem:[#allocation3 + $0x68] sm:$0xff] %vm3484, %v3472
    %3487 = vst.msk [vmem:[#allocation3 + $0xd0] sm:$0xff] %vm3484, %v3474
    %3488 = vst.msk [vmem:[#allocation3 + $0x138] sm:$0xff] %vm3484, %v3476
    %3489 = vst.msk [vmem:[#allocation3 + $0x1a0] sm:$0xff] %vm3484, %v3478
    %v3490 = vld [vmem:[#allocation2 + $0x78] sm:$0xff]
    %v3491 = vld [vmem:[#allocation2 + $0x80] sm:$0xff]
    %v3492 = vld [vmem:[#allocation2 + $0x88] sm:$0xff]
    %v3493 = vld [vmem:[#allocation2 + $0x90] sm:$0xff]
    %v3494 = vld [vmem:[#allocation2 + $0x98] sm:$0xff]
    %v3495 = vld [vmem:[#allocation2 + $0xa0] sm:$0xff]
    %v3496 = vld [vmem:[#allocation2 + $0xa8] sm:$0xff]
    %v3497 = vld [vmem:[#allocation2 + $0xb0] sm:$0xff]
    %v3498 = vld [vmem:[#allocation2 + $0xb8] sm:$0xff]
    %v3499 = vld [vmem:[#allocation2 + $0xc0] sm:$0xff]
    %3505 = vrot.lane.b32.xlu0 %v3495, 96
    %v3506 = vpop.permute.xlu0 %3505
    %3507 = vrot.lane.b32.xlu0 %v3496, 96
    %v3508 = vpop.permute.xlu0 %3507
    %3509 = vrot.lane.b32.xlu0 %v3497, 96
    %v3510 = vpop.permute.xlu0 %3509
    %3511 = vrot.lane.b32.xlu0 %v3498, 96
    %v3512 = vpop.permute.xlu0 %3511
    %3513 = vrot.lane.b32.xlu0 %v3499, 96
    %v3514 = vpop.permute.xlu0 %3513
    %v3520 = vadd.f32 %v3490, %v3506
    %v3521 = vadd.f32 %v3491, %v3508
    %v3522 = vadd.f32 %v3492, %v3510
    %v3523 = vadd.f32 %v3493, %v3512
    %v3524 = vadd.f32 %v3494, %v3514
    %v3525 = vld [vmem:[#allocation2 + $0xc8] sm:$0xff]
    %v3526 = vld [vmem:[#allocation2 + $0xd0] sm:$0xff]
    %v3527 = vld [vmem:[#allocation2 + $0xd8] sm:$0xff]
    %v3528 = vld [vmem:[#allocation2 + $0xe0] sm:$0xff]
    %v3529 = vld [vmem:[#allocation2 + $0xe8] sm:$0xff]
    %3535 = vrot.lane.b32.xlu0 %v3525, 64
    %v3536 = vpop.permute.xlu0 %3535
    %3537 = vrot.lane.b32.xlu0 %v3526, 64
    %v3538 = vpop.permute.xlu0 %3537
    %3539 = vrot.lane.b32.xlu0 %v3527, 64
    %v3540 = vpop.permute.xlu0 %3539
    %3541 = vrot.lane.b32.xlu0 %v3528, 64
    %v3542 = vpop.permute.xlu0 %3541
    %3543 = vrot.lane.b32.xlu0 %v3529, 64
    %v3544 = vpop.permute.xlu0 %3543
    %v3550 = vadd.f32 %v3520, %v3536
    %v3551 = vadd.f32 %v3521, %v3538
    %v3552 = vadd.f32 %v3522, %v3540
    %v3553 = vadd.f32 %v3523, %v3542
    %v3554 = vadd.f32 %v3524, %v3544
    %v3555 = vadd.f32 %v3550, %v3271
    %v3556 = vadd.f32 %v3551, %v3271
    %v3557 = vadd.f32 %v3552, %v3271
    %v3558 = vadd.f32 %v3553, %v3271
    %v3559 = vadd.f32 %v3554, %v3271
    %v3560 = vmax.f32 %v3555, 0.0
    %v3561 = vmax.f32 %v3556, 0.0
    %v3562 = vmax.f32 %v3557, 0.0
    %v3563 = vmax.f32 %v3558, 0.0
    %v3564 = vmax.f32 %v3559, 0.0
    %3570 = vrot.lane.b32.xlu0 %v3560, 96
    %v3571 = vpop.permute.xlu0 %3570
    %3572 = vrot.lane.b32.xlu0 %v3561, 96
    %v3573 = vpop.permute.xlu0 %3572
    %3574 = vrot.lane.b32.xlu0 %v3562, 96
    %v3575 = vpop.permute.xlu0 %3574
    %3576 = vrot.lane.b32.xlu0 %v3563, 96
    %v3577 = vpop.permute.xlu0 %3576
    %3578 = vrot.lane.b32.xlu0 %v3564, 96
    %v3579 = vpop.permute.xlu0 %3578
    %vm3585 = vcmask 1048320
    %3586 = vst.msk [vmem:[#allocation3] sm:$0xff] %vm3585, %v3571
    %3587 = vst.msk [vmem:[#allocation3 + $0x68] sm:$0xff] %vm3585, %v3573
    %3588 = vst.msk [vmem:[#allocation3 + $0xd0] sm:$0xff] %vm3585, %v3575
    %3589 = vst.msk [vmem:[#allocation3 + $0x138] sm:$0xff] %vm3585, %v3577
    %3590 = vst.msk [vmem:[#allocation3 + $0x1a0] sm:$0xff] %vm3585, %v3579
    %v3591 = vld [vmem:[#allocation2 + $0xa0] sm:$0xff]
    %v3592 = vld [vmem:[#allocation2 + $0xa8] sm:$0xff]
    %v3593 = vld [vmem:[#allocation2 + $0xb0] sm:$0xff]
    %v3594 = vld [vmem:[#allocation2 + $0xb8] sm:$0xff]
    %v3595 = vld [vmem:[#allocation2 + $0xc0] sm:$0xff]
    %v3596 = vld [vmem:[#allocation2 + $0xc8] sm:$0xff]
    %v3597 = vld [vmem:[#allocation2 + $0xd0] sm:$0xff]
    %v3598 = vld [vmem:[#allocation2 + $0xd8] sm:$0xff]
    %v3599 = vld [vmem:[#allocation2 + $0xe0] sm:$0xff]
    %v3600 = vld [vmem:[#allocation2 + $0xe8] sm:$0xff]
    %3606 = vrot.lane.b32.xlu0 %v3596, 96
    %v3607 = vpop.permute.xlu0 %3606
    %3608 = vrot.lane.b32.xlu0 %v3597, 96
    %v3609 = vpop.permute.xlu0 %3608
    %3610 = vrot.lane.b32.xlu0 %v3598, 96
    %v3611 = vpop.permute.xlu0 %3610
    %3612 = vrot.lane.b32.xlu0 %v3599, 96
    %v3613 = vpop.permute.xlu0 %3612
    %3614 = vrot.lane.b32.xlu0 %v3600, 96
    %v3615 = vpop.permute.xlu0 %3614
    %v3621 = vadd.f32 %v3591, %v3607
    %v3622 = vadd.f32 %v3592, %v3609
    %v3623 = vadd.f32 %v3593, %v3611
    %v3624 = vadd.f32 %v3594, %v3613
    %v3625 = vadd.f32 %v3595, %v3615
    %v3626 = vld [vmem:[#allocation2 + $0xf0] sm:$0xff]
    %v3627 = vld [vmem:[#allocation2 + $0xf8] sm:$0xff]
    %v3628 = vld [vmem:[#allocation2 + $0x100] sm:$0xff]
    %v3629 = vld [vmem:[#allocation2 + $0x108] sm:$0xff]
    %v3630 = vld [vmem:[#allocation2 + $0x110] sm:$0xff]
    %3636 = vrot.lane.b32.xlu0 %v3626, 64
    %v3637 = vpop.permute.xlu0 %3636
    %3638 = vrot.lane.b32.xlu0 %v3627, 64
    %v3639 = vpop.permute.xlu0 %3638
    %3640 = vrot.lane.b32.xlu0 %v3628, 64
    %v3641 = vpop.permute.xlu0 %3640
    %3642 = vrot.lane.b32.xlu0 %v3629, 64
    %v3643 = vpop.permute.xlu0 %3642
    %3644 = vrot.lane.b32.xlu0 %v3630, 64
    %v3645 = vpop.permute.xlu0 %3644
    %v3651 = vadd.f32 %v3621, %v3637
    %v3652 = vadd.f32 %v3622, %v3639
    %v3653 = vadd.f32 %v3623, %v3641
    %v3654 = vadd.f32 %v3624, %v3643
    %v3655 = vadd.f32 %v3625, %v3645
    %v3656 = vadd.f32 %v3651, %v3271
    %v3657 = vadd.f32 %v3652, %v3271
    %v3658 = vadd.f32 %v3653, %v3271
    %v3659 = vadd.f32 %v3654, %v3271
    %v3660 = vadd.f32 %v3655, %v3271
    %v3661 = vmax.f32 %v3656, 0.0
    %v3662 = vmax.f32 %v3657, 0.0
    %v3663 = vmax.f32 %v3658, 0.0
    %v3664 = vmax.f32 %v3659, 0.0
    %v3665 = vmax.f32 %v3660, 0.0
    %3666 = vst.msk [vmem:[#allocation3 + $0x8] sm:$0xff] %vm3282, %v3661
    %3667 = vst.msk [vmem:[#allocation3 + $0x70] sm:$0xff] %vm3282, %v3662
    %3668 = vst.msk [vmem:[#allocation3 + $0xd8] sm:$0xff] %vm3282, %v3663
    %3669 = vst.msk [vmem:[#allocation3 + $0x140] sm:$0xff] %vm3282, %v3664
    %3670 = vst.msk [vmem:[#allocation3 + $0x1a8] sm:$0xff] %vm3282, %v3665
    %v3671 = vld [vmem:[#allocation2 + $0xc8] sm:$0xff]
    %v3672 = vld [vmem:[#allocation2 + $0xd0] sm:$0xff]
    %v3673 = vld [vmem:[#allocation2 + $0xd8] sm:$0xff]
    %v3674 = vld [vmem:[#allocation2 + $0xe0] sm:$0xff]
    %v3675 = vld [vmem:[#allocation2 + $0xe8] sm:$0xff]
    %v3676 = vld [vmem:[#allocation2 + $0xf0] sm:$0xff]
    %v3677 = vld [vmem:[#allocation2 + $0xf8] sm:$0xff]
    %v3678 = vld [vmem:[#allocation2 + $0x100] sm:$0xff]
    %v3679 = vld [vmem:[#allocation2 + $0x108] sm:$0xff]
    %v3680 = vld [vmem:[#allocation2 + $0x110] sm:$0xff]
    %3686 = vrot.lane.b32.xlu0 %v3676, 96
    %v3687 = vpop.permute.xlu0 %3686
    %3688 = vrot.lane.b32.xlu0 %v3677, 96
    %v3689 = vpop.permute.xlu0 %3688
    %3690 = vrot.lane.b32.xlu0 %v3678, 96
    %v3691 = vpop.permute.xlu0 %3690
    %3692 = vrot.lane.b32.xlu0 %v3679, 96
    %v3693 = vpop.permute.xlu0 %3692
    %3694 = vrot.lane.b32.xlu0 %v3680, 96
    %v3695 = vpop.permute.xlu0 %3694
    %v3701 = vadd.f32 %v3671, %v3687
    %v3702 = vadd.f32 %v3672, %v3689
    %v3703 = vadd.f32 %v3673, %v3691
    %v3704 = vadd.f32 %v3674, %v3693
    %v3705 = vadd.f32 %v3675, %v3695
    %v3706 = vld [vmem:[#allocation2 + $0x118] sm:$0xff]
    %v3707 = vld [vmem:[#allocation2 + $0x120] sm:$0xff]
    %v3708 = vld [vmem:[#allocation2 + $0x128] sm:$0xff]
    %v3709 = vld [vmem:[#allocation2 + $0x130] sm:$0xff]
    %v3710 = vld [vmem:[#allocation2 + $0x138] sm:$0xff]
    %3716 = vrot.lane.b32.xlu0 %v3706, 64
    %v3717 = vpop.permute.xlu0 %3716
    %3718 = vrot.lane.b32.xlu0 %v3707, 64
    %v3719 = vpop.permute.xlu0 %3718
    %3720 = vrot.lane.b32.xlu0 %v3708, 64
    %v3721 = vpop.permute.xlu0 %3720
    %3722 = vrot.lane.b32.xlu0 %v3709, 64
    %v3723 = vpop.permute.xlu0 %3722
    %3724 = vrot.lane.b32.xlu0 %v3710, 64
    %v3725 = vpop.permute.xlu0 %3724
    %v3731 = vadd.f32 %v3701, %v3717
    %v3732 = vadd.f32 %v3702, %v3719
    %v3733 = vadd.f32 %v3703, %v3721
    %v3734 = vadd.f32 %v3704, %v3723
    %v3735 = vadd.f32 %v3705, %v3725
    %v3736 = vadd.f32 %v3731, %v3271
    %v3737 = vadd.f32 %v3732, %v3271
    %v3738 = vadd.f32 %v3733, %v3271
    %v3739 = vadd.f32 %v3734, %v3271
    %v3740 = vadd.f32 %v3735, %v3271
    %v3741 = vmax.f32 %v3736, 0.0
    %v3742 = vmax.f32 %v3737, 0.0
    %v3743 = vmax.f32 %v3738, 0.0
    %v3744 = vmax.f32 %v3739, 0.0
    %v3745 = vmax.f32 %v3740, 0.0
    %3751 = vrot.lane.b32.xlu0 %v3741, 32
    %v3752 = vpop.permute.xlu0 %3751
    %3753 = vrot.lane.b32.xlu0 %v3742, 32
    %v3754 = vpop.permute.xlu0 %3753
    %3755 = vrot.lane.b32.xlu0 %v3743, 32
    %v3756 = vpop.permute.xlu0 %3755
    %3757 = vrot.lane.b32.xlu0 %v3744, 32
    %v3758 = vpop.permute.xlu0 %3757
    %3759 = vrot.lane.b32.xlu0 %v3745, 32
    %v3760 = vpop.permute.xlu0 %3759
    %3766 = vst.msk [vmem:[#allocation3 + $0x8] sm:$0xff] %vm3383, %v3752
    %3767 = vst.msk [vmem:[#allocation3 + $0x70] sm:$0xff] %vm3383, %v3754
    %3768 = vst.msk [vmem:[#allocation3 + $0xd8] sm:$0xff] %vm3383, %v3756
    %3769 = vst.msk [vmem:[#allocation3 + $0x140] sm:$0xff] %vm3383, %v3758
    %3770 = vst.msk [vmem:[#allocation3 + $0x1a8] sm:$0xff] %vm3383, %v3760
    %v3771 = vld [vmem:[#allocation2 + $0xf0] sm:$0xff]
    %v3772 = vld [vmem:[#allocation2 + $0xf8] sm:$0xff]
    %v3773 = vld [vmem:[#allocation2 + $0x100] sm:$0xff]
    %v3774 = vld [vmem:[#allocation2 + $0x108] sm:$0xff]
    %v3775 = vld [vmem:[#allocation2 + $0x110] sm:$0xff]
    %v3776 = vld [vmem:[#allocation2 + $0x118] sm:$0xff]
    %v3777 = vld [vmem:[#allocation2 + $0x120] sm:$0xff]
    %v3778 = vld [vmem:[#allocation2 + $0x128] sm:$0xff]
    %v3779 = vld [vmem:[#allocation2 + $0x130] sm:$0xff]
    %v3780 = vld [vmem:[#allocation2 + $0x138] sm:$0xff]
    %3786 = vrot.lane.b32.xlu0 %v3776, 96
    %v3787 = vpop.permute.xlu0 %3786
    %3788 = vrot.lane.b32.xlu0 %v3777, 96
    %v3789 = vpop.permute.xlu0 %3788
    %3790 = vrot.lane.b32.xlu0 %v3778, 96
    %v3791 = vpop.permute.xlu0 %3790
    %3792 = vrot.lane.b32.xlu0 %v3779, 96
    %v3793 = vpop.permute.xlu0 %3792
    %3794 = vrot.lane.b32.xlu0 %v3780, 96
    %v3795 = vpop.permute.xlu0 %3794
    %v3801 = vadd.f32 %v3771, %v3787
    %v3802 = vadd.f32 %v3772, %v3789
    %v3803 = vadd.f32 %v3773, %v3791
    %v3804 = vadd.f32 %v3774, %v3793
    %v3805 = vadd.f32 %v3775, %v3795
    %v3806 = vld [vmem:[#allocation2 + $0x140] sm:$0xff]
    %v3807 = vld [vmem:[#allocation2 + $0x148] sm:$0xff]
    %v3808 = vld [vmem:[#allocation2 + $0x150] sm:$0xff]
    %v3809 = vld [vmem:[#allocation2 + $0x158] sm:$0xff]
    %v3810 = vld [vmem:[#allocation2 + $0x160] sm:$0xff]
    %3816 = vrot.lane.b32.xlu0 %v3806, 64
    %v3817 = vpop.permute.xlu0 %3816
    %3818 = vrot.lane.b32.xlu0 %v3807, 64
    %v3819 = vpop.permute.xlu0 %3818
    %3820 = vrot.lane.b32.xlu0 %v3808, 64
    %v3821 = vpop.permute.xlu0 %3820
    %3822 = vrot.lane.b32.xlu0 %v3809, 64
    %v3823 = vpop.permute.xlu0 %3822
    %3824 = vrot.lane.b32.xlu0 %v3810, 64
    %v3825 = vpop.permute.xlu0 %3824
    %v3831 = vadd.f32 %v3801, %v3817
    %v3832 = vadd.f32 %v3802, %v3819
    %v3833 = vadd.f32 %v3803, %v3821
    %v3834 = vadd.f32 %v3804, %v3823
    %v3835 = vadd.f32 %v3805, %v3825
    %v3836 = vadd.f32 %v3831, %v3271
    %v3837 = vadd.f32 %v3832, %v3271
    %v3838 = vadd.f32 %v3833, %v3271
    %v3839 = vadd.f32 %v3834, %v3271
    %v3840 = vadd.f32 %v3835, %v3271
    %v3841 = vmax.f32 %v3836, 0.0
    %v3842 = vmax.f32 %v3837, 0.0
    %v3843 = vmax.f32 %v3838, 0.0
    %v3844 = vmax.f32 %v3839, 0.0
    %v3845 = vmax.f32 %v3840, 0.0
    %3851 = vrot.lane.b32.xlu0 %v3841, 64
    %v3852 = vpop.permute.xlu0 %3851
    %3853 = vrot.lane.b32.xlu0 %v3842, 64
    %v3854 = vpop.permute.xlu0 %3853
    %3855 = vrot.lane.b32.xlu0 %v3843, 64
    %v3856 = vpop.permute.xlu0 %3855
    %3857 = vrot.lane.b32.xlu0 %v3844, 64
    %v3858 = vpop.permute.xlu0 %3857
    %3859 = vrot.lane.b32.xlu0 %v3845, 64
    %v3860 = vpop.permute.xlu0 %3859
    %3866 = vst.msk [vmem:[#allocation3 + $0x8] sm:$0xff] %vm3484, %v3852
    %3867 = vst.msk [vmem:[#allocation3 + $0x70] sm:$0xff] %vm3484, %v3854
    %3868 = vst.msk [vmem:[#allocation3 + $0xd8] sm:$0xff] %vm3484, %v3856
    %3869 = vst.msk [vmem:[#allocation3 + $0x140] sm:$0xff] %vm3484, %v3858
    %3870 = vst.msk [vmem:[#allocation3 + $0x1a8] sm:$0xff] %vm3484, %v3860
    %v3871 = vld [vmem:[#allocation2 + $0x118] sm:$0xff]
    %v3872 = vld [vmem:[#allocation2 + $0x120] sm:$0xff]
    %v3873 = vld [vmem:[#allocation2 + $0x128] sm:$0xff]
    %v3874 = vld [vmem:[#allocation2 + $0x130] sm:$0xff]
    %v3875 = vld [vmem:[#allocation2 + $0x138] sm:$0xff]
    %v3876 = vld [vmem:[#allocation2 + $0x140] sm:$0xff]
    %v3877 = vld [vmem:[#allocation2 + $0x148] sm:$0xff]
    %v3878 = vld [vmem:[#allocation2 + $0x150] sm:$0xff]
    %v3879 = vld [vmem:[#allocation2 + $0x158] sm:$0xff]
    %v3880 = vld [vmem:[#allocation2 + $0x160] sm:$0xff]
    %3886 = vrot.lane.b32.xlu0 %v3876, 96
    %v3887 = vpop.permute.xlu0 %3886
    %3888 = vrot.lane.b32.xlu0 %v3877, 96
    %v3889 = vpop.permute.xlu0 %3888
    %3890 = vrot.lane.b32.xlu0 %v3878, 96
    %v3891 = vpop.permute.xlu0 %3890
    %3892 = vrot.lane.b32.xlu0 %v3879, 96
    %v3893 = vpop.permute.xlu0 %3892
    %3894 = vrot.lane.b32.xlu0 %v3880, 96
    %v3895 = vpop.permute.xlu0 %3894
    %v3901 = vadd.f32 %v3871, %v3887
    %v3902 = vadd.f32 %v3872, %v3889
    %v3903 = vadd.f32 %v3873, %v3891
    %v3904 = vadd.f32 %v3874, %v3893
    %v3905 = vadd.f32 %v3875, %v3895
    %v3906 = vld [vmem:[#allocation2 + $0x168] sm:$0xff]
    %v3907 = vld [vmem:[#allocation2 + $0x170] sm:$0xff]
    %v3908 = vld [vmem:[#allocation2 + $0x178] sm:$0xff]
    %v3909 = vld [vmem:[#allocation2 + $0x180] sm:$0xff]
    %v3910 = vld [vmem:[#allocation2 + $0x188] sm:$0xff]
    %3916 = vrot.lane.b32.xlu0 %v3906, 64
    %v3917 = vpop.permute.xlu0 %3916
    %3918 = vrot.lane.b32.xlu0 %v3907, 64
    %v3919 = vpop.permute.xlu0 %3918
    %3920 = vrot.lane.b32.xlu0 %v3908, 64
    %v3921 = vpop.permute.xlu0 %3920
    %3922 = vrot.lane.b32.xlu0 %v3909, 64
    %v3923 = vpop.permute.xlu0 %3922
    %3924 = vrot.lane.b32.xlu0 %v3910, 64
    %v3925 = vpop.permute.xlu0 %3924
    %v3931 = vadd.f32 %v3901, %v3917
    %v3932 = vadd.f32 %v3902, %v3919
    %v3933 = vadd.f32 %v3903, %v3921
    %v3934 = vadd.f32 %v3904, %v3923
    %v3935 = vadd.f32 %v3905, %v3925
    %v3936 = vadd.f32 %v3931, %v3271
    %v3937 = vadd.f32 %v3932, %v3271
    %v3938 = vadd.f32 %v3933, %v3271
    %v3939 = vadd.f32 %v3934, %v3271
    %v3940 = vadd.f32 %v3935, %v3271
    %v3941 = vmax.f32 %v3936, 0.0
    %v3942 = vmax.f32 %v3937, 0.0
    %v3943 = vmax.f32 %v3938, 0.0
    %v3944 = vmax.f32 %v3939, 0.0
    %v3945 = vmax.f32 %v3940, 0.0
    %3951 = vrot.lane.b32.xlu0 %v3941, 96
    %v3952 = vpop.permute.xlu0 %3951
    %3953 = vrot.lane.b32.xlu0 %v3942, 96
    %v3954 = vpop.permute.xlu0 %3953
    %3955 = vrot.lane.b32.xlu0 %v3943, 96
    %v3956 = vpop.permute.xlu0 %3955
    %3957 = vrot.lane.b32.xlu0 %v3944, 96
    %v3958 = vpop.permute.xlu0 %3957
    %3959 = vrot.lane.b32.xlu0 %v3945, 96
    %v3960 = vpop.permute.xlu0 %3959
    %3966 = vst.msk [vmem:[#allocation3 + $0x8] sm:$0xff] %vm3585, %v3952
    %3967 = vst.msk [vmem:[#allocation3 + $0x70] sm:$0xff] %vm3585, %v3954
    %3968 = vst.msk [vmem:[#allocation3 + $0xd8] sm:$0xff] %vm3585, %v3956
    %3969 = vst.msk [vmem:[#allocation3 + $0x140] sm:$0xff] %vm3585, %v3958
    %3970 = vst.msk [vmem:[#allocation3 + $0x1a8] sm:$0xff] %vm3585, %v3960
    %v3971 = vld [vmem:[#allocation2 + $0x140] sm:$0xff]
    %v3972 = vld [vmem:[#allocation2 + $0x148] sm:$0xff]
    %v3973 = vld [vmem:[#allocation2 + $0x150] sm:$0xff]
    %v3974 = vld [vmem:[#allocation2 + $0x158] sm:$0xff]
    %v3975 = vld [vmem:[#allocation2 + $0x160] sm:$0xff]
    %v3976 = vld [vmem:[#allocation2 + $0x168] sm:$0xff]
    %v3977 = vld [vmem:[#allocation2 + $0x170] sm:$0xff]
    %v3978 = vld [vmem:[#allocation2 + $0x178] sm:$0xff]
    %v3979 = vld [vmem:[#allocation2 + $0x180] sm:$0xff]
    %v3980 = vld [vmem:[#allocation2 + $0x188] sm:$0xff]
    %3986 = vrot.lane.b32.xlu0 %v3976, 96
    %v3987 = vpop.permute.xlu0 %3986
    %3988 = vrot.lane.b32.xlu0 %v3977, 96
    %v3989 = vpop.permute.xlu0 %3988
    %3990 = vrot.lane.b32.xlu0 %v3978, 96
    %v3991 = vpop.permute.xlu0 %3990
    %3992 = vrot.lane.b32.xlu0 %v3979, 96
    %v3993 = vpop.permute.xlu0 %3992
    %3994 = vrot.lane.b32.xlu0 %v3980, 96
    %v3995 = vpop.permute.xlu0 %3994
    %v4001 = vadd.f32 %v3971, %v3987
    %v4002 = vadd.f32 %v3972, %v3989
    %v4003 = vadd.f32 %v3973, %v3991
    %v4004 = vadd.f32 %v3974, %v3993
    %v4005 = vadd.f32 %v3975, %v3995
    %v4006 = vld [vmem:[#allocation2 + $0x190] sm:$0xff]
    %v4007 = vld [vmem:[#allocation2 + $0x198] sm:$0xff]
    %v4008 = vld [vmem:[#allocation2 + $0x1a0] sm:$0xff]
    %v4009 = vld [vmem:[#allocation2 + $0x1a8] sm:$0xff]
    %v4010 = vld [vmem:[#allocation2 + $0x1b0] sm:$0xff]
    %4016 = vrot.lane.b32.xlu0 %v4006, 64
    %v4017 = vpop.permute.xlu0 %4016
    %4018 = vrot.lane.b32.xlu0 %v4007, 64
    %v4019 = vpop.permute.xlu0 %4018
    %4020 = vrot.lane.b32.xlu0 %v4008, 64
    %v4021 = vpop.permute.xlu0 %4020
    %4022 = vrot.lane.b32.xlu0 %v4009, 64
    %v4023 = vpop.permute.xlu0 %4022
    %4024 = vrot.lane.b32.xlu0 %v4010, 64
    %v4025 = vpop.permute.xlu0 %4024
    %v4031 = vadd.f32 %v4001, %v4017
    %v4032 = vadd.f32 %v4002, %v4019
    %v4033 = vadd.f32 %v4003, %v4021
    %v4034 = vadd.f32 %v4004, %v4023
    %v4035 = vadd.f32 %v4005, %v4025
    %v4036 = vadd.f32 %v4031, %v3271
    %v4037 = vadd.f32 %v4032, %v3271
    %v4038 = vadd.f32 %v4033, %v3271
    %v4039 = vadd.f32 %v4034, %v3271
    %v4040 = vadd.f32 %v4035, %v3271
    %v4041 = vmax.f32 %v4036, 0.0
    %v4042 = vmax.f32 %v4037, 0.0
    %v4043 = vmax.f32 %v4038, 0.0
    %v4044 = vmax.f32 %v4039, 0.0
    %v4045 = vmax.f32 %v4040, 0.0
    %4046 = vst.msk [vmem:[#allocation3 + $0x10] sm:$0xff] %vm3282, %v4041
    %4047 = vst.msk [vmem:[#allocation3 + $0x78] sm:$0xff] %vm3282, %v4042
    %4048 = vst.msk [vmem:[#allocation3 + $0xe0] sm:$0xff] %vm3282, %v4043
    %4049 = vst.msk [vmem:[#allocation3 + $0x148] sm:$0xff] %vm3282, %v4044
    %4050 = vst.msk [vmem:[#allocation3 + $0x1b0] sm:$0xff] %vm3282, %v4045
    %v4051 = vld [vmem:[#allocation2 + $0x168] sm:$0xff]
    %v4052 = vld [vmem:[#allocation2 + $0x170] sm:$0xff]
    %v4053 = vld [vmem:[#allocation2 + $0x178] sm:$0xff]
    %v4054 = vld [vmem:[#allocation2 + $0x180] sm:$0xff]
    %v4055 = vld [vmem:[#allocation2 + $0x188] sm:$0xff]
    %v4056 = vld [vmem:[#allocation2 + $0x190] sm:$0xff]
    %v4057 = vld [vmem:[#allocation2 + $0x198] sm:$0xff]
    %v4058 = vld [vmem:[#allocation2 + $0x1a0] sm:$0xff]
    %v4059 = vld [vmem:[#allocation2 + $0x1a8] sm:$0xff]
    %v4060 = vld [vmem:[#allocation2 + $0x1b0] sm:$0xff]
    %4066 = vrot.lane.b32.xlu0 %v4056, 96
    %v4067 = vpop.permute.xlu0 %4066
    %4068 = vrot.lane.b32.xlu0 %v4057, 96
    %v4069 = vpop.permute.xlu0 %4068
    %4070 = vrot.lane.b32.xlu0 %v4058, 96
    %v4071 = vpop.permute.xlu0 %4070
    %4072 = vrot.lane.b32.xlu0 %v4059, 96
    %v4073 = vpop.permute.xlu0 %4072
    %4074 = vrot.lane.b32.xlu0 %v4060, 96
    %v4075 = vpop.permute.xlu0 %4074
    %v4081 = vadd.f32 %v4051, %v4067
    %v4082 = vadd.f32 %v4052, %v4069
    %v4083 = vadd.f32 %v4053, %v4071
    %v4084 = vadd.f32 %v4054, %v4073
    %v4085 = vadd.f32 %v4055, %v4075
    %v4086 = vld [vmem:[#allocation2 + $0x1b8] sm:$0xff]
    %v4087 = vld [vmem:[#allocation2 + $0x1c0] sm:$0xff]
    %v4088 = vld [vmem:[#allocation2 + $0x1c8] sm:$0xff]
    %v4089 = vld [vmem:[#allocation2 + $0x1d0] sm:$0xff]
    %v4090 = vld [vmem:[#allocation2 + $0x1d8] sm:$0xff]
    %4096 = vrot.lane.b32.xlu0 %v4086, 64
    %v4097 = vpop.permute.xlu0 %4096
    %4098 = vrot.lane.b32.xlu0 %v4087, 64
    %v4099 = vpop.permute.xlu0 %4098
    %4100 = vrot.lane.b32.xlu0 %v4088, 64
    %v4101 = vpop.permute.xlu0 %4100
    %4102 = vrot.lane.b32.xlu0 %v4089, 64
    %v4103 = vpop.permute.xlu0 %4102
    %4104 = vrot.lane.b32.xlu0 %v4090, 64
    %v4105 = vpop.permute.xlu0 %4104
    %v4111 = vadd.f32 %v4081, %v4097
    %v4112 = vadd.f32 %v4082, %v4099
    %v4113 = vadd.f32 %v4083, %v4101
    %v4114 = vadd.f32 %v4084, %v4103
    %v4115 = vadd.f32 %v4085, %v4105
    %v4116 = vadd.f32 %v4111, %v3271
    %v4117 = vadd.f32 %v4112, %v3271
    %v4118 = vadd.f32 %v4113, %v3271
    %v4119 = vadd.f32 %v4114, %v3271
    %v4120 = vadd.f32 %v4115, %v3271
    %v4121 = vmax.f32 %v4116, 0.0
    %v4122 = vmax.f32 %v4117, 0.0
    %v4123 = vmax.f32 %v4118, 0.0
    %v4124 = vmax.f32 %v4119, 0.0
    %v4125 = vmax.f32 %v4120, 0.0
    %4131 = vrot.lane.b32.xlu0 %v4121, 32
    %v4132 = vpop.permute.xlu0 %4131
    %4133 = vrot.lane.b32.xlu0 %v4122, 32
    %v4134 = vpop.permute.xlu0 %4133
    %4135 = vrot.lane.b32.xlu0 %v4123, 32
    %v4136 = vpop.permute.xlu0 %4135
    %4137 = vrot.lane.b32.xlu0 %v4124, 32
    %v4138 = vpop.permute.xlu0 %4137
    %4139 = vrot.lane.b32.xlu0 %v4125, 32
    %v4140 = vpop.permute.xlu0 %4139
    %4146 = vst.msk [vmem:[#allocation3 + $0x10] sm:$0xff] %vm3383, %v4132
    %4147 = vst.msk [vmem:[#allocation3 + $0x78] sm:$0xff] %vm3383, %v4134
    %4148 = vst.msk [vmem:[#allocation3 + $0xe0] sm:$0xff] %vm3383, %v4136
    %4149 = vst.msk [vmem:[#allocation3 + $0x148] sm:$0xff] %vm3383, %v4138
    %4150 = vst.msk [vmem:[#allocation3 + $0x1b0] sm:$0xff] %vm3383, %v4140
    %v4151 = vld [vmem:[#allocation2 + $0x190] sm:$0xff]
    %v4152 = vld [vmem:[#allocation2 + $0x198] sm:$0xff]
    %v4153 = vld [vmem:[#allocation2 + $0x1a0] sm:$0xff]
    %v4154 = vld [vmem:[#allocation2 + $0x1a8] sm:$0xff]
    %v4155 = vld [vmem:[#allocation2 + $0x1b0] sm:$0xff]
    %v4156 = vld [vmem:[#allocation2 + $0x1b8] sm:$0xff]
    %v4157 = vld [vmem:[#allocation2 + $0x1c0] sm:$0xff]
    %v4158 = vld [vmem:[#allocation2 + $0x1c8] sm:$0xff]
    %v4159 = vld [vmem:[#allocation2 + $0x1d0] sm:$0xff]
    %v4160 = vld [vmem:[#allocation2 + $0x1d8] sm:$0xff]
    %4166 = vrot.lane.b32.xlu0 %v4156, 96
    %v4167 = vpop.permute.xlu0 %4166
    %4168 = vrot.lane.b32.xlu0 %v4157, 96
    %v4169 = vpop.permute.xlu0 %4168
    %4170 = vrot.lane.b32.xlu0 %v4158, 96
    %v4171 = vpop.permute.xlu0 %4170
    %4172 = vrot.lane.b32.xlu0 %v4159, 96
    %v4173 = vpop.permute.xlu0 %4172
    %4174 = vrot.lane.b32.xlu0 %v4160, 96
    %v4175 = vpop.permute.xlu0 %4174
    %v4181 = vadd.f32 %v4151, %v4167
    %v4182 = vadd.f32 %v4152, %v4169
    %v4183 = vadd.f32 %v4153, %v4171
    %v4184 = vadd.f32 %v4154, %v4173
    %v4185 = vadd.f32 %v4155, %v4175
    %v4186 = vld [vmem:[#allocation2 + $0x1e0] sm:$0xff]
    %v4187 = vld [vmem:[#allocation2 + $0x1e8] sm:$0xff]
    %v4188 = vld [vmem:[#allocation2 + $0x1f0] sm:$0xff]
    %v4189 = vld [vmem:[#allocation2 + $0x1f8] sm:$0xff]
    %v4190 = vld [vmem:[#allocation2 + $0x200] sm:$0xff]
    %4196 = vrot.lane.b32.xlu0 %v4186, 64
    %v4197 = vpop.permute.xlu0 %4196
    %4198 = vrot.lane.b32.xlu0 %v4187, 64
    %v4199 = vpop.permute.xlu0 %4198
    %4200 = vrot.lane.b32.xlu0 %v4188, 64
    %v4201 = vpop.permute.xlu0 %4200
    %4202 = vrot.lane.b32.xlu0 %v4189, 64
    %v4203 = vpop.permute.xlu0 %4202
    %4204 = vrot.lane.b32.xlu0 %v4190, 64
    %v4205 = vpop.permute.xlu0 %4204
    %v4211 = vadd.f32 %v4181, %v4197
    %v4212 = vadd.f32 %v4182, %v4199
    %v4213 = vadd.f32 %v4183, %v4201
    %v4214 = vadd.f32 %v4184, %v4203
    %v4215 = vadd.f32 %v4185, %v4205
    %v4216 = vadd.f32 %v4211, %v3271
    %v4217 = vadd.f32 %v4212, %v3271
    %v4218 = vadd.f32 %v4213, %v3271
    %v4219 = vadd.f32 %v4214, %v3271
    %v4220 = vadd.f32 %v4215, %v3271
    %v4221 = vmax.f32 %v4216, 0.0
    %v4222 = vmax.f32 %v4217, 0.0
    %v4223 = vmax.f32 %v4218, 0.0
    %v4224 = vmax.f32 %v4219, 0.0
    %v4225 = vmax.f32 %v4220, 0.0
    %4231 = vrot.lane.b32.xlu0 %v4221, 64
    %v4232 = vpop.permute.xlu0 %4231
    %4233 = vrot.lane.b32.xlu0 %v4222, 64
    %v4234 = vpop.permute.xlu0 %4233
    %4235 = vrot.lane.b32.xlu0 %v4223, 64
    %v4236 = vpop.permute.xlu0 %4235
    %4237 = vrot.lane.b32.xlu0 %v4224, 64
    %v4238 = vpop.permute.xlu0 %4237
    %4239 = vrot.lane.b32.xlu0 %v4225, 64
    %v4240 = vpop.permute.xlu0 %4239
    %4246 = vst.msk [vmem:[#allocation3 + $0x10] sm:$0xff] %vm3484, %v4232
    %4247 = vst.msk [vmem:[#allocation3 + $0x78] sm:$0xff] %vm3484, %v4234
    %4248 = vst.msk [vmem:[#allocation3 + $0xe0] sm:$0xff] %vm3484, %v4236
    %4249 = vst.msk [vmem:[#allocation3 + $0x148] sm:$0xff] %vm3484, %v4238
    %4250 = vst.msk [vmem:[#allocation3 + $0x1b0] sm:$0xff] %vm3484, %v4240
    %v4251 = vld [vmem:[#allocation2 + $0x1b8] sm:$0xff]
    %v4252 = vld [vmem:[#allocation2 + $0x1c0] sm:$0xff]
    %v4253 = vld [vmem:[#allocation2 + $0x1c8] sm:$0xff]
    %v4254 = vld [vmem:[#allocation2 + $0x1d0] sm:$0xff]
    %v4255 = vld [vmem:[#allocation2 + $0x1d8] sm:$0xff]
    %v4256 = vld [vmem:[#allocation2 + $0x1e0] sm:$0xff]
    %v4257 = vld [vmem:[#allocation2 + $0x1e8] sm:$0xff]
    %v4258 = vld [vmem:[#allocation2 + $0x1f0] sm:$0xff]
    %v4259 = vld [vmem:[#allocation2 + $0x1f8] sm:$0xff]
    %v4260 = vld [vmem:[#allocation2 + $0x200] sm:$0xff]
    %4266 = vrot.lane.b32.xlu0 %v4256, 96
    %v4267 = vpop.permute.xlu0 %4266
    %4268 = vrot.lane.b32.xlu0 %v4257, 96
    %v4269 = vpop.permute.xlu0 %4268
    %4270 = vrot.lane.b32.xlu0 %v4258, 96
    %v4271 = vpop.permute.xlu0 %4270
    %4272 = vrot.lane.b32.xlu0 %v4259, 96
    %v4273 = vpop.permute.xlu0 %4272
    %4274 = vrot.lane.b32.xlu0 %v4260, 96
    %v4275 = vpop.permute.xlu0 %4274
    %v4281 = vadd.f32 %v4251, %v4267
    %v4282 = vadd.f32 %v4252, %v4269
    %v4283 = vadd.f32 %v4253, %v4271
    %v4284 = vadd.f32 %v4254, %v4273
    %v4285 = vadd.f32 %v4255, %v4275
    %v4286 = vld [vmem:[#allocation2 + $0x208] sm:$0xff]
    %v4287 = vld [vmem:[#allocation2 + $0x210] sm:$0xff]
    %v4288 = vld [vmem:[#allocation2 + $0x218] sm:$0xff]
    %v4289 = vld [vmem:[#allocation2 + $0x220] sm:$0xff]
    %v4290 = vld [vmem:[#allocation2 + $0x228] sm:$0xff]
    %4296 = vrot.lane.b32.xlu0 %v4286, 64
    %v4297 = vpop.permute.xlu0 %4296
    %4298 = vrot.lane.b32.xlu0 %v4287, 64
    %v4299 = vpop.permute.xlu0 %4298
    %4300 = vrot.lane.b32.xlu0 %v4288, 64
    %v4301 = vpop.permute.xlu0 %4300
    %4302 = vrot.lane.b32.xlu0 %v4289, 64
    %v4303 = vpop.permute.xlu0 %4302
    %4304 = vrot.lane.b32.xlu0 %v4290, 64
    %v4305 = vpop.permute.xlu0 %4304
    %v4311 = vadd.f32 %v4281, %v4297
    %v4312 = vadd.f32 %v4282, %v4299
    %v4313 = vadd.f32 %v4283, %v4301
    %v4314 = vadd.f32 %v4284, %v4303
    %v4315 = vadd.f32 %v4285, %v4305
    %v4316 = vadd.f32 %v4311, %v3271
    %v4317 = vadd.f32 %v4312, %v3271
    %v4318 = vadd.f32 %v4313, %v3271
    %v4319 = vadd.f32 %v4314, %v3271
    %v4320 = vadd.f32 %v4315, %v3271
    %v4321 = vmax.f32 %v4316, 0.0
    %v4322 = vmax.f32 %v4317, 0.0
    %v4323 = vmax.f32 %v4318, 0.0
    %v4324 = vmax.f32 %v4319, 0.0
    %v4325 = vmax.f32 %v4320, 0.0
    %4331 = vrot.lane.b32.xlu0 %v4321, 96
    %v4332 = vpop.permute.xlu0 %4331
    %4333 = vrot.lane.b32.xlu0 %v4322, 96
    %v4334 = vpop.permute.xlu0 %4333
    %4335 = vrot.lane.b32.xlu0 %v4323, 96
    %v4336 = vpop.permute.xlu0 %4335
    %4337 = vrot.lane.b32.xlu0 %v4324, 96
    %v4338 = vpop.permute.xlu0 %4337
    %4339 = vrot.lane.b32.xlu0 %v4325, 96
    %v4340 = vpop.permute.xlu0 %4339
    %4346 = vst.msk [vmem:[#allocation3 + $0x10] sm:$0xff] %vm3585, %v4332
    %4347 = vst.msk [vmem:[#allocation3 + $0x78] sm:$0xff] %vm3585, %v4334
    %4348 = vst.msk [vmem:[#allocation3 + $0xe0] sm:$0xff] %vm3585, %v4336
    %4349 = vst.msk [vmem:[#allocation3 + $0x148] sm:$0xff] %vm3585, %v4338
    %4350 = vst.msk [vmem:[#allocation3 + $0x1b0] sm:$0xff] %vm3585, %v4340
    %v4351 = vld [vmem:[#allocation2 + $0x1e0] sm:$0xff]
    %v4352 = vld [vmem:[#allocation2 + $0x1e8] sm:$0xff]
    %v4353 = vld [vmem:[#allocation2 + $0x1f0] sm:$0xff]
    %v4354 = vld [vmem:[#allocation2 + $0x1f8] sm:$0xff]
    %v4355 = vld [vmem:[#allocation2 + $0x200] sm:$0xff]
    %v4356 = vld [vmem:[#allocation2 + $0x208] sm:$0xff]
    %v4357 = vld [vmem:[#allocation2 + $0x210] sm:$0xff]
    %v4358 = vld [vmem:[#allocation2 + $0x218] sm:$0xff]
    %v4359 = vld [vmem:[#allocation2 + $0x220] sm:$0xff]
    %v4360 = vld [vmem:[#allocation2 + $0x228] sm:$0xff]
    %4366 = vrot.lane.b32.xlu0 %v4356, 96
    %v4367 = vpop.permute.xlu0 %4366
    %4368 = vrot.lane.b32.xlu0 %v4357, 96
    %v4369 = vpop.permute.xlu0 %4368
    %4370 = vrot.lane.b32.xlu0 %v4358, 96
    %v4371 = vpop.permute.xlu0 %4370
    %4372 = vrot.lane.b32.xlu0 %v4359, 96
    %v4373 = vpop.permute.xlu0 %4372
    %4374 = vrot.lane.b32.xlu0 %v4360, 96
    %v4375 = vpop.permute.xlu0 %4374
    %v4381 = vadd.f32 %v4351, %v4367
    %v4382 = vadd.f32 %v4352, %v4369
    %v4383 = vadd.f32 %v4353, %v4371
    %v4384 = vadd.f32 %v4354, %v4373
    %v4385 = vadd.f32 %v4355, %v4375
    %v4386 = vld [vmem:[#allocation2 + $0x230] sm:$0xff]
    %v4387 = vld [vmem:[#allocation2 + $0x238] sm:$0xff]
    %v4388 = vld [vmem:[#allocation2 + $0x240] sm:$0xff]
    %v4389 = vld [vmem:[#allocation2 + $0x248] sm:$0xff]
    %v4390 = vld [vmem:[#allocation2 + $0x250] sm:$0xff]
    %4396 = vrot.lane.b32.xlu0 %v4386, 64
    %v4397 = vpop.permute.xlu0 %4396
    %4398 = vrot.lane.b32.xlu0 %v4387, 64
    %v4399 = vpop.permute.xlu0 %4398
    %4400 = vrot.lane.b32.xlu0 %v4388, 64
    %v4401 = vpop.permute.xlu0 %4400
    %4402 = vrot.lane.b32.xlu0 %v4389, 64
    %v4403 = vpop.permute.xlu0 %4402
    %4404 = vrot.lane.b32.xlu0 %v4390, 64
    %v4405 = vpop.permute.xlu0 %4404
    %v4411 = vadd.f32 %v4381, %v4397
    %v4412 = vadd.f32 %v4382, %v4399
    %v4413 = vadd.f32 %v4383, %v4401
    %v4414 = vadd.f32 %v4384, %v4403
    %v4415 = vadd.f32 %v4385, %v4405
    %v4416 = vadd.f32 %v4411, %v3271
    %v4417 = vadd.f32 %v4412, %v3271
    %v4418 = vadd.f32 %v4413, %v3271
    %v4419 = vadd.f32 %v4414, %v3271
    %v4420 = vadd.f32 %v4415, %v3271
    %v4421 = vmax.f32 %v4416, 0.0
    %v4422 = vmax.f32 %v4417, 0.0
    %v4423 = vmax.f32 %v4418, 0.0
    %v4424 = vmax.f32 %v4419, 0.0
    %v4425 = vmax.f32 %v4420, 0.0
    %4426 = vst.msk [vmem:[#allocation3 + $0x18] sm:$0xff] %vm3282, %v4421
    %4427 = vst.msk [vmem:[#allocation3 + $0x80] sm:$0xff] %vm3282, %v4422
    %4428 = vst.msk [vmem:[#allocation3 + $0xe8] sm:$0xff] %vm3282, %v4423
    %4429 = vst.msk [vmem:[#allocation3 + $0x150] sm:$0xff] %vm3282, %v4424
    %4430 = vst.msk [vmem:[#allocation3 + $0x1b8] sm:$0xff] %vm3282, %v4425
    %v4431 = vld [vmem:[#allocation2 + $0x208] sm:$0xff]
    %v4432 = vld [vmem:[#allocation2 + $0x210] sm:$0xff]
    %v4433 = vld [vmem:[#allocation2 + $0x218] sm:$0xff]
    %v4434 = vld [vmem:[#allocation2 + $0x220] sm:$0xff]
    %v4435 = vld [vmem:[#allocation2 + $0x228] sm:$0xff]
    %v4436 = vld [vmem:[#allocation2 + $0x230] sm:$0xff]
    %v4437 = vld [vmem:[#allocation2 + $0x238] sm:$0xff]
    %v4438 = vld [vmem:[#allocation2 + $0x240] sm:$0xff]
    %v4439 = vld [vmem:[#allocation2 + $0x248] sm:$0xff]
    %v4440 = vld [vmem:[#allocation2 + $0x250] sm:$0xff]
    %4446 = vrot.lane.b32.xlu0 %v4436, 96
    %v4447 = vpop.permute.xlu0 %4446
    %4448 = vrot.lane.b32.xlu0 %v4437, 96
    %v4449 = vpop.permute.xlu0 %4448
    %4450 = vrot.lane.b32.xlu0 %v4438, 96
    %v4451 = vpop.permute.xlu0 %4450
    %4452 = vrot.lane.b32.xlu0 %v4439, 96
    %v4453 = vpop.permute.xlu0 %4452
    %4454 = vrot.lane.b32.xlu0 %v4440, 96
    %v4455 = vpop.permute.xlu0 %4454
    %v4461 = vadd.f32 %v4431, %v4447
    %v4462 = vadd.f32 %v4432, %v4449
    %v4463 = vadd.f32 %v4433, %v4451
    %v4464 = vadd.f32 %v4434, %v4453
    %v4465 = vadd.f32 %v4435, %v4455
    %v4466 = vld [vmem:[#allocation2 + $0x258] sm:$0xff]
    %v4467 = vld [vmem:[#allocation2 + $0x260] sm:$0xff]
    %v4468 = vld [vmem:[#allocation2 + $0x268] sm:$0xff]
    %v4469 = vld [vmem:[#allocation2 + $0x270] sm:$0xff]
    %v4470 = vld [vmem:[#allocation2 + $0x278] sm:$0xff]
    %4476 = vrot.lane.b32.xlu0 %v4466, 64
    %v4477 = vpop.permute.xlu0 %4476
    %4478 = vrot.lane.b32.xlu0 %v4467, 64
    %v4479 = vpop.permute.xlu0 %4478
    %4480 = vrot.lane.b32.xlu0 %v4468, 64
    %v4481 = vpop.permute.xlu0 %4480
    %4482 = vrot.lane.b32.xlu0 %v4469, 64
    %v4483 = vpop.permute.xlu0 %4482
    %4484 = vrot.lane.b32.xlu0 %v4470, 64
    %v4485 = vpop.permute.xlu0 %4484
    %v4491 = vadd.f32 %v4461, %v4477
    %v4492 = vadd.f32 %v4462, %v4479
    %v4493 = vadd.f32 %v4463, %v4481
    %v4494 = vadd.f32 %v4464, %v4483
    %v4495 = vadd.f32 %v4465, %v4485
    %v4496 = vadd.f32 %v4491, %v3271
    %v4497 = vadd.f32 %v4492, %v3271
    %v4498 = vadd.f32 %v4493, %v3271
    %v4499 = vadd.f32 %v4494, %v3271
    %v4500 = vadd.f32 %v4495, %v3271
    %v4501 = vmax.f32 %v4496, 0.0
    %v4502 = vmax.f32 %v4497, 0.0
    %v4503 = vmax.f32 %v4498, 0.0
    %v4504 = vmax.f32 %v4499, 0.0
    %v4505 = vmax.f32 %v4500, 0.0
    %4511 = vrot.lane.b32.xlu0 %v4501, 32
    %v4512 = vpop.permute.xlu0 %4511
    %4513 = vrot.lane.b32.xlu0 %v4502, 32
    %v4514 = vpop.permute.xlu0 %4513
    %4515 = vrot.lane.b32.xlu0 %v4503, 32
    %v4516 = vpop.permute.xlu0 %4515
    %4517 = vrot.lane.b32.xlu0 %v4504, 32
    %v4518 = vpop.permute.xlu0 %4517
    %4519 = vrot.lane.b32.xlu0 %v4505, 32
    %v4520 = vpop.permute.xlu0 %4519
    %4526 = vst.msk [vmem:[#allocation3 + $0x18] sm:$0xff] %vm3383, %v4512
    %4527 = vst.msk [vmem:[#allocation3 + $0x80] sm:$0xff] %vm3383, %v4514
    %4528 = vst.msk [vmem:[#allocation3 + $0xe8] sm:$0xff] %vm3383, %v4516
    %4529 = vst.msk [vmem:[#allocation3 + $0x150] sm:$0xff] %vm3383, %v4518
    %4530 = vst.msk [vmem:[#allocation3 + $0x1b8] sm:$0xff] %vm3383, %v4520
    %v4531 = vld [vmem:[#allocation2 + $0x230] sm:$0xff]
    %v4532 = vld [vmem:[#allocation2 + $0x238] sm:$0xff]
    %v4533 = vld [vmem:[#allocation2 + $0x240] sm:$0xff]
    %v4534 = vld [vmem:[#allocation2 + $0x248] sm:$0xff]
    %v4535 = vld [vmem:[#allocation2 + $0x250] sm:$0xff]
    %v4536 = vld [vmem:[#allocation2 + $0x258] sm:$0xff]
    %v4537 = vld [vmem:[#allocation2 + $0x260] sm:$0xff]
    %v4538 = vld [vmem:[#allocation2 + $0x268] sm:$0xff]
    %v4539 = vld [vmem:[#allocation2 + $0x270] sm:$0xff]
    %v4540 = vld [vmem:[#allocation2 + $0x278] sm:$0xff]
    %4546 = vrot.lane.b32.xlu0 %v4536, 96
    %v4547 = vpop.permute.xlu0 %4546
    %4548 = vrot.lane.b32.xlu0 %v4537, 96
    %v4549 = vpop.permute.xlu0 %4548
    %4550 = vrot.lane.b32.xlu0 %v4538, 96
    %v4551 = vpop.permute.xlu0 %4550
    %4552 = vrot.lane.b32.xlu0 %v4539, 96
    %v4553 = vpop.permute.xlu0 %4552
    %4554 = vrot.lane.b32.xlu0 %v4540, 96
    %v4555 = vpop.permute.xlu0 %4554
    %v4561 = vadd.f32 %v4531, %v4547
    %v4562 = vadd.f32 %v4532, %v4549
    %v4563 = vadd.f32 %v4533, %v4551
    %v4564 = vadd.f32 %v4534, %v4553
    %v4565 = vadd.f32 %v4535, %v4555
    %v4566 = vld [vmem:[#allocation2 + $0x280] sm:$0xff]
    %v4567 = vld [vmem:[#allocation2 + $0x288] sm:$0xff]
    %v4568 = vld [vmem:[#allocation2 + $0x290] sm:$0xff]
    %v4569 = vld [vmem:[#allocation2 + $0x298] sm:$0xff]
    %v4570 = vld [vmem:[#allocation2 + $0x2a0] sm:$0xff]
    %4576 = vrot.lane.b32.xlu0 %v4566, 64
    %v4577 = vpop.permute.xlu0 %4576
    %4578 = vrot.lane.b32.xlu0 %v4567, 64
    %v4579 = vpop.permute.xlu0 %4578
    %4580 = vrot.lane.b32.xlu0 %v4568, 64
    %v4581 = vpop.permute.xlu0 %4580
    %4582 = vrot.lane.b32.xlu0 %v4569, 64
    %v4583 = vpop.permute.xlu0 %4582
    %4584 = vrot.lane.b32.xlu0 %v4570, 64
    %v4585 = vpop.permute.xlu0 %4584
    %v4591 = vadd.f32 %v4561, %v4577
    %v4592 = vadd.f32 %v4562, %v4579
    %v4593 = vadd.f32 %v4563, %v4581
    %v4594 = vadd.f32 %v4564, %v4583
    %v4595 = vadd.f32 %v4565, %v4585
    %v4596 = vadd.f32 %v4591, %v3271
    %v4597 = vadd.f32 %v4592, %v3271
    %v4598 = vadd.f32 %v4593, %v3271
    %v4599 = vadd.f32 %v4594, %v3271
    %v4600 = vadd.f32 %v4595, %v3271
    %v4601 = vmax.f32 %v4596, 0.0
    %v4602 = vmax.f32 %v4597, 0.0
    %v4603 = vmax.f32 %v4598, 0.0
    %v4604 = vmax.f32 %v4599, 0.0
    %v4605 = vmax.f32 %v4600, 0.0
    %4611 = vrot.lane.b32.xlu0 %v4601, 64
    %v4612 = vpop.permute.xlu0 %4611
    %4613 = vrot.lane.b32.xlu0 %v4602, 64
    %v4614 = vpop.permute.xlu0 %4613
    %4615 = vrot.lane.b32.xlu0 %v4603, 64
    %v4616 = vpop.permute.xlu0 %4615
    %4617 = vrot.lane.b32.xlu0 %v4604, 64
    %v4618 = vpop.permute.xlu0 %4617
    %4619 = vrot.lane.b32.xlu0 %v4605, 64
    %v4620 = vpop.permute.xlu0 %4619
    %4626 = vst.msk [vmem:[#allocation3 + $0x18] sm:$0xff] %vm3484, %v4612
    %4627 = vst.msk [vmem:[#allocation3 + $0x80] sm:$0xff] %vm3484, %v4614
    %4628 = vst.msk [vmem:[#allocation3 + $0xe8] sm:$0xff] %vm3484, %v4616
    %4629 = vst.msk [vmem:[#allocation3 + $0x150] sm:$0xff] %vm3484, %v4618
    %4630 = vst.msk [vmem:[#allocation3 + $0x1b8] sm:$0xff] %vm3484, %v4620
    %v4631 = vld [vmem:[#allocation2 + $0x258] sm:$0xff]
    %v4632 = vld [vmem:[#allocation2 + $0x260] sm:$0xff]
    %v4633 = vld [vmem:[#allocation2 + $0x268] sm:$0xff]
    %v4634 = vld [vmem:[#allocation2 + $0x270] sm:$0xff]
    %v4635 = vld [vmem:[#allocation2 + $0x278] sm:$0xff]
    %v4636 = vld [vmem:[#allocation2 + $0x280] sm:$0xff]
    %v4637 = vld [vmem:[#allocation2 + $0x288] sm:$0xff]
    %v4638 = vld [vmem:[#allocation2 + $0x290] sm:$0xff]
    %v4639 = vld [vmem:[#allocation2 + $0x298] sm:$0xff]
    %v4640 = vld [vmem:[#allocation2 + $0x2a0] sm:$0xff]
    %4646 = vrot.lane.b32.xlu0 %v4636, 96
    %v4647 = vpop.permute.xlu0 %4646
    %4648 = vrot.lane.b32.xlu0 %v4637, 96
    %v4649 = vpop.permute.xlu0 %4648
    %4650 = vrot.lane.b32.xlu0 %v4638, 96
    %v4651 = vpop.permute.xlu0 %4650
    %4652 = vrot.lane.b32.xlu0 %v4639, 96
    %v4653 = vpop.permute.xlu0 %4652
    %4654 = vrot.lane.b32.xlu0 %v4640, 96
    %v4655 = vpop.permute.xlu0 %4654
    %v4661 = vadd.f32 %v4631, %v4647
    %v4662 = vadd.f32 %v4632, %v4649
    %v4663 = vadd.f32 %v4633, %v4651
    %v4664 = vadd.f32 %v4634, %v4653
    %v4665 = vadd.f32 %v4635, %v4655
    %v4666 = vld [vmem:[#allocation2 + $0x2a8] sm:$0xff]
    %v4667 = vld [vmem:[#allocation2 + $0x2b0] sm:$0xff]
    %v4668 = vld [vmem:[#allocation2 + $0x2b8] sm:$0xff]
    %v4669 = vld [vmem:[#allocation2 + $0x2c0] sm:$0xff]
    %v4670 = vld [vmem:[#allocation2 + $0x2c8] sm:$0xff]
    %4676 = vrot.lane.b32.xlu0 %v4666, 64
    %v4677 = vpop.permute.xlu0 %4676
    %4678 = vrot.lane.b32.xlu0 %v4667, 64
    %v4679 = vpop.permute.xlu0 %4678
    %4680 = vrot.lane.b32.xlu0 %v4668, 64
    %v4681 = vpop.permute.xlu0 %4680
    %4682 = vrot.lane.b32.xlu0 %v4669, 64
    %v4683 = vpop.permute.xlu0 %4682
    %4684 = vrot.lane.b32.xlu0 %v4670, 64
    %v4685 = vpop.permute.xlu0 %4684
    %v4691 = vadd.f32 %v4661, %v4677
    %v4692 = vadd.f32 %v4662, %v4679
    %v4693 = vadd.f32 %v4663, %v4681
    %v4694 = vadd.f32 %v4664, %v4683
    %v4695 = vadd.f32 %v4665, %v4685
    %v4696 = vadd.f32 %v4691, %v3271
    %v4697 = vadd.f32 %v4692, %v3271
    %v4698 = vadd.f32 %v4693, %v3271
    %v4699 = vadd.f32 %v4694, %v3271
    %v4700 = vadd.f32 %v4695, %v3271
    %v4701 = vmax.f32 %v4696, 0.0
    %v4702 = vmax.f32 %v4697, 0.0
    %v4703 = vmax.f32 %v4698, 0.0
    %v4704 = vmax.f32 %v4699, 0.0
    %v4705 = vmax.f32 %v4700, 0.0
    %4711 = vrot.lane.b32.xlu0 %v4701, 96
    %v4712 = vpop.permute.xlu0 %4711
    %4713 = vrot.lane.b32.xlu0 %v4702, 96
    %v4714 = vpop.permute.xlu0 %4713
    %4715 = vrot.lane.b32.xlu0 %v4703, 96
    %v4716 = vpop.permute.xlu0 %4715
    %4717 = vrot.lane.b32.xlu0 %v4704, 96
    %v4718 = vpop.permute.xlu0 %4717
    %4719 = vrot.lane.b32.xlu0 %v4705, 96
    %v4720 = vpop.permute.xlu0 %4719
    %4726 = vst.msk [vmem:[#allocation3 + $0x18] sm:$0xff] %vm3585, %v4712
    %4727 = vst.msk [vmem:[#allocation3 + $0x80] sm:$0xff] %vm3585, %v4714
    %4728 = vst.msk [vmem:[#allocation3 + $0xe8] sm:$0xff] %vm3585, %v4716
    %4729 = vst.msk [vmem:[#allocation3 + $0x150] sm:$0xff] %vm3585, %v4718
    %4730 = vst.msk [vmem:[#allocation3 + $0x1b8] sm:$0xff] %vm3585, %v4720
    %v4731 = vld [vmem:[#allocation2 + $0x280] sm:$0xff]
    %v4732 = vld [vmem:[#allocation2 + $0x288] sm:$0xff]
    %v4733 = vld [vmem:[#allocation2 + $0x290] sm:$0xff]
    %v4734 = vld [vmem:[#allocation2 + $0x298] sm:$0xff]
    %v4735 = vld [vmem:[#allocation2 + $0x2a0] sm:$0xff]
    %v4736 = vld [vmem:[#allocation2 + $0x2a8] sm:$0xff]
    %v4737 = vld [vmem:[#allocation2 + $0x2b0] sm:$0xff]
    %v4738 = vld [vmem:[#allocation2 + $0x2b8] sm:$0xff]
    %v4739 = vld [vmem:[#allocation2 + $0x2c0] sm:$0xff]
    %v4740 = vld [vmem:[#allocation2 + $0x2c8] sm:$0xff]
    %4746 = vrot.lane.b32.xlu0 %v4736, 96
    %v4747 = vpop.permute.xlu0 %4746
    %4748 = vrot.lane.b32.xlu0 %v4737, 96
    %v4749 = vpop.permute.xlu0 %4748
    %4750 = vrot.lane.b32.xlu0 %v4738, 96
    %v4751 = vpop.permute.xlu0 %4750
    %4752 = vrot.lane.b32.xlu0 %v4739, 96
    %v4753 = vpop.permute.xlu0 %4752
    %4754 = vrot.lane.b32.xlu0 %v4740, 96
    %v4755 = vpop.permute.xlu0 %4754
    %v4761 = vadd.f32 %v4731, %v4747
    %v4762 = vadd.f32 %v4732, %v4749
    %v4763 = vadd.f32 %v4733, %v4751
    %v4764 = vadd.f32 %v4734, %v4753
    %v4765 = vadd.f32 %v4735, %v4755
    %v4766 = vld [vmem:[#allocation2 + $0x2d0] sm:$0xff]
    %v4767 = vld [vmem:[#allocation2 + $0x2d8] sm:$0xff]
    %v4768 = vld [vmem:[#allocation2 + $0x2e0] sm:$0xff]
    %v4769 = vld [vmem:[#allocation2 + $0x2e8] sm:$0xff]
    %v4770 = vld [vmem:[#allocation2 + $0x2f0] sm:$0xff]
    %4776 = vrot.lane.b32.xlu0 %v4766, 64
    %v4777 = vpop.permute.xlu0 %4776
    %4778 = vrot.lane.b32.xlu0 %v4767, 64
    %v4779 = vpop.permute.xlu0 %4778
    %4780 = vrot.lane.b32.xlu0 %v4768, 64
    %v4781 = vpop.permute.xlu0 %4780
    %4782 = vrot.lane.b32.xlu0 %v4769, 64
    %v4783 = vpop.permute.xlu0 %4782
    %4784 = vrot.lane.b32.xlu0 %v4770, 64
    %v4785 = vpop.permute.xlu0 %4784
    %v4791 = vadd.f32 %v4761, %v4777
    %v4792 = vadd.f32 %v4762, %v4779
    %v4793 = vadd.f32 %v4763, %v4781
    %v4794 = vadd.f32 %v4764, %v4783
    %v4795 = vadd.f32 %v4765, %v4785
    %v4796 = vadd.f32 %v4791, %v3271
    %v4797 = vadd.f32 %v4792, %v3271
    %v4798 = vadd.f32 %v4793, %v3271
    %v4799 = vadd.f32 %v4794, %v3271
    %v4800 = vadd.f32 %v4795, %v3271
    %v4801 = vmax.f32 %v4796, 0.0
    %v4802 = vmax.f32 %v4797, 0.0
    %v4803 = vmax.f32 %v4798, 0.0
    %v4804 = vmax.f32 %v4799, 0.0
    %v4805 = vmax.f32 %v4800, 0.0
    %4806 = vst.msk [vmem:[#allocation3 + $0x20] sm:$0xff] %vm3282, %v4801
    %4807 = vst.msk [vmem:[#allocation3 + $0x88] sm:$0xff] %vm3282, %v4802
    %4808 = vst.msk [vmem:[#allocation3 + $0xf0] sm:$0xff] %vm3282, %v4803
    %4809 = vst.msk [vmem:[#allocation3 + $0x158] sm:$0xff] %vm3282, %v4804
    %4810 = vst.msk [vmem:[#allocation3 + $0x1c0] sm:$0xff] %vm3282, %v4805
    %v4811 = vld [vmem:[#allocation2 + $0x2a8] sm:$0xff]
    %v4812 = vld [vmem:[#allocation2 + $0x2b0] sm:$0xff]
    %v4813 = vld [vmem:[#allocation2 + $0x2b8] sm:$0xff]
    %v4814 = vld [vmem:[#allocation2 + $0x2c0] sm:$0xff]
    %v4815 = vld [vmem:[#allocation2 + $0x2c8] sm:$0xff]
    %v4816 = vld [vmem:[#allocation2 + $0x2d0] sm:$0xff]
    %v4817 = vld [vmem:[#allocation2 + $0x2d8] sm:$0xff]
    %v4818 = vld [vmem:[#allocation2 + $0x2e0] sm:$0xff]
    %v4819 = vld [vmem:[#allocation2 + $0x2e8] sm:$0xff]
    %v4820 = vld [vmem:[#allocation2 + $0x2f0] sm:$0xff]
    %4826 = vrot.lane.b32.xlu0 %v4816, 96
    %v4827 = vpop.permute.xlu0 %4826
    %4828 = vrot.lane.b32.xlu0 %v4817, 96
    %v4829 = vpop.permute.xlu0 %4828
    %4830 = vrot.lane.b32.xlu0 %v4818, 96
    %v4831 = vpop.permute.xlu0 %4830
    %4832 = vrot.lane.b32.xlu0 %v4819, 96
    %v4833 = vpop.permute.xlu0 %4832
    %4834 = vrot.lane.b32.xlu0 %v4820, 96
    %v4835 = vpop.permute.xlu0 %4834
    %v4841 = vadd.f32 %v4811, %v4827
    %v4842 = vadd.f32 %v4812, %v4829
    %v4843 = vadd.f32 %v4813, %v4831
    %v4844 = vadd.f32 %v4814, %v4833
    %v4845 = vadd.f32 %v4815, %v4835
    %v4846 = vld [vmem:[#allocation2 + $0x2f8] sm:$0xff]
    %v4847 = vld [vmem:[#allocation2 + $0x300] sm:$0xff]
    %v4848 = vld [vmem:[#allocation2 + $0x308] sm:$0xff]
    %v4849 = vld [vmem:[#allocation2 + $0x310] sm:$0xff]
    %v4850 = vld [vmem:[#allocation2 + $0x318] sm:$0xff]
    %4856 = vrot.lane.b32.xlu0 %v4846, 64
    %v4857 = vpop.permute.xlu0 %4856
    %4858 = vrot.lane.b32.xlu0 %v4847, 64
    %v4859 = vpop.permute.xlu0 %4858
    %4860 = vrot.lane.b32.xlu0 %v4848, 64
    %v4861 = vpop.permute.xlu0 %4860
    %4862 = vrot.lane.b32.xlu0 %v4849, 64
    %v4863 = vpop.permute.xlu0 %4862
    %4864 = vrot.lane.b32.xlu0 %v4850, 64
    %v4865 = vpop.permute.xlu0 %4864
    %v4871 = vadd.f32 %v4841, %v4857
    %v4872 = vadd.f32 %v4842, %v4859
    %v4873 = vadd.f32 %v4843, %v4861
    %v4874 = vadd.f32 %v4844, %v4863
    %v4875 = vadd.f32 %v4845, %v4865
    %v4876 = vadd.f32 %v4871, %v3271
    %v4877 = vadd.f32 %v4872, %v3271
    %v4878 = vadd.f32 %v4873, %v3271
    %v4879 = vadd.f32 %v4874, %v3271
    %v4880 = vadd.f32 %v4875, %v3271
    %v4881 = vmax.f32 %v4876, 0.0
    %v4882 = vmax.f32 %v4877, 0.0
    %v4883 = vmax.f32 %v4878, 0.0
    %v4884 = vmax.f32 %v4879, 0.0
    %v4885 = vmax.f32 %v4880, 0.0
    %4891 = vrot.lane.b32.xlu0 %v4881, 32
    %v4892 = vpop.permute.xlu0 %4891
    %4893 = vrot.lane.b32.xlu0 %v4882, 32
    %v4894 = vpop.permute.xlu0 %4893
    %4895 = vrot.lane.b32.xlu0 %v4883, 32
    %v4896 = vpop.permute.xlu0 %4895
    %4897 = vrot.lane.b32.xlu0 %v4884, 32
    %v4898 = vpop.permute.xlu0 %4897
    %4899 = vrot.lane.b32.xlu0 %v4885, 32
    %v4900 = vpop.permute.xlu0 %4899
    %4906 = vst.msk [vmem:[#allocation3 + $0x20] sm:$0xff] %vm3383, %v4892
    %4907 = vst.msk [vmem:[#allocation3 + $0x88] sm:$0xff] %vm3383, %v4894
    %4908 = vst.msk [vmem:[#allocation3 + $0xf0] sm:$0xff] %vm3383, %v4896
    %4909 = vst.msk [vmem:[#allocation3 + $0x158] sm:$0xff] %vm3383, %v4898
    %4910 = vst.msk [vmem:[#allocation3 + $0x1c0] sm:$0xff] %vm3383, %v4900
    %v4911 = vld [vmem:[#allocation2 + $0x2d0] sm:$0xff]
    %v4912 = vld [vmem:[#allocation2 + $0x2d8] sm:$0xff]
    %v4913 = vld [vmem:[#allocation2 + $0x2e0] sm:$0xff]
    %v4914 = vld [vmem:[#allocation2 + $0x2e8] sm:$0xff]
    %v4915 = vld [vmem:[#allocation2 + $0x2f0] sm:$0xff]
    %v4916 = vld [vmem:[#allocation2 + $0x2f8] sm:$0xff]
    %v4917 = vld [vmem:[#allocation2 + $0x300] sm:$0xff]
    %v4918 = vld [vmem:[#allocation2 + $0x308] sm:$0xff]
    %v4919 = vld [vmem:[#allocation2 + $0x310] sm:$0xff]
    %v4920 = vld [vmem:[#allocation2 + $0x318] sm:$0xff]
    %4926 = vrot.lane.b32.xlu0 %v4916, 96
    %v4927 = vpop.permute.xlu0 %4926
    %4928 = vrot.lane.b32.xlu0 %v4917, 96
    %v4929 = vpop.permute.xlu0 %4928
    %4930 = vrot.lane.b32.xlu0 %v4918, 96
    %v4931 = vpop.permute.xlu0 %4930
    %4932 = vrot.lane.b32.xlu0 %v4919, 96
    %v4933 = vpop.permute.xlu0 %4932
    %4934 = vrot.lane.b32.xlu0 %v4920, 96
    %v4935 = vpop.permute.xlu0 %4934
    %v4941 = vadd.f32 %v4911, %v4927
    %v4942 = vadd.f32 %v4912, %v4929
    %v4943 = vadd.f32 %v4913, %v4931
    %v4944 = vadd.f32 %v4914, %v4933
    %v4945 = vadd.f32 %v4915, %v4935
    %v4946 = vld [vmem:[#allocation2 + $0x320] sm:$0xff]
    %v4947 = vld [vmem:[#allocation2 + $0x328] sm:$0xff]
    %v4948 = vld [vmem:[#allocation2 + $0x330] sm:$0xff]
    %v4949 = vld [vmem:[#allocation2 + $0x338] sm:$0xff]
    %v4950 = vld [vmem:[#allocation2 + $0x340] sm:$0xff]
    %4956 = vrot.lane.b32.xlu0 %v4946, 64
    %v4957 = vpop.permute.xlu0 %4956
    %4958 = vrot.lane.b32.xlu0 %v4947, 64
    %v4959 = vpop.permute.xlu0 %4958
    %4960 = vrot.lane.b32.xlu0 %v4948, 64
    %v4961 = vpop.permute.xlu0 %4960
    %4962 = vrot.lane.b32.xlu0 %v4949, 64
    %v4963 = vpop.permute.xlu0 %4962
    %4964 = vrot.lane.b32.xlu0 %v4950, 64
    %v4965 = vpop.permute.xlu0 %4964
    %v4971 = vadd.f32 %v4941, %v4957
    %v4972 = vadd.f32 %v4942, %v4959
    %v4973 = vadd.f32 %v4943, %v4961
    %v4974 = vadd.f32 %v4944, %v4963
    %v4975 = vadd.f32 %v4945, %v4965
    %v4976 = vadd.f32 %v4971, %v3271
    %v4977 = vadd.f32 %v4972, %v3271
    %v4978 = vadd.f32 %v4973, %v3271
    %v4979 = vadd.f32 %v4974, %v3271
    %v4980 = vadd.f32 %v4975, %v3271
    %v4981 = vmax.f32 %v4976, 0.0
    %v4982 = vmax.f32 %v4977, 0.0
    %v4983 = vmax.f32 %v4978, 0.0
    %v4984 = vmax.f32 %v4979, 0.0
    %v4985 = vmax.f32 %v4980, 0.0
    %4991 = vrot.lane.b32.xlu0 %v4981, 64
    %v4992 = vpop.permute.xlu0 %4991
    %4993 = vrot.lane.b32.xlu0 %v4982, 64
    %v4994 = vpop.permute.xlu0 %4993
    %4995 = vrot.lane.b32.xlu0 %v4983, 64
    %v4996 = vpop.permute.xlu0 %4995
    %4997 = vrot.lane.b32.xlu0 %v4984, 64
    %v4998 = vpop.permute.xlu0 %4997
    %4999 = vrot.lane.b32.xlu0 %v4985, 64
    %v5000 = vpop.permute.xlu0 %4999
    %5006 = vst.msk [vmem:[#allocation3 + $0x20] sm:$0xff] %vm3484, %v4992
    %5007 = vst.msk [vmem:[#allocation3 + $0x88] sm:$0xff] %vm3484, %v4994
    %5008 = vst.msk [vmem:[#allocation3 + $0xf0] sm:$0xff] %vm3484, %v4996
    %5009 = vst.msk [vmem:[#allocation3 + $0x158] sm:$0xff] %vm3484, %v4998
    %5010 = vst.msk [vmem:[#allocation3 + $0x1c0] sm:$0xff] %vm3484, %v5000
    %v5011 = vld [vmem:[#allocation2 + $0x2f8] sm:$0xff]
    %v5012 = vld [vmem:[#allocation2 + $0x300] sm:$0xff]
    %v5013 = vld [vmem:[#allocation2 + $0x308] sm:$0xff]
    %v5014 = vld [vmem:[#allocation2 + $0x310] sm:$0xff]
    %v5015 = vld [vmem:[#allocation2 + $0x318] sm:$0xff]
    %v5016 = vld [vmem:[#allocation2 + $0x320] sm:$0xff]
    %v5017 = vld [vmem:[#allocation2 + $0x328] sm:$0xff]
    %v5018 = vld [vmem:[#allocation2 + $0x330] sm:$0xff]
    %v5019 = vld [vmem:[#allocation2 + $0x338] sm:$0xff]
    %v5020 = vld [vmem:[#allocation2 + $0x340] sm:$0xff]
    %5026 = vrot.lane.b32.xlu0 %v5016, 96
    %v5027 = vpop.permute.xlu0 %5026
    %5028 = vrot.lane.b32.xlu0 %v5017, 96
    %v5029 = vpop.permute.xlu0 %5028
    %5030 = vrot.lane.b32.xlu0 %v5018, 96
    %v5031 = vpop.permute.xlu0 %5030
    %5032 = vrot.lane.b32.xlu0 %v5019, 96
    %v5033 = vpop.permute.xlu0 %5032
    %5034 = vrot.lane.b32.xlu0 %v5020, 96
    %v5035 = vpop.permute.xlu0 %5034
    %v5041 = vadd.f32 %v5011, %v5027
    %v5042 = vadd.f32 %v5012, %v5029
    %v5043 = vadd.f32 %v5013, %v5031
    %v5044 = vadd.f32 %v5014, %v5033
    %v5045 = vadd.f32 %v5015, %v5035
    %v5046 = vld [vmem:[#allocation2 + $0x348] sm:$0xff]
    %v5047 = vld [vmem:[#allocation2 + $0x350] sm:$0xff]
    %v5048 = vld [vmem:[#allocation2 + $0x358] sm:$0xff]
    %v5049 = vld [vmem:[#allocation2 + $0x360] sm:$0xff]
    %v5050 = vld [vmem:[#allocation2 + $0x368] sm:$0xff]
    %5056 = vrot.lane.b32.xlu0 %v5046, 64
    %v5057 = vpop.permute.xlu0 %5056
    %5058 = vrot.lane.b32.xlu0 %v5047, 64
    %v5059 = vpop.permute.xlu0 %5058
    %5060 = vrot.lane.b32.xlu0 %v5048, 64
    %v5061 = vpop.permute.xlu0 %5060
    %5062 = vrot.lane.b32.xlu0 %v5049, 64
    %v5063 = vpop.permute.xlu0 %5062
    %5064 = vrot.lane.b32.xlu0 %v5050, 64
    %v5065 = vpop.permute.xlu0 %5064
    %v5071 = vadd.f32 %v5041, %v5057
    %v5072 = vadd.f32 %v5042, %v5059
    %v5073 = vadd.f32 %v5043, %v5061
    %v5074 = vadd.f32 %v5044, %v5063
    %v5075 = vadd.f32 %v5045, %v5065
    %v5076 = vadd.f32 %v5071, %v3271
    %v5077 = vadd.f32 %v5072, %v3271
    %v5078 = vadd.f32 %v5073, %v3271
    %v5079 = vadd.f32 %v5074, %v3271
    %v5080 = vadd.f32 %v5075, %v3271
    %v5081 = vmax.f32 %v5076, 0.0
    %v5082 = vmax.f32 %v5077, 0.0
    %v5083 = vmax.f32 %v5078, 0.0
    %v5084 = vmax.f32 %v5079, 0.0
    %v5085 = vmax.f32 %v5080, 0.0
    %5091 = vrot.lane.b32.xlu0 %v5081, 96
    %v5092 = vpop.permute.xlu0 %5091
    %5093 = vrot.lane.b32.xlu0 %v5082, 96
    %v5094 = vpop.permute.xlu0 %5093
    %5095 = vrot.lane.b32.xlu0 %v5083, 96
    %v5096 = vpop.permute.xlu0 %5095
    %5097 = vrot.lane.b32.xlu0 %v5084, 96
    %v5098 = vpop.permute.xlu0 %5097
    %5099 = vrot.lane.b32.xlu0 %v5085, 96
    %v5100 = vpop.permute.xlu0 %5099
    %5106 = vst.msk [vmem:[#allocation3 + $0x20] sm:$0xff] %vm3585, %v5092
    %5107 = vst.msk [vmem:[#allocation3 + $0x88] sm:$0xff] %vm3585, %v5094
    %5108 = vst.msk [vmem:[#allocation3 + $0xf0] sm:$0xff] %vm3585, %v5096
    %5109 = vst.msk [vmem:[#allocation3 + $0x158] sm:$0xff] %vm3585, %v5098
    %5110 = vst.msk [vmem:[#allocation3 + $0x1c0] sm:$0xff] %vm3585, %v5100
    %v5111 = vld [vmem:[#allocation2 + $0x320] sm:$0xff]
    %v5112 = vld [vmem:[#allocation2 + $0x328] sm:$0xff]
    %v5113 = vld [vmem:[#allocation2 + $0x330] sm:$0xff]
    %v5114 = vld [vmem:[#allocation2 + $0x338] sm:$0xff]
    %v5115 = vld [vmem:[#allocation2 + $0x340] sm:$0xff]
    %v5116 = vld [vmem:[#allocation2 + $0x348] sm:$0xff]
    %v5117 = vld [vmem:[#allocation2 + $0x350] sm:$0xff]
    %v5118 = vld [vmem:[#allocation2 + $0x358] sm:$0xff]
    %v5119 = vld [vmem:[#allocation2 + $0x360] sm:$0xff]
    %v5120 = vld [vmem:[#allocation2 + $0x368] sm:$0xff]
    %5126 = vrot.lane.b32.xlu0 %v5116, 96
    %v5127 = vpop.permute.xlu0 %5126
    %5128 = vrot.lane.b32.xlu0 %v5117, 96
    %v5129 = vpop.permute.xlu0 %5128
    %5130 = vrot.lane.b32.xlu0 %v5118, 96
    %v5131 = vpop.permute.xlu0 %5130
    %5132 = vrot.lane.b32.xlu0 %v5119, 96
    %v5133 = vpop.permute.xlu0 %5132
    %5134 = vrot.lane.b32.xlu0 %v5120, 96
    %v5135 = vpop.permute.xlu0 %5134
    %v5141 = vadd.f32 %v5111, %v5127
    %v5142 = vadd.f32 %v5112, %v5129
    %v5143 = vadd.f32 %v5113, %v5131
    %v5144 = vadd.f32 %v5114, %v5133
    %v5145 = vadd.f32 %v5115, %v5135
    %v5146 = vld [vmem:[#allocation2 + $0x370] sm:$0xff]
    %v5147 = vld [vmem:[#allocation2 + $0x378] sm:$0xff]
    %v5148 = vld [vmem:[#allocation2 + $0x380] sm:$0xff]
    %v5149 = vld [vmem:[#allocation2 + $0x388] sm:$0xff]
    %v5150 = vld [vmem:[#allocation2 + $0x390] sm:$0xff]
    %5156 = vrot.lane.b32.xlu0 %v5146, 64
    %v5157 = vpop.permute.xlu0 %5156
    %5158 = vrot.lane.b32.xlu0 %v5147, 64
    %v5159 = vpop.permute.xlu0 %5158
    %5160 = vrot.lane.b32.xlu0 %v5148, 64
    %v5161 = vpop.permute.xlu0 %5160
    %5162 = vrot.lane.b32.xlu0 %v5149, 64
    %v5163 = vpop.permute.xlu0 %5162
    %5164 = vrot.lane.b32.xlu0 %v5150, 64
    %v5165 = vpop.permute.xlu0 %5164
    %v5171 = vadd.f32 %v5141, %v5157
    %v5172 = vadd.f32 %v5142, %v5159
    %v5173 = vadd.f32 %v5143, %v5161
    %v5174 = vadd.f32 %v5144, %v5163
    %v5175 = vadd.f32 %v5145, %v5165
    %v5176 = vadd.f32 %v5171, %v3271
    %v5177 = vadd.f32 %v5172, %v3271
    %v5178 = vadd.f32 %v5173, %v3271
    %v5179 = vadd.f32 %v5174, %v3271
    %v5180 = vadd.f32 %v5175, %v3271
    %v5181 = vmax.f32 %v5176, 0.0
    %v5182 = vmax.f32 %v5177, 0.0
    %v5183 = vmax.f32 %v5178, 0.0
    %v5184 = vmax.f32 %v5179, 0.0
    %v5185 = vmax.f32 %v5180, 0.0
    %5186 = vst.msk [vmem:[#allocation3 + $0x28] sm:$0xff] %vm3282, %v5181
    %5187 = vst.msk [vmem:[#allocation3 + $0x90] sm:$0xff] %vm3282, %v5182
    %5188 = vst.msk [vmem:[#allocation3 + $0xf8] sm:$0xff] %vm3282, %v5183
    %5189 = vst.msk [vmem:[#allocation3 + $0x160] sm:$0xff] %vm3282, %v5184
    %5190 = vst.msk [vmem:[#allocation3 + $0x1c8] sm:$0xff] %vm3282, %v5185
    %v5191 = vld [vmem:[#allocation2 + $0x348] sm:$0xff]
    %v5192 = vld [vmem:[#allocation2 + $0x350] sm:$0xff]
    %v5193 = vld [vmem:[#allocation2 + $0x358] sm:$0xff]
    %v5194 = vld [vmem:[#allocation2 + $0x360] sm:$0xff]
    %v5195 = vld [vmem:[#allocation2 + $0x368] sm:$0xff]
    %v5196 = vld [vmem:[#allocation2 + $0x370] sm:$0xff]
    %v5197 = vld [vmem:[#allocation2 + $0x378] sm:$0xff]
    %v5198 = vld [vmem:[#allocation2 + $0x380] sm:$0xff]
    %v5199 = vld [vmem:[#allocation2 + $0x388] sm:$0xff]
    %v5200 = vld [vmem:[#allocation2 + $0x390] sm:$0xff]
    %5206 = vrot.lane.b32.xlu0 %v5196, 96
    %v5207 = vpop.permute.xlu0 %5206
    %5208 = vrot.lane.b32.xlu0 %v5197, 96
    %v5209 = vpop.permute.xlu0 %5208
    %5210 = vrot.lane.b32.xlu0 %v5198, 96
    %v5211 = vpop.permute.xlu0 %5210
    %5212 = vrot.lane.b32.xlu0 %v5199, 96
    %v5213 = vpop.permute.xlu0 %5212
    %5214 = vrot.lane.b32.xlu0 %v5200, 96
    %v5215 = vpop.permute.xlu0 %5214
    %v5221 = vadd.f32 %v5191, %v5207
    %v5222 = vadd.f32 %v5192, %v5209
    %v5223 = vadd.f32 %v5193, %v5211
    %v5224 = vadd.f32 %v5194, %v5213
    %v5225 = vadd.f32 %v5195, %v5215
    %v5226 = vld [vmem:[#allocation2 + $0x398] sm:$0xff]
    %v5227 = vld [vmem:[#allocation2 + $0x3a0] sm:$0xff]
    %v5228 = vld [vmem:[#allocation2 + $0x3a8] sm:$0xff]
    %v5229 = vld [vmem:[#allocation2 + $0x3b0] sm:$0xff]
    %v5230 = vld [vmem:[#allocation2 + $0x3b8] sm:$0xff]
    %5236 = vrot.lane.b32.xlu0 %v5226, 64
    %v5237 = vpop.permute.xlu0 %5236
    %5238 = vrot.lane.b32.xlu0 %v5227, 64
    %v5239 = vpop.permute.xlu0 %5238
    %5240 = vrot.lane.b32.xlu0 %v5228, 64
    %v5241 = vpop.permute.xlu0 %5240
    %5242 = vrot.lane.b32.xlu0 %v5229, 64
    %v5243 = vpop.permute.xlu0 %5242
    %5244 = vrot.lane.b32.xlu0 %v5230, 64
    %v5245 = vpop.permute.xlu0 %5244
    %v5251 = vadd.f32 %v5221, %v5237
    %v5252 = vadd.f32 %v5222, %v5239
    %v5253 = vadd.f32 %v5223, %v5241
    %v5254 = vadd.f32 %v5224, %v5243
    %v5255 = vadd.f32 %v5225, %v5245
    %v5256 = vadd.f32 %v5251, %v3271
    %v5257 = vadd.f32 %v5252, %v3271
    %v5258 = vadd.f32 %v5253, %v3271
    %v5259 = vadd.f32 %v5254, %v3271
    %v5260 = vadd.f32 %v5255, %v3271
    %v5261 = vmax.f32 %v5256, 0.0
    %v5262 = vmax.f32 %v5257, 0.0
    %v5263 = vmax.f32 %v5258, 0.0
    %v5264 = vmax.f32 %v5259, 0.0
    %v5265 = vmax.f32 %v5260, 0.0
    %5271 = vrot.lane.b32.xlu0 %v5261, 32
    %v5272 = vpop.permute.xlu0 %5271
    %5273 = vrot.lane.b32.xlu0 %v5262, 32
    %v5274 = vpop.permute.xlu0 %5273
    %5275 = vrot.lane.b32.xlu0 %v5263, 32
    %v5276 = vpop.permute.xlu0 %5275
    %5277 = vrot.lane.b32.xlu0 %v5264, 32
    %v5278 = vpop.permute.xlu0 %5277
    %5279 = vrot.lane.b32.xlu0 %v5265, 32
    %v5280 = vpop.permute.xlu0 %5279
    %5286 = vst.msk [vmem:[#allocation3 + $0x28] sm:$0xff] %vm3383, %v5272
    %5287 = vst.msk [vmem:[#allocation3 + $0x90] sm:$0xff] %vm3383, %v5274
    %5288 = vst.msk [vmem:[#allocation3 + $0xf8] sm:$0xff] %vm3383, %v5276
    %5289 = vst.msk [vmem:[#allocation3 + $0x160] sm:$0xff] %vm3383, %v5278
    %5290 = vst.msk [vmem:[#allocation3 + $0x1c8] sm:$0xff] %vm3383, %v5280
    %v5291 = vld [vmem:[#allocation2 + $0x370] sm:$0xff]
    %v5292 = vld [vmem:[#allocation2 + $0x378] sm:$0xff]
    %v5293 = vld [vmem:[#allocation2 + $0x380] sm:$0xff]
    %v5294 = vld [vmem:[#allocation2 + $0x388] sm:$0xff]
    %v5295 = vld [vmem:[#allocation2 + $0x390] sm:$0xff]
    %v5296 = vld [vmem:[#allocation2 + $0x398] sm:$0xff]
    %v5297 = vld [vmem:[#allocation2 + $0x3a0] sm:$0xff]
    %v5298 = vld [vmem:[#allocation2 + $0x3a8] sm:$0xff]
    %v5299 = vld [vmem:[#allocation2 + $0x3b0] sm:$0xff]
    %v5300 = vld [vmem:[#allocation2 + $0x3b8] sm:$0xff]
    %5306 = vrot.lane.b32.xlu0 %v5296, 96
    %v5307 = vpop.permute.xlu0 %5306
    %5308 = vrot.lane.b32.xlu0 %v5297, 96
    %v5309 = vpop.permute.xlu0 %5308
    %5310 = vrot.lane.b32.xlu0 %v5298, 96
    %v5311 = vpop.permute.xlu0 %5310
    %5312 = vrot.lane.b32.xlu0 %v5299, 96
    %v5313 = vpop.permute.xlu0 %5312
    %5314 = vrot.lane.b32.xlu0 %v5300, 96
    %v5315 = vpop.permute.xlu0 %5314
    %v5321 = vadd.f32 %v5291, %v5307
    %v5322 = vadd.f32 %v5292, %v5309
    %v5323 = vadd.f32 %v5293, %v5311
    %v5324 = vadd.f32 %v5294, %v5313
    %v5325 = vadd.f32 %v5295, %v5315
    %v5326 = vld [vmem:[#allocation2 + $0x3c0] sm:$0xff]
    %v5327 = vld [vmem:[#allocation2 + $0x3c8] sm:$0xff]
    %v5328 = vld [vmem:[#allocation2 + $0x3d0] sm:$0xff]
    %v5329 = vld [vmem:[#allocation2 + $0x3d8] sm:$0xff]
    %v5330 = vld [vmem:[#allocation2 + $0x3e0] sm:$0xff]
    %5336 = vrot.lane.b32.xlu0 %v5326, 64
    %v5337 = vpop.permute.xlu0 %5336
    %5338 = vrot.lane.b32.xlu0 %v5327, 64
    %v5339 = vpop.permute.xlu0 %5338
    %5340 = vrot.lane.b32.xlu0 %v5328, 64
    %v5341 = vpop.permute.xlu0 %5340
    %5342 = vrot.lane.b32.xlu0 %v5329, 64
    %v5343 = vpop.permute.xlu0 %5342
    %5344 = vrot.lane.b32.xlu0 %v5330, 64
    %v5345 = vpop.permute.xlu0 %5344
    %v5351 = vadd.f32 %v5321, %v5337
    %v5352 = vadd.f32 %v5322, %v5339
    %v5353 = vadd.f32 %v5323, %v5341
    %v5354 = vadd.f32 %v5324, %v5343
    %v5355 = vadd.f32 %v5325, %v5345
    %v5356 = vadd.f32 %v5351, %v3271
    %v5357 = vadd.f32 %v5352, %v3271
    %v5358 = vadd.f32 %v5353, %v3271
    %v5359 = vadd.f32 %v5354, %v3271
    %v5360 = vadd.f32 %v5355, %v3271
    %v5361 = vmax.f32 %v5356, 0.0
    %v5362 = vmax.f32 %v5357, 0.0
    %v5363 = vmax.f32 %v5358, 0.0
    %v5364 = vmax.f32 %v5359, 0.0
    %v5365 = vmax.f32 %v5360, 0.0
    %5371 = vrot.lane.b32.xlu0 %v5361, 64
    %v5372 = vpop.permute.xlu0 %5371
    %5373 = vrot.lane.b32.xlu0 %v5362, 64
    %v5374 = vpop.permute.xlu0 %5373
    %5375 = vrot.lane.b32.xlu0 %v5363, 64
    %v5376 = vpop.permute.xlu0 %5375
    %5377 = vrot.lane.b32.xlu0 %v5364, 64
    %v5378 = vpop.permute.xlu0 %5377
    %5379 = vrot.lane.b32.xlu0 %v5365, 64
    %v5380 = vpop.permute.xlu0 %5379
    %5386 = vst.msk [vmem:[#allocation3 + $0x28] sm:$0xff] %vm3484, %v5372
    %5387 = vst.msk [vmem:[#allocation3 + $0x90] sm:$0xff] %vm3484, %v5374
    %5388 = vst.msk [vmem:[#allocation3 + $0xf8] sm:$0xff] %vm3484, %v5376
    %5389 = vst.msk [vmem:[#allocation3 + $0x160] sm:$0xff] %vm3484, %v5378
    %5390 = vst.msk [vmem:[#allocation3 + $0x1c8] sm:$0xff] %vm3484, %v5380
    %v5391 = vld [vmem:[#allocation2 + $0x398] sm:$0xff]
    %v5392 = vld [vmem:[#allocation2 + $0x3a0] sm:$0xff]
    %v5393 = vld [vmem:[#allocation2 + $0x3a8] sm:$0xff]
    %v5394 = vld [vmem:[#allocation2 + $0x3b0] sm:$0xff]
    %v5395 = vld [vmem:[#allocation2 + $0x3b8] sm:$0xff]
    %v5396 = vld [vmem:[#allocation2 + $0x3c0] sm:$0xff]
    %v5397 = vld [vmem:[#allocation2 + $0x3c8] sm:$0xff]
    %v5398 = vld [vmem:[#allocation2 + $0x3d0] sm:$0xff]
    %v5399 = vld [vmem:[#allocation2 + $0x3d8] sm:$0xff]
    %v5400 = vld [vmem:[#allocation2 + $0x3e0] sm:$0xff]
    %5406 = vrot.lane.b32.xlu0 %v5396, 96
    %v5407 = vpop.permute.xlu0 %5406
    %5408 = vrot.lane.b32.xlu0 %v5397, 96
    %v5409 = vpop.permute.xlu0 %5408
    %5410 = vrot.lane.b32.xlu0 %v5398, 96
    %v5411 = vpop.permute.xlu0 %5410
    %5412 = vrot.lane.b32.xlu0 %v5399, 96
    %v5413 = vpop.permute.xlu0 %5412
    %5414 = vrot.lane.b32.xlu0 %v5400, 96
    %v5415 = vpop.permute.xlu0 %5414
    %v5421 = vadd.f32 %v5391, %v5407
    %v5422 = vadd.f32 %v5392, %v5409
    %v5423 = vadd.f32 %v5393, %v5411
    %v5424 = vadd.f32 %v5394, %v5413
    %v5425 = vadd.f32 %v5395, %v5415
    %v5426 = vld [vmem:[#allocation2 + $0x3e8] sm:$0xff]
    %v5427 = vld [vmem:[#allocation2 + $0x3f0] sm:$0xff]
    %v5428 = vld [vmem:[#allocation2 + $0x3f8] sm:$0xff]
    %v5429 = vld [vmem:[#allocation2 + $0x400] sm:$0xff]
    %v5430 = vld [vmem:[#allocation2 + $0x408] sm:$0xff]
    %5436 = vrot.lane.b32.xlu0 %v5426, 64
    %v5437 = vpop.permute.xlu0 %5436
    %5438 = vrot.lane.b32.xlu0 %v5427, 64
    %v5439 = vpop.permute.xlu0 %5438
    %5440 = vrot.lane.b32.xlu0 %v5428, 64
    %v5441 = vpop.permute.xlu0 %5440
    %5442 = vrot.lane.b32.xlu0 %v5429, 64
    %v5443 = vpop.permute.xlu0 %5442
    %5444 = vrot.lane.b32.xlu0 %v5430, 64
    %v5445 = vpop.permute.xlu0 %5444
    %v5451 = vadd.f32 %v5421, %v5437
    %v5452 = vadd.f32 %v5422, %v5439
    %v5453 = vadd.f32 %v5423, %v5441
    %v5454 = vadd.f32 %v5424, %v5443
    %v5455 = vadd.f32 %v5425, %v5445
    %v5456 = vadd.f32 %v5451, %v3271
    %v5457 = vadd.f32 %v5452, %v3271
    %v5458 = vadd.f32 %v5453, %v3271
    %v5459 = vadd.f32 %v5454, %v3271
    %v5460 = vadd.f32 %v5455, %v3271
    %v5461 = vmax.f32 %v5456, 0.0
    %v5462 = vmax.f32 %v5457, 0.0
    %v5463 = vmax.f32 %v5458, 0.0
    %v5464 = vmax.f32 %v5459, 0.0
    %v5465 = vmax.f32 %v5460, 0.0
    %5471 = vrot.lane.b32.xlu0 %v5461, 96
    %v5472 = vpop.permute.xlu0 %5471
    %5473 = vrot.lane.b32.xlu0 %v5462, 96
    %v5474 = vpop.permute.xlu0 %5473
    %5475 = vrot.lane.b32.xlu0 %v5463, 96
    %v5476 = vpop.permute.xlu0 %5475
    %5477 = vrot.lane.b32.xlu0 %v5464, 96
    %v5478 = vpop.permute.xlu0 %5477
    %5479 = vrot.lane.b32.xlu0 %v5465, 96
    %v5480 = vpop.permute.xlu0 %5479
    %5486 = vst.msk [vmem:[#allocation3 + $0x28] sm:$0xff] %vm3585, %v5472
    %5487 = vst.msk [vmem:[#allocation3 + $0x90] sm:$0xff] %vm3585, %v5474
    %5488 = vst.msk [vmem:[#allocation3 + $0xf8] sm:$0xff] %vm3585, %v5476
    %5489 = vst.msk [vmem:[#allocation3 + $0x160] sm:$0xff] %vm3585, %v5478
    %5490 = vst.msk [vmem:[#allocation3 + $0x1c8] sm:$0xff] %vm3585, %v5480
    %v5491 = vld [vmem:[#allocation2 + $0x3c0] sm:$0xff]
    %v5492 = vld [vmem:[#allocation2 + $0x3c8] sm:$0xff]
    %v5493 = vld [vmem:[#allocation2 + $0x3d0] sm:$0xff]
    %v5494 = vld [vmem:[#allocation2 + $0x3d8] sm:$0xff]
    %v5495 = vld [vmem:[#allocation2 + $0x3e0] sm:$0xff]
    %v5496 = vld [vmem:[#allocation2 + $0x3e8] sm:$0xff]
    %v5497 = vld [vmem:[#allocation2 + $0x3f0] sm:$0xff]
    %v5498 = vld [vmem:[#allocation2 + $0x3f8] sm:$0xff]
    %v5499 = vld [vmem:[#allocation2 + $0x400] sm:$0xff]
    %v5500 = vld [vmem:[#allocation2 + $0x408] sm:$0xff]
    %5506 = vrot.lane.b32.xlu0 %v5496, 96
    %v5507 = vpop.permute.xlu0 %5506
    %5508 = vrot.lane.b32.xlu0 %v5497, 96
    %v5509 = vpop.permute.xlu0 %5508
    %5510 = vrot.lane.b32.xlu0 %v5498, 96
    %v5511 = vpop.permute.xlu0 %5510
    %5512 = vrot.lane.b32.xlu0 %v5499, 96
    %v5513 = vpop.permute.xlu0 %5512
    %5514 = vrot.lane.b32.xlu0 %v5500, 96
    %v5515 = vpop.permute.xlu0 %5514
    %v5521 = vadd.f32 %v5491, %v5507
    %v5522 = vadd.f32 %v5492, %v5509
    %v5523 = vadd.f32 %v5493, %v5511
    %v5524 = vadd.f32 %v5494, %v5513
    %v5525 = vadd.f32 %v5495, %v5515
    %v5526 = vld [vmem:[#allocation2 + $0x410] sm:$0xff]
    %v5527 = vld [vmem:[#allocation2 + $0x418] sm:$0xff]
    %v5528 = vld [vmem:[#allocation2 + $0x420] sm:$0xff]
    %v5529 = vld [vmem:[#allocation2 + $0x428] sm:$0xff]
    %v5530 = vld [vmem:[#allocation2 + $0x430] sm:$0xff]
    %5536 = vrot.lane.b32.xlu0 %v5526, 64
    %v5537 = vpop.permute.xlu0 %5536
    %5538 = vrot.lane.b32.xlu0 %v5527, 64
    %v5539 = vpop.permute.xlu0 %5538
    %5540 = vrot.lane.b32.xlu0 %v5528, 64
    %v5541 = vpop.permute.xlu0 %5540
    %5542 = vrot.lane.b32.xlu0 %v5529, 64
    %v5543 = vpop.permute.xlu0 %5542
    %5544 = vrot.lane.b32.xlu0 %v5530, 64
    %v5545 = vpop.permute.xlu0 %5544
    %v5551 = vadd.f32 %v5521, %v5537
    %v5552 = vadd.f32 %v5522, %v5539
    %v5553 = vadd.f32 %v5523, %v5541
    %v5554 = vadd.f32 %v5524, %v5543
    %v5555 = vadd.f32 %v5525, %v5545
    %v5556 = vadd.f32 %v5551, %v3271
    %v5557 = vadd.f32 %v5552, %v3271
    %v5558 = vadd.f32 %v5553, %v3271
    %v5559 = vadd.f32 %v5554, %v3271
    %v5560 = vadd.f32 %v5555, %v3271
    %v5561 = vmax.f32 %v5556, 0.0
    %v5562 = vmax.f32 %v5557, 0.0
    %v5563 = vmax.f32 %v5558, 0.0
    %v5564 = vmax.f32 %v5559, 0.0
    %v5565 = vmax.f32 %v5560, 0.0
    %5566 = vst.msk [vmem:[#allocation3 + $0x30] sm:$0xff] %vm3282, %v5561
    %5567 = vst.msk [vmem:[#allocation3 + $0x98] sm:$0xff] %vm3282, %v5562
    %5568 = vst.msk [vmem:[#allocation3 + $0x100] sm:$0xff] %vm3282, %v5563
    %5569 = vst.msk [vmem:[#allocation3 + $0x168] sm:$0xff] %vm3282, %v5564
    %5570 = vst.msk [vmem:[#allocation3 + $0x1d0] sm:$0xff] %vm3282, %v5565
    %v5571 = vld [vmem:[#allocation2 + $0x3e8] sm:$0xff]
    %v5572 = vld [vmem:[#allocation2 + $0x3f0] sm:$0xff]
    %v5573 = vld [vmem:[#allocation2 + $0x3f8] sm:$0xff]
    %v5574 = vld [vmem:[#allocation2 + $0x400] sm:$0xff]
    %v5575 = vld [vmem:[#allocation2 + $0x408] sm:$0xff]
    %v5576 = vld [vmem:[#allocation2 + $0x410] sm:$0xff]
    %v5577 = vld [vmem:[#allocation2 + $0x418] sm:$0xff]
    %v5578 = vld [vmem:[#allocation2 + $0x420] sm:$0xff]
    %v5579 = vld [vmem:[#allocation2 + $0x428] sm:$0xff]
    %v5580 = vld [vmem:[#allocation2 + $0x430] sm:$0xff]
    %5586 = vrot.lane.b32.xlu0 %v5576, 96
    %v5587 = vpop.permute.xlu0 %5586
    %5588 = vrot.lane.b32.xlu0 %v5577, 96
    %v5589 = vpop.permute.xlu0 %5588
    %5590 = vrot.lane.b32.xlu0 %v5578, 96
    %v5591 = vpop.permute.xlu0 %5590
    %5592 = vrot.lane.b32.xlu0 %v5579, 96
    %v5593 = vpop.permute.xlu0 %5592
    %5594 = vrot.lane.b32.xlu0 %v5580, 96
    %v5595 = vpop.permute.xlu0 %5594
    %v5601 = vadd.f32 %v5571, %v5587
    %v5602 = vadd.f32 %v5572, %v5589
    %v5603 = vadd.f32 %v5573, %v5591
    %v5604 = vadd.f32 %v5574, %v5593
    %v5605 = vadd.f32 %v5575, %v5595
    %v5606 = vld [vmem:[#allocation2 + $0x438] sm:$0xff]
    %v5607 = vld [vmem:[#allocation2 + $0x440] sm:$0xff]
    %v5608 = vld [vmem:[#allocation2 + $0x448] sm:$0xff]
    %v5609 = vld [vmem:[#allocation2 + $0x450] sm:$0xff]
    %v5610 = vld [vmem:[#allocation2 + $0x458] sm:$0xff]
    %5616 = vrot.lane.b32.xlu0 %v5606, 64
    %v5617 = vpop.permute.xlu0 %5616
    %5618 = vrot.lane.b32.xlu0 %v5607, 64
    %v5619 = vpop.permute.xlu0 %5618
    %5620 = vrot.lane.b32.xlu0 %v5608, 64
    %v5621 = vpop.permute.xlu0 %5620
    %5622 = vrot.lane.b32.xlu0 %v5609, 64
    %v5623 = vpop.permute.xlu0 %5622
    %5624 = vrot.lane.b32.xlu0 %v5610, 64
    %v5625 = vpop.permute.xlu0 %5624
    %v5631 = vadd.f32 %v5601, %v5617
    %v5632 = vadd.f32 %v5602, %v5619
    %v5633 = vadd.f32 %v5603, %v5621
    %v5634 = vadd.f32 %v5604, %v5623
    %v5635 = vadd.f32 %v5605, %v5625
    %v5636 = vadd.f32 %v5631, %v3271
    %v5637 = vadd.f32 %v5632, %v3271
    %v5638 = vadd.f32 %v5633, %v3271
    %v5639 = vadd.f32 %v5634, %v3271
    %v5640 = vadd.f32 %v5635, %v3271
    %v5641 = vmax.f32 %v5636, 0.0
    %v5642 = vmax.f32 %v5637, 0.0
    %v5643 = vmax.f32 %v5638, 0.0
    %v5644 = vmax.f32 %v5639, 0.0
    %v5645 = vmax.f32 %v5640, 0.0
    %5651 = vrot.lane.b32.xlu0 %v5641, 32
    %v5652 = vpop.permute.xlu0 %5651
    %5653 = vrot.lane.b32.xlu0 %v5642, 32
    %v5654 = vpop.permute.xlu0 %5653
    %5655 = vrot.lane.b32.xlu0 %v5643, 32
    %v5656 = vpop.permute.xlu0 %5655
    %5657 = vrot.lane.b32.xlu0 %v5644, 32
    %v5658 = vpop.permute.xlu0 %5657
    %5659 = vrot.lane.b32.xlu0 %v5645, 32
    %v5660 = vpop.permute.xlu0 %5659
    %5666 = vst.msk [vmem:[#allocation3 + $0x30] sm:$0xff] %vm3383, %v5652
    %5667 = vst.msk [vmem:[#allocation3 + $0x98] sm:$0xff] %vm3383, %v5654
    %5668 = vst.msk [vmem:[#allocation3 + $0x100] sm:$0xff] %vm3383, %v5656
    %5669 = vst.msk [vmem:[#allocation3 + $0x168] sm:$0xff] %vm3383, %v5658
    %5670 = vst.msk [vmem:[#allocation3 + $0x1d0] sm:$0xff] %vm3383, %v5660
    %v5671 = vld [vmem:[#allocation2 + $0x410] sm:$0xff]
    %v5672 = vld [vmem:[#allocation2 + $0x418] sm:$0xff]
    %v5673 = vld [vmem:[#allocation2 + $0x420] sm:$0xff]
    %v5674 = vld [vmem:[#allocation2 + $0x428] sm:$0xff]
    %v5675 = vld [vmem:[#allocation2 + $0x430] sm:$0xff]
    %v5676 = vld [vmem:[#allocation2 + $0x438] sm:$0xff]
    %v5677 = vld [vmem:[#allocation2 + $0x440] sm:$0xff]
    %v5678 = vld [vmem:[#allocation2 + $0x448] sm:$0xff]
    %v5679 = vld [vmem:[#allocation2 + $0x450] sm:$0xff]
    %v5680 = vld [vmem:[#allocation2 + $0x458] sm:$0xff]
    %5686 = vrot.lane.b32.xlu0 %v5676, 96
    %v5687 = vpop.permute.xlu0 %5686
    %5688 = vrot.lane.b32.xlu0 %v5677, 96
    %v5689 = vpop.permute.xlu0 %5688
    %5690 = vrot.lane.b32.xlu0 %v5678, 96
    %v5691 = vpop.permute.xlu0 %5690
    %5692 = vrot.lane.b32.xlu0 %v5679, 96
    %v5693 = vpop.permute.xlu0 %5692
    %5694 = vrot.lane.b32.xlu0 %v5680, 96
    %v5695 = vpop.permute.xlu0 %5694
    %v5701 = vadd.f32 %v5671, %v5687
    %v5702 = vadd.f32 %v5672, %v5689
    %v5703 = vadd.f32 %v5673, %v5691
    %v5704 = vadd.f32 %v5674, %v5693
    %v5705 = vadd.f32 %v5675, %v5695
    %v5706 = vld [vmem:[#allocation2 + $0x460] sm:$0xff]
    %v5707 = vld [vmem:[#allocation2 + $0x468] sm:$0xff]
    %v5708 = vld [vmem:[#allocation2 + $0x470] sm:$0xff]
    %v5709 = vld [vmem:[#allocation2 + $0x478] sm:$0xff]
    %v5710 = vld [vmem:[#allocation2 + $0x480] sm:$0xff]
    %5716 = vrot.lane.b32.xlu0 %v5706, 64
    %v5717 = vpop.permute.xlu0 %5716
    %5718 = vrot.lane.b32.xlu0 %v5707, 64
    %v5719 = vpop.permute.xlu0 %5718
    %5720 = vrot.lane.b32.xlu0 %v5708, 64
    %v5721 = vpop.permute.xlu0 %5720
    %5722 = vrot.lane.b32.xlu0 %v5709, 64
    %v5723 = vpop.permute.xlu0 %5722
    %5724 = vrot.lane.b32.xlu0 %v5710, 64
    %v5725 = vpop.permute.xlu0 %5724
    %v5731 = vadd.f32 %v5701, %v5717
    %v5732 = vadd.f32 %v5702, %v5719
    %v5733 = vadd.f32 %v5703, %v5721
    %v5734 = vadd.f32 %v5704, %v5723
    %v5735 = vadd.f32 %v5705, %v5725
    %v5736 = vadd.f32 %v5731, %v3271
    %v5737 = vadd.f32 %v5732, %v3271
    %v5738 = vadd.f32 %v5733, %v3271
    %v5739 = vadd.f32 %v5734, %v3271
    %v5740 = vadd.f32 %v5735, %v3271
    %v5741 = vmax.f32 %v5736, 0.0
    %v5742 = vmax.f32 %v5737, 0.0
    %v5743 = vmax.f32 %v5738, 0.0
    %v5744 = vmax.f32 %v5739, 0.0
    %v5745 = vmax.f32 %v5740, 0.0
    %5751 = vrot.lane.b32.xlu0 %v5741, 64
    %v5752 = vpop.permute.xlu0 %5751
    %5753 = vrot.lane.b32.xlu0 %v5742, 64
    %v5754 = vpop.permute.xlu0 %5753
    %5755 = vrot.lane.b32.xlu0 %v5743, 64
    %v5756 = vpop.permute.xlu0 %5755
    %5757 = vrot.lane.b32.xlu0 %v5744, 64
    %v5758 = vpop.permute.xlu0 %5757
    %5759 = vrot.lane.b32.xlu0 %v5745, 64
    %v5760 = vpop.permute.xlu0 %5759
    %5766 = vst.msk [vmem:[#allocation3 + $0x30] sm:$0xff] %vm3484, %v5752
    %5767 = vst.msk [vmem:[#allocation3 + $0x98] sm:$0xff] %vm3484, %v5754
    %5768 = vst.msk [vmem:[#allocation3 + $0x100] sm:$0xff] %vm3484, %v5756
    %5769 = vst.msk [vmem:[#allocation3 + $0x168] sm:$0xff] %vm3484, %v5758
    %5770 = vst.msk [vmem:[#allocation3 + $0x1d0] sm:$0xff] %vm3484, %v5760
    %v5771 = vld [vmem:[#allocation2 + $0x438] sm:$0xff]
    %v5772 = vld [vmem:[#allocation2 + $0x440] sm:$0xff]
    %v5773 = vld [vmem:[#allocation2 + $0x448] sm:$0xff]
    %v5774 = vld [vmem:[#allocation2 + $0x450] sm:$0xff]
    %v5775 = vld [vmem:[#allocation2 + $0x458] sm:$0xff]
    %v5776 = vld [vmem:[#allocation2 + $0x460] sm:$0xff]
    %v5777 = vld [vmem:[#allocation2 + $0x468] sm:$0xff]
    %v5778 = vld [vmem:[#allocation2 + $0x470] sm:$0xff]
    %v5779 = vld [vmem:[#allocation2 + $0x478] sm:$0xff]
    %v5780 = vld [vmem:[#allocation2 + $0x480] sm:$0xff]
    %5786 = vrot.lane.b32.xlu0 %v5776, 96
    %v5787 = vpop.permute.xlu0 %5786
    %5788 = vrot.lane.b32.xlu0 %v5777, 96
    %v5789 = vpop.permute.xlu0 %5788
    %5790 = vrot.lane.b32.xlu0 %v5778, 96
    %v5791 = vpop.permute.xlu0 %5790
    %5792 = vrot.lane.b32.xlu0 %v5779, 96
    %v5793 = vpop.permute.xlu0 %5792
    %5794 = vrot.lane.b32.xlu0 %v5780, 96
    %v5795 = vpop.permute.xlu0 %5794
    %v5801 = vadd.f32 %v5771, %v5787
    %v5802 = vadd.f32 %v5772, %v5789
    %v5803 = vadd.f32 %v5773, %v5791
    %v5804 = vadd.f32 %v5774, %v5793
    %v5805 = vadd.f32 %v5775, %v5795
    %v5806 = vld [vmem:[#allocation2 + $0x488] sm:$0xff]
    %v5807 = vld [vmem:[#allocation2 + $0x490] sm:$0xff]
    %v5808 = vld [vmem:[#allocation2 + $0x498] sm:$0xff]
    %v5809 = vld [vmem:[#allocation2 + $0x4a0] sm:$0xff]
    %v5810 = vld [vmem:[#allocation2 + $0x4a8] sm:$0xff]
    %5816 = vrot.lane.b32.xlu0 %v5806, 64
    %v5817 = vpop.permute.xlu0 %5816
    %5818 = vrot.lane.b32.xlu0 %v5807, 64
    %v5819 = vpop.permute.xlu0 %5818
    %5820 = vrot.lane.b32.xlu0 %v5808, 64
    %v5821 = vpop.permute.xlu0 %5820
    %5822 = vrot.lane.b32.xlu0 %v5809, 64
    %v5823 = vpop.permute.xlu0 %5822
    %5824 = vrot.lane.b32.xlu0 %v5810, 64
    %v5825 = vpop.permute.xlu0 %5824
    %v5831 = vadd.f32 %v5801, %v5817
    %v5832 = vadd.f32 %v5802, %v5819
    %v5833 = vadd.f32 %v5803, %v5821
    %v5834 = vadd.f32 %v5804, %v5823
    %v5835 = vadd.f32 %v5805, %v5825
    %v5836 = vadd.f32 %v5831, %v3271
    %v5837 = vadd.f32 %v5832, %v3271
    %v5838 = vadd.f32 %v5833, %v3271
    %v5839 = vadd.f32 %v5834, %v3271
    %v5840 = vadd.f32 %v5835, %v3271
    %v5841 = vmax.f32 %v5836, 0.0
    %v5842 = vmax.f32 %v5837, 0.0
    %v5843 = vmax.f32 %v5838, 0.0
    %v5844 = vmax.f32 %v5839, 0.0
    %v5845 = vmax.f32 %v5840, 0.0
    %5851 = vrot.lane.b32.xlu0 %v5841, 96
    %v5852 = vpop.permute.xlu0 %5851
    %5853 = vrot.lane.b32.xlu0 %v5842, 96
    %v5854 = vpop.permute.xlu0 %5853
    %5855 = vrot.lane.b32.xlu0 %v5843, 96
    %v5856 = vpop.permute.xlu0 %5855
    %5857 = vrot.lane.b32.xlu0 %v5844, 96
    %v5858 = vpop.permute.xlu0 %5857
    %5859 = vrot.lane.b32.xlu0 %v5845, 96
    %v5860 = vpop.permute.xlu0 %5859
    %5866 = vst.msk [vmem:[#allocation3 + $0x30] sm:$0xff] %vm3585, %v5852
    %5867 = vst.msk [vmem:[#allocation3 + $0x98] sm:$0xff] %vm3585, %v5854
    %5868 = vst.msk [vmem:[#allocation3 + $0x100] sm:$0xff] %vm3585, %v5856
    %5869 = vst.msk [vmem:[#allocation3 + $0x168] sm:$0xff] %vm3585, %v5858
    %5870 = vst.msk [vmem:[#allocation3 + $0x1d0] sm:$0xff] %vm3585, %v5860
    %v5871 = vld [vmem:[#allocation2 + $0x460] sm:$0xff]
    %v5872 = vld [vmem:[#allocation2 + $0x468] sm:$0xff]
    %v5873 = vld [vmem:[#allocation2 + $0x470] sm:$0xff]
    %v5874 = vld [vmem:[#allocation2 + $0x478] sm:$0xff]
    %v5875 = vld [vmem:[#allocation2 + $0x480] sm:$0xff]
    %v5876 = vld [vmem:[#allocation2 + $0x488] sm:$0xff]
    %v5877 = vld [vmem:[#allocation2 + $0x490] sm:$0xff]
    %v5878 = vld [vmem:[#allocation2 + $0x498] sm:$0xff]
    %v5879 = vld [vmem:[#allocation2 + $0x4a0] sm:$0xff]
    %v5880 = vld [vmem:[#allocation2 + $0x4a8] sm:$0xff]
    %5886 = vrot.lane.b32.xlu0 %v5876, 96
    %v5887 = vpop.permute.xlu0 %5886
    %5888 = vrot.lane.b32.xlu0 %v5877, 96
    %v5889 = vpop.permute.xlu0 %5888
    %5890 = vrot.lane.b32.xlu0 %v5878, 96
    %v5891 = vpop.permute.xlu0 %5890
    %5892 = vrot.lane.b32.xlu0 %v5879, 96
    %v5893 = vpop.permute.xlu0 %5892
    %5894 = vrot.lane.b32.xlu0 %v5880, 96
    %v5895 = vpop.permute.xlu0 %5894
    %v5901 = vadd.f32 %v5871, %v5887
    %v5902 = vadd.f32 %v5872, %v5889
    %v5903 = vadd.f32 %v5873, %v5891
    %v5904 = vadd.f32 %v5874, %v5893
    %v5905 = vadd.f32 %v5875, %v5895
    %v5906 = vld [vmem:[#allocation2 + $0x4b0] sm:$0xff]
    %v5907 = vld [vmem:[#allocation2 + $0x4b8] sm:$0xff]
    %v5908 = vld [vmem:[#allocation2 + $0x4c0] sm:$0xff]
    %v5909 = vld [vmem:[#allocation2 + $0x4c8] sm:$0xff]
    %v5910 = vld [vmem:[#allocation2 + $0x4d0] sm:$0xff]
    %5916 = vrot.lane.b32.xlu0 %v5906, 64
    %v5917 = vpop.permute.xlu0 %5916
    %5918 = vrot.lane.b32.xlu0 %v5907, 64
    %v5919 = vpop.permute.xlu0 %5918
    %5920 = vrot.lane.b32.xlu0 %v5908, 64
    %v5921 = vpop.permute.xlu0 %5920
    %5922 = vrot.lane.b32.xlu0 %v5909, 64
    %v5923 = vpop.permute.xlu0 %5922
    %5924 = vrot.lane.b32.xlu0 %v5910, 64
    %v5925 = vpop.permute.xlu0 %5924
    %v5931 = vadd.f32 %v5901, %v5917
    %v5932 = vadd.f32 %v5902, %v5919
    %v5933 = vadd.f32 %v5903, %v5921
    %v5934 = vadd.f32 %v5904, %v5923
    %v5935 = vadd.f32 %v5905, %v5925
    %v5936 = vadd.f32 %v5931, %v3271
    %v5937 = vadd.f32 %v5932, %v3271
    %v5938 = vadd.f32 %v5933, %v3271
    %v5939 = vadd.f32 %v5934, %v3271
    %v5940 = vadd.f32 %v5935, %v3271
    %v5941 = vmax.f32 %v5936, 0.0
    %v5942 = vmax.f32 %v5937, 0.0
    %v5943 = vmax.f32 %v5938, 0.0
    %v5944 = vmax.f32 %v5939, 0.0
    %v5945 = vmax.f32 %v5940, 0.0
    %5946 = vst.msk [vmem:[#allocation3 + $0x38] sm:$0xff] %vm3282, %v5941
    %5947 = vst.msk [vmem:[#allocation3 + $0xa0] sm:$0xff] %vm3282, %v5942
    %5948 = vst.msk [vmem:[#allocation3 + $0x108] sm:$0xff] %vm3282, %v5943
    %5949 = vst.msk [vmem:[#allocation3 + $0x170] sm:$0xff] %vm3282, %v5944
    %5950 = vst.msk [vmem:[#allocation3 + $0x1d8] sm:$0xff] %vm3282, %v5945
    %v5951 = vld [vmem:[#allocation2 + $0x488] sm:$0xff]
    %v5952 = vld [vmem:[#allocation2 + $0x490] sm:$0xff]
    %v5953 = vld [vmem:[#allocation2 + $0x498] sm:$0xff]
    %v5954 = vld [vmem:[#allocation2 + $0x4a0] sm:$0xff]
    %v5955 = vld [vmem:[#allocation2 + $0x4a8] sm:$0xff]
    %v5956 = vld [vmem:[#allocation2 + $0x4b0] sm:$0xff]
    %v5957 = vld [vmem:[#allocation2 + $0x4b8] sm:$0xff]
    %v5958 = vld [vmem:[#allocation2 + $0x4c0] sm:$0xff]
    %v5959 = vld [vmem:[#allocation2 + $0x4c8] sm:$0xff]
    %v5960 = vld [vmem:[#allocation2 + $0x4d0] sm:$0xff]
    %5966 = vrot.lane.b32.xlu0 %v5956, 96
    %v5967 = vpop.permute.xlu0 %5966
    %5968 = vrot.lane.b32.xlu0 %v5957, 96
    %v5969 = vpop.permute.xlu0 %5968
    %5970 = vrot.lane.b32.xlu0 %v5958, 96
    %v5971 = vpop.permute.xlu0 %5970
    %5972 = vrot.lane.b32.xlu0 %v5959, 96
    %v5973 = vpop.permute.xlu0 %5972
    %5974 = vrot.lane.b32.xlu0 %v5960, 96
    %v5975 = vpop.permute.xlu0 %5974
    %v5981 = vadd.f32 %v5951, %v5967
    %v5982 = vadd.f32 %v5952, %v5969
    %v5983 = vadd.f32 %v5953, %v5971
    %v5984 = vadd.f32 %v5954, %v5973
    %v5985 = vadd.f32 %v5955, %v5975
    %v5986 = vld [vmem:[#allocation2 + $0x4d8] sm:$0xff]
    %v5987 = vld [vmem:[#allocation2 + $0x4e0] sm:$0xff]
    %v5988 = vld [vmem:[#allocation2 + $0x4e8] sm:$0xff]
    %v5989 = vld [vmem:[#allocation2 + $0x4f0] sm:$0xff]
    %v5990 = vld [vmem:[#allocation2 + $0x4f8] sm:$0xff]
    %5996 = vrot.lane.b32.xlu0 %v5986, 64
    %v5997 = vpop.permute.xlu0 %5996
    %5998 = vrot.lane.b32.xlu0 %v5987, 64
    %v5999 = vpop.permute.xlu0 %5998
    %6000 = vrot.lane.b32.xlu0 %v5988, 64
    %v6001 = vpop.permute.xlu0 %6000
    %6002 = vrot.lane.b32.xlu0 %v5989, 64
    %v6003 = vpop.permute.xlu0 %6002
    %6004 = vrot.lane.b32.xlu0 %v5990, 64
    %v6005 = vpop.permute.xlu0 %6004
    %v6011 = vadd.f32 %v5981, %v5997
    %v6012 = vadd.f32 %v5982, %v5999
    %v6013 = vadd.f32 %v5983, %v6001
    %v6014 = vadd.f32 %v5984, %v6003
    %v6015 = vadd.f32 %v5985, %v6005
    %v6016 = vadd.f32 %v6011, %v3271
    %v6017 = vadd.f32 %v6012, %v3271
    %v6018 = vadd.f32 %v6013, %v3271
    %v6019 = vadd.f32 %v6014, %v3271
    %v6020 = vadd.f32 %v6015, %v3271
    %v6021 = vmax.f32 %v6016, 0.0
    %v6022 = vmax.f32 %v6017, 0.0
    %v6023 = vmax.f32 %v6018, 0.0
    %v6024 = vmax.f32 %v6019, 0.0
    %v6025 = vmax.f32 %v6020, 0.0
    %6031 = vrot.lane.b32.xlu0 %v6021, 32
    %v6032 = vpop.permute.xlu0 %6031
    %6033 = vrot.lane.b32.xlu0 %v6022, 32
    %v6034 = vpop.permute.xlu0 %6033
    %6035 = vrot.lane.b32.xlu0 %v6023, 32
    %v6036 = vpop.permute.xlu0 %6035
    %6037 = vrot.lane.b32.xlu0 %v6024, 32
    %v6038 = vpop.permute.xlu0 %6037
    %6039 = vrot.lane.b32.xlu0 %v6025, 32
    %v6040 = vpop.permute.xlu0 %6039
    %6046 = vst.msk [vmem:[#allocation3 + $0x38] sm:$0xff] %vm3383, %v6032
    %6047 = vst.msk [vmem:[#allocation3 + $0xa0] sm:$0xff] %vm3383, %v6034
    %6048 = vst.msk [vmem:[#allocation3 + $0x108] sm:$0xff] %vm3383, %v6036
    %6049 = vst.msk [vmem:[#allocation3 + $0x170] sm:$0xff] %vm3383, %v6038
    %6050 = vst.msk [vmem:[#allocation3 + $0x1d8] sm:$0xff] %vm3383, %v6040
    %v6051 = vld [vmem:[#allocation2 + $0x4b0] sm:$0xff]
    %v6052 = vld [vmem:[#allocation2 + $0x4b8] sm:$0xff]
    %v6053 = vld [vmem:[#allocation2 + $0x4c0] sm:$0xff]
    %v6054 = vld [vmem:[#allocation2 + $0x4c8] sm:$0xff]
    %v6055 = vld [vmem:[#allocation2 + $0x4d0] sm:$0xff]
    %v6056 = vld [vmem:[#allocation2 + $0x4d8] sm:$0xff]
    %v6057 = vld [vmem:[#allocation2 + $0x4e0] sm:$0xff]
    %v6058 = vld [vmem:[#allocation2 + $0x4e8] sm:$0xff]
    %v6059 = vld [vmem:[#allocation2 + $0x4f0] sm:$0xff]
    %v6060 = vld [vmem:[#allocation2 + $0x4f8] sm:$0xff]
    %6066 = vrot.lane.b32.xlu0 %v6056, 96
    %v6067 = vpop.permute.xlu0 %6066
    %6068 = vrot.lane.b32.xlu0 %v6057, 96
    %v6069 = vpop.permute.xlu0 %6068
    %6070 = vrot.lane.b32.xlu0 %v6058, 96
    %v6071 = vpop.permute.xlu0 %6070
    %6072 = vrot.lane.b32.xlu0 %v6059, 96
    %v6073 = vpop.permute.xlu0 %6072
    %6074 = vrot.lane.b32.xlu0 %v6060, 96
    %v6075 = vpop.permute.xlu0 %6074
    %v6081 = vadd.f32 %v6051, %v6067
    %v6082 = vadd.f32 %v6052, %v6069
    %v6083 = vadd.f32 %v6053, %v6071
    %v6084 = vadd.f32 %v6054, %v6073
    %v6085 = vadd.f32 %v6055, %v6075
    %v6086 = vld [vmem:[#allocation2 + $0x500] sm:$0xff]
    %v6087 = vld [vmem:[#allocation2 + $0x508] sm:$0xff]
    %v6088 = vld [vmem:[#allocation2 + $0x510] sm:$0xff]
    %v6089 = vld [vmem:[#allocation2 + $0x518] sm:$0xff]
    %v6090 = vld [vmem:[#allocation2 + $0x520] sm:$0xff]
    %6096 = vrot.lane.b32.xlu0 %v6086, 64
    %v6097 = vpop.permute.xlu0 %6096
    %6098 = vrot.lane.b32.xlu0 %v6087, 64
    %v6099 = vpop.permute.xlu0 %6098
    %6100 = vrot.lane.b32.xlu0 %v6088, 64
    %v6101 = vpop.permute.xlu0 %6100
    %6102 = vrot.lane.b32.xlu0 %v6089, 64
    %v6103 = vpop.permute.xlu0 %6102
    %6104 = vrot.lane.b32.xlu0 %v6090, 64
    %v6105 = vpop.permute.xlu0 %6104
    %v6111 = vadd.f32 %v6081, %v6097
    %v6112 = vadd.f32 %v6082, %v6099
    %v6113 = vadd.f32 %v6083, %v6101
    %v6114 = vadd.f32 %v6084, %v6103
    %v6115 = vadd.f32 %v6085, %v6105
    %v6116 = vadd.f32 %v6111, %v3271
    %v6117 = vadd.f32 %v6112, %v3271
    %v6118 = vadd.f32 %v6113, %v3271
    %v6119 = vadd.f32 %v6114, %v3271
    %v6120 = vadd.f32 %v6115, %v3271
    %v6121 = vmax.f32 %v6116, 0.0
    %v6122 = vmax.f32 %v6117, 0.0
    %v6123 = vmax.f32 %v6118, 0.0
    %v6124 = vmax.f32 %v6119, 0.0
    %v6125 = vmax.f32 %v6120, 0.0
    %6131 = vrot.lane.b32.xlu0 %v6121, 64
    %v6132 = vpop.permute.xlu0 %6131
    %6133 = vrot.lane.b32.xlu0 %v6122, 64
    %v6134 = vpop.permute.xlu0 %6133
    %6135 = vrot.lane.b32.xlu0 %v6123, 64
    %v6136 = vpop.permute.xlu0 %6135
    %6137 = vrot.lane.b32.xlu0 %v6124, 64
    %v6138 = vpop.permute.xlu0 %6137
    %6139 = vrot.lane.b32.xlu0 %v6125, 64
    %v6140 = vpop.permute.xlu0 %6139
    %6146 = vst.msk [vmem:[#allocation3 + $0x38] sm:$0xff] %vm3484, %v6132
    %6147 = vst.msk [vmem:[#allocation3 + $0xa0] sm:$0xff] %vm3484, %v6134
    %6148 = vst.msk [vmem:[#allocation3 + $0x108] sm:$0xff] %vm3484, %v6136
    %6149 = vst.msk [vmem:[#allocation3 + $0x170] sm:$0xff] %vm3484, %v6138
    %6150 = vst.msk [vmem:[#allocation3 + $0x1d8] sm:$0xff] %vm3484, %v6140
    %v6151 = vld [vmem:[#allocation2 + $0x4d8] sm:$0xff]
    %v6152 = vld [vmem:[#allocation2 + $0x4e0] sm:$0xff]
    %v6153 = vld [vmem:[#allocation2 + $0x4e8] sm:$0xff]
    %v6154 = vld [vmem:[#allocation2 + $0x4f0] sm:$0xff]
    %v6155 = vld [vmem:[#allocation2 + $0x4f8] sm:$0xff]
    %v6156 = vld [vmem:[#allocation2 + $0x500] sm:$0xff]
    %v6157 = vld [vmem:[#allocation2 + $0x508] sm:$0xff]
    %v6158 = vld [vmem:[#allocation2 + $0x510] sm:$0xff]
    %v6159 = vld [vmem:[#allocation2 + $0x518] sm:$0xff]
    %v6160 = vld [vmem:[#allocation2 + $0x520] sm:$0xff]
    %6166 = vrot.lane.b32.xlu0 %v6156, 96
    %v6167 = vpop.permute.xlu0 %6166
    %6168 = vrot.lane.b32.xlu0 %v6157, 96
    %v6169 = vpop.permute.xlu0 %6168
    %6170 = vrot.lane.b32.xlu0 %v6158, 96
    %v6171 = vpop.permute.xlu0 %6170
    %6172 = vrot.lane.b32.xlu0 %v6159, 96
    %v6173 = vpop.permute.xlu0 %6172
    %6174 = vrot.lane.b32.xlu0 %v6160, 96
    %v6175 = vpop.permute.xlu0 %6174
    %v6181 = vadd.f32 %v6151, %v6167
    %v6182 = vadd.f32 %v6152, %v6169
    %v6183 = vadd.f32 %v6153, %v6171
    %v6184 = vadd.f32 %v6154, %v6173
    %v6185 = vadd.f32 %v6155, %v6175
    %v6186 = vld [vmem:[#allocation2 + $0x528] sm:$0xff]
    %v6187 = vld [vmem:[#allocation2 + $0x530] sm:$0xff]
    %v6188 = vld [vmem:[#allocation2 + $0x538] sm:$0xff]
    %v6189 = vld [vmem:[#allocation2 + $0x540] sm:$0xff]
    %v6190 = vld [vmem:[#allocation2 + $0x548] sm:$0xff]
    %6196 = vrot.lane.b32.xlu0 %v6186, 64
    %v6197 = vpop.permute.xlu0 %6196
    %6198 = vrot.lane.b32.xlu0 %v6187, 64
    %v6199 = vpop.permute.xlu0 %6198
    %6200 = vrot.lane.b32.xlu0 %v6188, 64
    %v6201 = vpop.permute.xlu0 %6200
    %6202 = vrot.lane.b32.xlu0 %v6189, 64
    %v6203 = vpop.permute.xlu0 %6202
    %6204 = vrot.lane.b32.xlu0 %v6190, 64
    %v6205 = vpop.permute.xlu0 %6204
    %v6211 = vadd.f32 %v6181, %v6197
    %v6212 = vadd.f32 %v6182, %v6199
    %v6213 = vadd.f32 %v6183, %v6201
    %v6214 = vadd.f32 %v6184, %v6203
    %v6215 = vadd.f32 %v6185, %v6205
    %v6216 = vadd.f32 %v6211, %v3271
    %v6217 = vadd.f32 %v6212, %v3271
    %v6218 = vadd.f32 %v6213, %v3271
    %v6219 = vadd.f32 %v6214, %v3271
    %v6220 = vadd.f32 %v6215, %v3271
    %v6221 = vmax.f32 %v6216, 0.0
    %v6222 = vmax.f32 %v6217, 0.0
    %v6223 = vmax.f32 %v6218, 0.0
    %v6224 = vmax.f32 %v6219, 0.0
    %v6225 = vmax.f32 %v6220, 0.0
    %6231 = vrot.lane.b32.xlu0 %v6221, 96
    %v6232 = vpop.permute.xlu0 %6231
    %6233 = vrot.lane.b32.xlu0 %v6222, 96
    %v6234 = vpop.permute.xlu0 %6233
    %6235 = vrot.lane.b32.xlu0 %v6223, 96
    %v6236 = vpop.permute.xlu0 %6235
    %6237 = vrot.lane.b32.xlu0 %v6224, 96
    %v6238 = vpop.permute.xlu0 %6237
    %6239 = vrot.lane.b32.xlu0 %v6225, 96
    %v6240 = vpop.permute.xlu0 %6239
    %6246 = vst.msk [vmem:[#allocation3 + $0x38] sm:$0xff] %vm3585, %v6232
    %6247 = vst.msk [vmem:[#allocation3 + $0xa0] sm:$0xff] %vm3585, %v6234
    %6248 = vst.msk [vmem:[#allocation3 + $0x108] sm:$0xff] %vm3585, %v6236
    %6249 = vst.msk [vmem:[#allocation3 + $0x170] sm:$0xff] %vm3585, %v6238
    %6250 = vst.msk [vmem:[#allocation3 + $0x1d8] sm:$0xff] %vm3585, %v6240
    %v6251 = vld [vmem:[#allocation2 + $0x500] sm:$0xff]
    %v6252 = vld [vmem:[#allocation2 + $0x508] sm:$0xff]
    %v6253 = vld [vmem:[#allocation2 + $0x510] sm:$0xff]
    %v6254 = vld [vmem:[#allocation2 + $0x518] sm:$0xff]
    %v6255 = vld [vmem:[#allocation2 + $0x520] sm:$0xff]
    %v6256 = vld [vmem:[#allocation2 + $0x528] sm:$0xff]
    %v6257 = vld [vmem:[#allocation2 + $0x530] sm:$0xff]
    %v6258 = vld [vmem:[#allocation2 + $0x538] sm:$0xff]
    %v6259 = vld [vmem:[#allocation2 + $0x540] sm:$0xff]
    %v6260 = vld [vmem:[#allocation2 + $0x548] sm:$0xff]
    %6266 = vrot.lane.b32.xlu0 %v6256, 96
    %v6267 = vpop.permute.xlu0 %6266
    %6268 = vrot.lane.b32.xlu0 %v6257, 96
    %v6269 = vpop.permute.xlu0 %6268
    %6270 = vrot.lane.b32.xlu0 %v6258, 96
    %v6271 = vpop.permute.xlu0 %6270
    %6272 = vrot.lane.b32.xlu0 %v6259, 96
    %v6273 = vpop.permute.xlu0 %6272
    %6274 = vrot.lane.b32.xlu0 %v6260, 96
    %v6275 = vpop.permute.xlu0 %6274
    %v6281 = vadd.f32 %v6251, %v6267
    %v6282 = vadd.f32 %v6252, %v6269
    %v6283 = vadd.f32 %v6253, %v6271
    %v6284 = vadd.f32 %v6254, %v6273
    %v6285 = vadd.f32 %v6255, %v6275
    %v6286 = vld [vmem:[#allocation2 + $0x550] sm:$0xff]
    %v6287 = vld [vmem:[#allocation2 + $0x558] sm:$0xff]
    %v6288 = vld [vmem:[#allocation2 + $0x560] sm:$0xff]
    %v6289 = vld [vmem:[#allocation2 + $0x568] sm:$0xff]
    %v6290 = vld [vmem:[#allocation2 + $0x570] sm:$0xff]
    %6296 = vrot.lane.b32.xlu0 %v6286, 64
    %v6297 = vpop.permute.xlu0 %6296
    %6298 = vrot.lane.b32.xlu0 %v6287, 64
    %v6299 = vpop.permute.xlu0 %6298
    %6300 = vrot.lane.b32.xlu0 %v6288, 64
    %v6301 = vpop.permute.xlu0 %6300
    %6302 = vrot.lane.b32.xlu0 %v6289, 64
    %v6303 = vpop.permute.xlu0 %6302
    %6304 = vrot.lane.b32.xlu0 %v6290, 64
    %v6305 = vpop.permute.xlu0 %6304
    %v6311 = vadd.f32 %v6281, %v6297
    %v6312 = vadd.f32 %v6282, %v6299
    %v6313 = vadd.f32 %v6283, %v6301
    %v6314 = vadd.f32 %v6284, %v6303
    %v6315 = vadd.f32 %v6285, %v6305
    %v6316 = vadd.f32 %v6311, %v3271
    %v6317 = vadd.f32 %v6312, %v3271
    %v6318 = vadd.f32 %v6313, %v3271
    %v6319 = vadd.f32 %v6314, %v3271
    %v6320 = vadd.f32 %v6315, %v3271
    %v6321 = vmax.f32 %v6316, 0.0
    %v6322 = vmax.f32 %v6317, 0.0
    %v6323 = vmax.f32 %v6318, 0.0
    %v6324 = vmax.f32 %v6319, 0.0
    %v6325 = vmax.f32 %v6320, 0.0
    %6326 = vst.msk [vmem:[#allocation3 + $0x40] sm:$0xff] %vm3282, %v6321
    %6327 = vst.msk [vmem:[#allocation3 + $0xa8] sm:$0xff] %vm3282, %v6322
    %6328 = vst.msk [vmem:[#allocation3 + $0x110] sm:$0xff] %vm3282, %v6323
    %6329 = vst.msk [vmem:[#allocation3 + $0x178] sm:$0xff] %vm3282, %v6324
    %6330 = vst.msk [vmem:[#allocation3 + $0x1e0] sm:$0xff] %vm3282, %v6325
    %v6331 = vld [vmem:[#allocation2 + $0x528] sm:$0xff]
    %v6332 = vld [vmem:[#allocation2 + $0x530] sm:$0xff]
    %v6333 = vld [vmem:[#allocation2 + $0x538] sm:$0xff]
    %v6334 = vld [vmem:[#allocation2 + $0x540] sm:$0xff]
    %v6335 = vld [vmem:[#allocation2 + $0x548] sm:$0xff]
    %v6336 = vld [vmem:[#allocation2 + $0x550] sm:$0xff]
    %v6337 = vld [vmem:[#allocation2 + $0x558] sm:$0xff]
    %v6338 = vld [vmem:[#allocation2 + $0x560] sm:$0xff]
    %v6339 = vld [vmem:[#allocation2 + $0x568] sm:$0xff]
    %v6340 = vld [vmem:[#allocation2 + $0x570] sm:$0xff]
    %6346 = vrot.lane.b32.xlu0 %v6336, 96
    %v6347 = vpop.permute.xlu0 %6346
    %6348 = vrot.lane.b32.xlu0 %v6337, 96
    %v6349 = vpop.permute.xlu0 %6348
    %6350 = vrot.lane.b32.xlu0 %v6338, 96
    %v6351 = vpop.permute.xlu0 %6350
    %6352 = vrot.lane.b32.xlu0 %v6339, 96
    %v6353 = vpop.permute.xlu0 %6352
    %6354 = vrot.lane.b32.xlu0 %v6340, 96
    %v6355 = vpop.permute.xlu0 %6354
    %v6361 = vadd.f32 %v6331, %v6347
    %v6362 = vadd.f32 %v6332, %v6349
    %v6363 = vadd.f32 %v6333, %v6351
    %v6364 = vadd.f32 %v6334, %v6353
    %v6365 = vadd.f32 %v6335, %v6355
    %v6366 = vld [vmem:[#allocation2 + $0x578] sm:$0xff]
    %v6367 = vld [vmem:[#allocation2 + $0x580] sm:$0xff]
    %v6368 = vld [vmem:[#allocation2 + $0x588] sm:$0xff]
    %v6369 = vld [vmem:[#allocation2 + $0x590] sm:$0xff]
    %v6370 = vld [vmem:[#allocation2 + $0x598] sm:$0xff]
    %6376 = vrot.lane.b32.xlu0 %v6366, 64
    %v6377 = vpop.permute.xlu0 %6376
    %6378 = vrot.lane.b32.xlu0 %v6367, 64
    %v6379 = vpop.permute.xlu0 %6378
    %6380 = vrot.lane.b32.xlu0 %v6368, 64
    %v6381 = vpop.permute.xlu0 %6380
    %6382 = vrot.lane.b32.xlu0 %v6369, 64
    %v6383 = vpop.permute.xlu0 %6382
    %6384 = vrot.lane.b32.xlu0 %v6370, 64
    %v6385 = vpop.permute.xlu0 %6384
    %v6391 = vadd.f32 %v6361, %v6377
    %v6392 = vadd.f32 %v6362, %v6379
    %v6393 = vadd.f32 %v6363, %v6381
    %v6394 = vadd.f32 %v6364, %v6383
    %v6395 = vadd.f32 %v6365, %v6385
    %v6396 = vadd.f32 %v6391, %v3271
    %v6397 = vadd.f32 %v6392, %v3271
    %v6398 = vadd.f32 %v6393, %v3271
    %v6399 = vadd.f32 %v6394, %v3271
    %v6400 = vadd.f32 %v6395, %v3271
    %v6401 = vmax.f32 %v6396, 0.0
    %v6402 = vmax.f32 %v6397, 0.0
    %v6403 = vmax.f32 %v6398, 0.0
    %v6404 = vmax.f32 %v6399, 0.0
    %v6405 = vmax.f32 %v6400, 0.0
    %6411 = vrot.lane.b32.xlu0 %v6401, 32
    %v6412 = vpop.permute.xlu0 %6411
    %6413 = vrot.lane.b32.xlu0 %v6402, 32
    %v6414 = vpop.permute.xlu0 %6413
    %6415 = vrot.lane.b32.xlu0 %v6403, 32
    %v6416 = vpop.permute.xlu0 %6415
    %6417 = vrot.lane.b32.xlu0 %v6404, 32
    %v6418 = vpop.permute.xlu0 %6417
    %6419 = vrot.lane.b32.xlu0 %v6405, 32
    %v6420 = vpop.permute.xlu0 %6419
    %6426 = vst.msk [vmem:[#allocation3 + $0x40] sm:$0xff] %vm3383, %v6412
    %6427 = vst.msk [vmem:[#allocation3 + $0xa8] sm:$0xff] %vm3383, %v6414
    %6428 = vst.msk [vmem:[#allocation3 + $0x110] sm:$0xff] %vm3383, %v6416
    %6429 = vst.msk [vmem:[#allocation3 + $0x178] sm:$0xff] %vm3383, %v6418
    %6430 = vst.msk [vmem:[#allocation3 + $0x1e0] sm:$0xff] %vm3383, %v6420
    %v6431 = vld [vmem:[#allocation2 + $0x550] sm:$0xff]
    %v6432 = vld [vmem:[#allocation2 + $0x558] sm:$0xff]
    %v6433 = vld [vmem:[#allocation2 + $0x560] sm:$0xff]
    %v6434 = vld [vmem:[#allocation2 + $0x568] sm:$0xff]
    %v6435 = vld [vmem:[#allocation2 + $0x570] sm:$0xff]
    %v6436 = vld [vmem:[#allocation2 + $0x578] sm:$0xff]
    %v6437 = vld [vmem:[#allocation2 + $0x580] sm:$0xff]
    %v6438 = vld [vmem:[#allocation2 + $0x588] sm:$0xff]
    %v6439 = vld [vmem:[#allocation2 + $0x590] sm:$0xff]
    %v6440 = vld [vmem:[#allocation2 + $0x598] sm:$0xff]
    %6446 = vrot.lane.b32.xlu0 %v6436, 96
    %v6447 = vpop.permute.xlu0 %6446
    %6448 = vrot.lane.b32.xlu0 %v6437, 96
    %v6449 = vpop.permute.xlu0 %6448
    %6450 = vrot.lane.b32.xlu0 %v6438, 96
    %v6451 = vpop.permute.xlu0 %6450
    %6452 = vrot.lane.b32.xlu0 %v6439, 96
    %v6453 = vpop.permute.xlu0 %6452
    %6454 = vrot.lane.b32.xlu0 %v6440, 96
    %v6455 = vpop.permute.xlu0 %6454
    %v6461 = vadd.f32 %v6431, %v6447
    %v6462 = vadd.f32 %v6432, %v6449
    %v6463 = vadd.f32 %v6433, %v6451
    %v6464 = vadd.f32 %v6434, %v6453
    %v6465 = vadd.f32 %v6435, %v6455
    %v6466 = vld [vmem:[#allocation2 + $0x5a0] sm:$0xff]
    %v6467 = vld [vmem:[#allocation2 + $0x5a8] sm:$0xff]
    %v6468 = vld [vmem:[#allocation2 + $0x5b0] sm:$0xff]
    %v6469 = vld [vmem:[#allocation2 + $0x5b8] sm:$0xff]
    %v6470 = vld [vmem:[#allocation2 + $0x5c0] sm:$0xff]
    %6476 = vrot.lane.b32.xlu0 %v6466, 64
    %v6477 = vpop.permute.xlu0 %6476
    %6478 = vrot.lane.b32.xlu0 %v6467, 64
    %v6479 = vpop.permute.xlu0 %6478
    %6480 = vrot.lane.b32.xlu0 %v6468, 64
    %v6481 = vpop.permute.xlu0 %6480
    %6482 = vrot.lane.b32.xlu0 %v6469, 64
    %v6483 = vpop.permute.xlu0 %6482
    %6484 = vrot.lane.b32.xlu0 %v6470, 64
    %v6485 = vpop.permute.xlu0 %6484
    %v6491 = vadd.f32 %v6461, %v6477
    %v6492 = vadd.f32 %v6462, %v6479
    %v6493 = vadd.f32 %v6463, %v6481
    %v6494 = vadd.f32 %v6464, %v6483
    %v6495 = vadd.f32 %v6465, %v6485
    %v6496 = vadd.f32 %v6491, %v3271
    %v6497 = vadd.f32 %v6492, %v3271
    %v6498 = vadd.f32 %v6493, %v3271
    %v6499 = vadd.f32 %v6494, %v3271
    %v6500 = vadd.f32 %v6495, %v3271
    %v6501 = vmax.f32 %v6496, 0.0
    %v6502 = vmax.f32 %v6497, 0.0
    %v6503 = vmax.f32 %v6498, 0.0
    %v6504 = vmax.f32 %v6499, 0.0
    %v6505 = vmax.f32 %v6500, 0.0
    %6511 = vrot.lane.b32.xlu0 %v6501, 64
    %v6512 = vpop.permute.xlu0 %6511
    %6513 = vrot.lane.b32.xlu0 %v6502, 64
    %v6514 = vpop.permute.xlu0 %6513
    %6515 = vrot.lane.b32.xlu0 %v6503, 64
    %v6516 = vpop.permute.xlu0 %6515
    %6517 = vrot.lane.b32.xlu0 %v6504, 64
    %v6518 = vpop.permute.xlu0 %6517
    %6519 = vrot.lane.b32.xlu0 %v6505, 64
    %v6520 = vpop.permute.xlu0 %6519
    %6526 = vst.msk [vmem:[#allocation3 + $0x40] sm:$0xff] %vm3484, %v6512
    %6527 = vst.msk [vmem:[#allocation3 + $0xa8] sm:$0xff] %vm3484, %v6514
    %6528 = vst.msk [vmem:[#allocation3 + $0x110] sm:$0xff] %vm3484, %v6516
    %6529 = vst.msk [vmem:[#allocation3 + $0x178] sm:$0xff] %vm3484, %v6518
    %6530 = vst.msk [vmem:[#allocation3 + $0x1e0] sm:$0xff] %vm3484, %v6520
    %v6531 = vld [vmem:[#allocation2 + $0x578] sm:$0xff]
    %v6532 = vld [vmem:[#allocation2 + $0x580] sm:$0xff]
    %v6533 = vld [vmem:[#allocation2 + $0x588] sm:$0xff]
    %v6534 = vld [vmem:[#allocation2 + $0x590] sm:$0xff]
    %v6535 = vld [vmem:[#allocation2 + $0x598] sm:$0xff]
    %v6536 = vld [vmem:[#allocation2 + $0x5a0] sm:$0xff]
    %v6537 = vld [vmem:[#allocation2 + $0x5a8] sm:$0xff]
    %v6538 = vld [vmem:[#allocation2 + $0x5b0] sm:$0xff]
    %v6539 = vld [vmem:[#allocation2 + $0x5b8] sm:$0xff]
    %v6540 = vld [vmem:[#allocation2 + $0x5c0] sm:$0xff]
    %6546 = vrot.lane.b32.xlu0 %v6536, 96
    %v6547 = vpop.permute.xlu0 %6546
    %6548 = vrot.lane.b32.xlu0 %v6537, 96
    %v6549 = vpop.permute.xlu0 %6548
    %6550 = vrot.lane.b32.xlu0 %v6538, 96
    %v6551 = vpop.permute.xlu0 %6550
    %6552 = vrot.lane.b32.xlu0 %v6539, 96
    %v6553 = vpop.permute.xlu0 %6552
    %6554 = vrot.lane.b32.xlu0 %v6540, 96
    %v6555 = vpop.permute.xlu0 %6554
    %v6561 = vadd.f32 %v6531, %v6547
    %v6562 = vadd.f32 %v6532, %v6549
    %v6563 = vadd.f32 %v6533, %v6551
    %v6564 = vadd.f32 %v6534, %v6553
    %v6565 = vadd.f32 %v6535, %v6555
    %v6566 = vld [vmem:[#allocation2 + $0x5c8] sm:$0xff]
    %v6567 = vld [vmem:[#allocation2 + $0x5d0] sm:$0xff]
    %v6568 = vld [vmem:[#allocation2 + $0x5d8] sm:$0xff]
    %v6569 = vld [vmem:[#allocation2 + $0x5e0] sm:$0xff]
    %v6570 = vld [vmem:[#allocation2 + $0x5e8] sm:$0xff]
    %6576 = vrot.lane.b32.xlu0 %v6566, 64
    %v6577 = vpop.permute.xlu0 %6576
    %6578 = vrot.lane.b32.xlu0 %v6567, 64
    %v6579 = vpop.permute.xlu0 %6578
    %6580 = vrot.lane.b32.xlu0 %v6568, 64
    %v6581 = vpop.permute.xlu0 %6580
    %6582 = vrot.lane.b32.xlu0 %v6569, 64
    %v6583 = vpop.permute.xlu0 %6582
    %6584 = vrot.lane.b32.xlu0 %v6570, 64
    %v6585 = vpop.permute.xlu0 %6584
    %v6591 = vadd.f32 %v6561, %v6577
    %v6592 = vadd.f32 %v6562, %v6579
    %v6593 = vadd.f32 %v6563, %v6581
    %v6594 = vadd.f32 %v6564, %v6583
    %v6595 = vadd.f32 %v6565, %v6585
    %v6596 = vadd.f32 %v6591, %v3271
    %v6597 = vadd.f32 %v6592, %v3271
    %v6598 = vadd.f32 %v6593, %v3271
    %v6599 = vadd.f32 %v6594, %v3271
    %v6600 = vadd.f32 %v6595, %v3271
    %v6601 = vmax.f32 %v6596, 0.0
    %v6602 = vmax.f32 %v6597, 0.0
    %v6603 = vmax.f32 %v6598, 0.0
    %v6604 = vmax.f32 %v6599, 0.0
    %v6605 = vmax.f32 %v6600, 0.0
    %6611 = vrot.lane.b32.xlu0 %v6601, 96
    %v6612 = vpop.permute.xlu0 %6611
    %6613 = vrot.lane.b32.xlu0 %v6602, 96
    %v6614 = vpop.permute.xlu0 %6613
    %6615 = vrot.lane.b32.xlu0 %v6603, 96
    %v6616 = vpop.permute.xlu0 %6615
    %6617 = vrot.lane.b32.xlu0 %v6604, 96
    %v6618 = vpop.permute.xlu0 %6617
    %6619 = vrot.lane.b32.xlu0 %v6605, 96
    %v6620 = vpop.permute.xlu0 %6619
    %6626 = vst.msk [vmem:[#allocation3 + $0x40] sm:$0xff] %vm3585, %v6612
    %6627 = vst.msk [vmem:[#allocation3 + $0xa8] sm:$0xff] %vm3585, %v6614
    %6628 = vst.msk [vmem:[#allocation3 + $0x110] sm:$0xff] %vm3585, %v6616
    %6629 = vst.msk [vmem:[#allocation3 + $0x178] sm:$0xff] %vm3585, %v6618
    %6630 = vst.msk [vmem:[#allocation3 + $0x1e0] sm:$0xff] %vm3585, %v6620
    %v6631 = vld [vmem:[#allocation2 + $0x5a0] sm:$0xff]
    %v6632 = vld [vmem:[#allocation2 + $0x5a8] sm:$0xff]
    %v6633 = vld [vmem:[#allocation2 + $0x5b0] sm:$0xff]
    %v6634 = vld [vmem:[#allocation2 + $0x5b8] sm:$0xff]
    %v6635 = vld [vmem:[#allocation2 + $0x5c0] sm:$0xff]
    %v6636 = vld [vmem:[#allocation2 + $0x5c8] sm:$0xff]
    %v6637 = vld [vmem:[#allocation2 + $0x5d0] sm:$0xff]
    %v6638 = vld [vmem:[#allocation2 + $0x5d8] sm:$0xff]
    %v6639 = vld [vmem:[#allocation2 + $0x5e0] sm:$0xff]
    %v6640 = vld [vmem:[#allocation2 + $0x5e8] sm:$0xff]
    %6646 = vrot.lane.b32.xlu0 %v6636, 96
    %v6647 = vpop.permute.xlu0 %6646
    %6648 = vrot.lane.b32.xlu0 %v6637, 96
    %v6649 = vpop.permute.xlu0 %6648
    %6650 = vrot.lane.b32.xlu0 %v6638, 96
    %v6651 = vpop.permute.xlu0 %6650
    %6652 = vrot.lane.b32.xlu0 %v6639, 96
    %v6653 = vpop.permute.xlu0 %6652
    %6654 = vrot.lane.b32.xlu0 %v6640, 96
    %v6655 = vpop.permute.xlu0 %6654
    %v6661 = vadd.f32 %v6631, %v6647
    %v6662 = vadd.f32 %v6632, %v6649
    %v6663 = vadd.f32 %v6633, %v6651
    %v6664 = vadd.f32 %v6634, %v6653
    %v6665 = vadd.f32 %v6635, %v6655
    %v6666 = vld [vmem:[#allocation2 + $0x5f0] sm:$0xff]
    %v6667 = vld [vmem:[#allocation2 + $0x5f8] sm:$0xff]
    %v6668 = vld [vmem:[#allocation2 + $0x600] sm:$0xff]
    %v6669 = vld [vmem:[#allocation2 + $0x608] sm:$0xff]
    %v6670 = vld [vmem:[#allocation2 + $0x610] sm:$0xff]
    %6676 = vrot.lane.b32.xlu0 %v6666, 64
    %v6677 = vpop.permute.xlu0 %6676
    %6678 = vrot.lane.b32.xlu0 %v6667, 64
    %v6679 = vpop.permute.xlu0 %6678
    %6680 = vrot.lane.b32.xlu0 %v6668, 64
    %v6681 = vpop.permute.xlu0 %6680
    %6682 = vrot.lane.b32.xlu0 %v6669, 64
    %v6683 = vpop.permute.xlu0 %6682
    %6684 = vrot.lane.b32.xlu0 %v6670, 64
    %v6685 = vpop.permute.xlu0 %6684
    %v6691 = vadd.f32 %v6661, %v6677
    %v6692 = vadd.f32 %v6662, %v6679
    %v6693 = vadd.f32 %v6663, %v6681
    %v6694 = vadd.f32 %v6664, %v6683
    %v6695 = vadd.f32 %v6665, %v6685
    %v6696 = vadd.f32 %v6691, %v3271
    %v6697 = vadd.f32 %v6692, %v3271
    %v6698 = vadd.f32 %v6693, %v3271
    %v6699 = vadd.f32 %v6694, %v3271
    %v6700 = vadd.f32 %v6695, %v3271
    %v6701 = vmax.f32 %v6696, 0.0
    %v6702 = vmax.f32 %v6697, 0.0
    %v6703 = vmax.f32 %v6698, 0.0
    %v6704 = vmax.f32 %v6699, 0.0
    %v6705 = vmax.f32 %v6700, 0.0
    %6706 = vst.msk [vmem:[#allocation3 + $0x48] sm:$0xff] %vm3282, %v6701
    %6707 = vst.msk [vmem:[#allocation3 + $0xb0] sm:$0xff] %vm3282, %v6702
    %6708 = vst.msk [vmem:[#allocation3 + $0x118] sm:$0xff] %vm3282, %v6703
    %6709 = vst.msk [vmem:[#allocation3 + $0x180] sm:$0xff] %vm3282, %v6704
    %6710 = vst.msk [vmem:[#allocation3 + $0x1e8] sm:$0xff] %vm3282, %v6705
    %v6711 = vld [vmem:[#allocation2 + $0x5c8] sm:$0xff]
    %v6712 = vld [vmem:[#allocation2 + $0x5d0] sm:$0xff]
    %v6713 = vld [vmem:[#allocation2 + $0x5d8] sm:$0xff]
    %v6714 = vld [vmem:[#allocation2 + $0x5e0] sm:$0xff]
    %v6715 = vld [vmem:[#allocation2 + $0x5e8] sm:$0xff]
    %v6716 = vld [vmem:[#allocation2 + $0x5f0] sm:$0xff]
    %v6717 = vld [vmem:[#allocation2 + $0x5f8] sm:$0xff]
    %v6718 = vld [vmem:[#allocation2 + $0x600] sm:$0xff]
    %v6719 = vld [vmem:[#allocation2 + $0x608] sm:$0xff]
    %v6720 = vld [vmem:[#allocation2 + $0x610] sm:$0xff]
    %6726 = vrot.lane.b32.xlu0 %v6716, 96
    %v6727 = vpop.permute.xlu0 %6726
    %6728 = vrot.lane.b32.xlu0 %v6717, 96
    %v6729 = vpop.permute.xlu0 %6728
    %6730 = vrot.lane.b32.xlu0 %v6718, 96
    %v6731 = vpop.permute.xlu0 %6730
    %6732 = vrot.lane.b32.xlu0 %v6719, 96
    %v6733 = vpop.permute.xlu0 %6732
    %6734 = vrot.lane.b32.xlu0 %v6720, 96
    %v6735 = vpop.permute.xlu0 %6734
    %v6741 = vadd.f32 %v6711, %v6727
    %v6742 = vadd.f32 %v6712, %v6729
    %v6743 = vadd.f32 %v6713, %v6731
    %v6744 = vadd.f32 %v6714, %v6733
    %v6745 = vadd.f32 %v6715, %v6735
    %v6746 = vld [vmem:[#allocation2 + $0x618] sm:$0xff]
    %v6747 = vld [vmem:[#allocation2 + $0x620] sm:$0xff]
    %v6748 = vld [vmem:[#allocation2 + $0x628] sm:$0xff]
    %v6749 = vld [vmem:[#allocation2 + $0x630] sm:$0xff]
    %v6750 = vld [vmem:[#allocation2 + $0x638] sm:$0xff]
    %6756 = vrot.lane.b32.xlu0 %v6746, 64
    %v6757 = vpop.permute.xlu0 %6756
    %6758 = vrot.lane.b32.xlu0 %v6747, 64
    %v6759 = vpop.permute.xlu0 %6758
    %6760 = vrot.lane.b32.xlu0 %v6748, 64
    %v6761 = vpop.permute.xlu0 %6760
    %6762 = vrot.lane.b32.xlu0 %v6749, 64
    %v6763 = vpop.permute.xlu0 %6762
    %6764 = vrot.lane.b32.xlu0 %v6750, 64
    %v6765 = vpop.permute.xlu0 %6764
    %v6771 = vadd.f32 %v6741, %v6757
    %v6772 = vadd.f32 %v6742, %v6759
    %v6773 = vadd.f32 %v6743, %v6761
    %v6774 = vadd.f32 %v6744, %v6763
    %v6775 = vadd.f32 %v6745, %v6765
    %v6776 = vadd.f32 %v6771, %v3271
    %v6777 = vadd.f32 %v6772, %v3271
    %v6778 = vadd.f32 %v6773, %v3271
    %v6779 = vadd.f32 %v6774, %v3271
    %v6780 = vadd.f32 %v6775, %v3271
    %v6781 = vmax.f32 %v6776, 0.0
    %v6782 = vmax.f32 %v6777, 0.0
    %v6783 = vmax.f32 %v6778, 0.0
    %v6784 = vmax.f32 %v6779, 0.0
    %v6785 = vmax.f32 %v6780, 0.0
    %6791 = vrot.lane.b32.xlu0 %v6781, 32
    %v6792 = vpop.permute.xlu0 %6791
    %6793 = vrot.lane.b32.xlu0 %v6782, 32
    %v6794 = vpop.permute.xlu0 %6793
    %6795 = vrot.lane.b32.xlu0 %v6783, 32
    %v6796 = vpop.permute.xlu0 %6795
    %6797 = vrot.lane.b32.xlu0 %v6784, 32
    %v6798 = vpop.permute.xlu0 %6797
    %6799 = vrot.lane.b32.xlu0 %v6785, 32
    %v6800 = vpop.permute.xlu0 %6799
    %6806 = vst.msk [vmem:[#allocation3 + $0x48] sm:$0xff] %vm3383, %v6792
    %6807 = vst.msk [vmem:[#allocation3 + $0xb0] sm:$0xff] %vm3383, %v6794
    %6808 = vst.msk [vmem:[#allocation3 + $0x118] sm:$0xff] %vm3383, %v6796
    %6809 = vst.msk [vmem:[#allocation3 + $0x180] sm:$0xff] %vm3383, %v6798
    %6810 = vst.msk [vmem:[#allocation3 + $0x1e8] sm:$0xff] %vm3383, %v6800
    %v6811 = vld [vmem:[#allocation2 + $0x5f0] sm:$0xff]
    %v6812 = vld [vmem:[#allocation2 + $0x5f8] sm:$0xff]
    %v6813 = vld [vmem:[#allocation2 + $0x600] sm:$0xff]
    %v6814 = vld [vmem:[#allocation2 + $0x608] sm:$0xff]
    %v6815 = vld [vmem:[#allocation2 + $0x610] sm:$0xff]
    %v6816 = vld [vmem:[#allocation2 + $0x618] sm:$0xff]
    %v6817 = vld [vmem:[#allocation2 + $0x620] sm:$0xff]
    %v6818 = vld [vmem:[#allocation2 + $0x628] sm:$0xff]
    %v6819 = vld [vmem:[#allocation2 + $0x630] sm:$0xff]
    %v6820 = vld [vmem:[#allocation2 + $0x638] sm:$0xff]
    %6826 = vrot.lane.b32.xlu0 %v6816, 96
    %v6827 = vpop.permute.xlu0 %6826
    %6828 = vrot.lane.b32.xlu0 %v6817, 96
    %v6829 = vpop.permute.xlu0 %6828
    %6830 = vrot.lane.b32.xlu0 %v6818, 96
    %v6831 = vpop.permute.xlu0 %6830
    %6832 = vrot.lane.b32.xlu0 %v6819, 96
    %v6833 = vpop.permute.xlu0 %6832
    %6834 = vrot.lane.b32.xlu0 %v6820, 96
    %v6835 = vpop.permute.xlu0 %6834
    %v6841 = vadd.f32 %v6811, %v6827
    %v6842 = vadd.f32 %v6812, %v6829
    %v6843 = vadd.f32 %v6813, %v6831
    %v6844 = vadd.f32 %v6814, %v6833
    %v6845 = vadd.f32 %v6815, %v6835
    %v6846 = vld [vmem:[#allocation2 + $0x640] sm:$0xff]
    %v6847 = vld [vmem:[#allocation2 + $0x648] sm:$0xff]
    %v6848 = vld [vmem:[#allocation2 + $0x650] sm:$0xff]
    %v6849 = vld [vmem:[#allocation2 + $0x658] sm:$0xff]
    %v6850 = vld [vmem:[#allocation2 + $0x660] sm:$0xff]
    %6856 = vrot.lane.b32.xlu0 %v6846, 64
    %v6857 = vpop.permute.xlu0 %6856
    %6858 = vrot.lane.b32.xlu0 %v6847, 64
    %v6859 = vpop.permute.xlu0 %6858
    %6860 = vrot.lane.b32.xlu0 %v6848, 64
    %v6861 = vpop.permute.xlu0 %6860
    %6862 = vrot.lane.b32.xlu0 %v6849, 64
    %v6863 = vpop.permute.xlu0 %6862
    %6864 = vrot.lane.b32.xlu0 %v6850, 64
    %v6865 = vpop.permute.xlu0 %6864
    %v6871 = vadd.f32 %v6841, %v6857
    %v6872 = vadd.f32 %v6842, %v6859
    %v6873 = vadd.f32 %v6843, %v6861
    %v6874 = vadd.f32 %v6844, %v6863
    %v6875 = vadd.f32 %v6845, %v6865
    %v6876 = vadd.f32 %v6871, %v3271
    %v6877 = vadd.f32 %v6872, %v3271
    %v6878 = vadd.f32 %v6873, %v3271
    %v6879 = vadd.f32 %v6874, %v3271
    %v6880 = vadd.f32 %v6875, %v3271
    %v6881 = vmax.f32 %v6876, 0.0
    %v6882 = vmax.f32 %v6877, 0.0
    %v6883 = vmax.f32 %v6878, 0.0
    %v6884 = vmax.f32 %v6879, 0.0
    %v6885 = vmax.f32 %v6880, 0.0
    %6891 = vrot.lane.b32.xlu0 %v6881, 64
    %v6892 = vpop.permute.xlu0 %6891
    %6893 = vrot.lane.b32.xlu0 %v6882, 64
    %v6894 = vpop.permute.xlu0 %6893
    %6895 = vrot.lane.b32.xlu0 %v6883, 64
    %v6896 = vpop.permute.xlu0 %6895
    %6897 = vrot.lane.b32.xlu0 %v6884, 64
    %v6898 = vpop.permute.xlu0 %6897
    %6899 = vrot.lane.b32.xlu0 %v6885, 64
    %v6900 = vpop.permute.xlu0 %6899
    %6906 = vst.msk [vmem:[#allocation3 + $0x48] sm:$0xff] %vm3484, %v6892
    %6907 = vst.msk [vmem:[#allocation3 + $0xb0] sm:$0xff] %vm3484, %v6894
    %6908 = vst.msk [vmem:[#allocation3 + $0x118] sm:$0xff] %vm3484, %v6896
    %6909 = vst.msk [vmem:[#allocation3 + $0x180] sm:$0xff] %vm3484, %v6898
    %6910 = vst.msk [vmem:[#allocation3 + $0x1e8] sm:$0xff] %vm3484, %v6900
    %v6911 = vld [vmem:[#allocation2 + $0x618] sm:$0xff]
    %v6912 = vld [vmem:[#allocation2 + $0x620] sm:$0xff]
    %v6913 = vld [vmem:[#allocation2 + $0x628] sm:$0xff]
    %v6914 = vld [vmem:[#allocation2 + $0x630] sm:$0xff]
    %v6915 = vld [vmem:[#allocation2 + $0x638] sm:$0xff]
    %v6916 = vld [vmem:[#allocation2 + $0x640] sm:$0xff]
    %v6917 = vld [vmem:[#allocation2 + $0x648] sm:$0xff]
    %v6918 = vld [vmem:[#allocation2 + $0x650] sm:$0xff]
    %v6919 = vld [vmem:[#allocation2 + $0x658] sm:$0xff]
    %v6920 = vld [vmem:[#allocation2 + $0x660] sm:$0xff]
    %6926 = vrot.lane.b32.xlu0 %v6916, 96
    %v6927 = vpop.permute.xlu0 %6926
    %6928 = vrot.lane.b32.xlu0 %v6917, 96
    %v6929 = vpop.permute.xlu0 %6928
    %6930 = vrot.lane.b32.xlu0 %v6918, 96
    %v6931 = vpop.permute.xlu0 %6930
    %6932 = vrot.lane.b32.xlu0 %v6919, 96
    %v6933 = vpop.permute.xlu0 %6932
    %6934 = vrot.lane.b32.xlu0 %v6920, 96
    %v6935 = vpop.permute.xlu0 %6934
    %v6941 = vadd.f32 %v6911, %v6927
    %v6942 = vadd.f32 %v6912, %v6929
    %v6943 = vadd.f32 %v6913, %v6931
    %v6944 = vadd.f32 %v6914, %v6933
    %v6945 = vadd.f32 %v6915, %v6935
    %v6946 = vld [vmem:[#allocation2 + $0x668] sm:$0xff]
    %v6947 = vld [vmem:[#allocation2 + $0x670] sm:$0xff]
    %v6948 = vld [vmem:[#allocation2 + $0x678] sm:$0xff]
    %v6949 = vld [vmem:[#allocation2 + $0x680] sm:$0xff]
    %v6950 = vld [vmem:[#allocation2 + $0x688] sm:$0xff]
    %6956 = vrot.lane.b32.xlu0 %v6946, 64
    %v6957 = vpop.permute.xlu0 %6956
    %6958 = vrot.lane.b32.xlu0 %v6947, 64
    %v6959 = vpop.permute.xlu0 %6958
    %6960 = vrot.lane.b32.xlu0 %v6948, 64
    %v6961 = vpop.permute.xlu0 %6960
    %6962 = vrot.lane.b32.xlu0 %v6949, 64
    %v6963 = vpop.permute.xlu0 %6962
    %6964 = vrot.lane.b32.xlu0 %v6950, 64
    %v6965 = vpop.permute.xlu0 %6964
    %v6971 = vadd.f32 %v6941, %v6957
    %v6972 = vadd.f32 %v6942, %v6959
    %v6973 = vadd.f32 %v6943, %v6961
    %v6974 = vadd.f32 %v6944, %v6963
    %v6975 = vadd.f32 %v6945, %v6965
    %v6976 = vadd.f32 %v6971, %v3271
    %v6977 = vadd.f32 %v6972, %v3271
    %v6978 = vadd.f32 %v6973, %v3271
    %v6979 = vadd.f32 %v6974, %v3271
    %v6980 = vadd.f32 %v6975, %v3271
    %v6981 = vmax.f32 %v6976, 0.0
    %v6982 = vmax.f32 %v6977, 0.0
    %v6983 = vmax.f32 %v6978, 0.0
    %v6984 = vmax.f32 %v6979, 0.0
    %v6985 = vmax.f32 %v6980, 0.0
    %6991 = vrot.lane.b32.xlu0 %v6981, 96
    %v6992 = vpop.permute.xlu0 %6991
    %6993 = vrot.lane.b32.xlu0 %v6982, 96
    %v6994 = vpop.permute.xlu0 %6993
    %6995 = vrot.lane.b32.xlu0 %v6983, 96
    %v6996 = vpop.permute.xlu0 %6995
    %6997 = vrot.lane.b32.xlu0 %v6984, 96
    %v6998 = vpop.permute.xlu0 %6997
    %6999 = vrot.lane.b32.xlu0 %v6985, 96
    %v7000 = vpop.permute.xlu0 %6999
    %7006 = vst.msk [vmem:[#allocation3 + $0x48] sm:$0xff] %vm3585, %v6992
    %7007 = vst.msk [vmem:[#allocation3 + $0xb0] sm:$0xff] %vm3585, %v6994
    %7008 = vst.msk [vmem:[#allocation3 + $0x118] sm:$0xff] %vm3585, %v6996
    %7009 = vst.msk [vmem:[#allocation3 + $0x180] sm:$0xff] %vm3585, %v6998
    %7010 = vst.msk [vmem:[#allocation3 + $0x1e8] sm:$0xff] %vm3585, %v7000
    %v7011 = vld [vmem:[#allocation2 + $0x640] sm:$0xff]
    %v7012 = vld [vmem:[#allocation2 + $0x648] sm:$0xff]
    %v7013 = vld [vmem:[#allocation2 + $0x650] sm:$0xff]
    %v7014 = vld [vmem:[#allocation2 + $0x658] sm:$0xff]
    %v7015 = vld [vmem:[#allocation2 + $0x660] sm:$0xff]
    %v7016 = vld [vmem:[#allocation2 + $0x668] sm:$0xff]
    %v7017 = vld [vmem:[#allocation2 + $0x670] sm:$0xff]
    %v7018 = vld [vmem:[#allocation2 + $0x678] sm:$0xff]
    %v7019 = vld [vmem:[#allocation2 + $0x680] sm:$0xff]
    %v7020 = vld [vmem:[#allocation2 + $0x688] sm:$0xff]
    %7026 = vrot.lane.b32.xlu0 %v7016, 96
    %v7027 = vpop.permute.xlu0 %7026
    %7028 = vrot.lane.b32.xlu0 %v7017, 96
    %v7029 = vpop.permute.xlu0 %7028
    %7030 = vrot.lane.b32.xlu0 %v7018, 96
    %v7031 = vpop.permute.xlu0 %7030
    %7032 = vrot.lane.b32.xlu0 %v7019, 96
    %v7033 = vpop.permute.xlu0 %7032
    %7034 = vrot.lane.b32.xlu0 %v7020, 96
    %v7035 = vpop.permute.xlu0 %7034
    %v7041 = vadd.f32 %v7011, %v7027
    %v7042 = vadd.f32 %v7012, %v7029
    %v7043 = vadd.f32 %v7013, %v7031
    %v7044 = vadd.f32 %v7014, %v7033
    %v7045 = vadd.f32 %v7015, %v7035
    %v7046 = vld [vmem:[#allocation2 + $0x690] sm:$0xff]
    %v7047 = vld [vmem:[#allocation2 + $0x698] sm:$0xff]
    %v7048 = vld [vmem:[#allocation2 + $0x6a0] sm:$0xff]
    %v7049 = vld [vmem:[#allocation2 + $0x6a8] sm:$0xff]
    %v7050 = vld [vmem:[#allocation2 + $0x6b0] sm:$0xff]
    %7056 = vrot.lane.b32.xlu0 %v7046, 64
    %v7057 = vpop.permute.xlu0 %7056
    %7058 = vrot.lane.b32.xlu0 %v7047, 64
    %v7059 = vpop.permute.xlu0 %7058
    %7060 = vrot.lane.b32.xlu0 %v7048, 64
    %v7061 = vpop.permute.xlu0 %7060
    %7062 = vrot.lane.b32.xlu0 %v7049, 64
    %v7063 = vpop.permute.xlu0 %7062
    %7064 = vrot.lane.b32.xlu0 %v7050, 64
    %v7065 = vpop.permute.xlu0 %7064
    %v7071 = vadd.f32 %v7041, %v7057
    %v7072 = vadd.f32 %v7042, %v7059
    %v7073 = vadd.f32 %v7043, %v7061
    %v7074 = vadd.f32 %v7044, %v7063
    %v7075 = vadd.f32 %v7045, %v7065
    %v7076 = vadd.f32 %v7071, %v3271
    %v7077 = vadd.f32 %v7072, %v3271
    %v7078 = vadd.f32 %v7073, %v3271
    %v7079 = vadd.f32 %v7074, %v3271
    %v7080 = vadd.f32 %v7075, %v3271
    %v7081 = vmax.f32 %v7076, 0.0
    %v7082 = vmax.f32 %v7077, 0.0
    %v7083 = vmax.f32 %v7078, 0.0
    %v7084 = vmax.f32 %v7079, 0.0
    %v7085 = vmax.f32 %v7080, 0.0
    %7086 = vst.msk [vmem:[#allocation3 + $0x50] sm:$0xff] %vm3282, %v7081
    %7087 = vst.msk [vmem:[#allocation3 + $0xb8] sm:$0xff] %vm3282, %v7082
    %7088 = vst.msk [vmem:[#allocation3 + $0x120] sm:$0xff] %vm3282, %v7083
    %7089 = vst.msk [vmem:[#allocation3 + $0x188] sm:$0xff] %vm3282, %v7084
    %7090 = vst.msk [vmem:[#allocation3 + $0x1f0] sm:$0xff] %vm3282, %v7085
    %v7091 = vld [vmem:[#allocation2 + $0x668] sm:$0xff]
    %v7092 = vld [vmem:[#allocation2 + $0x670] sm:$0xff]
    %v7093 = vld [vmem:[#allocation2 + $0x678] sm:$0xff]
    %v7094 = vld [vmem:[#allocation2 + $0x680] sm:$0xff]
    %v7095 = vld [vmem:[#allocation2 + $0x688] sm:$0xff]
    %v7096 = vld [vmem:[#allocation2 + $0x690] sm:$0xff]
    %v7097 = vld [vmem:[#allocation2 + $0x698] sm:$0xff]
    %v7098 = vld [vmem:[#allocation2 + $0x6a0] sm:$0xff]
    %v7099 = vld [vmem:[#allocation2 + $0x6a8] sm:$0xff]
    %v7100 = vld [vmem:[#allocation2 + $0x6b0] sm:$0xff]
    %7106 = vrot.lane.b32.xlu0 %v7096, 96
    %v7107 = vpop.permute.xlu0 %7106
    %7108 = vrot.lane.b32.xlu0 %v7097, 96
    %v7109 = vpop.permute.xlu0 %7108
    %7110 = vrot.lane.b32.xlu0 %v7098, 96
    %v7111 = vpop.permute.xlu0 %7110
    %7112 = vrot.lane.b32.xlu0 %v7099, 96
    %v7113 = vpop.permute.xlu0 %7112
    %7114 = vrot.lane.b32.xlu0 %v7100, 96
    %v7115 = vpop.permute.xlu0 %7114
    %v7121 = vadd.f32 %v7091, %v7107
    %v7122 = vadd.f32 %v7092, %v7109
    %v7123 = vadd.f32 %v7093, %v7111
    %v7124 = vadd.f32 %v7094, %v7113
    %v7125 = vadd.f32 %v7095, %v7115
    %v7126 = vld [vmem:[#allocation2 + $0x6b8] sm:$0xff]
    %v7127 = vld [vmem:[#allocation2 + $0x6c0] sm:$0xff]
    %v7128 = vld [vmem:[#allocation2 + $0x6c8] sm:$0xff]
    %v7129 = vld [vmem:[#allocation2 + $0x6d0] sm:$0xff]
    %v7130 = vld [vmem:[#allocation2 + $0x6d8] sm:$0xff]
    %7136 = vrot.lane.b32.xlu0 %v7126, 64
    %v7137 = vpop.permute.xlu0 %7136
    %7138 = vrot.lane.b32.xlu0 %v7127, 64
    %v7139 = vpop.permute.xlu0 %7138
    %7140 = vrot.lane.b32.xlu0 %v7128, 64
    %v7141 = vpop.permute.xlu0 %7140
    %7142 = vrot.lane.b32.xlu0 %v7129, 64
    %v7143 = vpop.permute.xlu0 %7142
    %7144 = vrot.lane.b32.xlu0 %v7130, 64
    %v7145 = vpop.permute.xlu0 %7144
    %v7151 = vadd.f32 %v7121, %v7137
    %v7152 = vadd.f32 %v7122, %v7139
    %v7153 = vadd.f32 %v7123, %v7141
    %v7154 = vadd.f32 %v7124, %v7143
    %v7155 = vadd.f32 %v7125, %v7145
    %v7156 = vadd.f32 %v7151, %v3271
    %v7157 = vadd.f32 %v7152, %v3271
    %v7158 = vadd.f32 %v7153, %v3271
    %v7159 = vadd.f32 %v7154, %v3271
    %v7160 = vadd.f32 %v7155, %v3271
    %v7161 = vmax.f32 %v7156, 0.0
    %v7162 = vmax.f32 %v7157, 0.0
    %v7163 = vmax.f32 %v7158, 0.0
    %v7164 = vmax.f32 %v7159, 0.0
    %v7165 = vmax.f32 %v7160, 0.0
    %7171 = vrot.lane.b32.xlu0 %v7161, 32
    %v7172 = vpop.permute.xlu0 %7171
    %7173 = vrot.lane.b32.xlu0 %v7162, 32
    %v7174 = vpop.permute.xlu0 %7173
    %7175 = vrot.lane.b32.xlu0 %v7163, 32
    %v7176 = vpop.permute.xlu0 %7175
    %7177 = vrot.lane.b32.xlu0 %v7164, 32
    %v7178 = vpop.permute.xlu0 %7177
    %7179 = vrot.lane.b32.xlu0 %v7165, 32
    %v7180 = vpop.permute.xlu0 %7179
    %7186 = vst.msk [vmem:[#allocation3 + $0x50] sm:$0xff] %vm3383, %v7172
    %7187 = vst.msk [vmem:[#allocation3 + $0xb8] sm:$0xff] %vm3383, %v7174
    %7188 = vst.msk [vmem:[#allocation3 + $0x120] sm:$0xff] %vm3383, %v7176
    %7189 = vst.msk [vmem:[#allocation3 + $0x188] sm:$0xff] %vm3383, %v7178
    %7190 = vst.msk [vmem:[#allocation3 + $0x1f0] sm:$0xff] %vm3383, %v7180
    %v7191 = vld [vmem:[#allocation2 + $0x690] sm:$0xff]
    %v7192 = vld [vmem:[#allocation2 + $0x698] sm:$0xff]
    %v7193 = vld [vmem:[#allocation2 + $0x6a0] sm:$0xff]
    %v7194 = vld [vmem:[#allocation2 + $0x6a8] sm:$0xff]
    %v7195 = vld [vmem:[#allocation2 + $0x6b0] sm:$0xff]
    %v7196 = vld [vmem:[#allocation2 + $0x6b8] sm:$0xff]
    %v7197 = vld [vmem:[#allocation2 + $0x6c0] sm:$0xff]
    %v7198 = vld [vmem:[#allocation2 + $0x6c8] sm:$0xff]
    %v7199 = vld [vmem:[#allocation2 + $0x6d0] sm:$0xff]
    %v7200 = vld [vmem:[#allocation2 + $0x6d8] sm:$0xff]
    %7206 = vrot.lane.b32.xlu0 %v7196, 96
    %v7207 = vpop.permute.xlu0 %7206
    %7208 = vrot.lane.b32.xlu0 %v7197, 96
    %v7209 = vpop.permute.xlu0 %7208
    %7210 = vrot.lane.b32.xlu0 %v7198, 96
    %v7211 = vpop.permute.xlu0 %7210
    %7212 = vrot.lane.b32.xlu0 %v7199, 96
    %v7213 = vpop.permute.xlu0 %7212
    %7214 = vrot.lane.b32.xlu0 %v7200, 96
    %v7215 = vpop.permute.xlu0 %7214
    %v7221 = vadd.f32 %v7191, %v7207
    %v7222 = vadd.f32 %v7192, %v7209
    %v7223 = vadd.f32 %v7193, %v7211
    %v7224 = vadd.f32 %v7194, %v7213
    %v7225 = vadd.f32 %v7195, %v7215
    %v7226 = vld [vmem:[#allocation2 + $0x6e0] sm:$0xff]
    %v7227 = vld [vmem:[#allocation2 + $0x6e8] sm:$0xff]
    %v7228 = vld [vmem:[#allocation2 + $0x6f0] sm:$0xff]
    %v7229 = vld [vmem:[#allocation2 + $0x6f8] sm:$0xff]
    %v7230 = vld [vmem:[#allocation2 + $0x700] sm:$0xff]
    %7236 = vrot.lane.b32.xlu0 %v7226, 64
    %v7237 = vpop.permute.xlu0 %7236
    %7238 = vrot.lane.b32.xlu0 %v7227, 64
    %v7239 = vpop.permute.xlu0 %7238
    %7240 = vrot.lane.b32.xlu0 %v7228, 64
    %v7241 = vpop.permute.xlu0 %7240
    %7242 = vrot.lane.b32.xlu0 %v7229, 64
    %v7243 = vpop.permute.xlu0 %7242
    %7244 = vrot.lane.b32.xlu0 %v7230, 64
    %v7245 = vpop.permute.xlu0 %7244
    %v7251 = vadd.f32 %v7221, %v7237
    %v7252 = vadd.f32 %v7222, %v7239
    %v7253 = vadd.f32 %v7223, %v7241
    %v7254 = vadd.f32 %v7224, %v7243
    %v7255 = vadd.f32 %v7225, %v7245
    %v7256 = vadd.f32 %v7251, %v3271
    %v7257 = vadd.f32 %v7252, %v3271
    %v7258 = vadd.f32 %v7253, %v3271
    %v7259 = vadd.f32 %v7254, %v3271
    %v7260 = vadd.f32 %v7255, %v3271
    %v7261 = vmax.f32 %v7256, 0.0
    %v7262 = vmax.f32 %v7257, 0.0
    %v7263 = vmax.f32 %v7258, 0.0
    %v7264 = vmax.f32 %v7259, 0.0
    %v7265 = vmax.f32 %v7260, 0.0
    %7271 = vrot.lane.b32.xlu0 %v7261, 64
    %v7272 = vpop.permute.xlu0 %7271
    %7273 = vrot.lane.b32.xlu0 %v7262, 64
    %v7274 = vpop.permute.xlu0 %7273
    %7275 = vrot.lane.b32.xlu0 %v7263, 64
    %v7276 = vpop.permute.xlu0 %7275
    %7277 = vrot.lane.b32.xlu0 %v7264, 64
    %v7278 = vpop.permute.xlu0 %7277
    %7279 = vrot.lane.b32.xlu0 %v7265, 64
    %v7280 = vpop.permute.xlu0 %7279
    %7286 = vst.msk [vmem:[#allocation3 + $0x50] sm:$0xff] %vm3484, %v7272
    %7287 = vst.msk [vmem:[#allocation3 + $0xb8] sm:$0xff] %vm3484, %v7274
    %7288 = vst.msk [vmem:[#allocation3 + $0x120] sm:$0xff] %vm3484, %v7276
    %7289 = vst.msk [vmem:[#allocation3 + $0x188] sm:$0xff] %vm3484, %v7278
    %7290 = vst.msk [vmem:[#allocation3 + $0x1f0] sm:$0xff] %vm3484, %v7280
    %v7291 = vld [vmem:[#allocation2 + $0x6b8] sm:$0xff]
    %v7292 = vld [vmem:[#allocation2 + $0x6c0] sm:$0xff]
    %v7293 = vld [vmem:[#allocation2 + $0x6c8] sm:$0xff]
    %v7294 = vld [vmem:[#allocation2 + $0x6d0] sm:$0xff]
    %v7295 = vld [vmem:[#allocation2 + $0x6d8] sm:$0xff]
    %v7296 = vld [vmem:[#allocation2 + $0x6e0] sm:$0xff]
    %v7297 = vld [vmem:[#allocation2 + $0x6e8] sm:$0xff]
    %v7298 = vld [vmem:[#allocation2 + $0x6f0] sm:$0xff]
    %v7299 = vld [vmem:[#allocation2 + $0x6f8] sm:$0xff]
    %v7300 = vld [vmem:[#allocation2 + $0x700] sm:$0xff]
    %7306 = vrot.lane.b32.xlu0 %v7296, 96
    %v7307 = vpop.permute.xlu0 %7306
    %7308 = vrot.lane.b32.xlu0 %v7297, 96
    %v7309 = vpop.permute.xlu0 %7308
    %7310 = vrot.lane.b32.xlu0 %v7298, 96
    %v7311 = vpop.permute.xlu0 %7310
    %7312 = vrot.lane.b32.xlu0 %v7299, 96
    %v7313 = vpop.permute.xlu0 %7312
    %7314 = vrot.lane.b32.xlu0 %v7300, 96
    %v7315 = vpop.permute.xlu0 %7314
    %v7321 = vadd.f32 %v7291, %v7307
    %v7322 = vadd.f32 %v7292, %v7309
    %v7323 = vadd.f32 %v7293, %v7311
    %v7324 = vadd.f32 %v7294, %v7313
    %v7325 = vadd.f32 %v7295, %v7315
    %v7326 = vld [vmem:[#allocation2 + $0x708] sm:$0xff]
    %v7327 = vld [vmem:[#allocation2 + $0x710] sm:$0xff]
    %v7328 = vld [vmem:[#allocation2 + $0x718] sm:$0xff]
    %v7329 = vld [vmem:[#allocation2 + $0x720] sm:$0xff]
    %v7330 = vld [vmem:[#allocation2 + $0x728] sm:$0xff]
    %7336 = vrot.lane.b32.xlu0 %v7326, 64
    %v7337 = vpop.permute.xlu0 %7336
    %7338 = vrot.lane.b32.xlu0 %v7327, 64
    %v7339 = vpop.permute.xlu0 %7338
    %7340 = vrot.lane.b32.xlu0 %v7328, 64
    %v7341 = vpop.permute.xlu0 %7340
    %7342 = vrot.lane.b32.xlu0 %v7329, 64
    %v7343 = vpop.permute.xlu0 %7342
    %7344 = vrot.lane.b32.xlu0 %v7330, 64
    %v7345 = vpop.permute.xlu0 %7344
    %v7351 = vadd.f32 %v7321, %v7337
    %v7352 = vadd.f32 %v7322, %v7339
    %v7353 = vadd.f32 %v7323, %v7341
    %v7354 = vadd.f32 %v7324, %v7343
    %v7355 = vadd.f32 %v7325, %v7345
    %v7356 = vadd.f32 %v7351, %v3271
    %v7357 = vadd.f32 %v7352, %v3271
    %v7358 = vadd.f32 %v7353, %v3271
    %v7359 = vadd.f32 %v7354, %v3271
    %v7360 = vadd.f32 %v7355, %v3271
    %v7361 = vmax.f32 %v7356, 0.0
    %v7362 = vmax.f32 %v7357, 0.0
    %v7363 = vmax.f32 %v7358, 0.0
    %v7364 = vmax.f32 %v7359, 0.0
    %v7365 = vmax.f32 %v7360, 0.0
    %7371 = vrot.lane.b32.xlu0 %v7361, 96
    %v7372 = vpop.permute.xlu0 %7371
    %7373 = vrot.lane.b32.xlu0 %v7362, 96
    %v7374 = vpop.permute.xlu0 %7373
    %7375 = vrot.lane.b32.xlu0 %v7363, 96
    %v7376 = vpop.permute.xlu0 %7375
    %7377 = vrot.lane.b32.xlu0 %v7364, 96
    %v7378 = vpop.permute.xlu0 %7377
    %7379 = vrot.lane.b32.xlu0 %v7365, 96
    %v7380 = vpop.permute.xlu0 %7379
    %7386 = vst.msk [vmem:[#allocation3 + $0x50] sm:$0xff] %vm3585, %v7372
    %7387 = vst.msk [vmem:[#allocation3 + $0xb8] sm:$0xff] %vm3585, %v7374
    %7388 = vst.msk [vmem:[#allocation3 + $0x120] sm:$0xff] %vm3585, %v7376
    %7389 = vst.msk [vmem:[#allocation3 + $0x188] sm:$0xff] %vm3585, %v7378
    %7390 = vst.msk [vmem:[#allocation3 + $0x1f0] sm:$0xff] %vm3585, %v7380
    %v7391 = vld [vmem:[#allocation2 + $0x6e0] sm:$0xff]
    %v7392 = vld [vmem:[#allocation2 + $0x6e8] sm:$0xff]
    %v7393 = vld [vmem:[#allocation2 + $0x6f0] sm:$0xff]
    %v7394 = vld [vmem:[#allocation2 + $0x6f8] sm:$0xff]
    %v7395 = vld [vmem:[#allocation2 + $0x700] sm:$0xff]
    %v7396 = vld [vmem:[#allocation2 + $0x708] sm:$0xff]
    %v7397 = vld [vmem:[#allocation2 + $0x710] sm:$0xff]
    %v7398 = vld [vmem:[#allocation2 + $0x718] sm:$0xff]
    %v7399 = vld [vmem:[#allocation2 + $0x720] sm:$0xff]
    %v7400 = vld [vmem:[#allocation2 + $0x728] sm:$0xff]
    %7406 = vrot.lane.b32.xlu0 %v7396, 96
    %v7407 = vpop.permute.xlu0 %7406
    %7408 = vrot.lane.b32.xlu0 %v7397, 96
    %v7409 = vpop.permute.xlu0 %7408
    %7410 = vrot.lane.b32.xlu0 %v7398, 96
    %v7411 = vpop.permute.xlu0 %7410
    %7412 = vrot.lane.b32.xlu0 %v7399, 96
    %v7413 = vpop.permute.xlu0 %7412
    %7414 = vrot.lane.b32.xlu0 %v7400, 96
    %v7415 = vpop.permute.xlu0 %7414
    %v7421 = vadd.f32 %v7391, %v7407
    %v7422 = vadd.f32 %v7392, %v7409
    %v7423 = vadd.f32 %v7393, %v7411
    %v7424 = vadd.f32 %v7394, %v7413
    %v7425 = vadd.f32 %v7395, %v7415
    %v7426 = vld [vmem:[#allocation2 + $0x730] sm:$0xff]
    %v7427 = vld [vmem:[#allocation2 + $0x738] sm:$0xff]
    %v7428 = vld [vmem:[#allocation2 + $0x740] sm:$0xff]
    %v7429 = vld [vmem:[#allocation2 + $0x748] sm:$0xff]
    %v7430 = vld [vmem:[#allocation2 + $0x750] sm:$0xff]
    %7436 = vrot.lane.b32.xlu0 %v7426, 64
    %v7437 = vpop.permute.xlu0 %7436
    %7438 = vrot.lane.b32.xlu0 %v7427, 64
    %v7439 = vpop.permute.xlu0 %7438
    %7440 = vrot.lane.b32.xlu0 %v7428, 64
    %v7441 = vpop.permute.xlu0 %7440
    %7442 = vrot.lane.b32.xlu0 %v7429, 64
    %v7443 = vpop.permute.xlu0 %7442
    %7444 = vrot.lane.b32.xlu0 %v7430, 64
    %v7445 = vpop.permute.xlu0 %7444
    %v7451 = vadd.f32 %v7421, %v7437
    %v7452 = vadd.f32 %v7422, %v7439
    %v7453 = vadd.f32 %v7423, %v7441
    %v7454 = vadd.f32 %v7424, %v7443
    %v7455 = vadd.f32 %v7425, %v7445
    %v7456 = vadd.f32 %v7451, %v3271
    %v7457 = vadd.f32 %v7452, %v3271
    %v7458 = vadd.f32 %v7453, %v3271
    %v7459 = vadd.f32 %v7454, %v3271
    %v7460 = vadd.f32 %v7455, %v3271
    %v7461 = vmax.f32 %v7456, 0.0
    %v7462 = vmax.f32 %v7457, 0.0
    %v7463 = vmax.f32 %v7458, 0.0
    %v7464 = vmax.f32 %v7459, 0.0
    %v7465 = vmax.f32 %v7460, 0.0
    %7466 = vst.msk [vmem:[#allocation3 + $0x58] sm:$0xff] %vm3282, %v7461
    %7467 = vst.msk [vmem:[#allocation3 + $0xc0] sm:$0xff] %vm3282, %v7462
    %7468 = vst.msk [vmem:[#allocation3 + $0x128] sm:$0xff] %vm3282, %v7463
    %7469 = vst.msk [vmem:[#allocation3 + $0x190] sm:$0xff] %vm3282, %v7464
    %7470 = vst.msk [vmem:[#allocation3 + $0x1f8] sm:$0xff] %vm3282, %v7465
    %v7471 = vld [vmem:[#allocation2 + $0x708] sm:$0xff]
    %v7472 = vld [vmem:[#allocation2 + $0x710] sm:$0xff]
    %v7473 = vld [vmem:[#allocation2 + $0x718] sm:$0xff]
    %v7474 = vld [vmem:[#allocation2 + $0x720] sm:$0xff]
    %v7475 = vld [vmem:[#allocation2 + $0x728] sm:$0xff]
    %v7476 = vld [vmem:[#allocation2 + $0x730] sm:$0xff]
    %v7477 = vld [vmem:[#allocation2 + $0x738] sm:$0xff]
    %v7478 = vld [vmem:[#allocation2 + $0x740] sm:$0xff]
    %v7479 = vld [vmem:[#allocation2 + $0x748] sm:$0xff]
    %v7480 = vld [vmem:[#allocation2 + $0x750] sm:$0xff]
    %7486 = vrot.lane.b32.xlu0 %v7476, 96
    %v7487 = vpop.permute.xlu0 %7486
    %7488 = vrot.lane.b32.xlu0 %v7477, 96
    %v7489 = vpop.permute.xlu0 %7488
    %7490 = vrot.lane.b32.xlu0 %v7478, 96
    %v7491 = vpop.permute.xlu0 %7490
    %7492 = vrot.lane.b32.xlu0 %v7479, 96
    %v7493 = vpop.permute.xlu0 %7492
    %7494 = vrot.lane.b32.xlu0 %v7480, 96
    %v7495 = vpop.permute.xlu0 %7494
    %v7501 = vadd.f32 %v7471, %v7487
    %v7502 = vadd.f32 %v7472, %v7489
    %v7503 = vadd.f32 %v7473, %v7491
    %v7504 = vadd.f32 %v7474, %v7493
    %v7505 = vadd.f32 %v7475, %v7495
    %v7506 = vld [vmem:[#allocation2 + $0x758] sm:$0xff]
    %v7507 = vld [vmem:[#allocation2 + $0x760] sm:$0xff]
    %v7508 = vld [vmem:[#allocation2 + $0x768] sm:$0xff]
    %v7509 = vld [vmem:[#allocation2 + $0x770] sm:$0xff]
    %v7510 = vld [vmem:[#allocation2 + $0x778] sm:$0xff]
    %7516 = vrot.lane.b32.xlu0 %v7506, 64
    %v7517 = vpop.permute.xlu0 %7516
    %7518 = vrot.lane.b32.xlu0 %v7507, 64
    %v7519 = vpop.permute.xlu0 %7518
    %7520 = vrot.lane.b32.xlu0 %v7508, 64
    %v7521 = vpop.permute.xlu0 %7520
    %7522 = vrot.lane.b32.xlu0 %v7509, 64
    %v7523 = vpop.permute.xlu0 %7522
    %7524 = vrot.lane.b32.xlu0 %v7510, 64
    %v7525 = vpop.permute.xlu0 %7524
    %v7531 = vadd.f32 %v7501, %v7517
    %v7532 = vadd.f32 %v7502, %v7519
    %v7533 = vadd.f32 %v7503, %v7521
    %v7534 = vadd.f32 %v7504, %v7523
    %v7535 = vadd.f32 %v7505, %v7525
    %v7536 = vadd.f32 %v7531, %v3271
    %v7537 = vadd.f32 %v7532, %v3271
    %v7538 = vadd.f32 %v7533, %v3271
    %v7539 = vadd.f32 %v7534, %v3271
    %v7540 = vadd.f32 %v7535, %v3271
    %v7541 = vmax.f32 %v7536, 0.0
    %v7542 = vmax.f32 %v7537, 0.0
    %v7543 = vmax.f32 %v7538, 0.0
    %v7544 = vmax.f32 %v7539, 0.0
    %v7545 = vmax.f32 %v7540, 0.0
    %7551 = vrot.lane.b32.xlu0 %v7541, 32
    %v7552 = vpop.permute.xlu0 %7551
    %7553 = vrot.lane.b32.xlu0 %v7542, 32
    %v7554 = vpop.permute.xlu0 %7553
    %7555 = vrot.lane.b32.xlu0 %v7543, 32
    %v7556 = vpop.permute.xlu0 %7555
    %7557 = vrot.lane.b32.xlu0 %v7544, 32
    %v7558 = vpop.permute.xlu0 %7557
    %7559 = vrot.lane.b32.xlu0 %v7545, 32
    %v7560 = vpop.permute.xlu0 %7559
    %7566 = vst.msk [vmem:[#allocation3 + $0x58] sm:$0xff] %vm3383, %v7552
    %7567 = vst.msk [vmem:[#allocation3 + $0xc0] sm:$0xff] %vm3383, %v7554
    %7568 = vst.msk [vmem:[#allocation3 + $0x128] sm:$0xff] %vm3383, %v7556
    %7569 = vst.msk [vmem:[#allocation3 + $0x190] sm:$0xff] %vm3383, %v7558
    %7570 = vst.msk [vmem:[#allocation3 + $0x1f8] sm:$0xff] %vm3383, %v7560
    %v7571 = vld [vmem:[#allocation2 + $0x730] sm:$0xff]
    %v7572 = vld [vmem:[#allocation2 + $0x738] sm:$0xff]
    %v7573 = vld [vmem:[#allocation2 + $0x740] sm:$0xff]
    %v7574 = vld [vmem:[#allocation2 + $0x748] sm:$0xff]
    %v7575 = vld [vmem:[#allocation2 + $0x750] sm:$0xff]
    %v7576 = vld [vmem:[#allocation2 + $0x758] sm:$0xff]
    %v7577 = vld [vmem:[#allocation2 + $0x760] sm:$0xff]
    %v7578 = vld [vmem:[#allocation2 + $0x768] sm:$0xff]
    %v7579 = vld [vmem:[#allocation2 + $0x770] sm:$0xff]
    %v7580 = vld [vmem:[#allocation2 + $0x778] sm:$0xff]
    %7586 = vrot.lane.b32.xlu0 %v7576, 96
    %v7587 = vpop.permute.xlu0 %7586
    %7588 = vrot.lane.b32.xlu0 %v7577, 96
    %v7589 = vpop.permute.xlu0 %7588
    %7590 = vrot.lane.b32.xlu0 %v7578, 96
    %v7591 = vpop.permute.xlu0 %7590
    %7592 = vrot.lane.b32.xlu0 %v7579, 96
    %v7593 = vpop.permute.xlu0 %7592
    %7594 = vrot.lane.b32.xlu0 %v7580, 96
    %v7595 = vpop.permute.xlu0 %7594
    %v7601 = vadd.f32 %v7571, %v7587
    %v7602 = vadd.f32 %v7572, %v7589
    %v7603 = vadd.f32 %v7573, %v7591
    %v7604 = vadd.f32 %v7574, %v7593
    %v7605 = vadd.f32 %v7575, %v7595
    %v7606 = vld [vmem:[#allocation2 + $0x780] sm:$0xff]
    %v7607 = vld [vmem:[#allocation2 + $0x788] sm:$0xff]
    %v7608 = vld [vmem:[#allocation2 + $0x790] sm:$0xff]
    %v7609 = vld [vmem:[#allocation2 + $0x798] sm:$0xff]
    %v7610 = vld [vmem:[#allocation2 + $0x7a0] sm:$0xff]
    %7616 = vrot.lane.b32.xlu0 %v7606, 64
    %v7617 = vpop.permute.xlu0 %7616
    %7618 = vrot.lane.b32.xlu0 %v7607, 64
    %v7619 = vpop.permute.xlu0 %7618
    %7620 = vrot.lane.b32.xlu0 %v7608, 64
    %v7621 = vpop.permute.xlu0 %7620
    %7622 = vrot.lane.b32.xlu0 %v7609, 64
    %v7623 = vpop.permute.xlu0 %7622
    %7624 = vrot.lane.b32.xlu0 %v7610, 64
    %v7625 = vpop.permute.xlu0 %7624
    %v7631 = vadd.f32 %v7601, %v7617
    %v7632 = vadd.f32 %v7602, %v7619
    %v7633 = vadd.f32 %v7603, %v7621
    %v7634 = vadd.f32 %v7604, %v7623
    %v7635 = vadd.f32 %v7605, %v7625
    %v7636 = vadd.f32 %v7631, %v3271
    %v7637 = vadd.f32 %v7632, %v3271
    %v7638 = vadd.f32 %v7633, %v3271
    %v7639 = vadd.f32 %v7634, %v3271
    %v7640 = vadd.f32 %v7635, %v3271
    %v7641 = vmax.f32 %v7636, 0.0
    %v7642 = vmax.f32 %v7637, 0.0
    %v7643 = vmax.f32 %v7638, 0.0
    %v7644 = vmax.f32 %v7639, 0.0
    %v7645 = vmax.f32 %v7640, 0.0
    %7651 = vrot.lane.b32.xlu0 %v7641, 64
    %v7652 = vpop.permute.xlu0 %7651
    %7653 = vrot.lane.b32.xlu0 %v7642, 64
    %v7654 = vpop.permute.xlu0 %7653
    %7655 = vrot.lane.b32.xlu0 %v7643, 64
    %v7656 = vpop.permute.xlu0 %7655
    %7657 = vrot.lane.b32.xlu0 %v7644, 64
    %v7658 = vpop.permute.xlu0 %7657
    %7659 = vrot.lane.b32.xlu0 %v7645, 64
    %v7660 = vpop.permute.xlu0 %7659
    %7666 = vst.msk [vmem:[#allocation3 + $0x58] sm:$0xff] %vm3484, %v7652
    %7667 = vst.msk [vmem:[#allocation3 + $0xc0] sm:$0xff] %vm3484, %v7654
    %7668 = vst.msk [vmem:[#allocation3 + $0x128] sm:$0xff] %vm3484, %v7656
    %7669 = vst.msk [vmem:[#allocation3 + $0x190] sm:$0xff] %vm3484, %v7658
    %7670 = vst.msk [vmem:[#allocation3 + $0x1f8] sm:$0xff] %vm3484, %v7660
    %v7671 = vld [vmem:[#allocation2 + $0x758] sm:$0xff]
    %v7672 = vld [vmem:[#allocation2 + $0x760] sm:$0xff]
    %v7673 = vld [vmem:[#allocation2 + $0x768] sm:$0xff]
    %v7674 = vld [vmem:[#allocation2 + $0x770] sm:$0xff]
    %v7675 = vld [vmem:[#allocation2 + $0x778] sm:$0xff]
    %v7676 = vld [vmem:[#allocation2 + $0x780] sm:$0xff]
    %v7677 = vld [vmem:[#allocation2 + $0x788] sm:$0xff]
    %v7678 = vld [vmem:[#allocation2 + $0x790] sm:$0xff]
    %v7679 = vld [vmem:[#allocation2 + $0x798] sm:$0xff]
    %v7680 = vld [vmem:[#allocation2 + $0x7a0] sm:$0xff]
    %7686 = vrot.lane.b32.xlu0 %v7676, 96
    %v7687 = vpop.permute.xlu0 %7686
    %7688 = vrot.lane.b32.xlu0 %v7677, 96
    %v7689 = vpop.permute.xlu0 %7688
    %7690 = vrot.lane.b32.xlu0 %v7678, 96
    %v7691 = vpop.permute.xlu0 %7690
    %7692 = vrot.lane.b32.xlu0 %v7679, 96
    %v7693 = vpop.permute.xlu0 %7692
    %7694 = vrot.lane.b32.xlu0 %v7680, 96
    %v7695 = vpop.permute.xlu0 %7694
    %v7701 = vadd.f32 %v7671, %v7687
    %v7702 = vadd.f32 %v7672, %v7689
    %v7703 = vadd.f32 %v7673, %v7691
    %v7704 = vadd.f32 %v7674, %v7693
    %v7705 = vadd.f32 %v7675, %v7695
    %v7706 = vld [vmem:[#allocation2 + $0x7a8] sm:$0xff]
    %v7707 = vld [vmem:[#allocation2 + $0x7b0] sm:$0xff]
    %v7708 = vld [vmem:[#allocation2 + $0x7b8] sm:$0xff]
    %v7709 = vld [vmem:[#allocation2 + $0x7c0] sm:$0xff]
    %v7710 = vld [vmem:[#allocation2 + $0x7c8] sm:$0xff]
    %7716 = vrot.lane.b32.xlu0 %v7706, 64
    %v7717 = vpop.permute.xlu0 %7716
    %7718 = vrot.lane.b32.xlu0 %v7707, 64
    %v7719 = vpop.permute.xlu0 %7718
    %7720 = vrot.lane.b32.xlu0 %v7708, 64
    %v7721 = vpop.permute.xlu0 %7720
    %7722 = vrot.lane.b32.xlu0 %v7709, 64
    %v7723 = vpop.permute.xlu0 %7722
    %7724 = vrot.lane.b32.xlu0 %v7710, 64
    %v7725 = vpop.permute.xlu0 %7724
    %v7731 = vadd.f32 %v7701, %v7717
    %v7732 = vadd.f32 %v7702, %v7719
    %v7733 = vadd.f32 %v7703, %v7721
    %v7734 = vadd.f32 %v7704, %v7723
    %v7735 = vadd.f32 %v7705, %v7725
    %v7736 = vadd.f32 %v7731, %v3271
    %v7737 = vadd.f32 %v7732, %v3271
    %v7738 = vadd.f32 %v7733, %v3271
    %v7739 = vadd.f32 %v7734, %v3271
    %v7740 = vadd.f32 %v7735, %v3271
    %v7741 = vmax.f32 %v7736, 0.0
    %v7742 = vmax.f32 %v7737, 0.0
    %v7743 = vmax.f32 %v7738, 0.0
    %v7744 = vmax.f32 %v7739, 0.0
    %v7745 = vmax.f32 %v7740, 0.0
    %7751 = vrot.lane.b32.xlu0 %v7741, 96
    %v7752 = vpop.permute.xlu0 %7751
    %7753 = vrot.lane.b32.xlu0 %v7742, 96
    %v7754 = vpop.permute.xlu0 %7753
    %7755 = vrot.lane.b32.xlu0 %v7743, 96
    %v7756 = vpop.permute.xlu0 %7755
    %7757 = vrot.lane.b32.xlu0 %v7744, 96
    %v7758 = vpop.permute.xlu0 %7757
    %7759 = vrot.lane.b32.xlu0 %v7745, 96
    %v7760 = vpop.permute.xlu0 %7759
    %7766 = vst.msk [vmem:[#allocation3 + $0x58] sm:$0xff] %vm3585, %v7752
    %7767 = vst.msk [vmem:[#allocation3 + $0xc0] sm:$0xff] %vm3585, %v7754
    %7768 = vst.msk [vmem:[#allocation3 + $0x128] sm:$0xff] %vm3585, %v7756
    %7769 = vst.msk [vmem:[#allocation3 + $0x190] sm:$0xff] %vm3585, %v7758
    %7770 = vst.msk [vmem:[#allocation3 + $0x1f8] sm:$0xff] %vm3585, %v7760
    %v7771 = vld [vmem:[#allocation2 + $0x780] sm:$0xff]
    %v7772 = vld [vmem:[#allocation2 + $0x788] sm:$0xff]
    %v7773 = vld [vmem:[#allocation2 + $0x790] sm:$0xff]
    %v7774 = vld [vmem:[#allocation2 + $0x798] sm:$0xff]
    %v7775 = vld [vmem:[#allocation2 + $0x7a0] sm:$0xff]
    %v7776 = vld [vmem:[#allocation2 + $0x7a8] sm:$0xff]
    %v7777 = vld [vmem:[#allocation2 + $0x7b0] sm:$0xff]
    %v7778 = vld [vmem:[#allocation2 + $0x7b8] sm:$0xff]
    %v7779 = vld [vmem:[#allocation2 + $0x7c0] sm:$0xff]
    %v7780 = vld [vmem:[#allocation2 + $0x7c8] sm:$0xff]
    %7786 = vrot.lane.b32.xlu0 %v7776, 96
    %v7787 = vpop.permute.xlu0 %7786
    %7788 = vrot.lane.b32.xlu0 %v7777, 96
    %v7789 = vpop.permute.xlu0 %7788
    %7790 = vrot.lane.b32.xlu0 %v7778, 96
    %v7791 = vpop.permute.xlu0 %7790
    %7792 = vrot.lane.b32.xlu0 %v7779, 96
    %v7793 = vpop.permute.xlu0 %7792
    %7794 = vrot.lane.b32.xlu0 %v7780, 96
    %v7795 = vpop.permute.xlu0 %7794
    %v7801 = vadd.f32 %v7771, %v7787
    %v7802 = vadd.f32 %v7772, %v7789
    %v7803 = vadd.f32 %v7773, %v7791
    %v7804 = vadd.f32 %v7774, %v7793
    %v7805 = vadd.f32 %v7775, %v7795
    %v7806 = vld [vmem:[#allocation2 + $0x7d0] sm:$0xff]
    %v7807 = vld [vmem:[#allocation2 + $0x7d8] sm:$0xff]
    %v7808 = vld [vmem:[#allocation2 + $0x7e0] sm:$0xff]
    %v7809 = vld [vmem:[#allocation2 + $0x7e8] sm:$0xff]
    %v7810 = vld [vmem:[#allocation2 + $0x7f0] sm:$0xff]
    %7816 = vrot.lane.b32.xlu0 %v7806, 64
    %v7817 = vpop.permute.xlu0 %7816
    %7818 = vrot.lane.b32.xlu0 %v7807, 64
    %v7819 = vpop.permute.xlu0 %7818
    %7820 = vrot.lane.b32.xlu0 %v7808, 64
    %v7821 = vpop.permute.xlu0 %7820
    %7822 = vrot.lane.b32.xlu0 %v7809, 64
    %v7823 = vpop.permute.xlu0 %7822
    %7824 = vrot.lane.b32.xlu0 %v7810, 64
    %v7825 = vpop.permute.xlu0 %7824
    %v7831 = vadd.f32 %v7801, %v7817
    %v7832 = vadd.f32 %v7802, %v7819
    %v7833 = vadd.f32 %v7803, %v7821
    %v7834 = vadd.f32 %v7804, %v7823
    %v7835 = vadd.f32 %v7805, %v7825
    %v7836 = vadd.f32 %v7831, %v3271
    %v7837 = vadd.f32 %v7832, %v3271
    %v7838 = vadd.f32 %v7833, %v3271
    %v7839 = vadd.f32 %v7834, %v3271
    %v7840 = vadd.f32 %v7835, %v3271
    %v7841 = vmax.f32 %v7836, 0.0
    %v7842 = vmax.f32 %v7837, 0.0
    %v7843 = vmax.f32 %v7838, 0.0
    %v7844 = vmax.f32 %v7839, 0.0
    %v7845 = vmax.f32 %v7840, 0.0
    %7846 = vst.msk [vmem:[#allocation3 + $0x60] sm:$0xff] %vm3282, %v7841
    %7847 = vst.msk [vmem:[#allocation3 + $0xc8] sm:$0xff] %vm3282, %v7842
    %7848 = vst.msk [vmem:[#allocation3 + $0x130] sm:$0xff] %vm3282, %v7843
    %7849 = vst.msk [vmem:[#allocation3 + $0x198] sm:$0xff] %vm3282, %v7844
    %7850 = vst.msk [vmem:[#allocation3 + $0x200] sm:$0xff] %vm3282, %v7845
    %v7851 = vld [vmem:[#allocation3] sm:$0xff]
    %v7852 = vld [vmem:[#allocation3 + $0x8] sm:$0xff]
    %v7853 = vld [vmem:[#allocation3 + $0x10] sm:$0xff]
    %v7854 = vld [vmem:[#allocation3 + $0x18] sm:$0xff]
    %v7855 = vld [vmem:[#allocation3 + $0x20] sm:$0xff]
    %v7856 = vld [vmem:[#allocation3 + $0x28] sm:$0xff]
    %v7857 = vld [vmem:[#allocation3 + $0x30] sm:$0xff]
    %v7858 = vld [vmem:[#allocation3 + $0x38] sm:$0xff]
    %v7859 = vld [vmem:[#allocation3 + $0x40] sm:$0xff]
    %v7860 = vld [vmem:[#allocation3 + $0x48] sm:$0xff]
    %v7861 = vld [vmem:[#allocation3 + $0x50] sm:$0xff]
    %v7862 = vld [vmem:[#allocation3 + $0x58] sm:$0xff]
    %v7863 = vld [vmem:[#allocation3 + $0x60] sm:$0xff]
    %v7864 = vld [vmem:[#allocation3 + $0x68] sm:$0xff]
    %v7865 = vld [vmem:[#allocation3 + $0x70] sm:$0xff]
    %v7866 = vld [vmem:[#allocation3 + $0x78] sm:$0xff]
    %v7867 = vld [vmem:[#allocation3 + $0x80] sm:$0xff]
    %v7868 = vld [vmem:[#allocation3 + $0x88] sm:$0xff]
    %v7869 = vld [vmem:[#allocation3 + $0x90] sm:$0xff]
    %v7870 = vld [vmem:[#allocation3 + $0x98] sm:$0xff]
    %v7871 = vld [vmem:[#allocation3 + $0xa0] sm:$0xff]
    %v7872 = vld [vmem:[#allocation3 + $0xa8] sm:$0xff]
    %v7873 = vld [vmem:[#allocation3 + $0xb0] sm:$0xff]
    %v7874 = vld [vmem:[#allocation3 + $0xb8] sm:$0xff]
    %v7875 = vld [vmem:[#allocation3 + $0xc0] sm:$0xff]
    %v7876 = vld [vmem:[#allocation3 + $0xc8] sm:$0xff]
    %v7877 = vld [vmem:[#allocation3 + $0xd0] sm:$0xff]
    %v7878 = vld [vmem:[#allocation3 + $0xd8] sm:$0xff]
    %v7879 = vld [vmem:[#allocation3 + $0xe0] sm:$0xff]
    %v7880 = vld [vmem:[#allocation3 + $0xe8] sm:$0xff]
    %v7881 = vld [vmem:[#allocation3 + $0xf0] sm:$0xff]
    %v7882 = vld [vmem:[#allocation3 + $0xf8] sm:$0xff]
    %v7883 = vld [vmem:[#allocation3 + $0x100] sm:$0xff]
    %v7884 = vld [vmem:[#allocation3 + $0x108] sm:$0xff]
    %v7885 = vld [vmem:[#allocation3 + $0x110] sm:$0xff]
    %v7886 = vld [vmem:[#allocation3 + $0x118] sm:$0xff]
    %v7887 = vld [vmem:[#allocation3 + $0x120] sm:$0xff]
    %v7888 = vld [vmem:[#allocation3 + $0x128] sm:$0xff]
    %v7889 = vld [vmem:[#allocation3 + $0x130] sm:$0xff]
    %v7890 = vld [vmem:[#allocation3 + $0x138] sm:$0xff]
    %v7891 = vld [vmem:[#allocation3 + $0x140] sm:$0xff]
    %v7892 = vld [vmem:[#allocation3 + $0x148] sm:$0xff]
    %v7893 = vld [vmem:[#allocation3 + $0x150] sm:$0xff]
    %v7894 = vld [vmem:[#allocation3 + $0x158] sm:$0xff]
    %v7895 = vld [vmem:[#allocation3 + $0x160] sm:$0xff]
    %v7896 = vld [vmem:[#allocation3 + $0x168] sm:$0xff]
    %v7897 = vld [vmem:[#allocation3 + $0x170] sm:$0xff]
    %v7898 = vld [vmem:[#allocation3 + $0x178] sm:$0xff]
    %v7899 = vld [vmem:[#allocation3 + $0x180] sm:$0xff]
    %v7900 = vld [vmem:[#allocation3 + $0x188] sm:$0xff]
    %v7901 = vld [vmem:[#allocation3 + $0x190] sm:$0xff]
    %v7902 = vld [vmem:[#allocation3 + $0x198] sm:$0xff]
    %v7903 = vld [vmem:[#allocation3 + $0x1a0] sm:$0xff]
    %v7904 = vld [vmem:[#allocation3 + $0x1a8] sm:$0xff]
    %v7905 = vld [vmem:[#allocation3 + $0x1b0] sm:$0xff]
    %v7906 = vld [vmem:[#allocation3 + $0x1b8] sm:$0xff]
    %v7907 = vld [vmem:[#allocation3 + $0x1c0] sm:$0xff]
    %v7908 = vld [vmem:[#allocation3 + $0x1c8] sm:$0xff]
    %v7909 = vld [vmem:[#allocation3 + $0x1d0] sm:$0xff]
    %v7910 = vld [vmem:[#allocation3 + $0x1d8] sm:$0xff]
    %v7911 = vld [vmem:[#allocation3 + $0x1e0] sm:$0xff]
    %v7912 = vld [vmem:[#allocation3 + $0x1e8] sm:$0xff]
    %v7913 = vld [vmem:[#allocation3 + $0x1f0] sm:$0xff]
    %v7914 = vld [vmem:[#allocation3 + $0x1f8] sm:$0xff]
    %v7915 = vld [vmem:[#allocation3 + $0x200] sm:$0xff]
    %v7916 = vpack.c.bf16 %v7864, %v7851
    %v7917 = vpack.c.bf16 %v7865, %v7852
    %v7918 = vpack.c.bf16 %v7866, %v7853
    %v7919 = vpack.c.bf16 %v7867, %v7854
    %v7920 = vpack.c.bf16 %v7868, %v7855
    %v7921 = vpack.c.bf16 %v7869, %v7856
    %v7922 = vpack.c.bf16 %v7870, %v7857
    %v7923 = vpack.c.bf16 %v7871, %v7858
    %v7924 = vpack.c.bf16 %v7872, %v7859
    %v7925 = vpack.c.bf16 %v7873, %v7860
    %v7926 = vpack.c.bf16 %v7874, %v7861
    %v7927 = vpack.c.bf16 %v7875, %v7862
    %v7928 = vpack.c.bf16 %v7876, %v7863
    %v7929 = vpack.c.bf16 %v7890, %v7877
    %v7930 = vpack.c.bf16 %v7891, %v7878
    %v7931 = vpack.c.bf16 %v7892, %v7879
    %v7932 = vpack.c.bf16 %v7893, %v7880
    %v7933 = vpack.c.bf16 %v7894, %v7881
    %v7934 = vpack.c.bf16 %v7895, %v7882
    %v7935 = vpack.c.bf16 %v7896, %v7883
    %v7936 = vpack.c.bf16 %v7897, %v7884
    %v7937 = vpack.c.bf16 %v7898, %v7885
    %v7938 = vpack.c.bf16 %v7899, %v7886
    %v7939 = vpack.c.bf16 %v7900, %v7887
    %v7940 = vpack.c.bf16 %v7901, %v7888
    %v7941 = vpack.c.bf16 %v7902, %v7889
    %v7942 = vpack.c.bf16 %v7903, %v7903
    %v7943 = vpack.c.bf16 %v7904, %v7904
    %v7944 = vpack.c.bf16 %v7905, %v7905
    %v7945 = vpack.c.bf16 %v7906, %v7906
    %v7946 = vpack.c.bf16 %v7907, %v7907
    %v7947 = vpack.c.bf16 %v7908, %v7908
    %v7948 = vpack.c.bf16 %v7909, %v7909
    %v7949 = vpack.c.bf16 %v7910, %v7910
    %v7950 = vpack.c.bf16 %v7911, %v7911
    %v7951 = vpack.c.bf16 %v7912, %v7912
    %v7952 = vpack.c.bf16 %v7913, %v7913
    %v7953 = vpack.c.bf16 %v7914, %v7914
    %v7954 = vpack.c.bf16 %v7915, %v7915
    %v7955 = vld [vmem:[%s3] sm:$0xf]
    %v7956 = vld [vmem:[%s3 + $0x4] sm:$0xf]
    %v7957 = vld [vmem:[%s3 + $0x8] sm:$0xf]
    %v7958 = vld [vmem:[%s3 + $0xc] sm:$0xf]
    %v7959 = vld [vmem:[%s3 + $0x10] sm:$0xf]
    %v7960 = vld [vmem:[%s3 + $0x14] sm:$0xf]
    %v7961 = vld [vmem:[%s3 + $0x18] sm:$0xf]
    %v7962 = vld [vmem:[%s3 + $0x1c] sm:$0xf]
    %v7963 = vld [vmem:[%s3 + $0x20] sm:$0xf]
    %v7964 = vld [vmem:[%s3 + $0x24] sm:$0xf]
    %v7965 = vld [vmem:[%s3 + $0x28] sm:$0xf]
    %v7966 = vld [vmem:[%s3 + $0x2c] sm:$0xf]
    %v7967 = vld [vmem:[%s3 + $0x30] sm:$0xf]
    %v7968 = vld [vmem:[%s3 + $0x34] sm:$0xf]
    %v7969 = vld [vmem:[%s3 + $0x38] sm:$0xf]
    %v7970 = vld [vmem:[%s3 + $0x3c] sm:$0xf]
    %v7971 = vld [vmem:[%s3 + $0x40] sm:$0xf]
    %v7972 = vld [vmem:[%s3 + $0x44] sm:$0xf]
    %v7973 = vld [vmem:[%s3 + $0x48] sm:$0xf]
    %v7974 = vld [vmem:[%s3 + $0x4c] sm:$0xf]
    %v7975 = vld [vmem:[%s3 + $0x50] sm:$0xf]
    %v7976 = vld [vmem:[%s3 + $0x54] sm:$0xf]
    %v7977 = vld [vmem:[%s3 + $0x58] sm:$0xf]
    %v7978 = vld [vmem:[%s3 + $0x5c] sm:$0xf]
    %v7979 = vld [vmem:[%s3 + $0x60] sm:$0xf]
    %v7980 = vld [vmem:[%s3 + $0x64] sm:$0xf]
    %v7981 = vld [vmem:[%s3 + $0x68] sm:$0xf]
    %v7982 = vld [vmem:[%s3 + $0x6c] sm:$0xf]
    %v7983 = vld [vmem:[%s3 + $0x70] sm:$0xf]
    %v7984 = vld [vmem:[%s3 + $0x74] sm:$0xf]
    %v7985 = vld [vmem:[%s3 + $0x78] sm:$0xf]
    %v7986 = vld [vmem:[%s3 + $0x7c] sm:$0xf]
    %v7987 = vld [vmem:[%s3 + $0x80] sm:$0xf]
    %v7988 = vld [vmem:[%s3 + $0x84] sm:$0xf]
    %v7989 = vld [vmem:[%s3 + $0x88] sm:$0xf]
    %v7990 = vld [vmem:[%s3 + $0x8c] sm:$0xf]
    %v7991 = vld [vmem:[%s3 + $0x90] sm:$0xf]
    %v7992 = vld [vmem:[%s3 + $0x94] sm:$0xf]
    %v7993 = vld [vmem:[%s3 + $0x98] sm:$0xf]
    %v7994 = vld [vmem:[%s3 + $0x9c] sm:$0xf]
    %v7995 = vld [vmem:[%s3 + $0xa0] sm:$0xf]
    %v7996 = vld [vmem:[%s3 + $0xa4] sm:$0xf]
    %v7997 = vld [vmem:[%s3 + $0xa8] sm:$0xf]
    %v7998 = vld [vmem:[%s3 + $0xac] sm:$0xf]
    %v7999 = vld [vmem:[%s3 + $0xb0] sm:$0xf]
    %v8000 = vld [vmem:[%s3 + $0xb4] sm:$0xf]
    %v8001 = vld [vmem:[%s3 + $0xb8] sm:$0xf]
    %v8002 = vld [vmem:[%s3 + $0xbc] sm:$0xf]
    %v8003 = vld [vmem:[%s3 + $0xc0] sm:$0xf]
    %v8004 = vld [vmem:[%s3 + $0xc4] sm:$0xf]
    %v8005 = vld [vmem:[%s3 + $0xc8] sm:$0xf]
    %v8006 = vld [vmem:[%s3 + $0xcc] sm:$0xf]
    %v8007 = vld [vmem:[%s3 + $0xd0] sm:$0xf]
    %v8008 = vld [vmem:[%s3 + $0xd4] sm:$0xf]
    %v8009 = vld [vmem:[%s3 + $0xd8] sm:$0xf]
    %v8010 = vld [vmem:[%s3 + $0xdc] sm:$0xf]
    %v8011 = vld [vmem:[%s3 + $0xe0] sm:$0xf]
    %v8012 = vld [vmem:[%s3 + $0xe4] sm:$0xf]
    %v8013 = vld [vmem:[%s3 + $0xe8] sm:$0xf]
    %v8014 = vld [vmem:[%s3 + $0xec] sm:$0xf]
    %v8015 = vld [vmem:[%s3 + $0xf0] sm:$0xf]
    %v8016 = vld [vmem:[%s3 + $0xf4] sm:$0xf]
    %v8017 = vld [vmem:[%s3 + $0xf8] sm:$0xf]
    %v8018 = vld [vmem:[%s3 + $0xfc] sm:$0xf]
    %v8019 = vld [vmem:[%s3 + $0x100] sm:$0xf]
    %v8020 = vld [vmem:[%s3 + $0x104] sm:$0xf]
    %v8021 = vld [vmem:[%s3 + $0x108] sm:$0xf]
    %v8022 = vld [vmem:[%s3 + $0x10c] sm:$0xf]
    %v8023 = vld [vmem:[%s3 + $0x110] sm:$0xf]
    %v8024 = vld [vmem:[%s3 + $0x114] sm:$0xf]
    %v8025 = vld [vmem:[%s3 + $0x118] sm:$0xf]
    %v8026 = vld [vmem:[%s3 + $0x11c] sm:$0xf]
    %v8027 = vld [vmem:[%s3 + $0x120] sm:$0xf]
    %v8028 = vld [vmem:[%s3 + $0x124] sm:$0xf]
    %v8029 = vld [vmem:[%s3 + $0x128] sm:$0xf]
    %v8030 = vld [vmem:[%s3 + $0x12c] sm:$0xf]
    %v8031 = vld [vmem:[%s3 + $0x130] sm:$0xf]
    %v8032 = vld [vmem:[%s3 + $0x134] sm:$0xf]
    %v8033 = vld [vmem:[%s3 + $0x138] sm:$0xf]
    %v8034 = vld [vmem:[%s3 + $0x13c] sm:$0xf]
    %v8035 = vld [vmem:[%s3 + $0x140] sm:$0xf]
    %v8036 = vld [vmem:[%s3 + $0x144] sm:$0xf]
    %v8037 = vld [vmem:[%s3 + $0x148] sm:$0xf]
    %v8038 = vld [vmem:[%s3 + $0x14c] sm:$0xf]
    %v8039 = vld [vmem:[%s3 + $0x150] sm:$0xf]
    %v8040 = vld [vmem:[%s3 + $0x154] sm:$0xf]
    %v8041 = vld [vmem:[%s3 + $0x158] sm:$0xf]
    %v8042 = vld [vmem:[%s3 + $0x15c] sm:$0xf]
    %v8043 = vld [vmem:[%s3 + $0x160] sm:$0xf]
    %v8044 = vld [vmem:[%s3 + $0x164] sm:$0xf]
    %v8045 = vld [vmem:[%s3 + $0x168] sm:$0xf]
    %v8046 = vld [vmem:[%s3 + $0x16c] sm:$0xf]
    %v8047 = vld [vmem:[%s3 + $0x170] sm:$0xf]
    %v8048 = vld [vmem:[%s3 + $0x174] sm:$0xf]
    %v8049 = vld [vmem:[%s3 + $0x178] sm:$0xf]
    %v8050 = vld [vmem:[%s3 + $0x17c] sm:$0xf]
    %v8051 = vld [vmem:[%s3 + $0x180] sm:$0xf]
    %v8052 = vld [vmem:[%s3 + $0x184] sm:$0xf]
    %v8053 = vld [vmem:[%s3 + $0x188] sm:$0xf]
    %v8054 = vld [vmem:[%s3 + $0x18c] sm:$0xf]
    %v8055 = vld [vmem:[%s3 + $0x190] sm:$0xf]
    %v8056 = vld [vmem:[%s3 + $0x194] sm:$0xf]
    %v8057 = vld [vmem:[%s3 + $0x198] sm:$0xf]
    %v8058 = vld [vmem:[%s3 + $0x19c] sm:$0xf]
    %v8059 = vld [vmem:[%s3 + $0x1a0] sm:$0xf]
    %v8060 = vld [vmem:[%s3 + $0x1a4] sm:$0xf]
    %v8061 = vld [vmem:[%s3 + $0x1a8] sm:$0xf]
    %v8062 = vld [vmem:[%s3 + $0x1ac] sm:$0xf]
    %v8063 = vld [vmem:[%s3 + $0x1b0] sm:$0xf]
    %v8064 = vld [vmem:[%s3 + $0x1b4] sm:$0xf]
    %v8065 = vld [vmem:[%s3 + $0x1b8] sm:$0xf]
    %v8066 = vld [vmem:[%s3 + $0x1bc] sm:$0xf]
    %v8067 = vld [vmem:[%s3 + $0x1c0] sm:$0xf]
    %v8068 = vld [vmem:[%s3 + $0x1c4] sm:$0xf]
    %v8069 = vld [vmem:[%s3 + $0x1c8] sm:$0xf]
    %v8070 = vld [vmem:[%s3 + $0x1cc] sm:$0xf]
    %v8071 = vld [vmem:[%s3 + $0x1d0] sm:$0xf]
    %v8072 = vld [vmem:[%s3 + $0x1d4] sm:$0xf]
    %v8073 = vld [vmem:[%s3 + $0x1d8] sm:$0xf]
    %v8074 = vld [vmem:[%s3 + $0x1dc] sm:$0xf]
    %v8075 = vld [vmem:[%s3 + $0x1e0] sm:$0xf]
    %v8076 = vld [vmem:[%s3 + $0x1e4] sm:$0xf]
    %v8077 = vld [vmem:[%s3 + $0x1e8] sm:$0xf]
    %v8078 = vld [vmem:[%s3 + $0x1ec] sm:$0xf]
    %v8079 = vld [vmem:[%s3 + $0x1f0] sm:$0xf]
    %v8080 = vld [vmem:[%s3 + $0x1f4] sm:$0xf]
    %v8081 = vld [vmem:[%s3 + $0x1f8] sm:$0xf]
    %v8082 = vld [vmem:[%s3 + $0x1fc] sm:$0xf]
    %v8083 = vld [vmem:[%s3 + $0x200] sm:$0xf]
    %v8084 = vld [vmem:[%s3 + $0x204] sm:$0xf]
    %v8085 = vld [vmem:[%s3 + $0x208] sm:$0xf]
    %v8086 = vld [vmem:[%s3 + $0x20c] sm:$0xf]
    %v8087 = vld [vmem:[%s3 + $0x210] sm:$0xf]
    %v8088 = vld [vmem:[%s3 + $0x214] sm:$0xf]
    %v8089 = vld [vmem:[%s3 + $0x218] sm:$0xf]
    %v8090 = vld [vmem:[%s3 + $0x21c] sm:$0xf]
    %v8091 = vld [vmem:[%s3 + $0x220] sm:$0xf]
    %v8092 = vld [vmem:[%s3 + $0x224] sm:$0xf]
    %v8093 = vld [vmem:[%s3 + $0x228] sm:$0xf]
    %v8094 = vld [vmem:[%s3 + $0x22c] sm:$0xf]
    %v8095 = vld [vmem:[%s3 + $0x230] sm:$0xf]
    %v8096 = vld [vmem:[%s3 + $0x234] sm:$0xf]
    %v8097 = vld [vmem:[%s3 + $0x238] sm:$0xf]
    %v8098 = vld [vmem:[%s3 + $0x23c] sm:$0xf]
    %v8099 = vld [vmem:[%s3 + $0x240] sm:$0xf]
    %v8100 = vld [vmem:[%s3 + $0x244] sm:$0xf]
    %v8101 = vld [vmem:[%s3 + $0x248] sm:$0xf]
    %v8102 = vld [vmem:[%s3 + $0x24c] sm:$0xf]
    %v8103 = vld [vmem:[%s3 + $0x250] sm:$0xf]
    %v8104 = vld [vmem:[%s3 + $0x254] sm:$0xf]
    %v8105 = vld [vmem:[%s3 + $0x258] sm:$0xf]
    %v8106 = vld [vmem:[%s3 + $0x25c] sm:$0xf]
    %v8107 = vld [vmem:[%s3 + $0x260] sm:$0xf]
    %v8108 = vld [vmem:[%s3 + $0x264] sm:$0xf]
    %v8109 = vld [vmem:[%s3 + $0x268] sm:$0xf]
    %v8110 = vld [vmem:[%s3 + $0x26c] sm:$0xf]
    %v8111 = vld [vmem:[%s3 + $0x270] sm:$0xf]
    %v8112 = vld [vmem:[%s3 + $0x274] sm:$0xf]
    %v8113 = vld [vmem:[%s3 + $0x278] sm:$0xf]
    %v8114 = vld [vmem:[%s3 + $0x27c] sm:$0xf]
    %v8115 = vld [vmem:[%s3 + $0x280] sm:$0xf]
    %v8116 = vld [vmem:[%s3 + $0x284] sm:$0xf]
    %v8117 = vld [vmem:[%s3 + $0x288] sm:$0xf]
    %v8118 = vld [vmem:[%s3 + $0x28c] sm:$0xf]
    %v8119 = vld [vmem:[%s3 + $0x290] sm:$0xf]
    %v8120 = vld [vmem:[%s3 + $0x294] sm:$0xf]
    %v8121 = vld [vmem:[%s3 + $0x298] sm:$0xf]
    %v8122 = vld [vmem:[%s3 + $0x29c] sm:$0xf]
    %v8123 = vld [vmem:[%s3 + $0x2a0] sm:$0xf]
    %v8124 = vld [vmem:[%s3 + $0x2a4] sm:$0xf]
    %v8125 = vld [vmem:[%s3 + $0x2a8] sm:$0xf]
    %v8126 = vld [vmem:[%s3 + $0x2ac] sm:$0xf]
    %v8127 = vld [vmem:[%s3 + $0x2b0] sm:$0xf]
    %v8128 = vld [vmem:[%s3 + $0x2b4] sm:$0xf]
    %v8129 = vld [vmem:[%s3 + $0x2b8] sm:$0xf]
    %v8130 = vld [vmem:[%s3 + $0x2bc] sm:$0xf]
    %v8131 = vld [vmem:[%s3 + $0x2c0] sm:$0xf]
    %v8132 = vld [vmem:[%s3 + $0x2c4] sm:$0xf]
    %v8133 = vld [vmem:[%s3 + $0x2c8] sm:$0xf]
    %v8134 = vld [vmem:[%s3 + $0x2cc] sm:$0xf]
    %v8135 = vld [vmem:[%s3 + $0x2d0] sm:$0xf]
    %v8136 = vld [vmem:[%s3 + $0x2d4] sm:$0xf]
    %v8137 = vld [vmem:[%s3 + $0x2d8] sm:$0xf]
    %v8138 = vld [vmem:[%s3 + $0x2dc] sm:$0xf]
    %v8139 = vld [vmem:[%s3 + $0x2e0] sm:$0xf]
    %v8140 = vld [vmem:[%s3 + $0x2e4] sm:$0xf]
    %v8141 = vld [vmem:[%s3 + $0x2e8] sm:$0xf]
    %v8142 = vld [vmem:[%s3 + $0x2ec] sm:$0xf]
    %v8143 = vld [vmem:[%s3 + $0x2f0] sm:$0xf]
    %v8144 = vld [vmem:[%s3 + $0x2f4] sm:$0xf]
    %v8145 = vld [vmem:[%s3 + $0x2f8] sm:$0xf]
    %v8146 = vld [vmem:[%s3 + $0x2fc] sm:$0xf]
    %v8147 = vld [vmem:[%s3 + $0x300] sm:$0xf]
    %v8148 = vld [vmem:[%s3 + $0x304] sm:$0xf]
    %v8149 = vld [vmem:[%s3 + $0x308] sm:$0xf]
    %v8150 = vld [vmem:[%s3 + $0x30c] sm:$0xf]
    %v8151 = vperm.slane %v30, 0
    %v8348 = vunpack.c.l.b16 %v7955
    %v8349 = vunpack.c.l.b16 %v7956
    %v8350 = vunpack.c.l.b16 %v7957
    %v8351 = vunpack.c.l.b16 %v7958
    %v8352 = vunpack.c.l.b16 %v7959
    %v8353 = vunpack.c.l.b16 %v7960
    %v8354 = vunpack.c.l.b16 %v7961
    %v8355 = vunpack.c.l.b16 %v7962
    %v8356 = vunpack.c.l.b16 %v7963
    %v8357 = vunpack.c.l.b16 %v7964
    %v8358 = vunpack.c.l.b16 %v7965
    %v8359 = vunpack.c.l.b16 %v7966
    %v8360 = vunpack.c.l.b16 %v7967
    %v8361 = vunpack.c.l.b16 %v7968
    %v8362 = vunpack.c.l.b16 %v7969
    %v8363 = vunpack.c.l.b16 %v7970
    %v8364 = vunpack.c.l.b16 %v7971
    %v8365 = vunpack.c.l.b16 %v7972
    %v8366 = vunpack.c.l.b16 %v7973
    %v8367 = vunpack.c.l.b16 %v7974
    %v8368 = vunpack.c.l.b16 %v7975
    %v8369 = vunpack.c.l.b16 %v7976
    %v8370 = vunpack.c.l.b16 %v7977
    %v8371 = vunpack.c.l.b16 %v7978
    %v8372 = vunpack.c.l.b16 %v7979
    %v8373 = vunpack.c.l.b16 %v7980
    %v8374 = vunpack.c.l.b16 %v7981
    %v8375 = vunpack.c.l.b16 %v7982
    %v8376 = vunpack.c.l.b16 %v7983
    %v8377 = vunpack.c.l.b16 %v7984
    %v8378 = vunpack.c.l.b16 %v7985
    %v8379 = vunpack.c.l.b16 %v7986
    %v8380 = vunpack.c.l.b16 %v7987
    %v8381 = vunpack.c.l.b16 %v7988
    %v8382 = vunpack.c.l.b16 %v7989
    %v8383 = vunpack.c.l.b16 %v7990
    %v8384 = vunpack.c.l.b16 %v7991
    %v8385 = vunpack.c.l.b16 %v7992
    %v8386 = vunpack.c.l.b16 %v7993
    %v8387 = vunpack.c.l.b16 %v7994
    %v8388 = vunpack.c.l.b16 %v7995
    %v8389 = vunpack.c.l.b16 %v7996
    %v8390 = vunpack.c.l.b16 %v7997
    %v8391 = vunpack.c.l.b16 %v7998
    %v8392 = vunpack.c.l.b16 %v7999
    %v8393 = vunpack.c.l.b16 %v8000
    %v8394 = vunpack.c.l.b16 %v8001
    %v8395 = vunpack.c.l.b16 %v8002
    %v8396 = vunpack.c.l.b16 %v8003
    %v8397 = vunpack.c.l.b16 %v8004
    %v8398 = vunpack.c.l.b16 %v8005
    %v8399 = vunpack.c.l.b16 %v8006
    %v8400 = vunpack.c.l.b16 %v8007
    %v8401 = vunpack.c.l.b16 %v8008
    %v8402 = vunpack.c.l.b16 %v8009
    %v8403 = vunpack.c.l.b16 %v8010
    %v8404 = vunpack.c.l.b16 %v8011
    %v8405 = vunpack.c.l.b16 %v8012
    %v8406 = vunpack.c.l.b16 %v8013
    %v8407 = vunpack.c.l.b16 %v8014
    %v8408 = vunpack.c.l.b16 %v8015
    %v8409 = vunpack.c.l.b16 %v8016
    %v8410 = vunpack.c.l.b16 %v8017
    %v8411 = vunpack.c.l.b16 %v8018
    %v8412 = vunpack.c.l.b16 %v8019
    %v8413 = vunpack.c.l.b16 %v8020
    %v8414 = vunpack.c.l.b16 %v8021
    %v8415 = vunpack.c.l.b16 %v8022
    %v8416 = vunpack.c.l.b16 %v8023
    %v8417 = vunpack.c.l.b16 %v8024
    %v8418 = vunpack.c.l.b16 %v8025
    %v8419 = vunpack.c.l.b16 %v8026
    %v8420 = vunpack.c.l.b16 %v8027
    %v8421 = vunpack.c.l.b16 %v8028
    %v8422 = vunpack.c.l.b16 %v8029
    %v8423 = vunpack.c.l.b16 %v8030
    %v8424 = vunpack.c.l.b16 %v8031
    %v8425 = vunpack.c.l.b16 %v8032
    %v8426 = vunpack.c.l.b16 %v8033
    %v8427 = vunpack.c.l.b16 %v8034
    %v8428 = vunpack.c.l.b16 %v8035
    %v8429 = vunpack.c.l.b16 %v8036
    %v8430 = vunpack.c.l.b16 %v8037
    %v8431 = vunpack.c.l.b16 %v8038
    %v8432 = vunpack.c.l.b16 %v8039
    %v8433 = vunpack.c.l.b16 %v8040
    %v8434 = vunpack.c.l.b16 %v8041
    %v8435 = vunpack.c.l.b16 %v8042
    %v8436 = vunpack.c.l.b16 %v8043
    %v8437 = vunpack.c.l.b16 %v8044
    %v8438 = vunpack.c.l.b16 %v8045
    %v8439 = vunpack.c.l.b16 %v8046
    %v8440 = vunpack.c.l.b16 %v8047
    %v8441 = vunpack.c.l.b16 %v8048
    %v8442 = vunpack.c.l.b16 %v8049
    %v8443 = vunpack.c.l.b16 %v8050
    %v8444 = vunpack.c.l.b16 %v8051
    %v8445 = vunpack.c.l.b16 %v8052
    %v8446 = vunpack.c.l.b16 %v8053
    %v8447 = vunpack.c.l.b16 %v8054
    %v8448 = vunpack.c.l.b16 %v8055
    %v8449 = vunpack.c.l.b16 %v8056
    %v8450 = vunpack.c.l.b16 %v8057
    %v8451 = vunpack.c.l.b16 %v8058
    %v8452 = vunpack.c.l.b16 %v8059
    %v8453 = vunpack.c.l.b16 %v8060
    %v8454 = vunpack.c.l.b16 %v8061
    %v8455 = vunpack.c.l.b16 %v8062
    %v8456 = vunpack.c.l.b16 %v8063
    %v8457 = vunpack.c.l.b16 %v8064
    %v8458 = vunpack.c.l.b16 %v8065
    %v8459 = vunpack.c.l.b16 %v8066
    %v8460 = vunpack.c.l.b16 %v8067
    %v8461 = vunpack.c.l.b16 %v8068
    %v8462 = vunpack.c.l.b16 %v8069
    %v8463 = vunpack.c.l.b16 %v8070
    %v8464 = vunpack.c.l.b16 %v8071
    %v8465 = vunpack.c.l.b16 %v8072
    %v8466 = vunpack.c.l.b16 %v8073
    %v8467 = vunpack.c.l.b16 %v8074
    %v8468 = vunpack.c.l.b16 %v8075
    %v8469 = vunpack.c.l.b16 %v8076
    %v8470 = vunpack.c.l.b16 %v8077
    %v8471 = vunpack.c.l.b16 %v8078
    %v8472 = vunpack.c.l.b16 %v8079
    %v8473 = vunpack.c.l.b16 %v8080
    %v8474 = vunpack.c.l.b16 %v8081
    %v8475 = vunpack.c.l.b16 %v8082
    %v8476 = vunpack.c.l.b16 %v8083
    %v8477 = vunpack.c.l.b16 %v8084
    %v8478 = vunpack.c.l.b16 %v8085
    %v8479 = vunpack.c.l.b16 %v8086
    %v8480 = vunpack.c.l.b16 %v8087
    %v8481 = vunpack.c.l.b16 %v8088
    %v8482 = vunpack.c.l.b16 %v8089
    %v8483 = vunpack.c.l.b16 %v8090
    %v8484 = vunpack.c.l.b16 %v8091
    %v8485 = vunpack.c.l.b16 %v8092
    %v8486 = vunpack.c.l.b16 %v8093
    %v8487 = vunpack.c.l.b16 %v8094
    %v8488 = vunpack.c.l.b16 %v8095
    %v8489 = vunpack.c.l.b16 %v8096
    %v8490 = vunpack.c.l.b16 %v8097
    %v8491 = vunpack.c.l.b16 %v8098
    %v8492 = vunpack.c.l.b16 %v8099
    %v8493 = vunpack.c.l.b16 %v8100
    %v8494 = vunpack.c.l.b16 %v8101
    %v8495 = vunpack.c.l.b16 %v8102
    %v8496 = vunpack.c.l.b16 %v8103
    %v8497 = vunpack.c.l.b16 %v8104
    %v8498 = vunpack.c.l.b16 %v8105
    %v8499 = vunpack.c.l.b16 %v8106
    %v8500 = vunpack.c.l.b16 %v8107
    %v8501 = vunpack.c.l.b16 %v8108
    %v8502 = vunpack.c.l.b16 %v8109
    %v8503 = vunpack.c.l.b16 %v8110
    %v8504 = vunpack.c.l.b16 %v8111
    %v8505 = vunpack.c.l.b16 %v8112
    %v8506 = vunpack.c.l.b16 %v8113
    %v8507 = vunpack.c.l.b16 %v8114
    %v8508 = vunpack.c.l.b16 %v8115
    %v8509 = vunpack.c.l.b16 %v8116
    %v8510 = vunpack.c.l.b16 %v8117
    %v8511 = vunpack.c.l.b16 %v8118
    %v8512 = vunpack.c.l.b16 %v8119
    %v8513 = vunpack.c.l.b16 %v8120
    %v8514 = vunpack.c.l.b16 %v8121
    %v8515 = vunpack.c.l.b16 %v8122
    %v8516 = vunpack.c.l.b16 %v8123
    %v8517 = vunpack.c.l.b16 %v8124
    %v8518 = vunpack.c.l.b16 %v8125
    %v8519 = vunpack.c.l.b16 %v8126
    %v8520 = vunpack.c.l.b16 %v8127
    %v8521 = vunpack.c.l.b16 %v8128
    %v8522 = vunpack.c.l.b16 %v8129
    %v8523 = vunpack.c.l.b16 %v8130
    %v8524 = vunpack.c.l.b16 %v8131
    %v8525 = vunpack.c.l.b16 %v8132
    %v8526 = vunpack.c.l.b16 %v8133
    %v8527 = vunpack.c.l.b16 %v8134
    %v8528 = vunpack.c.l.b16 %v8135
    %v8529 = vunpack.c.l.b16 %v8136
    %v8530 = vunpack.c.l.b16 %v8137
    %v8531 = vunpack.c.l.b16 %v8138
    %v8532 = vunpack.c.l.b16 %v8139
    %v8533 = vunpack.c.l.b16 %v8140
    %v8534 = vunpack.c.l.b16 %v8141
    %v8535 = vunpack.c.l.b16 %v8142
    %v8536 = vunpack.c.l.b16 %v8143
    %v8537 = vunpack.c.l.b16 %v8144
    %v8538 = vunpack.c.l.b16 %v8145
    %v8539 = vunpack.c.l.b16 %v8146
    %v8540 = vunpack.c.l.b16 %v8147
    %v8541 = vunpack.c.l.b16 %v8148
    %v8542 = vunpack.c.l.b16 %v8149
    %v8543 = vunpack.c.l.b16 %v8150
    %v8544 = vpack.c.b16 %v8349, %v8348
    %v8545 = vpack.c.b16 %v8351, %v8350
    %v8546 = vpack.c.b16 %v8353, %v8352
    %v8547 = vpack.c.b16 %v8355, %v8354
    %v8548 = vpack.c.b16 %v8357, %v8356
    %v8549 = vpack.c.b16 %v8359, %v8358
    %v8550 = vpack.c.b16 %v8361, %v8360
    %v8551 = vpack.c.b16 %v8363, %v8362
    %v8552 = vpack.c.b16 %v8365, %v8364
    %v8553 = vpack.c.b16 %v8367, %v8366
    %v8554 = vpack.c.b16 %v8369, %v8368
    %v8555 = vpack.c.b16 %v8371, %v8370
    %v8556 = vpack.c.b16 %v8373, %v8372
    %v8557 = vpack.c.b16 %v8375, %v8374
    %v8558 = vpack.c.b16 %v8377, %v8376
    %v8559 = vpack.c.b16 %v8379, %v8378
    %v8560 = vpack.c.b16 %v8381, %v8380
    %v8561 = vpack.c.b16 %v8383, %v8382
    %v8562 = vpack.c.b16 %v8385, %v8384
    %v8563 = vpack.c.b16 %v8387, %v8386
    %v8564 = vpack.c.b16 %v8389, %v8388
    %v8565 = vpack.c.b16 %v8391, %v8390
    %v8566 = vpack.c.b16 %v8393, %v8392
    %v8567 = vpack.c.b16 %v8395, %v8394
    %v8568 = vpack.c.b16 %v8397, %v8396
    %v8569 = vpack.c.b16 %v8399, %v8398
    %v8570 = vpack.c.b16 %v8401, %v8400
    %v8571 = vpack.c.b16 %v8403, %v8402
    %v8572 = vpack.c.b16 %v8405, %v8404
    %v8573 = vpack.c.b16 %v8407, %v8406
    %v8574 = vpack.c.b16 %v8409, %v8408
    %v8575 = vpack.c.b16 %v8411, %v8410
    %v8576 = vpack.c.b16 %v8413, %v8412
    %v8577 = vpack.c.b16 %v8415, %v8414
    %v8578 = vpack.c.b16 %v8417, %v8416
    %v8579 = vpack.c.b16 %v8419, %v8418
    %v8580 = vpack.c.b16 %v8421, %v8420
    %v8581 = vpack.c.b16 %v8423, %v8422
    %v8582 = vpack.c.b16 %v8425, %v8424
    %v8583 = vpack.c.b16 %v8427, %v8426
    %v8584 = vpack.c.b16 %v8429, %v8428
    %v8585 = vpack.c.b16 %v8431, %v8430
    %v8586 = vpack.c.b16 %v8433, %v8432
    %v8587 = vpack.c.b16 %v8435, %v8434
    %v8588 = vpack.c.b16 %v8437, %v8436
    %v8589 = vpack.c.b16 %v8439, %v8438
    %v8590 = vpack.c.b16 %v8441, %v8440
    %v8591 = vpack.c.b16 %v8443, %v8442
    %v8592 = vpack.c.b16 %v8445, %v8444
    %v8593 = vpack.c.b16 %v8447, %v8446
    %v8594 = vpack.c.b16 %v8449, %v8448
    %v8595 = vpack.c.b16 %v8451, %v8450
    %v8596 = vpack.c.b16 %v8453, %v8452
    %v8597 = vpack.c.b16 %v8455, %v8454
    %v8598 = vpack.c.b16 %v8457, %v8456
    %v8599 = vpack.c.b16 %v8459, %v8458
    %v8600 = vpack.c.b16 %v8461, %v8460
    %v8601 = vpack.c.b16 %v8463, %v8462
    %v8602 = vpack.c.b16 %v8465, %v8464
    %v8603 = vpack.c.b16 %v8467, %v8466
    %v8604 = vpack.c.b16 %v8469, %v8468
    %v8605 = vpack.c.b16 %v8471, %v8470
    %v8606 = vpack.c.b16 %v8473, %v8472
    %v8607 = vpack.c.b16 %v8475, %v8474
    %v8608 = vpack.c.b16 %v8477, %v8476
    %v8609 = vpack.c.b16 %v8479, %v8478
    %v8610 = vpack.c.b16 %v8481, %v8480
    %v8611 = vpack.c.b16 %v8483, %v8482
    %v8612 = vpack.c.b16 %v8485, %v8484
    %v8613 = vpack.c.b16 %v8487, %v8486
    %v8614 = vpack.c.b16 %v8489, %v8488
    %v8615 = vpack.c.b16 %v8491, %v8490
    %v8616 = vpack.c.b16 %v8493, %v8492
    %v8617 = vpack.c.b16 %v8495, %v8494
    %v8618 = vpack.c.b16 %v8497, %v8496
    %v8619 = vpack.c.b16 %v8499, %v8498
    %v8620 = vpack.c.b16 %v8501, %v8500
    %v8621 = vpack.c.b16 %v8503, %v8502
    %v8622 = vpack.c.b16 %v8505, %v8504
    %v8623 = vpack.c.b16 %v8507, %v8506
    %v8624 = vpack.c.b16 %v8509, %v8508
    %v8625 = vpack.c.b16 %v8511, %v8510
    %v8626 = vpack.c.b16 %v8513, %v8512
    %v8627 = vpack.c.b16 %v8515, %v8514
    %v8628 = vpack.c.b16 %v8517, %v8516
    %v8629 = vpack.c.b16 %v8519, %v8518
    %v8630 = vpack.c.b16 %v8521, %v8520
    %v8631 = vpack.c.b16 %v8523, %v8522
    %v8632 = vpack.c.b16 %v8525, %v8524
    %v8633 = vpack.c.b16 %v8527, %v8526
    %v8634 = vpack.c.b16 %v8529, %v8528
    %v8635 = vpack.c.b16 %v8531, %v8530
    %v8636 = vpack.c.b16 %v8533, %v8532
    %v8637 = vpack.c.b16 %v8535, %v8534
    %v8638 = vpack.c.b16 %v8537, %v8536
    %v8639 = vpack.c.b16 %v8539, %v8538
    %v8640 = vpack.c.b16 %v8541, %v8540
    %v8641 = vpack.c.b16 %v8543, %v8542
    %v8741 = vsel %vm3282, %v7928, 0
    %v8744 = vsel %vm3282, %v7941, 0
    %v8747 = vsel %vm3282, %v7954, 0
    %8749 = vmatpush.bf16.msra.mxu0 %v8551
    %8750 = vmatpush.bf16.msra.mxu0 %v8550
    %8751 = vmatpush.bf16.msra.mxu0 %v8549
    %8752 = vmatpush.bf16.msra.mxu0 %v8548
    %8753 = vmatpush.bf16.msra.mxu0 %v8547
    %8754 = vmatpush.bf16.msra.mxu0 %v8546
    %8755 = vmatpush.bf16.msra.mxu0 %v8545
    %8756 = vmatpush.bf16.msra.mxu0 %v8544
    %8757 = vmatmul.bf16.gmra.mxu0 %v7916
    %v8758 = vpop.f32.mrf.mxu0
    %v8759 = vadd.f32 %v8151, %v8758
    %v8760 = vpop.f32.mrf.mxu0
    %v8761 = vadd.f32 %v8151, %v8760
    %8762 = vmatmul.bf16.gmra.mxu0 %v7929
    %v8763 = vpop.f32.mrf.mxu0
    %v8764 = vadd.f32 %v8151, %v8763
    %v8765 = vpop.f32.mrf.mxu0
    %v8766 = vadd.f32 %v8151, %v8765
    %8767 = vmatmul.bf16.gmra.mxu0 %v7942
    %v8768 = vpop.f32.mrf.mxu0
    %v8769 = vadd.f32 %v8151, %v8768
    %v8770 = vpop.f32.mrf.mxu0
    %8771 = vdwg.mxu0
    %8772 = vmatpush.bf16.msra.mxu0 %v8559
    %8773 = vmatpush.bf16.msra.mxu0 %v8558
    %8774 = vmatpush.bf16.msra.mxu0 %v8557
    %8775 = vmatpush.bf16.msra.mxu0 %v8556
    %8776 = vmatpush.bf16.msra.mxu0 %v8555
    %8777 = vmatpush.bf16.msra.mxu0 %v8554
    %8778 = vmatpush.bf16.msra.mxu0 %v8553
    %8779 = vmatpush.bf16.msra.mxu0 %v8552
    %8780 = vmatmul.bf16.gmra.mxu0 %v7917
    %v8781 = vpop.f32.mrf.mxu0
    %v8782 = vadd.f32 %v8759, %v8781
    %v8783 = vpop.f32.mrf.mxu0
    %v8784 = vadd.f32 %v8761, %v8783
    %8785 = vmatmul.bf16.gmra.mxu0 %v7930
    %v8786 = vpop.f32.mrf.mxu0
    %v8787 = vadd.f32 %v8764, %v8786
    %v8788 = vpop.f32.mrf.mxu0
    %v8789 = vadd.f32 %v8766, %v8788
    %8790 = vmatmul.bf16.gmra.mxu0 %v7943
    %v8791 = vpop.f32.mrf.mxu0
    %v8792 = vadd.f32 %v8769, %v8791
    %v8793 = vpop.f32.mrf.mxu0
    %8794 = vdwg.mxu0
    %8795 = vmatpush.bf16.msra.mxu0 %v8567
    %8796 = vmatpush.bf16.msra.mxu0 %v8566
    %8797 = vmatpush.bf16.msra.mxu0 %v8565
    %8798 = vmatpush.bf16.msra.mxu0 %v8564
    %8799 = vmatpush.bf16.msra.mxu0 %v8563
    %8800 = vmatpush.bf16.msra.mxu0 %v8562
    %8801 = vmatpush.bf16.msra.mxu0 %v8561
    %8802 = vmatpush.bf16.msra.mxu0 %v8560
    %8803 = vmatmul.bf16.gmra.mxu0 %v7918
    %v8804 = vpop.f32.mrf.mxu0
    %v8805 = vadd.f32 %v8782, %v8804
    %v8806 = vpop.f32.mrf.mxu0
    %v8807 = vadd.f32 %v8784, %v8806
    %8808 = vmatmul.bf16.gmra.mxu0 %v7931
    %v8809 = vpop.f32.mrf.mxu0
    %v8810 = vadd.f32 %v8787, %v8809
    %v8811 = vpop.f32.mrf.mxu0
    %v8812 = vadd.f32 %v8789, %v8811
    %8813 = vmatmul.bf16.gmra.mxu0 %v7944
    %v8814 = vpop.f32.mrf.mxu0
    %v8815 = vadd.f32 %v8792, %v8814
    %v8816 = vpop.f32.mrf.mxu0
    %8817 = vdwg.mxu0
    %8818 = vmatpush.bf16.msra.mxu0 %v8575
    %8819 = vmatpush.bf16.msra.mxu0 %v8574
    %8820 = vmatpush.bf16.msra.mxu0 %v8573
    %8821 = vmatpush.bf16.msra.mxu0 %v8572
    %8822 = vmatpush.bf16.msra.mxu0 %v8571
    %8823 = vmatpush.bf16.msra.mxu0 %v8570
    %8824 = vmatpush.bf16.msra.mxu0 %v8569
    %8825 = vmatpush.bf16.msra.mxu0 %v8568
    %8826 = vmatmul.bf16.gmra.mxu0 %v7919
    %v8827 = vpop.f32.mrf.mxu0
    %v8828 = vadd.f32 %v8805, %v8827
    %v8829 = vpop.f32.mrf.mxu0
    %v8830 = vadd.f32 %v8807, %v8829
    %8831 = vmatmul.bf16.gmra.mxu0 %v7932
    %v8832 = vpop.f32.mrf.mxu0
    %v8833 = vadd.f32 %v8810, %v8832
    %v8834 = vpop.f32.mrf.mxu0
    %v8835 = vadd.f32 %v8812, %v8834
    %8836 = vmatmul.bf16.gmra.mxu0 %v7945
    %v8837 = vpop.f32.mrf.mxu0
    %v8838 = vadd.f32 %v8815, %v8837
    %v8839 = vpop.f32.mrf.mxu0
    %8840 = vdwg.mxu0
    %8841 = vmatpush.bf16.msra.mxu0 %v8583
    %8842 = vmatpush.bf16.msra.mxu0 %v8582
    %8843 = vmatpush.bf16.msra.mxu0 %v8581
    %8844 = vmatpush.bf16.msra.mxu0 %v8580
    %8845 = vmatpush.bf16.msra.mxu0 %v8579
    %8846 = vmatpush.bf16.msra.mxu0 %v8578
    %8847 = vmatpush.bf16.msra.mxu0 %v8577
    %8848 = vmatpush.bf16.msra.mxu0 %v8576
    %8849 = vmatmul.bf16.gmra.mxu0 %v7920
    %v8850 = vpop.f32.mrf.mxu0
    %v8851 = vadd.f32 %v8828, %v8850
    %v8852 = vpop.f32.mrf.mxu0
    %v8853 = vadd.f32 %v8830, %v8852
    %8854 = vmatmul.bf16.gmra.mxu0 %v7933
    %v8855 = vpop.f32.mrf.mxu0
    %v8856 = vadd.f32 %v8833, %v8855
    %v8857 = vpop.f32.mrf.mxu0
    %v8858 = vadd.f32 %v8835, %v8857
    %8859 = vmatmul.bf16.gmra.mxu0 %v7946
    %v8860 = vpop.f32.mrf.mxu0
    %v8861 = vadd.f32 %v8838, %v8860
    %v8862 = vpop.f32.mrf.mxu0
    %8863 = vdwg.mxu0
    %8864 = vmatpush.bf16.msra.mxu0 %v8591
    %8865 = vmatpush.bf16.msra.mxu0 %v8590
    %8866 = vmatpush.bf16.msra.mxu0 %v8589
    %8867 = vmatpush.bf16.msra.mxu0 %v8588
    %8868 = vmatpush.bf16.msra.mxu0 %v8587
    %8869 = vmatpush.bf16.msra.mxu0 %v8586
    %8870 = vmatpush.bf16.msra.mxu0 %v8585
    %8871 = vmatpush.bf16.msra.mxu0 %v8584
    %8872 = vmatmul.bf16.gmra.mxu0 %v7921
    %v8873 = vpop.f32.mrf.mxu0
    %v8874 = vadd.f32 %v8851, %v8873
    %v8875 = vpop.f32.mrf.mxu0
    %v8876 = vadd.f32 %v8853, %v8875
    %8877 = vmatmul.bf16.gmra.mxu0 %v7934
    %v8878 = vpop.f32.mrf.mxu0
    %v8879 = vadd.f32 %v8856, %v8878
    %v8880 = vpop.f32.mrf.mxu0
    %v8881 = vadd.f32 %v8858, %v8880
    %8882 = vmatmul.bf16.gmra.mxu0 %v7947
    %v8883 = vpop.f32.mrf.mxu0
    %v8884 = vadd.f32 %v8861, %v8883
    %v8885 = vpop.f32.mrf.mxu0
    %8886 = vdwg.mxu0
    %8887 = vmatpush.bf16.msra.mxu0 %v8599
    %8888 = vmatpush.bf16.msra.mxu0 %v8598
    %8889 = vmatpush.bf16.msra.mxu0 %v8597
    %8890 = vmatpush.bf16.msra.mxu0 %v8596
    %8891 = vmatpush.bf16.msra.mxu0 %v8595
    %8892 = vmatpush.bf16.msra.mxu0 %v8594
    %8893 = vmatpush.bf16.msra.mxu0 %v8593
    %8894 = vmatpush.bf16.msra.mxu0 %v8592
    %8895 = vmatmul.bf16.gmra.mxu0 %v7922
    %v8896 = vpop.f32.mrf.mxu0
    %v8897 = vadd.f32 %v8874, %v8896
    %v8898 = vpop.f32.mrf.mxu0
    %v8899 = vadd.f32 %v8876, %v8898
    %8900 = vmatmul.bf16.gmra.mxu0 %v7935
    %v8901 = vpop.f32.mrf.mxu0
    %v8902 = vadd.f32 %v8879, %v8901
    %v8903 = vpop.f32.mrf.mxu0
    %v8904 = vadd.f32 %v8881, %v8903
    %8905 = vmatmul.bf16.gmra.mxu0 %v7948
    %v8906 = vpop.f32.mrf.mxu0
    %v8907 = vadd.f32 %v8884, %v8906
    %v8908 = vpop.f32.mrf.mxu0
    %8909 = vdwg.mxu0
    %8910 = vmatpush.bf16.msra.mxu0 %v8607
    %8911 = vmatpush.bf16.msra.mxu0 %v8606
    %8912 = vmatpush.bf16.msra.mxu0 %v8605
    %8913 = vmatpush.bf16.msra.mxu0 %v8604
    %8914 = vmatpush.bf16.msra.mxu0 %v8603
    %8915 = vmatpush.bf16.msra.mxu0 %v8602
    %8916 = vmatpush.bf16.msra.mxu0 %v8601
    %8917 = vmatpush.bf16.msra.mxu0 %v8600
    %8918 = vmatmul.bf16.gmra.mxu0 %v7923
    %v8919 = vpop.f32.mrf.mxu0
    %v8920 = vadd.f32 %v8897, %v8919
    %v8921 = vpop.f32.mrf.mxu0
    %v8922 = vadd.f32 %v8899, %v8921
    %8923 = vmatmul.bf16.gmra.mxu0 %v7936
    %v8924 = vpop.f32.mrf.mxu0
    %v8925 = vadd.f32 %v8902, %v8924
    %v8926 = vpop.f32.mrf.mxu0
    %v8927 = vadd.f32 %v8904, %v8926
    %8928 = vmatmul.bf16.gmra.mxu0 %v7949
    %v8929 = vpop.f32.mrf.mxu0
    %v8930 = vadd.f32 %v8907, %v8929
    %v8931 = vpop.f32.mrf.mxu0
    %8932 = vdwg.mxu0
    %8933 = vmatpush.bf16.msra.mxu0 %v8615
    %8934 = vmatpush.bf16.msra.mxu0 %v8614
    %8935 = vmatpush.bf16.msra.mxu0 %v8613
    %8936 = vmatpush.bf16.msra.mxu0 %v8612
    %8937 = vmatpush.bf16.msra.mxu0 %v8611
    %8938 = vmatpush.bf16.msra.mxu0 %v8610
    %8939 = vmatpush.bf16.msra.mxu0 %v8609
    %8940 = vmatpush.bf16.msra.mxu0 %v8608
    %8941 = vmatmul.bf16.gmra.mxu0 %v7924
    %v8942 = vpop.f32.mrf.mxu0
    %v8943 = vadd.f32 %v8920, %v8942
    %v8944 = vpop.f32.mrf.mxu0
    %v8945 = vadd.f32 %v8922, %v8944
    %8946 = vmatmul.bf16.gmra.mxu0 %v7937
    %v8947 = vpop.f32.mrf.mxu0
    %v8948 = vadd.f32 %v8925, %v8947
    %v8949 = vpop.f32.mrf.mxu0
    %v8950 = vadd.f32 %v8927, %v8949
    %8951 = vmatmul.bf16.gmra.mxu0 %v7950
    %v8952 = vpop.f32.mrf.mxu0
    %v8953 = vadd.f32 %v8930, %v8952
    %v8954 = vpop.f32.mrf.mxu0
    %8955 = vdwg.mxu0
    %8956 = vmatpush.bf16.msra.mxu0 %v8623
    %8957 = vmatpush.bf16.msra.mxu0 %v8622
    %8958 = vmatpush.bf16.msra.mxu0 %v8621
    %8959 = vmatpush.bf16.msra.mxu0 %v8620
    %8960 = vmatpush.bf16.msra.mxu0 %v8619
    %8961 = vmatpush.bf16.msra.mxu0 %v8618
    %8962 = vmatpush.bf16.msra.mxu0 %v8617
    %8963 = vmatpush.bf16.msra.mxu0 %v8616
    %8964 = vmatmul.bf16.gmra.mxu0 %v7925
    %v8965 = vpop.f32.mrf.mxu0
    %v8966 = vadd.f32 %v8943, %v8965
    %v8967 = vpop.f32.mrf.mxu0
    %v8968 = vadd.f32 %v8945, %v8967
    %8969 = vmatmul.bf16.gmra.mxu0 %v7938
    %v8970 = vpop.f32.mrf.mxu0
    %v8971 = vadd.f32 %v8948, %v8970
    %v8972 = vpop.f32.mrf.mxu0
    %v8973 = vadd.f32 %v8950, %v8972
    %8974 = vmatmul.bf16.gmra.mxu0 %v7951
    %v8975 = vpop.f32.mrf.mxu0
    %v8976 = vadd.f32 %v8953, %v8975
    %v8977 = vpop.f32.mrf.mxu0
    %8978 = vdwg.mxu0
    %8979 = vmatpush.bf16.msra.mxu0 %v8631
    %8980 = vmatpush.bf16.msra.mxu0 %v8630
    %8981 = vmatpush.bf16.msra.mxu0 %v8629
    %8982 = vmatpush.bf16.msra.mxu0 %v8628
    %8983 = vmatpush.bf16.msra.mxu0 %v8627
    %8984 = vmatpush.bf16.msra.mxu0 %v8626
    %8985 = vmatpush.bf16.msra.mxu0 %v8625
    %8986 = vmatpush.bf16.msra.mxu0 %v8624
    %8987 = vmatmul.bf16.gmra.mxu0 %v7926
    %v8988 = vpop.f32.mrf.mxu0
    %v8989 = vadd.f32 %v8966, %v8988
    %v8990 = vpop.f32.mrf.mxu0
    %v8991 = vadd.f32 %v8968, %v8990
    %8992 = vmatmul.bf16.gmra.mxu0 %v7939
    %v8993 = vpop.f32.mrf.mxu0
    %v8994 = vadd.f32 %v8971, %v8993
    %v8995 = vpop.f32.mrf.mxu0
    %v8996 = vadd.f32 %v8973, %v8995
    %8997 = vmatmul.bf16.gmra.mxu0 %v7952
    %v8998 = vpop.f32.mrf.mxu0
    %v8999 = vadd.f32 %v8976, %v8998
    %v9000 = vpop.f32.mrf.mxu0
    %9001 = vdwg.mxu0
    %9002 = vmatpush.bf16.msra.mxu0 %v8639
    %9003 = vmatpush.bf16.msra.mxu0 %v8638
    %9004 = vmatpush.bf16.msra.mxu0 %v8637
    %9005 = vmatpush.bf16.msra.mxu0 %v8636
    %9006 = vmatpush.bf16.msra.mxu0 %v8635
    %9007 = vmatpush.bf16.msra.mxu0 %v8634
    %9008 = vmatpush.bf16.msra.mxu0 %v8633
    %9009 = vmatpush.bf16.msra.mxu0 %v8632
    %9010 = vmatmul.bf16.gmra.mxu0 %v7927
    %v9011 = vpop.f32.mrf.mxu0
    %v9012 = vadd.f32 %v8989, %v9011
    %v9013 = vpop.f32.mrf.mxu0
    %v9014 = vadd.f32 %v8991, %v9013
    %9015 = vmatmul.bf16.gmra.mxu0 %v7940
    %v9016 = vpop.f32.mrf.mxu0
    %v9017 = vadd.f32 %v8994, %v9016
    %v9018 = vpop.f32.mrf.mxu0
    %v9019 = vadd.f32 %v8996, %v9018
    %9020 = vmatmul.bf16.gmra.mxu0 %v7953
    %v9021 = vpop.f32.mrf.mxu0
    %v9022 = vadd.f32 %v8999, %v9021
    %v9023 = vpop.f32.mrf.mxu0
    %9024 = vdwg.mxu0
    %9025 = vmatpush.bf16.msra.mxu0 0
    %9026 = vmatpush.bf16.msra.mxu0 0
    %9027 = vmatpush.bf16.msra.mxu0 0
    %9028 = vmatpush.bf16.msra.mxu0 0
    %9029 = vmatpush.bf16.msra.mxu0 0
    %9030 = vmatpush.bf16.msra.mxu0 0
    %9031 = vmatpush.bf16.msra.mxu0 %v8641
    %9032 = vmatpush.bf16.msra.mxu0 %v8640
    %9033 = vmatmul.bf16.gmra.mxu0 %v8741
    %v9034 = vpop.f32.mrf.mxu0
    %v9035 = vadd.f32 %v9012, %v9034
    %v9036 = vpop.f32.mrf.mxu0
    %v9037 = vadd.f32 %v9014, %v9036
    %9038 = vmatmul.bf16.gmra.mxu0 %v8744
    %v9039 = vpop.f32.mrf.mxu0
    %v9040 = vadd.f32 %v9017, %v9039
    %v9041 = vpop.f32.mrf.mxu0
    %v9042 = vadd.f32 %v9019, %v9041
    %9043 = vmatmul.bf16.gmra.mxu0 %v8747
    %v9044 = vpop.f32.mrf.mxu0
    %v9045 = vadd.f32 %v9022, %v9044
    %v9046 = vpop.f32.mrf.mxu0
    %9047 = vdwg.mxu0
    %v9048 = vmax.f32 %v9035, 0.0
    %v9049 = vmax.f32 %v9037, 0.0
    %v9050 = vmax.f32 %v9040, 0.0
    %v9051 = vmax.f32 %v9042, 0.0
    %v9052 = vmax.f32 %v9045, 0.0
    %v9053 = vpack.c.bf16 %v9049, %v9048
    %v9054 = vpack.c.bf16 %v9051, %v9050
    %v9055 = vpack.c.bf16 %v9052, %v9052
    %v9056 = vld [vmem:[%s4] sm:$0xf]
    %v9057 = vld [vmem:[%s4 + $0x4] sm:$0xf]
    %v9058 = vld [vmem:[%s4 + $0x8] sm:$0xf]
    %v9059 = vld [vmem:[%s4 + $0xc] sm:$0xf]
    %v9060 = vld [vmem:[%s4 + $0x10] sm:$0xf]
    %v9061 = vld [vmem:[%s4 + $0x14] sm:$0xf]
    %v9062 = vld [vmem:[%s4 + $0x18] sm:$0xf]
    %v9063 = vld [vmem:[%s4 + $0x1c] sm:$0xf]
    %v9064 = vld [vmem:[%s4 + $0x20] sm:$0xf]
    %v9065 = vld [vmem:[%s4 + $0x24] sm:$0xf]
    %v9076 = vunpack.c.l.b16 %v9056
    %v9077 = vunpack.c.l.b16 %v9057
    %v9078 = vunpack.c.l.b16 %v9058
    %v9079 = vunpack.c.l.b16 %v9059
    %v9080 = vunpack.c.l.b16 %v9060
    %v9081 = vunpack.c.l.b16 %v9061
    %v9082 = vunpack.c.l.b16 %v9062
    %v9083 = vunpack.c.l.b16 %v9063
    %v9084 = vunpack.c.l.b16 %v9064
    %v9085 = vunpack.c.l.b16 %v9065
    %v9086 = vpack.c.b16 %v9077, %v9076
    %v9087 = vpack.c.b16 %v9079, %v9078
    %v9088 = vpack.c.b16 %v9081, %v9080
    %v9089 = vpack.c.b16 %v9083, %v9082
    %v9090 = vpack.c.b16 %v9085, %v9084
    %vm9096 = vcmask 654336
    %v9098 = vsel %vm9096, %v9053, 0
    %v9101 = vsel %vm9096, %v9054, 0
    %v9104 = vsel %vm9096, %v9055, 0
    %9106 = vmatpush.bf16.msra.mxu0 0
    %9107 = vmatpush.bf16.msra.mxu0 0
    %9108 = vmatpush.bf16.msra.mxu0 0
    %9109 = vmatpush.bf16.msra.mxu0 %v9090
    %9110 = vmatpush.bf16.msra.mxu0 %v9089
    %9111 = vmatpush.bf16.msra.mxu0 %v9088
    %9112 = vmatpush.bf16.msra.mxu0 %v9087
    %9113 = vmatpush.bf16.msra.mxu0 %v9086
    %9114 = vmatmul.bf16.gmra.mxu0 %v9098
    %v9115 = vpop.f32.mrf.mxu0
    %v9116 = vadd.f32 0.0, %v9115
    %v9117 = vpop.f32.mrf.mxu0
    %v9118 = vadd.f32 0.0, %v9117
    %9119 = vmatmul.bf16.gmra.mxu0 %v9101
    %v9120 = vpop.f32.mrf.mxu0
    %v9121 = vadd.f32 0.0, %v9120
    %v9122 = vpop.f32.mrf.mxu0
    %v9123 = vadd.f32 0.0, %v9122
    %9124 = vmatmul.bf16.gmra.mxu0 %v9104
    %v9125 = vpop.f32.mrf.mxu0
    %v9126 = vadd.f32 0.0, %v9125
    %v9127 = vpop.f32.mrf.mxu0
    %9128 = vdwg.mxu0
    %v9129 = vperm.slane %v33, 0
    %v9130 = vmul.f32 %v9116, %v9129
    %v9131 = vmul.f32 %v9118, %v9129
    %v9132 = vmul.f32 %v9121, %v9129
    %v9133 = vmul.f32 %v9123, %v9129
    %v9134 = vmul.f32 %v9126, %v9129
    %vm9135 = vcmask 326656
    %v9136 = vsel %vm9135, %v9130, 0.0
    %9137 = vadd.xlane.f32.xlu0 %v9136
    %v9138 = vpop.xlane.xlu0 %9137
    %v9139 = vsel %vm9135, %v9131, 0.0
    %9140 = vadd.xlane.f32.xlu0 %v9139
    %v9141 = vpop.xlane.xlu0 %9140
    %v9142 = vsel %vm9135, %v9132, 0.0
    %9143 = vadd.xlane.f32.xlu0 %v9142
    %v9144 = vpop.xlane.xlu0 %9143
    %v9145 = vsel %vm9135, %v9133, 0.0
    %9146 = vadd.xlane.f32.xlu0 %v9145
    %v9147 = vpop.xlane.xlu0 %9146
    %v9148 = vsel %vm9135, %v9134, 0.0
    %9149 = vadd.xlane.f32.xlu0 %v9148
    %v9150 = vpop.xlane.xlu0 %9149
    %v9152 = vsel %vm9135, %v32, 0
    %v9155 = vsel %vm9135, %v9116, 0
    %v9158 = vsel %vm9135, %v9118, 0
    %v9161 = vsel %vm9135, %v9121, 0
    %v9164 = vsel %vm9135, %v9123, 0
    %v9167 = vsel %vm9135, %v9126, 0
    %9169 = vmatpush.xpose.msra.mxu0 0.0
    %9170 = vmatpush.xpose.msra.mxu0 0.0
    %9171 = vmatpush.xpose.msra.mxu0 0.0
    %9172 = vmatpush.xpose.msra.mxu0 0.0
    %9173 = vmatpush.xpose.msra.mxu0 0.0
    %9174 = vmatpush.xpose.msra.mxu0 0.0
    %9175 = vmatpush.xpose.msra.mxu0 0.0
    %9176 = vmatpush.xpose.msra.mxu0 0.0
    %9177 = vmatpush.xpose.msra.mxu0 0.0
    %9178 = vmatpush.xpose.msra.mxu0 0.0
    %9179 = vmatpush.xpose.msra.mxu0 0.0
    %9180 = vmatpush.xpose.msra.mxu0 %v9167
    %9181 = vmatpush.xpose.msra.mxu0 %v9164
    %9182 = vmatpush.xpose.msra.mxu0 %v9161
    %9183 = vmatpush.xpose.msra.mxu0 %v9158
    %9184 = vmatpush.xpose.msra.mxu0 %v9155
    %9185 = vmatmul.f32.gmra.mxu0 %v9152
    %v9186 = vpop.f32.mrf.mxu0
    %v9187 = vadd.f32 0.0, %v9186
    %9188 = vdwg.mxu0
    %v9189 = vperm.slane %v9187, 0
    %9191 = vrot.lane.b32.xlu0 %v9189, 120
    %v9192 = vpop.permute.xlu0 %9191
    %9194 = vrot.lane.b32.xlu0 %v9189, 112
    %v9195 = vpop.permute.xlu0 %9194
    %9197 = vrot.lane.b32.xlu0 %v9189, 104
    %v9198 = vpop.permute.xlu0 %9197
    %9200 = vrot.lane.b32.xlu0 %v9189, 96
    %v9201 = vpop.permute.xlu0 %9200
    %v9203 = vld [vmem:[%s6] sm:$0xff]
    %vm9204 = vcmp.gt.f32.partialorder %v9203, 0.0
    %v9205 = vsel %vm9204, 0.0, -1e+30
    %v9206 = vadd.f32 %v9138, %v9189
    %v9207 = vadd.f32 %v9141, %v9192
    %v9208 = vadd.f32 %v9144, %v9195
    %v9209 = vadd.f32 %v9147, %v9198
    %v9210 = vadd.f32 %v9150, %v9201
    %vm9211 = vcmp.gt.f32.partialorder %v9206, 0.0
    %vm9212 = vcmp.gt.f32.partialorder %v9207, 0.0
    %vm9213 = vcmp.gt.f32.partialorder %v9208, 0.0
    %vm9214 = vcmp.gt.f32.partialorder %v9209, 0.0
    %vm9215 = vcmp.gt.f32.partialorder %v9210, 0.0
    %v9216 = vmul.f32 %v9206, 0.2
    %v9217 = vmul.f32 %v9207, 0.2
    %v9218 = vmul.f32 %v9208, 0.2
    %v9219 = vmul.f32 %v9209, 0.2
    %v9220 = vmul.f32 %v9210, 0.2
    %v9221 = vsel %vm9211, %v9206, %v9216
    %v9222 = vsel %vm9212, %v9207, %v9217
    %v9223 = vsel %vm9213, %v9208, %v9218
    %v9224 = vsel %vm9214, %v9209, %v9219
    %v9225 = vsel %vm9215, %v9210, %v9220
    %v9226 = vadd.f32 %v9221, %v9205
    %v9227 = vadd.f32 %v9222, %v9205
    %v9228 = vadd.f32 %v9223, %v9205
    %v9229 = vadd.f32 %v9224, %v9205
    %v9230 = vadd.f32 %v9225, %v9205
    %v9231 = vsel %vm107, %v9226, -inf
    %9232 = vmax.xlane.f32.xlu0 %v9231
    %v9233 = vpop.xlane.xlu0 %9232
    %v9234 = vsel %vm107, %v9227, -inf
    %9235 = vmax.xlane.f32.xlu0 %v9234
    %v9236 = vpop.xlane.xlu0 %9235
    %v9237 = vsel %vm107, %v9228, -inf
    %9238 = vmax.xlane.f32.xlu0 %v9237
    %v9239 = vpop.xlane.xlu0 %9238
    %v9240 = vsel %vm107, %v9229, -inf
    %9241 = vmax.xlane.f32.xlu0 %v9240
    %v9242 = vpop.xlane.xlu0 %9241
    %v9243 = vsel %vm107, %v9230, -inf
    %9244 = vmax.xlane.f32.xlu0 %v9243
    %v9245 = vpop.xlane.xlu0 %9244
    %v9246 = vsub.f32 %v9226, %v9233
    %v9247 = vsub.f32 %v9227, %v9236
    %v9248 = vsub.f32 %v9228, %v9239
    %v9249 = vsub.f32 %v9229, %v9242
    %v9250 = vsub.f32 %v9230, %v9245
    %v9251 = vmul.f32 %v9246, 1.442695
    %v9252 = vpow.pop %v9251
    %v9253 = vmul.f32 %v9247, 1.442695
    %v9254 = vpow.pop %v9253
    %v9255 = vmul.f32 %v9248, 1.442695
    %v9256 = vpow.pop %v9255
    %v9257 = vmul.f32 %v9249, 1.442695
    %v9258 = vpow.pop %v9257
    %v9259 = vmul.f32 %v9250, 1.442695
    %v9260 = vpow.pop %v9259
    %v9261 = vsel %vm107, %v9252, 0.0
    %9262 = vadd.xlane.f32.xlu0 %v9261
    %v9263 = vpop.xlane.xlu0 %9262
    %v9264 = vsel %vm107, %v9254, 0.0
    %9265 = vadd.xlane.f32.xlu0 %v9264
    %v9266 = vpop.xlane.xlu0 %9265
    %v9267 = vsel %vm107, %v9256, 0.0
    %9268 = vadd.xlane.f32.xlu0 %v9267
    %v9269 = vpop.xlane.xlu0 %9268
    %v9270 = vsel %vm107, %v9258, 0.0
    %9271 = vadd.xlane.f32.xlu0 %v9270
    %v9272 = vpop.xlane.xlu0 %9271
    %v9273 = vsel %vm107, %v9260, 0.0
    %9274 = vadd.xlane.f32.xlu0 %v9273
    %v9275 = vpop.xlane.xlu0 %9274
    %v9276 = vmax.f32 %v9263, 1e-20
    %v9277 = vmax.f32 %v9266, 1e-20
    %v9278 = vmax.f32 %v9269, 1e-20
    %v9279 = vmax.f32 %v9272, 1e-20
    %v9280 = vmax.f32 %v9275, 1e-20
    %v9281 = vrcp.pop %v9276
    %v9282 = vrcp.pop %v9277
    %v9283 = vrcp.pop %v9278
    %v9284 = vrcp.pop %v9279
    %v9285 = vrcp.pop %v9280
    %v9286 = vmul.f32 %v9252, %v9281
    %v9287 = vmul.f32 %v9254, %v9282
    %v9288 = vmul.f32 %v9256, %v9283
    %v9289 = vmul.f32 %v9258, %v9284
    %v9290 = vmul.f32 %v9260, %v9285
    %v9291 = vperm.slane %v9116, 0
    %v9292 = vperm.slane %v9118, 0
    %v9293 = vperm.slane %v9121, 0
    %v9294 = vperm.slane %v9123, 0
    %v9295 = vperm.slane %v9126, 0
    %9297 = vset.pattern.permute.xlu0 0
    %9298 = vperm.xlu0 %9297, %v9286
    %v9299 = vpop.permute.xlu0 %9298
    %9302 = vset.pattern.permute.xlu0 0
    %9303 = vperm.xlu0 %9302, %v9287
    %v9304 = vpop.permute.xlu0 %9303
    %9307 = vset.pattern.permute.xlu0 0
    %9308 = vperm.xlu0 %9307, %v9288
    %v9309 = vpop.permute.xlu0 %9308
    %9312 = vset.pattern.permute.xlu0 0
    %9313 = vperm.xlu0 %9312, %v9289
    %v9314 = vpop.permute.xlu0 %9313
    %9317 = vset.pattern.permute.xlu0 0
    %9318 = vperm.xlu0 %9317, %v9290
    %v9319 = vpop.permute.xlu0 %9318
    %v9321 = vmul.f32 %v9299, %v9291
    %v9322 = vmul.f32 %v9304, %v9292
    %v9323 = vmul.f32 %v9309, %v9293
    %v9324 = vmul.f32 %v9314, %v9294
    %v9325 = vmul.f32 %v9319, %v9295
    %9327 = vset.pattern.permute.xlu0 0
    %9328 = vperm.xlu0 %9327, %v9205
    %v9329 = vpop.permute.xlu0 %9328
    %v9331 = vadd.f32 %v9321, %v9329
    %v9332 = vadd.f32 %v9322, %v9329
    %v9333 = vadd.f32 %v9323, %v9329
    %v9334 = vadd.f32 %v9324, %v9329
    %v9335 = vadd.f32 %v9325, %v9329
    %v9336 = vmax.f32 %v9331, -1e+30
    %v9337 = vmax.f32 %v9332, -1e+30
    %v9338 = vmax.f32 %v9333, -1e+30
    %v9339 = vmax.f32 %v9334, -1e+30
    %v9340 = vmax.f32 %v9335, -1e+30
    %v9341 = vperm.slane %v9116, 1
    %v9342 = vperm.slane %v9118, 1
    %v9343 = vperm.slane %v9121, 1
    %v9344 = vperm.slane %v9123, 1
    %v9345 = vperm.slane %v9126, 1
    %9346 = vset.pattern.permute.xlu0 1
    %9347 = vperm.xlu0 %9346, %v9286
    %v9348 = vpop.permute.xlu0 %9347
    %9350 = vset.pattern.permute.xlu0 1
    %9351 = vperm.xlu0 %9350, %v9287
    %v9352 = vpop.permute.xlu0 %9351
    %9354 = vset.pattern.permute.xlu0 1
    %9355 = vperm.xlu0 %9354, %v9288
    %v9356 = vpop.permute.xlu0 %9355
    %9358 = vset.pattern.permute.xlu0 1
    %9359 = vperm.xlu0 %9358, %v9289
    %v9360 = vpop.permute.xlu0 %9359
    %9362 = vset.pattern.permute.xlu0 1
    %9363 = vperm.xlu0 %9362, %v9290
    %v9364 = vpop.permute.xlu0 %9363
    %v9366 = vmul.f32 %v9348, %v9341
    %v9367 = vmul.f32 %v9352, %v9342
    %v9368 = vmul.f32 %v9356, %v9343
    %v9369 = vmul.f32 %v9360, %v9344
    %v9370 = vmul.f32 %v9364, %v9345
    %9371 = vset.pattern.permute.xlu0 1
    %9372 = vperm.xlu0 %9371, %v9205
    %v9373 = vpop.permute.xlu0 %9372
    %v9375 = vadd.f32 %v9366, %v9373
    %v9376 = vadd.f32 %v9367, %v9373
    %v9377 = vadd.f32 %v9368, %v9373
    %v9378 = vadd.f32 %v9369, %v9373
    %v9379 = vadd.f32 %v9370, %v9373
    %v9380 = vmax.f32 %v9336, %v9375
    %v9381 = vmax.f32 %v9337, %v9376
    %v9382 = vmax.f32 %v9338, %v9377
    %v9383 = vmax.f32 %v9339, %v9378
    %v9384 = vmax.f32 %v9340, %v9379
    %v9385 = vperm.slane %v9116, 2
    %v9386 = vperm.slane %v9118, 2
    %v9387 = vperm.slane %v9121, 2
    %v9388 = vperm.slane %v9123, 2
    %v9389 = vperm.slane %v9126, 2
    %9390 = vset.pattern.permute.xlu0 2
    %9391 = vperm.xlu0 %9390, %v9286
    %v9392 = vpop.permute.xlu0 %9391
    %9394 = vset.pattern.permute.xlu0 2
    %9395 = vperm.xlu0 %9394, %v9287
    %v9396 = vpop.permute.xlu0 %9395
    %9398 = vset.pattern.permute.xlu0 2
    %9399 = vperm.xlu0 %9398, %v9288
    %v9400 = vpop.permute.xlu0 %9399
    %9402 = vset.pattern.permute.xlu0 2
    %9403 = vperm.xlu0 %9402, %v9289
    %v9404 = vpop.permute.xlu0 %9403
    %9406 = vset.pattern.permute.xlu0 2
    %9407 = vperm.xlu0 %9406, %v9290
    %v9408 = vpop.permute.xlu0 %9407
    %v9410 = vmul.f32 %v9392, %v9385
    %v9411 = vmul.f32 %v9396, %v9386
    %v9412 = vmul.f32 %v9400, %v9387
    %v9413 = vmul.f32 %v9404, %v9388
    %v9414 = vmul.f32 %v9408, %v9389
    %9415 = vset.pattern.permute.xlu0 2
    %9416 = vperm.xlu0 %9415, %v9205
    %v9417 = vpop.permute.xlu0 %9416
    %v9419 = vadd.f32 %v9410, %v9417
    %v9420 = vadd.f32 %v9411, %v9417
    %v9421 = vadd.f32 %v9412, %v9417
    %v9422 = vadd.f32 %v9413, %v9417
    %v9423 = vadd.f32 %v9414, %v9417
    %v9424 = vmax.f32 %v9380, %v9419
    %v9425 = vmax.f32 %v9381, %v9420
    %v9426 = vmax.f32 %v9382, %v9421
    %v9427 = vmax.f32 %v9383, %v9422
    %v9428 = vmax.f32 %v9384, %v9423
    %v9429 = vperm.slane %v9116, 3
    %v9430 = vperm.slane %v9118, 3
    %v9431 = vperm.slane %v9121, 3
    %v9432 = vperm.slane %v9123, 3
    %v9433 = vperm.slane %v9126, 3
    %9434 = vset.pattern.permute.xlu0 3
    %9435 = vperm.xlu0 %9434, %v9286
    %v9436 = vpop.permute.xlu0 %9435
    %9438 = vset.pattern.permute.xlu0 3
    %9439 = vperm.xlu0 %9438, %v9287
    %v9440 = vpop.permute.xlu0 %9439
    %9442 = vset.pattern.permute.xlu0 3
    %9443 = vperm.xlu0 %9442, %v9288
    %v9444 = vpop.permute.xlu0 %9443
    %9446 = vset.pattern.permute.xlu0 3
    %9447 = vperm.xlu0 %9446, %v9289
    %v9448 = vpop.permute.xlu0 %9447
    %9450 = vset.pattern.permute.xlu0 3
    %9451 = vperm.xlu0 %9450, %v9290
    %v9452 = vpop.permute.xlu0 %9451
    %v9454 = vmul.f32 %v9436, %v9429
    %v9455 = vmul.f32 %v9440, %v9430
    %v9456 = vmul.f32 %v9444, %v9431
    %v9457 = vmul.f32 %v9448, %v9432
    %v9458 = vmul.f32 %v9452, %v9433
    %9459 = vset.pattern.permute.xlu0 3
    %9460 = vperm.xlu0 %9459, %v9205
    %v9461 = vpop.permute.xlu0 %9460
    %v9463 = vadd.f32 %v9454, %v9461
    %v9464 = vadd.f32 %v9455, %v9461
    %v9465 = vadd.f32 %v9456, %v9461
    %v9466 = vadd.f32 %v9457, %v9461
    %v9467 = vadd.f32 %v9458, %v9461
    %v9468 = vmax.f32 %v9424, %v9463
    %v9469 = vmax.f32 %v9425, %v9464
    %v9470 = vmax.f32 %v9426, %v9465
    %v9471 = vmax.f32 %v9427, %v9466
    %v9472 = vmax.f32 %v9428, %v9467
    %v9473 = vperm.slane %v9116, 4
    %v9474 = vperm.slane %v9118, 4
    %v9475 = vperm.slane %v9121, 4
    %v9476 = vperm.slane %v9123, 4
    %v9477 = vperm.slane %v9126, 4
    %9478 = vset.pattern.permute.xlu0 4
    %9479 = vperm.xlu0 %9478, %v9286
    %v9480 = vpop.permute.xlu0 %9479
    %9482 = vset.pattern.permute.xlu0 4
    %9483 = vperm.xlu0 %9482, %v9287
    %v9484 = vpop.permute.xlu0 %9483
    %9486 = vset.pattern.permute.xlu0 4
    %9487 = vperm.xlu0 %9486, %v9288
    %v9488 = vpop.permute.xlu0 %9487
    %9490 = vset.pattern.permute.xlu0 4
    %9491 = vperm.xlu0 %9490, %v9289
    %v9492 = vpop.permute.xlu0 %9491
    %9494 = vset.pattern.permute.xlu0 4
    %9495 = vperm.xlu0 %9494, %v9290
    %v9496 = vpop.permute.xlu0 %9495
    %v9498 = vmul.f32 %v9480, %v9473
    %v9499 = vmul.f32 %v9484, %v9474
    %v9500 = vmul.f32 %v9488, %v9475
    %v9501 = vmul.f32 %v9492, %v9476
    %v9502 = vmul.f32 %v9496, %v9477
    %9503 = vset.pattern.permute.xlu0 4
    %9504 = vperm.xlu0 %9503, %v9205
    %v9505 = vpop.permute.xlu0 %9504
    %v9507 = vadd.f32 %v9498, %v9505
    %v9508 = vadd.f32 %v9499, %v9505
    %v9509 = vadd.f32 %v9500, %v9505
    %v9510 = vadd.f32 %v9501, %v9505
    %v9511 = vadd.f32 %v9502, %v9505
    %v9512 = vmax.f32 %v9468, %v9507
    %v9513 = vmax.f32 %v9469, %v9508
    %v9514 = vmax.f32 %v9470, %v9509
    %v9515 = vmax.f32 %v9471, %v9510
    %v9516 = vmax.f32 %v9472, %v9511
    %v9517 = vperm.slane %v9116, 5
    %v9518 = vperm.slane %v9118, 5
    %v9519 = vperm.slane %v9121, 5
    %v9520 = vperm.slane %v9123, 5
    %v9521 = vperm.slane %v9126, 5
    %9522 = vset.pattern.permute.xlu0 5
    %9523 = vperm.xlu0 %9522, %v9286
    %v9524 = vpop.permute.xlu0 %9523
    %9526 = vset.pattern.permute.xlu0 5
    %9527 = vperm.xlu0 %9526, %v9287
    %v9528 = vpop.permute.xlu0 %9527
    %9530 = vset.pattern.permute.xlu0 5
    %9531 = vperm.xlu0 %9530, %v9288
    %v9532 = vpop.permute.xlu0 %9531
    %9534 = vset.pattern.permute.xlu0 5
    %9535 = vperm.xlu0 %9534, %v9289
    %v9536 = vpop.permute.xlu0 %9535
    %9538 = vset.pattern.permute.xlu0 5
    %9539 = vperm.xlu0 %9538, %v9290
    %v9540 = vpop.permute.xlu0 %9539
    %v9542 = vmul.f32 %v9524, %v9517
    %v9543 = vmul.f32 %v9528, %v9518
    %v9544 = vmul.f32 %v9532, %v9519
    %v9545 = vmul.f32 %v9536, %v9520
    %v9546 = vmul.f32 %v9540, %v9521
    %9547 = vset.pattern.permute.xlu0 5
    %9548 = vperm.xlu0 %9547, %v9205
    %v9549 = vpop.permute.xlu0 %9548
    %v9551 = vadd.f32 %v9542, %v9549
    %v9552 = vadd.f32 %v9543, %v9549
    %v9553 = vadd.f32 %v9544, %v9549
    %v9554 = vadd.f32 %v9545, %v9549
    %v9555 = vadd.f32 %v9546, %v9549
    %v9556 = vmax.f32 %v9512, %v9551
    %v9557 = vmax.f32 %v9513, %v9552
    %v9558 = vmax.f32 %v9514, %v9553
    %v9559 = vmax.f32 %v9515, %v9554
    %v9560 = vmax.f32 %v9516, %v9555
    %v9561 = vperm.slane %v9116, 6
    %v9562 = vperm.slane %v9118, 6
    %v9563 = vperm.slane %v9121, 6
    %v9564 = vperm.slane %v9123, 6
    %v9565 = vperm.slane %v9126, 6
    %9566 = vset.pattern.permute.xlu0 6
    %9567 = vperm.xlu0 %9566, %v9286
    %v9568 = vpop.permute.xlu0 %9567
    %9570 = vset.pattern.permute.xlu0 6
    %9571 = vperm.xlu0 %9570, %v9287
    %v9572 = vpop.permute.xlu0 %9571
    %9574 = vset.pattern.permute.xlu0 6
    %9575 = vperm.xlu0 %9574, %v9288
    %v9576 = vpop.permute.xlu0 %9575
    %9578 = vset.pattern.permute.xlu0 6
    %9579 = vperm.xlu0 %9578, %v9289
    %v9580 = vpop.permute.xlu0 %9579
    %9582 = vset.pattern.permute.xlu0 6
    %9583 = vperm.xlu0 %9582, %v9290
    %v9584 = vpop.permute.xlu0 %9583
    %v9586 = vmul.f32 %v9568, %v9561
    %v9587 = vmul.f32 %v9572, %v9562
    %v9588 = vmul.f32 %v9576, %v9563
    %v9589 = vmul.f32 %v9580, %v9564
    %v9590 = vmul.f32 %v9584, %v9565
    %9591 = vset.pattern.permute.xlu0 6
    %9592 = vperm.xlu0 %9591, %v9205
    %v9593 = vpop.permute.xlu0 %9592
    %v9595 = vadd.f32 %v9586, %v9593
    %v9596 = vadd.f32 %v9587, %v9593
    %v9597 = vadd.f32 %v9588, %v9593
    %v9598 = vadd.f32 %v9589, %v9593
    %v9599 = vadd.f32 %v9590, %v9593
    %v9600 = vmax.f32 %v9556, %v9595
    %v9601 = vmax.f32 %v9557, %v9596
    %v9602 = vmax.f32 %v9558, %v9597
    %v9603 = vmax.f32 %v9559, %v9598
    %v9604 = vmax.f32 %v9560, %v9599
    %v9605 = vperm.slane %v9116, 7
    %v9606 = vperm.slane %v9118, 7
    %v9607 = vperm.slane %v9121, 7
    %v9608 = vperm.slane %v9123, 7
    %v9609 = vperm.slane %v9126, 7
    %9610 = vset.pattern.permute.xlu0 7
    %9611 = vperm.xlu0 %9610, %v9286
    %v9612 = vpop.permute.xlu0 %9611
    %9614 = vset.pattern.permute.xlu0 7
    %9615 = vperm.xlu0 %9614, %v9287
    %v9616 = vpop.permute.xlu0 %9615
    %9618 = vset.pattern.permute.xlu0 7
    %9619 = vperm.xlu0 %9618, %v9288
    %v9620 = vpop.permute.xlu0 %9619
    %9622 = vset.pattern.permute.xlu0 7
    %9623 = vperm.xlu0 %9622, %v9289
    %v9624 = vpop.permute.xlu0 %9623
    %9626 = vset.pattern.permute.xlu0 7
    %9627 = vperm.xlu0 %9626, %v9290
    %v9628 = vpop.permute.xlu0 %9627
    %v9630 = vmul.f32 %v9612, %v9605
    %v9631 = vmul.f32 %v9616, %v9606
    %v9632 = vmul.f32 %v9620, %v9607
    %v9633 = vmul.f32 %v9624, %v9608
    %v9634 = vmul.f32 %v9628, %v9609
    %9635 = vset.pattern.permute.xlu0 7
    %9636 = vperm.xlu0 %9635, %v9205
    %v9637 = vpop.permute.xlu0 %9636
    %v9639 = vadd.f32 %v9630, %v9637
    %v9640 = vadd.f32 %v9631, %v9637
    %v9641 = vadd.f32 %v9632, %v9637
    %v9642 = vadd.f32 %v9633, %v9637
    %v9643 = vadd.f32 %v9634, %v9637
    %v9644 = vmax.f32 %v9600, %v9639
    %v9645 = vmax.f32 %v9601, %v9640
    %v9646 = vmax.f32 %v9602, %v9641
    %v9647 = vmax.f32 %v9603, %v9642
    %v9648 = vmax.f32 %v9604, %v9643
    %v9649 = vperm.slane %v31, 0
    %v9650 = vadd.f32 %v9644, %v9649
    %v9651 = vadd.f32 %v9645, %v9649
    %v9652 = vadd.f32 %v9646, %v9649
    %v9653 = vadd.f32 %v9647, %v9649
    %v9654 = vadd.f32 %v9648, %v9649
    %v9655 = vmax.f32 %v9650, 0.0
    %v9656 = vmax.f32 %v9651, 0.0
    %v9657 = vmax.f32 %v9652, 0.0
    %v9658 = vmax.f32 %v9653, 0.0
    %v9659 = vmax.f32 %v9654, 0.0
    %9660 = vst.msk [vmem:[#allocation4] sm:$0xff] %vm9135, %v9655
    %9661 = vst.msk [vmem:[#allocation4 + $0x8] sm:$0xff] %vm9135, %v9656
    %9662 = vst.msk [vmem:[#allocation4 + $0x10] sm:$0xff] %vm9135, %v9657
    %9663 = vst.msk [vmem:[#allocation4 + $0x18] sm:$0xff] %vm9135, %v9658
    %9664 = vst.msk [vmem:[#allocation4 + $0x20] sm:$0xff] %vm9135, %v9659
    // Predicated region
    $region30: #{cnn_gnn_forward.1} parent=1 // pred_check
      _
    $region31: #{cnn_gnn_forward.1} parent=1 // pred_check_branch
      %9666 = sbr.rel (0) target = $region33
    $region32: #{cnn_gnn_forward.1} parent=1 // pred_region
      %9668 = vsyncadd [#allocation5], 0
      %s9669 = sshll.u32 [#allocation4], 4
      %s9670 = int_to_ptr.vmem [resolvable:$true] %s9669
      %s9671 = sshll.u32 %s7, 4
      %s9672 = int_to_ptr.hbm [resolvable:$true] %s9671
      %9677 = dma.vmem_to_hbm [thread:$0]  %s9670, 640, %s9672, [#allocation5], 128, 128, 8
    $region33: #{cnn_gnn_forward.1} parent=1 // pred_fallthru
      _
    // Predicated region
    $region34: #{cnn_gnn_forward.1} parent=1 // pred_check
      _
    $region35: #{cnn_gnn_forward.1} parent=1 // pred_check_branch
      %9679 = sbr.rel (0) target = $region37
    $region36: #{cnn_gnn_forward.1} parent=1 // pred_region
      %9681 = dma.done [#allocation5], 640
    $region37: #{cnn_gnn_forward.1} parent=1 // pred_fallthru
      _
    %9682 = vsyncpa [#allocation5], 1

</llo_original>
